<compile_context>
chip_gen: v7x
topology: tpu7x:2x2x1
jax: 0.10.0
libtpu: 0.0.40
codegen_flags: <defaults>
</compile_context>

<pallas_src>
import functools

import jax
import jax.numpy as jnp
import numpy as np
from jax.experimental import pallas as pl
from jax.experimental.pallas import tpu as pltpu

LANE = 128


def _state_frame(hid_dim):
    # 128-lane frame holding [h_fwd(H) | h_bwd(H) | zeros].
    return LANE * ((2 * hid_dim + LANE - 1) // LANE)


# -----------------------------------------------------------------------------
# Pallas kernel
# -----------------------------------------------------------------------------
def _recon_kernel(n_layers, W, frame, n_chains, cdt, x_ref, *rest):
    """Fused bidirectional multi-layer LSTM + final Linear.

    rest = [Q1_l, Q2_l, R_l, bias_l]*n_layers + [Fblock, fc_b]   (inputs)
           + [out_ref]                                           (output)
           + [xsum_ref, hs_ref, hsbm_ref]                        (VMEM scratch)
    """
    nw = 4 * n_layers + 2
    w_refs = rest[:nw]
    out_ref = rest[nw]
    xsum_ref, hs_ref, hsbm_ref = rest[nw + 1:nw + 4]

    sub = xsum_ref.shape[2]          # rows per independent sub-chain
    bt = n_chains * sub              # batch tile
    g4 = 4 * frame                   # gate-aligned frame width (i|f|o|g blocks)

    for l in range(n_layers):
        q1 = w_refs[4 * l][...]
        q2 = w_refs[4 * l + 1][...]
        rmat = w_refs[4 * l + 2][...]
        bias = w_refs[4 * l + 3][...]            # (1, g4) f32
        last = l == n_layers - 1

        # ---- whole-window input projections, pre-summed into the xsum scratch ----
        # xsum[k] feeds fused step k: the fwd direction at time k uses proj_a window k and
        # the bwd direction at time W-1-k uses proj_c window W-1-k -- that is how the time
        # reversal is realised (no flips, no sub-128-lane slicing anywhere in the loop).
        if l == 0:
            # repeat_interleave is folded into q1/q2 at pack time: project the raw
            # (bt, in_dim) tile once per side for ALL W windows.
            xb = x_ref[...].astype(cdt)                                   # (bt, in_dim)
            pa = jnp.dot(xb, q1, preferred_element_type=jnp.float32)      # (bt, W*g4)
            pc = jnp.dot(xb, q2, preferred_element_type=jnp.float32)
            for k in range(W):
                xs = (pa[:, k * g4:(k + 1) * g4]
                      + pc[:, (W - 1 - k) * g4:(W - k) * g4] + bias)
                xsum_ref[k] = xs.reshape(n_chains, sub, g4)
        else:
            inp = hs_ref[...].reshape(W * bt, frame)                      # already cdt
            pa = jnp.dot(inp, q1, preferred_element_type=jnp.float32)
            pc = jnp.dot(inp, q2, preferred_element_type=jnp.float32)
            pa = pa.reshape(W, n_chains, sub, g4)
            pc = pc.reshape(W, n_chains, sub, g4)
            for k in range(W):
                xsum_ref[k] = pa[k] + pc[W - 1 - k] + bias

        # ---- fused fwd+bwd recurrence; independent sub-chains interleaved per step ----
        h = [jnp.zeros((sub, frame), jnp.float32) for _ in range(n_chains)]
        c = [jnp.zeros((sub, frame), jnp.float32) for _ in range(n_chains)]
        for k in range(W):
            for s in range(n_chains):
                gates = xsum_ref[k, s] + jnp.dot(
                    h[s].astype(cdt), rmat, preferred_element_type=jnp.float32)
                sig = jax.nn.sigmoid(gates[:, :3 * frame])       # i | f | o blocks
                g_act = jnp.tanh(gates[:, 3 * frame:])           # g block
                c[s] = sig[:, frame:2 * frame] * c[s] + sig[:, :frame] * g_act
                h[s] = sig[:, 2 * frame:3 * frame] * jnp.tanh(c[s])
                if last:
                    # Batch-major, 128-aligned lane offset: feeds the single fc matmul.
                    hsbm_ref[s, :, k * frame:(k + 1) * frame] = h[s].astype(cdt)
                else:
                    hs_ref[k, s] = h[s].astype(cdt)               # full-lane store
        # TODO(synk): inter-layer dropout exists only in training mode; eval semantics here.

    # ---- final Linear: one block-structured matmul, lane-dense (bt, W*out_dim) output ----
    fblk = w_refs[4 * n_layers][...]            # (W*frame, W*out_dim) cdt
    fcb = w_refs[4 * n_layers + 1][...]         # (1, W*out_dim) f32
    hbm = hsbm_ref[...].reshape(bt, W * frame)
    out = jnp.dot(hbm, fblk, preferred_element_type=jnp.float32) + fcb
    out_ref[...] = out.astype(out_ref.dtype)


# -----------------------------------------------------------------------------
# Wrapper
# -----------------------------------------------------------------------------
def reconstruction_model_forward(x, packed, *, window_size, in_dim, hid_dim,
                                 out_dim, n_layers, batch_tile=None):
    B = x.shape[0]
    W = window_size
    frame = _state_frame(hid_dim)
    g4 = 4 * frame
    cdt = packed[0].dtype                      # MXU operand dtype (bf16 by default)

    if batch_tile is None:
        bt = B if (B <= 128 or B % 128 != 0) else 128
    else:
        bt = batch_tile
    assert B % bt == 0 and (bt == B or bt % 8 == 0), \
        "batch_tile must divide B and be a multiple of 8"
    grid = (B // bt,)
    n_chains = 2 if (bt % 16 == 0) else 1      # interleaved independent recurrence chains
    sub = bt // n_chains

    in_specs = [pl.BlockSpec((bt, in_dim), lambda i: (i, 0))]
    in_specs += [pl.BlockSpec(w.shape, lambda i: (0, 0)) for w in packed]  # all 2-D, resident
    # Lane-dense output (W*out_dim == 128 here -> unmasked vst); wrapper reshapes.
    out_spec = pl.BlockSpec((bt, W * out_dim), lambda i: (i, 0))

    dt_bytes = packed[0].dtype.itemsize
    scratch_bytes = (W * bt * g4 * 4) + 2 * (W * bt * frame * dt_bytes)
    weight_bytes = sum(int(w.size) * w.dtype.itemsize for w in packed)
    vmem_limit = int(max(32 << 20,
                         min(60 << 20, 4 * scratch_bytes + 3 * weight_bytes + (8 << 20))))

    kernel = functools.partial(_recon_kernel, n_layers, W, frame, n_chains, cdt)
    out = pl.pallas_call(
        kernel,
        out_shape=jax.ShapeDtypeStruct((B, W * out_dim), jnp.float32),
        grid=grid,
        in_specs=in_specs,
        out_specs=out_spec,
        scratch_shapes=[
            pltpu.VMEM((W, n_chains, sub, g4), jnp.float32),   # pre-summed per-step inputs
            pltpu.VMEM((W, n_chains, sub, frame), cdt),        # hidden sequence (time-major)
            pltpu.VMEM((n_chains, sub, W * frame), cdt),       # last-layer hidden (batch-major)
        ],
        compiler_params=pltpu.CompilerParams(
            dimension_semantics=("parallel",),
            vmem_limit_bytes=vmem_limit),
    )(x, *packed)
    return out.reshape(B, W, out_dim)


# -----------------------------------------------------------------------------
# Parameter construction (PyTorch-style init) and gate-aligned packing
# -----------------------------------------------------------------------------
def make_params(key, *, in_dim, hid_dim, out_dim, n_layers):
    H = hid_dim
    k = 1.0 / np.sqrt(H)

    def u(key, shape, kk):
        return jax.random.uniform(key, shape, jnp.float32, minval=-kk, maxval=kk)

    params = {"lstm": []}
    for l in range(n_layers):
        layer_in = in_dim if l == 0 else 2 * H
        dirs = []
        for _ in range(2):  # 0 = forward, 1 = backward
            key, k1, k2, k3, k4 = jax.random.split(key, 5)
            w_ih = u(k1, (4 * H, layer_in), k)
            w_hh = u(k2, (4 * H, H), k)
            b_ih = u(k3, (4 * H,), k)
            b_hh = u(k4, (4 * H,), k)
            dirs.append((w_ih.T, w_hh.T, (b_ih + b_hh)[None, :]))
        params["lstm"].append(dirs)

    key, k1, k2 = jax.random.split(key, 3)
    kf = 1.0 / np.sqrt(2 * H)
    fc_w = jax.random.uniform(k1, (out_dim, 2 * H), jnp.float32, minval=-kf, maxval=kf)
    fc_b = jax.random.uniform(k2, (out_dim,), jnp.float32, minval=-kf, maxval=kf)
    params["fc_wT"] = fc_w.T
    params["fc_b"] = fc_b[None, :]
    return params


_GATE_SRC = (0, 1, 3, 2)   # frame gate blocks (i, f, o, g)  <-  torch gate order (i, f, g, o)


def pack_params(params, *, window_size, in_dim, hid_dim, out_dim, n_layers,
                mxu_dtype=jnp.bfloat16):
    """Pack PyTorch-layout weights into gate-aligned, zero-padded kernel frames.

    Frame layout: 4 blocks of `frame` lanes in gate order (i, f, o, g); within each block the
    forward direction occupies lanes 0:H and the backward direction lanes H:2H; remaining
    lanes are dead and must be exactly zero (asserted).
    """
    H = hid_dim
    W = window_size
    FR = _state_frame(hid_dim)
    G4 = 4 * FR

    dead_g = np.zeros(G4, bool)                 # dead lanes of the 4-gate frame
    for g in range(4):
        dead_g[g * FR + 2 * H:(g + 1) * FR] = True
    dead_s = np.zeros(FR, bool)                 # dead lanes of the state frame
    dead_s[2 * H:] = True

    packed = []
    for l in range(n_layers):
        (wf, whf, bf), (wb, whb, bb) = params["lstm"][l]
        wf, whf, bf = np.asarray(wf), np.asarray(whf), np.asarray(bf)
        wb, whb, bb = np.asarray(wb), np.asarray(whb), np.asarray(bb)
        fin = in_dim if l == 0 else FR
        q1 = np.zeros((fin, G4), np.float32)
        q2 = np.zeros((fin, G4), np.float32)
        r = np.zeros((FR, G4), np.float32)
        bias = np.zeros((1, G4), np.float32)
        for blk in range(4):
            c0 = blk * FR
            gs = slice(_GATE_SRC[blk] * H, (_GATE_SRC[blk] + 1) * H)
            if l == 0:                          # raw x columns (repeat folded in below)
                q1[:, c0:c0 + H] = wf[:, gs]
                q2[:, c0 + H:c0 + 2 * H] = wb[:, gs]
            else:                               # input = previous layer's hidden frame
                q1[0:H, c0:c0 + H] = wf[0:H, gs]
                q1[H:2 * H, c0 + H:c0 + 2 * H] = wb[H:2 * H, gs]
                q2[0:H, c0 + H:c0 + 2 * H] = wb[0:H, gs]
                q2[H:2 * H, c0:c0 + H] = wf[H:2 * H, gs]
            r[0:H, c0:c0 + H] = whf[:, gs]
            r[H:2 * H, c0 + H:c0 + 2 * H] = whb[:, gs]
            bias[:, c0:c0 + H] = bf[:, gs]
            bias[:, c0 + H:c0 + 2 * H] = bb[:, gs]

        if l == 0:
            # Fold repeat_interleave(window_size, dim=1) + view into the layer-0 weights:
            # collapse the rows that multiply the same raw-x element, one G4 block per window.
            gidx = (np.arange(W)[:, None] * in_dim + np.arange(in_dim)[None, :]) // W
            q1c = np.zeros((in_dim, W * G4), np.float32)
            q2c = np.zeros((in_dim, W * G4), np.float32)
            for w in range(W):
                for d in range(in_dim):
                    q1c[gidx[w, d], w * G4:(w + 1) * G4] += q1[d]
                    q2c[gidx[w, d], w * G4:(w + 1) * G4] += q2[d]
            q1, q2 = q1c, q2c

        # Dead-lane guards: in-kernel h/c correctness relies on these being exactly zero.
        assert not np.any(q1[:, np.tile(dead_g, q1.shape[1] // G4)])
        assert not np.any(q2[:, np.tile(dead_g, q2.shape[1] // G4)])
        assert not np.any(r[:, dead_g]) and not np.any(r[dead_s, :])
        assert not np.any(bias[:, dead_g])
        if l > 0:
            assert not np.any(q1[dead_s, :]) and not np.any(q2[dead_s, :])

        packed += [jnp.asarray(q1, mxu_dtype), jnp.asarray(q2, mxu_dtype),
                   jnp.asarray(r, mxu_dtype), jnp.asarray(bias, jnp.float32)]

    # Block-structured final Linear: out(t) = h_fwd(t)@fcw[:H] + h_bwd(t)@fcw[H:2H] + b.
    # At fused step k the last layer's frame holds [h_fwd(k) | h_bwd(W-1-k)], so the fwd half
    # lands on diagonal time-blocks and the bwd half on anti-diagonal time-blocks.
    fcw = np.asarray(params["fc_wT"])                     # (2H, out_dim)
    fblk = np.zeros((W * FR, W * out_dim), np.float32)
    for t in range(W):
        fblk[t * FR:t * FR + H, t * out_dim:(t + 1) * out_dim] = fcw[0:H]
        fblk[(W - 1 - t) * FR + H:(W - 1 - t) * FR + 2 * H,
             t * out_dim:(t + 1) * out_dim] = fcw[H:2 * H]
    assert not np.any(fblk[np.tile(dead_s, W), :])
    fcb = np.tile(np.asarray(params["fc_b"]), (1, W))     # (1, W*out_dim)
    packed += [jnp.asarray(fblk, mxu_dtype), jnp.asarray(fcb, jnp.float32)]
    return packed


# -----------------------------------------------------------------------------
# Pure-JAX f32 reference ("PyTorch semantics") for checking the Pallas lowering.
# -----------------------------------------------------------------------------
def reference_forward(x, params, *, window_size, in_dim, hid_dim, out_dim, n_layers):
    W, H = window_size, hid_dim
    B = x.shape[0]
    gidx = (np.arange(W)[:, None] * in_dim + np.arange(in_dim)[None, :]) // W
    seq = x[:, gidx].astype(jnp.float32)
    for l in range(n_layers):
        outs = []
        for d in range(2):
            wih, whh, b = params["lstm"][l][d]
            xproj = (seq.reshape(B * W, -1) @ wih + b).reshape(B, W, 4 * H)
            h = jnp.zeros((B, H)); c = jnp.zeros((B, H))
            hs = [None] * W
            trange = range(W) if d == 0 else range(W - 1, -1, -1)
            for t in trange:
                g = xproj[:, t, :] + h @ whh
                i_g = jax.nn.sigmoid(g[:, 0 * H:1 * H]); f_g = jax.nn.sigmoid(g[:, 1 * H:2 * H])
                g_g = jnp.tanh(g[:, 2 * H:3 * H]);       o_g = jax.nn.sigmoid(g[:, 3 * H:4 * H])
                c = f_g * c + i_g * g_g
                h = o_g * jnp.tanh(c)
                hs[t] = h
            outs.append(jnp.stack(hs, axis=1))
        seq = jnp.concatenate(outs, axis=-1)
    y = seq.reshape(B * W, 2 * H) @ params["fc_wT"] + params["fc_b"]
    return y.reshape(B, W, out_dim)


# -----------------------------------------------------------------------------
if __name__ == "__main__":
    window_size, in_dim, hid_dim, out_dim, n_layers = 8, 16, 32, 16, 2
    # dropout=0.2 in __init__, inactive in eval mode (between layers only).

    key = jax.random.PRNGKey(0)
    key, kx, kp, kx2 = jax.random.split(key, 4)
    x = jax.random.normal(kx, (2, in_dim), dtype=jnp.float32)     # h_end: (B, in_dim)
    params = make_params(kp, in_dim=in_dim, hid_dim=hid_dim, out_dim=out_dim,
                         n_layers=n_layers)

    fwd_kw = dict(window_size=window_size, in_dim=in_dim, hid_dim=hid_dim,
                  out_dim=out_dim, n_layers=n_layers)

    ref = jax.block_until_ready(reference_forward(x, params, **fwd_kw))

    # 1) f32 MXU operands: tight structural check of the fused-direction lowering.
    packed_f32 = pack_params(params, mxu_dtype=jnp.float32, **fwd_kw)
    out_f32 = jax.block_until_ready(reconstruction_model_forward(x, packed_f32, **fwd_kw))
    assert out_f32.shape == (2, window_size, out_dim)
    np.testing.assert_allclose(np.asarray(out_f32), np.asarray(ref), rtol=2e-3, atol=2e-4)

    # 2) bf16 MXU operands (default fast path; f32 accumulation, f32 gate math).
    packed_bf16 = pack_params(params, mxu_dtype=jnp.bfloat16, **fwd_kw)
    out_bf16 = jax.block_until_ready(reconstruction_model_forward(x, packed_bf16, **fwd_kw))
    np.testing.assert_allclose(np.asarray(out_bf16), np.asarray(ref), rtol=5e-2, atol=5e-2)

    # 3) Realistic batch: 128 rows per grid step (amortizes MXU fill/drain over the serial
    #    recurrence) and grid == 2 so the batch shards across both TensorCores on v7x.
    xb = jax.random.normal(kx2, (256, in_dim), dtype=jnp.float32)
    refb = jax.block_until_ready(reference_forward(xb, params, **fwd_kw))
    outb = jax.block_until_ready(
        reconstruction_model_forward(xb, packed_bf16, batch_tile=128, **fwd_kw))
    np.testing.assert_allclose(np.asarray(outb), np.asarray(refb), rtol=8e-2, atol=8e-2)

    print("KERNEL_OK")
</pallas_src>

<mosaic_0001>
module attributes {stable_mosaic.version = 11 : i64} {
  func.func @_recon_kernel(%arg0: i32, %arg1: memref<2x16xf32, #tpu.memory_space<vmem>>, %arg2: memref<16x4096xf32, #tpu.memory_space<vmem>>, %arg3: memref<16x4096xf32, #tpu.memory_space<vmem>>, %arg4: memref<128x512xf32, #tpu.memory_space<vmem>>, %arg5: memref<1x512xf32, #tpu.memory_space<vmem>>, %arg6: memref<128x512xf32, #tpu.memory_space<vmem>>, %arg7: memref<128x512xf32, #tpu.memory_space<vmem>>, %arg8: memref<128x512xf32, #tpu.memory_space<vmem>>, %arg9: memref<1x512xf32, #tpu.memory_space<vmem>>, %arg10: memref<1024x128xf32, #tpu.memory_space<vmem>>, %arg11: memref<1x128xf32, #tpu.memory_space<vmem>>, %arg12: memref<2x128xf32, #tpu.memory_space<vmem>>, %arg13: memref<8x1x2x512xf32, #tpu.memory_space<vmem>>, %arg14: memref<8x1x2x128xf32, #tpu.memory_space<vmem>>, %arg15: memref<1x2x1024xf32, #tpu.memory_space<vmem>>) attributes {dimension_semantics = [#tpu.dimension_semantics<parallel>], iteration_bounds = array<i64: 1>, scalar_prefetch = 0 : i64, scratch_operands = 3 : i64, tpu.core_type = #tpu.core_type<tc>, window_params = [{transform_indices = @transform_0, window_bounds = array<i64: 2, 16>}, {pipeline_mode = #tpu.pipeline_mode<synchronous>, transform_indices = @transform_1, window_bounds = array<i64: 16, 4096>}, {pipeline_mode = #tpu.pipeline_mode<synchronous>, transform_indices = @transform_2, window_bounds = array<i64: 16, 4096>}, {pipeline_mode = #tpu.pipeline_mode<synchronous>, transform_indices = @transform_3, window_bounds = array<i64: 128, 512>}, {pipeline_mode = #tpu.pipeline_mode<synchronous>, transform_indices = @transform_4, window_bounds = array<i64: 1, 512>}, {pipeline_mode = #tpu.pipeline_mode<synchronous>, transform_indices = @transform_5, window_bounds = array<i64: 128, 512>}, {pipeline_mode = #tpu.pipeline_mode<synchronous>, transform_indices = @transform_6, window_bounds = array<i64: 128, 512>}, {pipeline_mode = #tpu.pipeline_mode<synchronous>, transform_indices = @transform_7, window_bounds = array<i64: 128, 512>}, {pipeline_mode = #tpu.pipeline_mode<synchronous>, transform_indices = @transform_8, window_bounds = array<i64: 1, 512>}, {pipeline_mode = #tpu.pipeline_mode<synchronous>, transform_indices = @transform_9, window_bounds = array<i64: 1024, 128>}, {pipeline_mode = #tpu.pipeline_mode<synchronous>, transform_indices = @transform_10, window_bounds = array<i64: 1, 128>}, {transform_indices = @transform_11, window_bounds = array<i64: 2, 128>}]} {
    %c0 = arith.constant 0 : index
    %c0_0 = arith.constant 0 : index
    %0 = vector.load %arg2[%c0, %c0_0] : memref<16x4096xf32, #tpu.memory_space<vmem>>, vector<16x4096xf32>
    %c0_1 = arith.constant 0 : index
    %c0_2 = arith.constant 0 : index
    %1 = vector.load %arg3[%c0_1, %c0_2] : memref<16x4096xf32, #tpu.memory_space<vmem>>, vector<16x4096xf32>
    %c0_3 = arith.constant 0 : index
    %c0_4 = arith.constant 0 : index
    %2 = vector.load %arg4[%c0_3, %c0_4] : memref<128x512xf32, #tpu.memory_space<vmem>>, vector<128x512xf32>
    %c0_5 = arith.constant 0 : index
    %c0_6 = arith.constant 0 : index
    %3 = vector.load %arg5[%c0_5, %c0_6] : memref<1x512xf32, #tpu.memory_space<vmem>>, vector<1x512xf32>
    %c0_7 = arith.constant 0 : index
    %c0_8 = arith.constant 0 : index
    %4 = vector.load %arg1[%c0_7, %c0_8] : memref<2x16xf32, #tpu.memory_space<vmem>>, vector<2x16xf32>
    %cst = arith.constant dense<0.000000e+00> : vector<2x4096xf32>
    %5 = tpu.matmul %4, %0, %cst {dimension_numbers = #tpu.dot_dimension_numbers<[1], [0], [0], [1], [0, 0, 1, 1], [], []>} : vector<2x16xf32>, vector<16x4096xf32>, vector<2x4096xf32> -> vector<2x4096xf32>
    %cst_9 = arith.constant dense<0.000000e+00> : vector<2x4096xf32>
    %6 = tpu.matmul %4, %1, %cst_9 {dimension_numbers = #tpu.dot_dimension_numbers<[1], [0], [0], [1], [0, 0, 1, 1], [], []>} : vector<2x16xf32>, vector<16x4096xf32>, vector<2x4096xf32> -> vector<2x4096xf32>
    %7 = vector.extract_strided_slice %5 {offsets = [0, 0], sizes = [2, 512], strides = [1, 1]} : vector<2x4096xf32> to vector<2x512xf32>
    %8 = vector.extract_strided_slice %6 {offsets = [0, 3584], sizes = [2, 512], strides = [1, 1]} : vector<2x4096xf32> to vector<2x512xf32>
    %9 = arith.addf %7, %8 : vector<2x512xf32>
    %10 = vector.broadcast %3 : vector<1x512xf32> to vector<2x512xf32>
    %11 = arith.addf %9, %10 : vector<2x512xf32>
    %12 = vector.shape_cast %11 : vector<2x512xf32> to vector<1x2x512xf32>
    %c0_10 = arith.constant 0 : index
    %c0_11 = arith.constant 0 : index
    %c0_12 = arith.constant 0 : index
    %c0_13 = arith.constant 0 : index
    %13 = vector.load %arg13[%c0_10, %c0_11, %c0_12, %c0_13] : memref<8x1x2x512xf32, #tpu.memory_space<vmem>>, vector<1x1x2x512xf32>
    %14 = vector.shape_cast %13 : vector<1x1x2x512xf32> to vector<1x2x512xf32>
    %15 = vector.shape_cast %12 : vector<1x2x512xf32> to vector<1x1x2x512xf32>
    tpu.vector_store %arg13[%c0_10, %c0_11, %c0_12, %c0_13], %15 {strides = array<i32>} : memref<8x1x2x512xf32, #tpu.memory_space<vmem>>, vector<1x1x2x512xf32>,
    %16 = vector.extract_strided_slice %5 {offsets = [0, 512], sizes = [2, 512], strides = [1, 1]} : vector<2x4096xf32> to vector<2x512xf32>
    %17 = vector.extract_strided_slice %6 {offsets = [0, 3072], sizes = [2, 512], strides = [1, 1]} : vector<2x4096xf32> to vector<2x512xf32>
    %18 = arith.addf %16, %17 : vector<2x512xf32>
    %19 = vector.broadcast %3 : vector<1x512xf32> to vector<2x512xf32>
    %20 = arith.addf %18, %19 : vector<2x512xf32>
    %21 = vector.shape_cast %20 : vector<2x512xf32> to vector<1x2x512xf32>
    %c1 = arith.constant 1 : index
    %c0_14 = arith.constant 0 : index
    %c0_15 = arith.constant 0 : index
    %c0_16 = arith.constant 0 : index
    %22 = vector.load %arg13[%c1, %c0_14, %c0_15, %c0_16] : memref<8x1x2x512xf32, #tpu.memory_space<vmem>>, vector<1x1x2x512xf32>
    %23 = vector.shape_cast %22 : vector<1x1x2x512xf32> to vector<1x2x512xf32>
    %24 = vector.shape_cast %21 : vector<1x2x512xf32> to vector<1x1x2x512xf32>
    tpu.vector_store %arg13[%c1, %c0_14, %c0_15, %c0_16], %24 {strides = array<i32>} : memref<8x1x2x512xf32, #tpu.memory_space<vmem>>, vector<1x1x2x512xf32>,
    %25 = vector.extract_strided_slice %5 {offsets = [0, 1024], sizes = [2, 512], strides = [1, 1]} : vector<2x4096xf32> to vector<2x512xf32>
    %26 = vector.extract_strided_slice %6 {offsets = [0, 2560], sizes = [2, 512], strides = [1, 1]} : vector<2x4096xf32> to vector<2x512xf32>
    %27 = arith.addf %25, %26 : vector<2x512xf32>
    %28 = vector.broadcast %3 : vector<1x512xf32> to vector<2x512xf32>
    %29 = arith.addf %27, %28 : vector<2x512xf32>
    %30 = vector.shape_cast %29 : vector<2x512xf32> to vector<1x2x512xf32>
    %c2 = arith.constant 2 : index
    %c0_17 = arith.constant 0 : index
    %c0_18 = arith.constant 0 : index
    %c0_19 = arith.constant 0 : index
    %31 = vector.load %arg13[%c2, %c0_17, %c0_18, %c0_19] : memref<8x1x2x512xf32, #tpu.memory_space<vmem>>, vector<1x1x2x512xf32>
    %32 = vector.shape_cast %31 : vector<1x1x2x512xf32> to vector<1x2x512xf32>
    %33 = vector.shape_cast %30 : vector<1x2x512xf32> to vector<1x1x2x512xf32>
    tpu.vector_store %arg13[%c2, %c0_17, %c0_18, %c0_19], %33 {strides = array<i32>} : memref<8x1x2x512xf32, #tpu.memory_space<vmem>>, vector<1x1x2x512xf32>,
    %34 = vector.extract_strided_slice %5 {offsets = [0, 1536], sizes = [2, 512], strides = [1, 1]} : vector<2x4096xf32> to vector<2x512xf32>
    %35 = vector.extract_strided_slice %6 {offsets = [0, 2048], sizes = [2, 512], strides = [1, 1]} : vector<2x4096xf32> to vector<2x512xf32>
    %36 = arith.addf %34, %35 : vector<2x512xf32>
    %37 = vector.broadcast %3 : vector<1x512xf32> to vector<2x512xf32>
    %38 = arith.addf %36, %37 : vector<2x512xf32>
    %39 = vector.shape_cast %38 : vector<2x512xf32> to vector<1x2x512xf32>
    %c3 = arith.constant 3 : index
    %c0_20 = arith.constant 0 : index
    %c0_21 = arith.constant 0 : index
    %c0_22 = arith.constant 0 : index
    %40 = vector.load %arg13[%c3, %c0_20, %c0_21, %c0_22] : memref<8x1x2x512xf32, #tpu.memory_space<vmem>>, vector<1x1x2x512xf32>
    %41 = vector.shape_cast %40 : vector<1x1x2x512xf32> to vector<1x2x512xf32>
    %42 = vector.shape_cast %39 : vector<1x2x512xf32> to vector<1x1x2x512xf32>
    tpu.vector_store %arg13[%c3, %c0_20, %c0_21, %c0_22], %42 {strides = array<i32>} : memref<8x1x2x512xf32, #tpu.memory_space<vmem>>, vector<1x1x2x512xf32>,
    %43 = vector.extract_strided_slice %5 {offsets = [0, 2048], sizes = [2, 512], strides = [1, 1]} : vector<2x4096xf32> to vector<2x512xf32>
    %44 = vector.extract_strided_slice %6 {offsets = [0, 1536], sizes = [2, 512], strides = [1, 1]} : vector<2x4096xf32> to vector<2x512xf32>
    %45 = arith.addf %43, %44 : vector<2x512xf32>
    %46 = vector.broadcast %3 : vector<1x512xf32> to vector<2x512xf32>
    %47 = arith.addf %45, %46 : vector<2x512xf32>
    %48 = vector.shape_cast %47 : vector<2x512xf32> to vector<1x2x512xf32>
    %c4 = arith.constant 4 : index
    %c0_23 = arith.constant 0 : index
    %c0_24 = arith.constant 0 : index
    %c0_25 = arith.constant 0 : index
    %49 = vector.load %arg13[%c4, %c0_23, %c0_24, %c0_25] : memref<8x1x2x512xf32, #tpu.memory_space<vmem>>, vector<1x1x2x512xf32>
    %50 = vector.shape_cast %49 : vector<1x1x2x512xf32> to vector<1x2x512xf32>
    %51 = vector.shape_cast %48 : vector<1x2x512xf32> to vector<1x1x2x512xf32>
    tpu.vector_store %arg13[%c4, %c0_23, %c0_24, %c0_25], %51 {strides = array<i32>} : memref<8x1x2x512xf32, #tpu.memory_space<vmem>>, vector<1x1x2x512xf32>,
    %52 = vector.extract_strided_slice %5 {offsets = [0, 2560], sizes = [2, 512], strides = [1, 1]} : vector<2x4096xf32> to vector<2x512xf32>
    %53 = vector.extract_strided_slice %6 {offsets = [0, 1024], sizes = [2, 512], strides = [1, 1]} : vector<2x4096xf32> to vector<2x512xf32>
    %54 = arith.addf %52, %53 : vector<2x512xf32>
    %55 = vector.broadcast %3 : vector<1x512xf32> to vector<2x512xf32>
    %56 = arith.addf %54, %55 : vector<2x512xf32>
    %57 = vector.shape_cast %56 : vector<2x512xf32> to vector<1x2x512xf32>
    %c5 = arith.constant 5 : index
    %c0_26 = arith.constant 0 : index
    %c0_27 = arith.constant 0 : index
    %c0_28 = arith.constant 0 : index
    %58 = vector.load %arg13[%c5, %c0_26, %c0_27, %c0_28] : memref<8x1x2x512xf32, #tpu.memory_space<vmem>>, vector<1x1x2x512xf32>
    %59 = vector.shape_cast %58 : vector<1x1x2x512xf32> to vector<1x2x512xf32>
    %60 = vector.shape_cast %57 : vector<1x2x512xf32> to vector<1x1x2x512xf32>
    tpu.vector_store %arg13[%c5, %c0_26, %c0_27, %c0_28], %60 {strides = array<i32>} : memref<8x1x2x512xf32, #tpu.memory_space<vmem>>, vector<1x1x2x512xf32>,
    %61 = vector.extract_strided_slice %5 {offsets = [0, 3072], sizes = [2, 512], strides = [1, 1]} : vector<2x4096xf32> to vector<2x512xf32>
    %62 = vector.extract_strided_slice %6 {offsets = [0, 512], sizes = [2, 512], strides = [1, 1]} : vector<2x4096xf32> to vector<2x512xf32>
    %63 = arith.addf %61, %62 : vector<2x512xf32>
    %64 = vector.broadcast %3 : vector<1x512xf32> to vector<2x512xf32>
    %65 = arith.addf %63, %64 : vector<2x512xf32>
    %66 = vector.shape_cast %65 : vector<2x512xf32> to vector<1x2x512xf32>
    %c6 = arith.constant 6 : index
    %c0_29 = arith.constant 0 : index
    %c0_30 = arith.constant 0 : index
    %c0_31 = arith.constant 0 : index
    %67 = vector.load %arg13[%c6, %c0_29, %c0_30, %c0_31] : memref<8x1x2x512xf32, #tpu.memory_space<vmem>>, vector<1x1x2x512xf32>
    %68 = vector.shape_cast %67 : vector<1x1x2x512xf32> to vector<1x2x512xf32>
    %69 = vector.shape_cast %66 : vector<1x2x512xf32> to vector<1x1x2x512xf32>
    tpu.vector_store %arg13[%c6, %c0_29, %c0_30, %c0_31], %69 {strides = array<i32>} : memref<8x1x2x512xf32, #tpu.memory_space<vmem>>, vector<1x1x2x512xf32>,
    %70 = vector.extract_strided_slice %5 {offsets = [0, 3584], sizes = [2, 512], strides = [1, 1]} : vector<2x4096xf32> to vector<2x512xf32>
    %71 = vector.extract_strided_slice %6 {offsets = [0, 0], sizes = [2, 512], strides = [1, 1]} : vector<2x4096xf32> to vector<2x512xf32>
    %72 = arith.addf %70, %71 : vector<2x512xf32>
    %73 = vector.broadcast %3 : vector<1x512xf32> to vector<2x512xf32>
    %74 = arith.addf %72, %73 : vector<2x512xf32>
    %75 = vector.shape_cast %74 : vector<2x512xf32> to vector<1x2x512xf32>
    %c7 = arith.constant 7 : index
    %c0_32 = arith.constant 0 : index
    %c0_33 = arith.constant 0 : index
    %c0_34 = arith.constant 0 : index
    %76 = vector.load %arg13[%c7, %c0_32, %c0_33, %c0_34] : memref<8x1x2x512xf32, #tpu.memory_space<vmem>>, vector<1x1x2x512xf32>
    %77 = vector.shape_cast %76 : vector<1x1x2x512xf32> to vector<1x2x512xf32>
    %78 = vector.shape_cast %75 : vector<1x2x512xf32> to vector<1x1x2x512xf32>
    tpu.vector_store %arg13[%c7, %c0_32, %c0_33, %c0_34], %78 {strides = array<i32>} : memref<8x1x2x512xf32, #tpu.memory_space<vmem>>, vector<1x1x2x512xf32>,
    %cst_35 = arith.constant 0.000000e+00 : f32
    %79 = vector.broadcast %cst_35 : f32 to vector<2x128xf32>
    %cst_36 = arith.constant 0.000000e+00 : f32
    %80 = vector.broadcast %cst_36 : f32 to vector<2x128xf32>
    %c0_37 = arith.constant 0 : index
    %c0_38 = arith.constant 0 : index
    %c0_39 = arith.constant 0 : index
    %c0_40 = arith.constant 0 : index
    %81 = vector.load %arg13[%c0_37, %c0_38, %c0_39, %c0_40] : memref<8x1x2x512xf32, #tpu.memory_space<vmem>>, vector<1x1x2x512xf32>
    %82 = vector.shape_cast %81 : vector<1x1x2x512xf32> to vector<2x512xf32>
    %cst_41 = arith.constant dense<0.000000e+00> : vector<2x512xf32>
    %83 = tpu.matmul %79, %2, %cst_41 {dimension_numbers = #tpu.dot_dimension_numbers<[1], [0], [0], [1], [0, 0, 1, 1], [], []>} : vector<2x128xf32>, vector<128x512xf32>, vector<2x512xf32> -> vector<2x512xf32>
    %84 = arith.addf %82, %83 : vector<2x512xf32>
    %85 = vector.extract_strided_slice %84 {offsets = [0, 0], sizes = [2, 384], strides = [1, 1]} : vector<2x512xf32> to vector<2x384xf32>
    %86 = arith.negf %85 : vector<2x384xf32>
    %87 = math.exp %86 : vector<2x384xf32>
    %cst_42 = arith.constant 1.000000e+00 : f32
    %88 = vector.broadcast %cst_42 : f32 to vector<2x384xf32>
    %89 = arith.addf %88, %87 : vector<2x384xf32>
    %90 = arith.divf %88, %89 : vector<2x384xf32>
    %91 = vector.extract_strided_slice %84 {offsets = [0, 384], sizes = [2, 128], strides = [1, 1]} : vector<2x512xf32> to vector<2x128xf32>
    %92 = math.tanh %91 : vector<2x128xf32>
    %93 = vector.extract_strided_slice %90 {offsets = [0, 128], sizes = [2, 128], strides = [1, 1]} : vector<2x384xf32> to vector<2x128xf32>
    %94 = arith.mulf %93, %80 : vector<2x128xf32>
    %95 = vector.extract_strided_slice %90 {offsets = [0, 0], sizes = [2, 128], strides = [1, 1]} : vector<2x384xf32> to vector<2x128xf32>
    %96 = arith.mulf %95, %92 : vector<2x128xf32>
    %97 = arith.addf %94, %96 : vector<2x128xf32>
    %98 = vector.extract_strided_slice %90 {offsets = [0, 256], sizes = [2, 128], strides = [1, 1]} : vector<2x384xf32> to vector<2x128xf32>
    %99 = math.tanh %97 : vector<2x128xf32>
    %100 = arith.mulf %98, %99 : vector<2x128xf32>
    %c0_43 = arith.constant 0 : index
    %c0_44 = arith.constant 0 : index
    %c0_45 = arith.constant 0 : index
    %c0_46 = arith.constant 0 : index
    %101 = vector.load %arg14[%c0_43, %c0_44, %c0_45, %c0_46] : memref<8x1x2x128xf32, #tpu.memory_space<vmem>>, vector<1x1x2x128xf32>
    %102 = vector.shape_cast %101 : vector<1x1x2x128xf32> to vector<2x128xf32>
    %103 = vector.shape_cast %100 : vector<2x128xf32> to vector<1x1x2x128xf32>
    tpu.vector_store %arg14[%c0_43, %c0_44, %c0_45, %c0_46], %103 {strides = array<i32>} : memref<8x1x2x128xf32, #tpu.memory_space<vmem>>, vector<1x1x2x128xf32>,
    %c1_47 = arith.constant 1 : index
    %c0_48 = arith.constant 0 : index
    %c0_49 = arith.constant 0 : index
    %c0_50 = arith.constant 0 : index
    %104 = vector.load %arg13[%c1_47, %c0_48, %c0_49, %c0_50] : memref<8x1x2x512xf32, #tpu.memory_space<vmem>>, vector<1x1x2x512xf32>
    %105 = vector.shape_cast %104 : vector<1x1x2x512xf32> to vector<2x512xf32>
    %cst_51 = arith.constant dense<0.000000e+00> : vector<2x512xf32>
    %106 = tpu.matmul %100, %2, %cst_51 {dimension_numbers = #tpu.dot_dimension_numbers<[1], [0], [0], [1], [0, 0, 1, 1], [], []>} : vector<2x128xf32>, vector<128x512xf32>, vector<2x512xf32> -> vector<2x512xf32>
    %107 = arith.addf %105, %106 : vector<2x512xf32>
    %108 = vector.extract_strided_slice %107 {offsets = [0, 0], sizes = [2, 384], strides = [1, 1]} : vector<2x512xf32> to vector<2x384xf32>
    %109 = arith.negf %108 : vector<2x384xf32>
    %110 = math.exp %109 : vector<2x384xf32>
    %cst_52 = arith.constant 1.000000e+00 : f32
    %111 = vector.broadcast %cst_52 : f32 to vector<2x384xf32>
    %112 = arith.addf %111, %110 : vector<2x384xf32>
    %113 = arith.divf %111, %112 : vector<2x384xf32>
    %114 = vector.extract_strided_slice %107 {offsets = [0, 384], sizes = [2, 128], strides = [1, 1]} : vector<2x512xf32> to vector<2x128xf32>
    %115 = math.tanh %114 : vector<2x128xf32>
    %116 = vector.extract_strided_slice %113 {offsets = [0, 128], sizes = [2, 128], strides = [1, 1]} : vector<2x384xf32> to vector<2x128xf32>
    %117 = arith.mulf %116, %97 : vector<2x128xf32>
    %118 = vector.extract_strided_slice %113 {offsets = [0, 0], sizes = [2, 128], strides = [1, 1]} : vector<2x384xf32> to vector<2x128xf32>
    %119 = arith.mulf %118, %115 : vector<2x128xf32>
    %120 = arith.addf %117, %119 : vector<2x128xf32>
    %121 = vector.extract_strided_slice %113 {offsets = [0, 256], sizes = [2, 128], strides = [1, 1]} : vector<2x384xf32> to vector<2x128xf32>
    %122 = math.tanh %120 : vector<2x128xf32>
    %123 = arith.mulf %121, %122 : vector<2x128xf32>
    %c1_53 = arith.constant 1 : index
    %c0_54 = arith.constant 0 : index
    %c0_55 = arith.constant 0 : index
    %c0_56 = arith.constant 0 : index
    %124 = vector.load %arg14[%c1_53, %c0_54, %c0_55, %c0_56] : memref<8x1x2x128xf32, #tpu.memory_space<vmem>>, vector<1x1x2x128xf32>
    %125 = vector.shape_cast %124 : vector<1x1x2x128xf32> to vector<2x128xf32>
    %126 = vector.shape_cast %123 : vector<2x128xf32> to vector<1x1x2x128xf32>
    tpu.vector_store %arg14[%c1_53, %c0_54, %c0_55, %c0_56], %126 {strides = array<i32>} : memref<8x1x2x128xf32, #tpu.memory_space<vmem>>, vector<1x1x2x128xf32>,
    %c2_57 = arith.constant 2 : index
    %c0_58 = arith.constant 0 : index
    %c0_59 = arith.constant 0 : index
    %c0_60 = arith.constant 0 : index
    %127 = vector.load %arg13[%c2_57, %c0_58, %c0_59, %c0_60] : memref<8x1x2x512xf32, #tpu.memory_space<vmem>>, vector<1x1x2x512xf32>
    %128 = vector.shape_cast %127 : vector<1x1x2x512xf32> to vector<2x512xf32>
    %cst_61 = arith.constant dense<0.000000e+00> : vector<2x512xf32>
    %129 = tpu.matmul %123, %2, %cst_61 {dimension_numbers = #tpu.dot_dimension_numbers<[1], [0], [0], [1], [0, 0, 1, 1], [], []>} : vector<2x128xf32>, vector<128x512xf32>, vector<2x512xf32> -> vector<2x512xf32>
    %130 = arith.addf %128, %129 : vector<2x512xf32>
    %131 = vector.extract_strided_slice %130 {offsets = [0, 0], sizes = [2, 384], strides = [1, 1]} : vector<2x512xf32> to vector<2x384xf32>
    %132 = arith.negf %131 : vector<2x384xf32>
    %133 = math.exp %132 : vector<2x384xf32>
    %cst_62 = arith.constant 1.000000e+00 : f32
    %134 = vector.broadcast %cst_62 : f32 to vector<2x384xf32>
    %135 = arith.addf %134, %133 : vector<2x384xf32>
    %136 = arith.divf %134, %135 : vector<2x384xf32>
    %137 = vector.extract_strided_slice %130 {offsets = [0, 384], sizes = [2, 128], strides = [1, 1]} : vector<2x512xf32> to vector<2x128xf32>
    %138 = math.tanh %137 : vector<2x128xf32>
    %139 = vector.extract_strided_slice %136 {offsets = [0, 128], sizes = [2, 128], strides = [1, 1]} : vector<2x384xf32> to vector<2x128xf32>
    %140 = arith.mulf %139, %120 : vector<2x128xf32>
    %141 = vector.extract_strided_slice %136 {offsets = [0, 0], sizes = [2, 128], strides = [1, 1]} : vector<2x384xf32> to vector<2x128xf32>
    %142 = arith.mulf %141, %138 : vector<2x128xf32>
    %143 = arith.addf %140, %142 : vector<2x128xf32>
    %144 = vector.extract_strided_slice %136 {offsets = [0, 256], sizes = [2, 128], strides = [1, 1]} : vector<2x384xf32> to vector<2x128xf32>
    %145 = math.tanh %143 : vector<2x128xf32>
    %146 = arith.mulf %144, %145 : vector<2x128xf32>
    %c2_63 = arith.constant 2 : index
    %c0_64 = arith.constant 0 : index
    %c0_65 = arith.constant 0 : index
    %c0_66 = arith.constant 0 : index
    %147 = vector.load %arg14[%c2_63, %c0_64, %c0_65, %c0_66] : memref<8x1x2x128xf32, #tpu.memory_space<vmem>>, vector<1x1x2x128xf32>
    %148 = vector.shape_cast %147 : vector<1x1x2x128xf32> to vector<2x128xf32>
    %149 = vector.shape_cast %146 : vector<2x128xf32> to vector<1x1x2x128xf32>
    tpu.vector_store %arg14[%c2_63, %c0_64, %c0_65, %c0_66], %149 {strides = array<i32>} : memref<8x1x2x128xf32, #tpu.memory_space<vmem>>, vector<1x1x2x128xf32>,
    %c3_67 = arith.constant 3 : index
    %c0_68 = arith.constant 0 : index
    %c0_69 = arith.constant 0 : index
    %c0_70 = arith.constant 0 : index
    %150 = vector.load %arg13[%c3_67, %c0_68, %c0_69, %c0_70] : memref<8x1x2x512xf32, #tpu.memory_space<vmem>>, vector<1x1x2x512xf32>
    %151 = vector.shape_cast %150 : vector<1x1x2x512xf32> to vector<2x512xf32>
    %cst_71 = arith.constant dense<0.000000e+00> : vector<2x512xf32>
    %152 = tpu.matmul %146, %2, %cst_71 {dimension_numbers = #tpu.dot_dimension_numbers<[1], [0], [0], [1], [0, 0, 1, 1], [], []>} : vector<2x128xf32>, vector<128x512xf32>, vector<2x512xf32> -> vector<2x512xf32>
    %153 = arith.addf %151, %152 : vector<2x512xf32>
    %154 = vector.extract_strided_slice %153 {offsets = [0, 0], sizes = [2, 384], strides = [1, 1]} : vector<2x512xf32> to vector<2x384xf32>
    %155 = arith.negf %154 : vector<2x384xf32>
    %156 = math.exp %155 : vector<2x384xf32>
    %cst_72 = arith.constant 1.000000e+00 : f32
    %157 = vector.broadcast %cst_72 : f32 to vector<2x384xf32>
    %158 = arith.addf %157, %156 : vector<2x384xf32>
    %159 = arith.divf %157, %158 : vector<2x384xf32>
    %160 = vector.extract_strided_slice %153 {offsets = [0, 384], sizes = [2, 128], strides = [1, 1]} : vector<2x512xf32> to vector<2x128xf32>
    %161 = math.tanh %160 : vector<2x128xf32>
    %162 = vector.extract_strided_slice %159 {offsets = [0, 128], sizes = [2, 128], strides = [1, 1]} : vector<2x384xf32> to vector<2x128xf32>
    %163 = arith.mulf %162, %143 : vector<2x128xf32>
    %164 = vector.extract_strided_slice %159 {offsets = [0, 0], sizes = [2, 128], strides = [1, 1]} : vector<2x384xf32> to vector<2x128xf32>
    %165 = arith.mulf %164, %161 : vector<2x128xf32>
    %166 = arith.addf %163, %165 : vector<2x128xf32>
    %167 = vector.extract_strided_slice %159 {offsets = [0, 256], sizes = [2, 128], strides = [1, 1]} : vector<2x384xf32> to vector<2x128xf32>
    %168 = math.tanh %166 : vector<2x128xf32>
    %169 = arith.mulf %167, %168 : vector<2x128xf32>
    %c3_73 = arith.constant 3 : index
    %c0_74 = arith.constant 0 : index
    %c0_75 = arith.constant 0 : index
    %c0_76 = arith.constant 0 : index
    %170 = vector.load %arg14[%c3_73, %c0_74, %c0_75, %c0_76] : memref<8x1x2x128xf32, #tpu.memory_space<vmem>>, vector<1x1x2x128xf32>
    %171 = vector.shape_cast %170 : vector<1x1x2x128xf32> to vector<2x128xf32>
    %172 = vector.shape_cast %169 : vector<2x128xf32> to vector<1x1x2x128xf32>
    tpu.vector_store %arg14[%c3_73, %c0_74, %c0_75, %c0_76], %172 {strides = array<i32>} : memref<8x1x2x128xf32, #tpu.memory_space<vmem>>, vector<1x1x2x128xf32>,
    %c4_77 = arith.constant 4 : index
    %c0_78 = arith.constant 0 : index
    %c0_79 = arith.constant 0 : index
    %c0_80 = arith.constant 0 : index
    %173 = vector.load %arg13[%c4_77, %c0_78, %c0_79, %c0_80] : memref<8x1x2x512xf32, #tpu.memory_space<vmem>>, vector<1x1x2x512xf32>
    %174 = vector.shape_cast %173 : vector<1x1x2x512xf32> to vector<2x512xf32>
    %cst_81 = arith.constant dense<0.000000e+00> : vector<2x512xf32>
    %175 = tpu.matmul %169, %2, %cst_81 {dimension_numbers = #tpu.dot_dimension_numbers<[1], [0], [0], [1], [0, 0, 1, 1], [], []>} : vector<2x128xf32>, vector<128x512xf32>, vector<2x512xf32> -> vector<2x512xf32>
    %176 = arith.addf %174, %175 : vector<2x512xf32>
    %177 = vector.extract_strided_slice %176 {offsets = [0, 0], sizes = [2, 384], strides = [1, 1]} : vector<2x512xf32> to vector<2x384xf32>
    %178 = arith.negf %177 : vector<2x384xf32>
    %179 = math.exp %178 : vector<2x384xf32>
    %cst_82 = arith.constant 1.000000e+00 : f32
    %180 = vector.broadcast %cst_82 : f32 to vector<2x384xf32>
    %181 = arith.addf %180, %179 : vector<2x384xf32>
    %182 = arith.divf %180, %181 : vector<2x384xf32>
    %183 = vector.extract_strided_slice %176 {offsets = [0, 384], sizes = [2, 128], strides = [1, 1]} : vector<2x512xf32> to vector<2x128xf32>
    %184 = math.tanh %183 : vector<2x128xf32>
    %185 = vector.extract_strided_slice %182 {offsets = [0, 128], sizes = [2, 128], strides = [1, 1]} : vector<2x384xf32> to vector<2x128xf32>
    %186 = arith.mulf %185, %166 : vector<2x128xf32>
    %187 = vector.extract_strided_slice %182 {offsets = [0, 0], sizes = [2, 128], strides = [1, 1]} : vector<2x384xf32> to vector<2x128xf32>
    %188 = arith.mulf %187, %184 : vector<2x128xf32>
    %189 = arith.addf %186, %188 : vector<2x128xf32>
    %190 = vector.extract_strided_slice %182 {offsets = [0, 256], sizes = [2, 128], strides = [1, 1]} : vector<2x384xf32> to vector<2x128xf32>
    %191 = math.tanh %189 : vector<2x128xf32>
    %192 = arith.mulf %190, %191 : vector<2x128xf32>
    %c4_83 = arith.constant 4 : index
    %c0_84 = arith.constant 0 : index
    %c0_85 = arith.constant 0 : index
    %c0_86 = arith.constant 0 : index
    %193 = vector.load %arg14[%c4_83, %c0_84, %c0_85, %c0_86] : memref<8x1x2x128xf32, #tpu.memory_space<vmem>>, vector<1x1x2x128xf32>
    %194 = vector.shape_cast %193 : vector<1x1x2x128xf32> to vector<2x128xf32>
    %195 = vector.shape_cast %192 : vector<2x128xf32> to vector<1x1x2x128xf32>
    tpu.vector_store %arg14[%c4_83, %c0_84, %c0_85, %c0_86], %195 {strides = array<i32>} : memref<8x1x2x128xf32, #tpu.memory_space<vmem>>, vector<1x1x2x128xf32>,
    %c5_87 = arith.constant 5 : index
    %c0_88 = arith.constant 0 : index
    %c0_89 = arith.constant 0 : index
    %c0_90 = arith.constant 0 : index
    %196 = vector.load %arg13[%c5_87, %c0_88, %c0_89, %c0_90] : memref<8x1x2x512xf32, #tpu.memory_space<vmem>>, vector<1x1x2x512xf32>
    %197 = vector.shape_cast %196 : vector<1x1x2x512xf32> to vector<2x512xf32>
    %cst_91 = arith.constant dense<0.000000e+00> : vector<2x512xf32>
    %198 = tpu.matmul %192, %2, %cst_91 {dimension_numbers = #tpu.dot_dimension_numbers<[1], [0], [0], [1], [0, 0, 1, 1], [], []>} : vector<2x128xf32>, vector<128x512xf32>, vector<2x512xf32> -> vector<2x512xf32>
    %199 = arith.addf %197, %198 : vector<2x512xf32>
    %200 = vector.extract_strided_slice %199 {offsets = [0, 0], sizes = [2, 384], strides = [1, 1]} : vector<2x512xf32> to vector<2x384xf32>
    %201 = arith.negf %200 : vector<2x384xf32>
    %202 = math.exp %201 : vector<2x384xf32>
    %cst_92 = arith.constant 1.000000e+00 : f32
    %203 = vector.broadcast %cst_92 : f32 to vector<2x384xf32>
    %204 = arith.addf %203, %202 : vector<2x384xf32>
    %205 = arith.divf %203, %204 : vector<2x384xf32>
    %206 = vector.extract_strided_slice %199 {offsets = [0, 384], sizes = [2, 128], strides = [1, 1]} : vector<2x512xf32> to vector<2x128xf32>
    %207 = math.tanh %206 : vector<2x128xf32>
    %208 = vector.extract_strided_slice %205 {offsets = [0, 128], sizes = [2, 128], strides = [1, 1]} : vector<2x384xf32> to vector<2x128xf32>
    %209 = arith.mulf %208, %189 : vector<2x128xf32>
    %210 = vector.extract_strided_slice %205 {offsets = [0, 0], sizes = [2, 128], strides = [1, 1]} : vector<2x384xf32> to vector<2x128xf32>
    %211 = arith.mulf %210, %207 : vector<2x128xf32>
    %212 = arith.addf %209, %211 : vector<2x128xf32>
    %213 = vector.extract_strided_slice %205 {offsets = [0, 256], sizes = [2, 128], strides = [1, 1]} : vector<2x384xf32> to vector<2x128xf32>
    %214 = math.tanh %212 : vector<2x128xf32>
    %215 = arith.mulf %213, %214 : vector<2x128xf32>
    %c5_93 = arith.constant 5 : index
    %c0_94 = arith.constant 0 : index
    %c0_95 = arith.constant 0 : index
    %c0_96 = arith.constant 0 : index
    %216 = vector.load %arg14[%c5_93, %c0_94, %c0_95, %c0_96] : memref<8x1x2x128xf32, #tpu.memory_space<vmem>>, vector<1x1x2x128xf32>
    %217 = vector.shape_cast %216 : vector<1x1x2x128xf32> to vector<2x128xf32>
    %218 = vector.shape_cast %215 : vector<2x128xf32> to vector<1x1x2x128xf32>
    tpu.vector_store %arg14[%c5_93, %c0_94, %c0_95, %c0_96], %218 {strides = array<i32>} : memref<8x1x2x128xf32, #tpu.memory_space<vmem>>, vector<1x1x2x128xf32>,
    %c6_97 = arith.constant 6 : index
    %c0_98 = arith.constant 0 : index
    %c0_99 = arith.constant 0 : index
    %c0_100 = arith.constant 0 : index
    %219 = vector.load %arg13[%c6_97, %c0_98, %c0_99, %c0_100] : memref<8x1x2x512xf32, #tpu.memory_space<vmem>>, vector<1x1x2x512xf32>
    %220 = vector.shape_cast %219 : vector<1x1x2x512xf32> to vector<2x512xf32>
    %cst_101 = arith.constant dense<0.000000e+00> : vector<2x512xf32>
    %221 = tpu.matmul %215, %2, %cst_101 {dimension_numbers = #tpu.dot_dimension_numbers<[1], [0], [0], [1], [0, 0, 1, 1], [], []>} : vector<2x128xf32>, vector<128x512xf32>, vector<2x512xf32> -> vector<2x512xf32>
    %222 = arith.addf %220, %221 : vector<2x512xf32>
    %223 = vector.extract_strided_slice %222 {offsets = [0, 0], sizes = [2, 384], strides = [1, 1]} : vector<2x512xf32> to vector<2x384xf32>
    %224 = arith.negf %223 : vector<2x384xf32>
    %225 = math.exp %224 : vector<2x384xf32>
    %cst_102 = arith.constant 1.000000e+00 : f32
    %226 = vector.broadcast %cst_102 : f32 to vector<2x384xf32>
    %227 = arith.addf %226, %225 : vector<2x384xf32>
    %228 = arith.divf %226, %227 : vector<2x384xf32>
    %229 = vector.extract_strided_slice %222 {offsets = [0, 384], sizes = [2, 128], strides = [1, 1]} : vector<2x512xf32> to vector<2x128xf32>
    %230 = math.tanh %229 : vector<2x128xf32>
    %231 = vector.extract_strided_slice %228 {offsets = [0, 128], sizes = [2, 128], strides = [1, 1]} : vector<2x384xf32> to vector<2x128xf32>
    %232 = arith.mulf %231, %212 : vector<2x128xf32>
    %233 = vector.extract_strided_slice %228 {offsets = [0, 0], sizes = [2, 128], strides = [1, 1]} : vector<2x384xf32> to vector<2x128xf32>
    %234 = arith.mulf %233, %230 : vector<2x128xf32>
    %235 = arith.addf %232, %234 : vector<2x128xf32>
    %236 = vector.extract_strided_slice %228 {offsets = [0, 256], sizes = [2, 128], strides = [1, 1]} : vector<2x384xf32> to vector<2x128xf32>
    %237 = math.tanh %235 : vector<2x128xf32>
    %238 = arith.mulf %236, %237 : vector<2x128xf32>
    %c6_103 = arith.constant 6 : index
    %c0_104 = arith.constant 0 : index
    %c0_105 = arith.constant 0 : index
    %c0_106 = arith.constant 0 : index
    %239 = vector.load %arg14[%c6_103, %c0_104, %c0_105, %c0_106] : memref<8x1x2x128xf32, #tpu.memory_space<vmem>>, vector<1x1x2x128xf32>
    %240 = vector.shape_cast %239 : vector<1x1x2x128xf32> to vector<2x128xf32>
    %241 = vector.shape_cast %238 : vector<2x128xf32> to vector<1x1x2x128xf32>
    tpu.vector_store %arg14[%c6_103, %c0_104, %c0_105, %c0_106], %241 {strides = array<i32>} : memref<8x1x2x128xf32, #tpu.memory_space<vmem>>, vector<1x1x2x128xf32>,
    %c7_107 = arith.constant 7 : index
    %c0_108 = arith.constant 0 : index
    %c0_109 = arith.constant 0 : index
    %c0_110 = arith.constant 0 : index
    %242 = vector.load %arg13[%c7_107, %c0_108, %c0_109, %c0_110] : memref<8x1x2x512xf32, #tpu.memory_space<vmem>>, vector<1x1x2x512xf32>
    %243 = vector.shape_cast %242 : vector<1x1x2x512xf32> to vector<2x512xf32>
    %cst_111 = arith.constant dense<0.000000e+00> : vector<2x512xf32>
    %244 = tpu.matmul %238, %2, %cst_111 {dimension_numbers = #tpu.dot_dimension_numbers<[1], [0], [0], [1], [0, 0, 1, 1], [], []>} : vector<2x128xf32>, vector<128x512xf32>, vector<2x512xf32> -> vector<2x512xf32>
    %245 = arith.addf %243, %244 : vector<2x512xf32>
    %246 = vector.extract_strided_slice %245 {offsets = [0, 0], sizes = [2, 384], strides = [1, 1]} : vector<2x512xf32> to vector<2x384xf32>
    %247 = arith.negf %246 : vector<2x384xf32>
    %248 = math.exp %247 : vector<2x384xf32>
    %cst_112 = arith.constant 1.000000e+00 : f32
    %249 = vector.broadcast %cst_112 : f32 to vector<2x384xf32>
    %250 = arith.addf %249, %248 : vector<2x384xf32>
    %251 = arith.divf %249, %250 : vector<2x384xf32>
    %252 = vector.extract_strided_slice %245 {offsets = [0, 384], sizes = [2, 128], strides = [1, 1]} : vector<2x512xf32> to vector<2x128xf32>
    %253 = math.tanh %252 : vector<2x128xf32>
    %254 = vector.extract_strided_slice %251 {offsets = [0, 128], sizes = [2, 128], strides = [1, 1]} : vector<2x384xf32> to vector<2x128xf32>
    %255 = arith.mulf %254, %235 : vector<2x128xf32>
    %256 = vector.extract_strided_slice %251 {offsets = [0, 0], sizes = [2, 128], strides = [1, 1]} : vector<2x384xf32> to vector<2x128xf32>
    %257 = arith.mulf %256, %253 : vector<2x128xf32>
    %258 = arith.addf %255, %257 : vector<2x128xf32>
    %259 = vector.extract_strided_slice %251 {offsets = [0, 256], sizes = [2, 128], strides = [1, 1]} : vector<2x384xf32> to vector<2x128xf32>
    %260 = math.tanh %258 : vector<2x128xf32>
    %261 = arith.mulf %259, %260 : vector<2x128xf32>
    %c7_113 = arith.constant 7 : index
    %c0_114 = arith.constant 0 : index
    %c0_115 = arith.constant 0 : index
    %c0_116 = arith.constant 0 : index
    %262 = vector.load %arg14[%c7_113, %c0_114, %c0_115, %c0_116] : memref<8x1x2x128xf32, #tpu.memory_space<vmem>>, vector<1x1x2x128xf32>
    %263 = vector.shape_cast %262 : vector<1x1x2x128xf32> to vector<2x128xf32>
    %264 = vector.shape_cast %261 : vector<2x128xf32> to vector<1x1x2x128xf32>
    tpu.vector_store %arg14[%c7_113, %c0_114, %c0_115, %c0_116], %264 {strides = array<i32>} : memref<8x1x2x128xf32, #tpu.memory_space<vmem>>, vector<1x1x2x128xf32>,
    %c0_117 = arith.constant 0 : index
    %c0_118 = arith.constant 0 : index
    %265 = vector.load %arg6[%c0_117, %c0_118] : memref<128x512xf32, #tpu.memory_space<vmem>>, vector<128x512xf32>
    %c0_119 = arith.constant 0 : index
    %c0_120 = arith.constant 0 : index
    %266 = vector.load %arg7[%c0_119, %c0_120] : memref<128x512xf32, #tpu.memory_space<vmem>>, vector<128x512xf32>
    %c0_121 = arith.constant 0 : index
    %c0_122 = arith.constant 0 : index
    %267 = vector.load %arg8[%c0_121, %c0_122] : memref<128x512xf32, #tpu.memory_space<vmem>>, vector<128x512xf32>
    %c0_123 = arith.constant 0 : index
    %c0_124 = arith.constant 0 : index
    %268 = vector.load %arg9[%c0_123, %c0_124] : memref<1x512xf32, #tpu.memory_space<vmem>>, vector<1x512xf32>
    %c0_125 = arith.constant 0 : index
    %c0_126 = arith.constant 0 : index
    %c0_127 = arith.constant 0 : index
    %c0_128 = arith.constant 0 : index
    %269 = vector.load %arg14[%c0_125, %c0_126, %c0_127, %c0_128] : memref<8x1x2x128xf32, #tpu.memory_space<vmem>>, vector<8x1x2x128xf32>
    %270 = vector.shape_cast %269 : vector<8x1x2x128xf32> to vector<16x128xf32>
    %cst_129 = arith.constant dense<0.000000e+00> : vector<16x512xf32>
    %271 = tpu.matmul %270, %265, %cst_129 {dimension_numbers = #tpu.dot_dimension_numbers<[1], [0], [0], [1], [0, 0, 1, 1], [], []>} : vector<16x128xf32>, vector<128x512xf32>, vector<16x512xf32> -> vector<16x512xf32>
    %cst_130 = arith.constant dense<0.000000e+00> : vector<16x512xf32>
    %272 = tpu.matmul %270, %266, %cst_130 {dimension_numbers = #tpu.dot_dimension_numbers<[1], [0], [0], [1], [0, 0, 1, 1], [], []>} : vector<16x128xf32>, vector<128x512xf32>, vector<16x512xf32> -> vector<16x512xf32>
    %273 = vector.shape_cast %271 : vector<16x512xf32> to vector<8x1x2x512xf32>
    %274 = vector.shape_cast %272 : vector<16x512xf32> to vector<8x1x2x512xf32>
    %275 = vector.extract_strided_slice %273 {offsets = [0, 0, 0, 0], sizes = [1, 1, 2, 512], strides = [1, 1, 1, 1]} : vector<8x1x2x512xf32> to vector<1x1x2x512xf32>
    %276 = vector.shape_cast %275 : vector<1x1x2x512xf32> to vector<1x2x512xf32>
    %277 = vector.extract_strided_slice %274 {offsets = [7, 0, 0, 0], sizes = [1, 1, 2, 512], strides = [1, 1, 1, 1]} : vector<8x1x2x512xf32> to vector<1x1x2x512xf32>
    %278 = vector.shape_cast %277 : vector<1x1x2x512xf32> to vector<1x2x512xf32>
    %279 = arith.addf %276, %278 : vector<1x2x512xf32>
    %280 = vector.shape_cast %268 : vector<1x512xf32> to vector<1x1x512xf32>
    %281 = vector.broadcast %280 : vector<1x1x512xf32> to vector<1x2x512xf32>
    %282 = arith.addf %279, %281 : vector<1x2x512xf32>
    %c0_131 = arith.constant 0 : index
    %c0_132 = arith.constant 0 : index
    %c0_133 = arith.constant 0 : index
    %c0_134 = arith.constant 0 : index
    %283 = vector.load %arg13[%c0_131, %c0_132, %c0_133, %c0_134] : memref<8x1x2x512xf32, #tpu.memory_space<vmem>>, vector<1x1x2x512xf32>
    %284 = vector.shape_cast %283 : vector<1x1x2x512xf32> to vector<1x2x512xf32>
    %285 = vector.shape_cast %282 : vector<1x2x512xf32> to vector<1x1x2x512xf32>
    tpu.vector_store %arg13[%c0_131, %c0_132, %c0_133, %c0_134], %285 {strides = array<i32>} : memref<8x1x2x512xf32, #tpu.memory_space<vmem>>, vector<1x1x2x512xf32>,
    %286 = vector.extract_strided_slice %273 {offsets = [1, 0, 0, 0], sizes = [1, 1, 2, 512], strides = [1, 1, 1, 1]} : vector<8x1x2x512xf32> to vector<1x1x2x512xf32>
    %287 = vector.shape_cast %286 : vector<1x1x2x512xf32> to vector<1x2x512xf32>
    %288 = vector.extract_strided_slice %274 {offsets = [6, 0, 0, 0], sizes = [1, 1, 2, 512], strides = [1, 1, 1, 1]} : vector<8x1x2x512xf32> to vector<1x1x2x512xf32>
    %289 = vector.shape_cast %288 : vector<1x1x2x512xf32> to vector<1x2x512xf32>
    %290 = arith.addf %287, %289 : vector<1x2x512xf32>
    %291 = vector.shape_cast %268 : vector<1x512xf32> to vector<1x1x512xf32>
    %292 = vector.broadcast %291 : vector<1x1x512xf32> to vector<1x2x512xf32>
    %293 = arith.addf %290, %292 : vector<1x2x512xf32>
    %c1_135 = arith.constant 1 : index
    %c0_136 = arith.constant 0 : index
    %c0_137 = arith.constant 0 : index
    %c0_138 = arith.constant 0 : index
    %294 = vector.load %arg13[%c1_135, %c0_136, %c0_137, %c0_138] : memref<8x1x2x512xf32, #tpu.memory_space<vmem>>, vector<1x1x2x512xf32>
    %295 = vector.shape_cast %294 : vector<1x1x2x512xf32> to vector<1x2x512xf32>
    %296 = vector.shape_cast %293 : vector<1x2x512xf32> to vector<1x1x2x512xf32>
    tpu.vector_store %arg13[%c1_135, %c0_136, %c0_137, %c0_138], %296 {strides = array<i32>} : memref<8x1x2x512xf32, #tpu.memory_space<vmem>>, vector<1x1x2x512xf32>,
    %297 = vector.extract_strided_slice %273 {offsets = [2, 0, 0, 0], sizes = [1, 1, 2, 512], strides = [1, 1, 1, 1]} : vector<8x1x2x512xf32> to vector<1x1x2x512xf32>
    %298 = vector.shape_cast %297 : vector<1x1x2x512xf32> to vector<1x2x512xf32>
    %299 = vector.extract_strided_slice %274 {offsets = [5, 0, 0, 0], sizes = [1, 1, 2, 512], strides = [1, 1, 1, 1]} : vector<8x1x2x512xf32> to vector<1x1x2x512xf32>
    %300 = vector.shape_cast %299 : vector<1x1x2x512xf32> to vector<1x2x512xf32>
    %301 = arith.addf %298, %300 : vector<1x2x512xf32>
    %302 = vector.shape_cast %268 : vector<1x512xf32> to vector<1x1x512xf32>
    %303 = vector.broadcast %302 : vector<1x1x512xf32> to vector<1x2x512xf32>
    %304 = arith.addf %301, %303 : vector<1x2x512xf32>
    %c2_139 = arith.constant 2 : index
    %c0_140 = arith.constant 0 : index
    %c0_141 = arith.constant 0 : index
    %c0_142 = arith.constant 0 : index
    %305 = vector.load %arg13[%c2_139, %c0_140, %c0_141, %c0_142] : memref<8x1x2x512xf32, #tpu.memory_space<vmem>>, vector<1x1x2x512xf32>
    %306 = vector.shape_cast %305 : vector<1x1x2x512xf32> to vector<1x2x512xf32>
    %307 = vector.shape_cast %304 : vector<1x2x512xf32> to vector<1x1x2x512xf32>
    tpu.vector_store %arg13[%c2_139, %c0_140, %c0_141, %c0_142], %307 {strides = array<i32>} : memref<8x1x2x512xf32, #tpu.memory_space<vmem>>, vector<1x1x2x512xf32>,
    %308 = vector.extract_strided_slice %273 {offsets = [3, 0, 0, 0], sizes = [1, 1, 2, 512], strides = [1, 1, 1, 1]} : vector<8x1x2x512xf32> to vector<1x1x2x512xf32>
    %309 = vector.shape_cast %308 : vector<1x1x2x512xf32> to vector<1x2x512xf32>
    %310 = vector.extract_strided_slice %274 {offsets = [4, 0, 0, 0], sizes = [1, 1, 2, 512], strides = [1, 1, 1, 1]} : vector<8x1x2x512xf32> to vector<1x1x2x512xf32>
    %311 = vector.shape_cast %310 : vector<1x1x2x512xf32> to vector<1x2x512xf32>
    %312 = arith.addf %309, %311 : vector<1x2x512xf32>
    %313 = vector.shape_cast %268 : vector<1x512xf32> to vector<1x1x512xf32>
    %314 = vector.broadcast %313 : vector<1x1x512xf32> to vector<1x2x512xf32>
    %315 = arith.addf %312, %314 : vector<1x2x512xf32>
    %c3_143 = arith.constant 3 : index
    %c0_144 = arith.constant 0 : index
    %c0_145 = arith.constant 0 : index
    %c0_146 = arith.constant 0 : index
    %316 = vector.load %arg13[%c3_143, %c0_144, %c0_145, %c0_146] : memref<8x1x2x512xf32, #tpu.memory_space<vmem>>, vector<1x1x2x512xf32>
    %317 = vector.shape_cast %316 : vector<1x1x2x512xf32> to vector<1x2x512xf32>
    %318 = vector.shape_cast %315 : vector<1x2x512xf32> to vector<1x1x2x512xf32>
    tpu.vector_store %arg13[%c3_143, %c0_144, %c0_145, %c0_146], %318 {strides = array<i32>} : memref<8x1x2x512xf32, #tpu.memory_space<vmem>>, vector<1x1x2x512xf32>,
    %319 = vector.extract_strided_slice %273 {offsets = [4, 0, 0, 0], sizes = [1, 1, 2, 512], strides = [1, 1, 1, 1]} : vector<8x1x2x512xf32> to vector<1x1x2x512xf32>
    %320 = vector.shape_cast %319 : vector<1x1x2x512xf32> to vector<1x2x512xf32>
    %321 = vector.extract_strided_slice %274 {offsets = [3, 0, 0, 0], sizes = [1, 1, 2, 512], strides = [1, 1, 1, 1]} : vector<8x1x2x512xf32> to vector<1x1x2x512xf32>
    %322 = vector.shape_cast %321 : vector<1x1x2x512xf32> to vector<1x2x512xf32>
    %323 = arith.addf %320, %322 : vector<1x2x512xf32>
    %324 = vector.shape_cast %268 : vector<1x512xf32> to vector<1x1x512xf32>
    %325 = vector.broadcast %324 : vector<1x1x512xf32> to vector<1x2x512xf32>
    %326 = arith.addf %323, %325 : vector<1x2x512xf32>
    %c4_147 = arith.constant 4 : index
    %c0_148 = arith.constant 0 : index
    %c0_149 = arith.constant 0 : index
    %c0_150 = arith.constant 0 : index
    %327 = vector.load %arg13[%c4_147, %c0_148, %c0_149, %c0_150] : memref<8x1x2x512xf32, #tpu.memory_space<vmem>>, vector<1x1x2x512xf32>
    %328 = vector.shape_cast %327 : vector<1x1x2x512xf32> to vector<1x2x512xf32>
    %329 = vector.shape_cast %326 : vector<1x2x512xf32> to vector<1x1x2x512xf32>
    tpu.vector_store %arg13[%c4_147, %c0_148, %c0_149, %c0_150], %329 {strides = array<i32>} : memref<8x1x2x512xf32, #tpu.memory_space<vmem>>, vector<1x1x2x512xf32>,
    %330 = vector.extract_strided_slice %273 {offsets = [5, 0, 0, 0], sizes = [1, 1, 2, 512], strides = [1, 1, 1, 1]} : vector<8x1x2x512xf32> to vector<1x1x2x512xf32>
    %331 = vector.shape_cast %330 : vector<1x1x2x512xf32> to vector<1x2x512xf32>
    %332 = vector.extract_strided_slice %274 {offsets = [2, 0, 0, 0], sizes = [1, 1, 2, 512], strides = [1, 1, 1, 1]} : vector<8x1x2x512xf32> to vector<1x1x2x512xf32>
    %333 = vector.shape_cast %332 : vector<1x1x2x512xf32> to vector<1x2x512xf32>
    %334 = arith.addf %331, %333 : vector<1x2x512xf32>
    %335 = vector.shape_cast %268 : vector<1x512xf32> to vector<1x1x512xf32>
    %336 = vector.broadcast %335 : vector<1x1x512xf32> to vector<1x2x512xf32>
    %337 = arith.addf %334, %336 : vector<1x2x512xf32>
    %c5_151 = arith.constant 5 : index
    %c0_152 = arith.constant 0 : index
    %c0_153 = arith.constant 0 : index
    %c0_154 = arith.constant 0 : index
    %338 = vector.load %arg13[%c5_151, %c0_152, %c0_153, %c0_154] : memref<8x1x2x512xf32, #tpu.memory_space<vmem>>, vector<1x1x2x512xf32>
    %339 = vector.shape_cast %338 : vector<1x1x2x512xf32> to vector<1x2x512xf32>
    %340 = vector.shape_cast %337 : vector<1x2x512xf32> to vector<1x1x2x512xf32>
    tpu.vector_store %arg13[%c5_151, %c0_152, %c0_153, %c0_154], %340 {strides = array<i32>} : memref<8x1x2x512xf32, #tpu.memory_space<vmem>>, vector<1x1x2x512xf32>,
    %341 = vector.extract_strided_slice %273 {offsets = [6, 0, 0, 0], sizes = [1, 1, 2, 512], strides = [1, 1, 1, 1]} : vector<8x1x2x512xf32> to vector<1x1x2x512xf32>
    %342 = vector.shape_cast %341 : vector<1x1x2x512xf32> to vector<1x2x512xf32>
    %343 = vector.extract_strided_slice %274 {offsets = [1, 0, 0, 0], sizes = [1, 1, 2, 512], strides = [1, 1, 1, 1]} : vector<8x1x2x512xf32> to vector<1x1x2x512xf32>
    %344 = vector.shape_cast %343 : vector<1x1x2x512xf32> to vector<1x2x512xf32>
    %345 = arith.addf %342, %344 : vector<1x2x512xf32>
    %346 = vector.shape_cast %268 : vector<1x512xf32> to vector<1x1x512xf32>
    %347 = vector.broadcast %346 : vector<1x1x512xf32> to vector<1x2x512xf32>
    %348 = arith.addf %345, %347 : vector<1x2x512xf32>
    %c6_155 = arith.constant 6 : index
    %c0_156 = arith.constant 0 : index
    %c0_157 = arith.constant 0 : index
    %c0_158 = arith.constant 0 : index
    %349 = vector.load %arg13[%c6_155, %c0_156, %c0_157, %c0_158] : memref<8x1x2x512xf32, #tpu.memory_space<vmem>>, vector<1x1x2x512xf32>
    %350 = vector.shape_cast %349 : vector<1x1x2x512xf32> to vector<1x2x512xf32>
    %351 = vector.shape_cast %348 : vector<1x2x512xf32> to vector<1x1x2x512xf32>
    tpu.vector_store %arg13[%c6_155, %c0_156, %c0_157, %c0_158], %351 {strides = array<i32>} : memref<8x1x2x512xf32, #tpu.memory_space<vmem>>, vector<1x1x2x512xf32>,
    %352 = vector.extract_strided_slice %273 {offsets = [7, 0, 0, 0], sizes = [1, 1, 2, 512], strides = [1, 1, 1, 1]} : vector<8x1x2x512xf32> to vector<1x1x2x512xf32>
    %353 = vector.shape_cast %352 : vector<1x1x2x512xf32> to vector<1x2x512xf32>
    %354 = vector.extract_strided_slice %274 {offsets = [0, 0, 0, 0], sizes = [1, 1, 2, 512], strides = [1, 1, 1, 1]} : vector<8x1x2x512xf32> to vector<1x1x2x512xf32>
    %355 = vector.shape_cast %354 : vector<1x1x2x512xf32> to vector<1x2x512xf32>
    %356 = arith.addf %353, %355 : vector<1x2x512xf32>
    %357 = vector.shape_cast %268 : vector<1x512xf32> to vector<1x1x512xf32>
    %358 = vector.broadcast %357 : vector<1x1x512xf32> to vector<1x2x512xf32>
    %359 = arith.addf %356, %358 : vector<1x2x512xf32>
    %c7_159 = arith.constant 7 : index
    %c0_160 = arith.constant 0 : index
    %c0_161 = arith.constant 0 : index
    %c0_162 = arith.constant 0 : index
    %360 = vector.load %arg13[%c7_159, %c0_160, %c0_161, %c0_162] : memref<8x1x2x512xf32, #tpu.memory_space<vmem>>, vector<1x1x2x512xf32>
    %361 = vector.shape_cast %360 : vector<1x1x2x512xf32> to vector<1x2x512xf32>
    %362 = vector.shape_cast %359 : vector<1x2x512xf32> to vector<1x1x2x512xf32>
    tpu.vector_store %arg13[%c7_159, %c0_160, %c0_161, %c0_162], %362 {strides = array<i32>} : memref<8x1x2x512xf32, #tpu.memory_space<vmem>>, vector<1x1x2x512xf32>,
    %cst_163 = arith.constant 0.000000e+00 : f32
    %363 = vector.broadcast %cst_163 : f32 to vector<2x128xf32>
    %cst_164 = arith.constant 0.000000e+00 : f32
    %364 = vector.broadcast %cst_164 : f32 to vector<2x128xf32>
    %c0_165 = arith.constant 0 : index
    %c0_166 = arith.constant 0 : index
    %c0_167 = arith.constant 0 : index
    %c0_168 = arith.constant 0 : index
    %365 = vector.load %arg13[%c0_165, %c0_166, %c0_167, %c0_168] : memref<8x1x2x512xf32, #tpu.memory_space<vmem>>, vector<1x1x2x512xf32>
    %366 = vector.shape_cast %365 : vector<1x1x2x512xf32> to vector<2x512xf32>
    %cst_169 = arith.constant dense<0.000000e+00> : vector<2x512xf32>
    %367 = tpu.matmul %363, %267, %cst_169 {dimension_numbers = #tpu.dot_dimension_numbers<[1], [0], [0], [1], [0, 0, 1, 1], [], []>} : vector<2x128xf32>, vector<128x512xf32>, vector<2x512xf32> -> vector<2x512xf32>
    %368 = arith.addf %366, %367 : vector<2x512xf32>
    %369 = vector.extract_strided_slice %368 {offsets = [0, 0], sizes = [2, 384], strides = [1, 1]} : vector<2x512xf32> to vector<2x384xf32>
    %370 = arith.negf %369 : vector<2x384xf32>
    %371 = math.exp %370 : vector<2x384xf32>
    %cst_170 = arith.constant 1.000000e+00 : f32
    %372 = vector.broadcast %cst_170 : f32 to vector<2x384xf32>
    %373 = arith.addf %372, %371 : vector<2x384xf32>
    %374 = arith.divf %372, %373 : vector<2x384xf32>
    %375 = vector.extract_strided_slice %368 {offsets = [0, 384], sizes = [2, 128], strides = [1, 1]} : vector<2x512xf32> to vector<2x128xf32>
    %376 = math.tanh %375 : vector<2x128xf32>
    %377 = vector.extract_strided_slice %374 {offsets = [0, 128], sizes = [2, 128], strides = [1, 1]} : vector<2x384xf32> to vector<2x128xf32>
    %378 = arith.mulf %377, %364 : vector<2x128xf32>
    %379 = vector.extract_strided_slice %374 {offsets = [0, 0], sizes = [2, 128], strides = [1, 1]} : vector<2x384xf32> to vector<2x128xf32>
    %380 = arith.mulf %379, %376 : vector<2x128xf32>
    %381 = arith.addf %378, %380 : vector<2x128xf32>
    %382 = vector.extract_strided_slice %374 {offsets = [0, 256], sizes = [2, 128], strides = [1, 1]} : vector<2x384xf32> to vector<2x128xf32>
    %383 = math.tanh %381 : vector<2x128xf32>
    %384 = arith.mulf %382, %383 : vector<2x128xf32>
    %c0_171 = arith.constant 0 : index
    %c0_172 = arith.constant 0 : index
    %c0_173 = arith.constant 0 : index
    %385 = vector.load %arg15[%c0_171, %c0_172, %c0_173] : memref<1x2x1024xf32, #tpu.memory_space<vmem>>, vector<1x2x128xf32>
    %386 = vector.shape_cast %385 : vector<1x2x128xf32> to vector<2x128xf32>
    %387 = vector.shape_cast %384 : vector<2x128xf32> to vector<1x2x128xf32>
    tpu.vector_store %arg15[%c0_171, %c0_172, %c0_173], %387 {strides = array<i32>} : memref<1x2x1024xf32, #tpu.memory_space<vmem>>, vector<1x2x128xf32>,
    %c1_174 = arith.constant 1 : index
    %c0_175 = arith.constant 0 : index
    %c0_176 = arith.constant 0 : index
    %c0_177 = arith.constant 0 : index
    %388 = vector.load %arg13[%c1_174, %c0_175, %c0_176, %c0_177] : memref<8x1x2x512xf32, #tpu.memory_space<vmem>>, vector<1x1x2x512xf32>
    %389 = vector.shape_cast %388 : vector<1x1x2x512xf32> to vector<2x512xf32>
    %cst_178 = arith.constant dense<0.000000e+00> : vector<2x512xf32>
    %390 = tpu.matmul %384, %267, %cst_178 {dimension_numbers = #tpu.dot_dimension_numbers<[1], [0], [0], [1], [0, 0, 1, 1], [], []>} : vector<2x128xf32>, vector<128x512xf32>, vector<2x512xf32> -> vector<2x512xf32>
    %391 = arith.addf %389, %390 : vector<2x512xf32>
    %392 = vector.extract_strided_slice %391 {offsets = [0, 0], sizes = [2, 384], strides = [1, 1]} : vector<2x512xf32> to vector<2x384xf32>
    %393 = arith.negf %392 : vector<2x384xf32>
    %394 = math.exp %393 : vector<2x384xf32>
    %cst_179 = arith.constant 1.000000e+00 : f32
    %395 = vector.broadcast %cst_179 : f32 to vector<2x384xf32>
    %396 = arith.addf %395, %394 : vector<2x384xf32>
    %397 = arith.divf %395, %396 : vector<2x384xf32>
    %398 = vector.extract_strided_slice %391 {offsets = [0, 384], sizes = [2, 128], strides = [1, 1]} : vector<2x512xf32> to vector<2x128xf32>
    %399 = math.tanh %398 : vector<2x128xf32>
    %400 = vector.extract_strided_slice %397 {offsets = [0, 128], sizes = [2, 128], strides = [1, 1]} : vector<2x384xf32> to vector<2x128xf32>
    %401 = arith.mulf %400, %381 : vector<2x128xf32>
    %402 = vector.extract_strided_slice %397 {offsets = [0, 0], sizes = [2, 128], strides = [1, 1]} : vector<2x384xf32> to vector<2x128xf32>
    %403 = arith.mulf %402, %399 : vector<2x128xf32>
    %404 = arith.addf %401, %403 : vector<2x128xf32>
    %405 = vector.extract_strided_slice %397 {offsets = [0, 256], sizes = [2, 128], strides = [1, 1]} : vector<2x384xf32> to vector<2x128xf32>
    %406 = math.tanh %404 : vector<2x128xf32>
    %407 = arith.mulf %405, %406 : vector<2x128xf32>
    %c0_180 = arith.constant 0 : index
    %c0_181 = arith.constant 0 : index
    %c128 = arith.constant 128 : index
    %408 = vector.load %arg15[%c0_180, %c0_181, %c128] : memref<1x2x1024xf32, #tpu.memory_space<vmem>>, vector<1x2x128xf32>
    %409 = vector.shape_cast %408 : vector<1x2x128xf32> to vector<2x128xf32>
    %410 = vector.shape_cast %407 : vector<2x128xf32> to vector<1x2x128xf32>
    tpu.vector_store %arg15[%c0_180, %c0_181, %c128], %410 {strides = array<i32>} : memref<1x2x1024xf32, #tpu.memory_space<vmem>>, vector<1x2x128xf32>,
    %c2_182 = arith.constant 2 : index
    %c0_183 = arith.constant 0 : index
    %c0_184 = arith.constant 0 : index
    %c0_185 = arith.constant 0 : index
    %411 = vector.load %arg13[%c2_182, %c0_183, %c0_184, %c0_185] : memref<8x1x2x512xf32, #tpu.memory_space<vmem>>, vector<1x1x2x512xf32>
    %412 = vector.shape_cast %411 : vector<1x1x2x512xf32> to vector<2x512xf32>
    %cst_186 = arith.constant dense<0.000000e+00> : vector<2x512xf32>
    %413 = tpu.matmul %407, %267, %cst_186 {dimension_numbers = #tpu.dot_dimension_numbers<[1], [0], [0], [1], [0, 0, 1, 1], [], []>} : vector<2x128xf32>, vector<128x512xf32>, vector<2x512xf32> -> vector<2x512xf32>
    %414 = arith.addf %412, %413 : vector<2x512xf32>
    %415 = vector.extract_strided_slice %414 {offsets = [0, 0], sizes = [2, 384], strides = [1, 1]} : vector<2x512xf32> to vector<2x384xf32>
    %416 = arith.negf %415 : vector<2x384xf32>
    %417 = math.exp %416 : vector<2x384xf32>
    %cst_187 = arith.constant 1.000000e+00 : f32
    %418 = vector.broadcast %cst_187 : f32 to vector<2x384xf32>
    %419 = arith.addf %418, %417 : vector<2x384xf32>
    %420 = arith.divf %418, %419 : vector<2x384xf32>
    %421 = vector.extract_strided_slice %414 {offsets = [0, 384], sizes = [2, 128], strides = [1, 1]} : vector<2x512xf32> to vector<2x128xf32>
    %422 = math.tanh %421 : vector<2x128xf32>
    %423 = vector.extract_strided_slice %420 {offsets = [0, 128], sizes = [2, 128], strides = [1, 1]} : vector<2x384xf32> to vector<2x128xf32>
    %424 = arith.mulf %423, %404 : vector<2x128xf32>
    %425 = vector.extract_strided_slice %420 {offsets = [0, 0], sizes = [2, 128], strides = [1, 1]} : vector<2x384xf32> to vector<2x128xf32>
    %426 = arith.mulf %425, %422 : vector<2x128xf32>
    %427 = arith.addf %424, %426 : vector<2x128xf32>
    %428 = vector.extract_strided_slice %420 {offsets = [0, 256], sizes = [2, 128], strides = [1, 1]} : vector<2x384xf32> to vector<2x128xf32>
    %429 = math.tanh %427 : vector<2x128xf32>
    %430 = arith.mulf %428, %429 : vector<2x128xf32>
    %c0_188 = arith.constant 0 : index
    %c0_189 = arith.constant 0 : index
    %c256 = arith.constant 256 : index
    %431 = vector.load %arg15[%c0_188, %c0_189, %c256] : memref<1x2x1024xf32, #tpu.memory_space<vmem>>, vector<1x2x128xf32>
    %432 = vector.shape_cast %431 : vector<1x2x128xf32> to vector<2x128xf32>
    %433 = vector.shape_cast %430 : vector<2x128xf32> to vector<1x2x128xf32>
    tpu.vector_store %arg15[%c0_188, %c0_189, %c256], %433 {strides = array<i32>} : memref<1x2x1024xf32, #tpu.memory_space<vmem>>, vector<1x2x128xf32>,
    %c3_190 = arith.constant 3 : index
    %c0_191 = arith.constant 0 : index
    %c0_192 = arith.constant 0 : index
    %c0_193 = arith.constant 0 : index
    %434 = vector.load %arg13[%c3_190, %c0_191, %c0_192, %c0_193] : memref<8x1x2x512xf32, #tpu.memory_space<vmem>>, vector<1x1x2x512xf32>
    %435 = vector.shape_cast %434 : vector<1x1x2x512xf32> to vector<2x512xf32>
    %cst_194 = arith.constant dense<0.000000e+00> : vector<2x512xf32>
    %436 = tpu.matmul %430, %267, %cst_194 {dimension_numbers = #tpu.dot_dimension_numbers<[1], [0], [0], [1], [0, 0, 1, 1], [], []>} : vector<2x128xf32>, vector<128x512xf32>, vector<2x512xf32> -> vector<2x512xf32>
    %437 = arith.addf %435, %436 : vector<2x512xf32>
    %438 = vector.extract_strided_slice %437 {offsets = [0, 0], sizes = [2, 384], strides = [1, 1]} : vector<2x512xf32> to vector<2x384xf32>
    %439 = arith.negf %438 : vector<2x384xf32>
    %440 = math.exp %439 : vector<2x384xf32>
    %cst_195 = arith.constant 1.000000e+00 : f32
    %441 = vector.broadcast %cst_195 : f32 to vector<2x384xf32>
    %442 = arith.addf %441, %440 : vector<2x384xf32>
    %443 = arith.divf %441, %442 : vector<2x384xf32>
    %444 = vector.extract_strided_slice %437 {offsets = [0, 384], sizes = [2, 128], strides = [1, 1]} : vector<2x512xf32> to vector<2x128xf32>
    %445 = math.tanh %444 : vector<2x128xf32>
    %446 = vector.extract_strided_slice %443 {offsets = [0, 128], sizes = [2, 128], strides = [1, 1]} : vector<2x384xf32> to vector<2x128xf32>
    %447 = arith.mulf %446, %427 : vector<2x128xf32>
    %448 = vector.extract_strided_slice %443 {offsets = [0, 0], sizes = [2, 128], strides = [1, 1]} : vector<2x384xf32> to vector<2x128xf32>
    %449 = arith.mulf %448, %445 : vector<2x128xf32>
    %450 = arith.addf %447, %449 : vector<2x128xf32>
    %451 = vector.extract_strided_slice %443 {offsets = [0, 256], sizes = [2, 128], strides = [1, 1]} : vector<2x384xf32> to vector<2x128xf32>
    %452 = math.tanh %450 : vector<2x128xf32>
    %453 = arith.mulf %451, %452 : vector<2x128xf32>
    %c0_196 = arith.constant 0 : index
    %c0_197 = arith.constant 0 : index
    %c384 = arith.constant 384 : index
    %454 = vector.load %arg15[%c0_196, %c0_197, %c384] : memref<1x2x1024xf32, #tpu.memory_space<vmem>>, vector<1x2x128xf32>
    %455 = vector.shape_cast %454 : vector<1x2x128xf32> to vector<2x128xf32>
    %456 = vector.shape_cast %453 : vector<2x128xf32> to vector<1x2x128xf32>
    tpu.vector_store %arg15[%c0_196, %c0_197, %c384], %456 {strides = array<i32>} : memref<1x2x1024xf32, #tpu.memory_space<vmem>>, vector<1x2x128xf32>,
    %c4_198 = arith.constant 4 : index
    %c0_199 = arith.constant 0 : index
    %c0_200 = arith.constant 0 : index
    %c0_201 = arith.constant 0 : index
    %457 = vector.load %arg13[%c4_198, %c0_199, %c0_200, %c0_201] : memref<8x1x2x512xf32, #tpu.memory_space<vmem>>, vector<1x1x2x512xf32>
    %458 = vector.shape_cast %457 : vector<1x1x2x512xf32> to vector<2x512xf32>
    %cst_202 = arith.constant dense<0.000000e+00> : vector<2x512xf32>
    %459 = tpu.matmul %453, %267, %cst_202 {dimension_numbers = #tpu.dot_dimension_numbers<[1], [0], [0], [1], [0, 0, 1, 1], [], []>} : vector<2x128xf32>, vector<128x512xf32>, vector<2x512xf32> -> vector<2x512xf32>
    %460 = arith.addf %458, %459 : vector<2x512xf32>
    %461 = vector.extract_strided_slice %460 {offsets = [0, 0], sizes = [2, 384], strides = [1, 1]} : vector<2x512xf32> to vector<2x384xf32>
    %462 = arith.negf %461 : vector<2x384xf32>
    %463 = math.exp %462 : vector<2x384xf32>
    %cst_203 = arith.constant 1.000000e+00 : f32
    %464 = vector.broadcast %cst_203 : f32 to vector<2x384xf32>
    %465 = arith.addf %464, %463 : vector<2x384xf32>
    %466 = arith.divf %464, %465 : vector<2x384xf32>
    %467 = vector.extract_strided_slice %460 {offsets = [0, 384], sizes = [2, 128], strides = [1, 1]} : vector<2x512xf32> to vector<2x128xf32>
    %468 = math.tanh %467 : vector<2x128xf32>
    %469 = vector.extract_strided_slice %466 {offsets = [0, 128], sizes = [2, 128], strides = [1, 1]} : vector<2x384xf32> to vector<2x128xf32>
    %470 = arith.mulf %469, %450 : vector<2x128xf32>
    %471 = vector.extract_strided_slice %466 {offsets = [0, 0], sizes = [2, 128], strides = [1, 1]} : vector<2x384xf32> to vector<2x128xf32>
    %472 = arith.mulf %471, %468 : vector<2x128xf32>
    %473 = arith.addf %470, %472 : vector<2x128xf32>
    %474 = vector.extract_strided_slice %466 {offsets = [0, 256], sizes = [2, 128], strides = [1, 1]} : vector<2x384xf32> to vector<2x128xf32>
    %475 = math.tanh %473 : vector<2x128xf32>
    %476 = arith.mulf %474, %475 : vector<2x128xf32>
    %c0_204 = arith.constant 0 : index
    %c0_205 = arith.constant 0 : index
    %c512 = arith.constant 512 : index
    %477 = vector.load %arg15[%c0_204, %c0_205, %c512] : memref<1x2x1024xf32, #tpu.memory_space<vmem>>, vector<1x2x128xf32>
    %478 = vector.shape_cast %477 : vector<1x2x128xf32> to vector<2x128xf32>
    %479 = vector.shape_cast %476 : vector<2x128xf32> to vector<1x2x128xf32>
    tpu.vector_store %arg15[%c0_204, %c0_205, %c512], %479 {strides = array<i32>} : memref<1x2x1024xf32, #tpu.memory_space<vmem>>, vector<1x2x128xf32>,
    %c5_206 = arith.constant 5 : index
    %c0_207 = arith.constant 0 : index
    %c0_208 = arith.constant 0 : index
    %c0_209 = arith.constant 0 : index
    %480 = vector.load %arg13[%c5_206, %c0_207, %c0_208, %c0_209] : memref<8x1x2x512xf32, #tpu.memory_space<vmem>>, vector<1x1x2x512xf32>
    %481 = vector.shape_cast %480 : vector<1x1x2x512xf32> to vector<2x512xf32>
    %cst_210 = arith.constant dense<0.000000e+00> : vector<2x512xf32>
    %482 = tpu.matmul %476, %267, %cst_210 {dimension_numbers = #tpu.dot_dimension_numbers<[1], [0], [0], [1], [0, 0, 1, 1], [], []>} : vector<2x128xf32>, vector<128x512xf32>, vector<2x512xf32> -> vector<2x512xf32>
    %483 = arith.addf %481, %482 : vector<2x512xf32>
    %484 = vector.extract_strided_slice %483 {offsets = [0, 0], sizes = [2, 384], strides = [1, 1]} : vector<2x512xf32> to vector<2x384xf32>
    %485 = arith.negf %484 : vector<2x384xf32>
    %486 = math.exp %485 : vector<2x384xf32>
    %cst_211 = arith.constant 1.000000e+00 : f32
    %487 = vector.broadcast %cst_211 : f32 to vector<2x384xf32>
    %488 = arith.addf %487, %486 : vector<2x384xf32>
    %489 = arith.divf %487, %488 : vector<2x384xf32>
    %490 = vector.extract_strided_slice %483 {offsets = [0, 384], sizes = [2, 128], strides = [1, 1]} : vector<2x512xf32> to vector<2x128xf32>
    %491 = math.tanh %490 : vector<2x128xf32>
    %492 = vector.extract_strided_slice %489 {offsets = [0, 128], sizes = [2, 128], strides = [1, 1]} : vector<2x384xf32> to vector<2x128xf32>
    %493 = arith.mulf %492, %473 : vector<2x128xf32>
    %494 = vector.extract_strided_slice %489 {offsets = [0, 0], sizes = [2, 128], strides = [1, 1]} : vector<2x384xf32> to vector<2x128xf32>
    %495 = arith.mulf %494, %491 : vector<2x128xf32>
    %496 = arith.addf %493, %495 : vector<2x128xf32>
    %497 = vector.extract_strided_slice %489 {offsets = [0, 256], sizes = [2, 128], strides = [1, 1]} : vector<2x384xf32> to vector<2x128xf32>
    %498 = math.tanh %496 : vector<2x128xf32>
    %499 = arith.mulf %497, %498 : vector<2x128xf32>
    %c0_212 = arith.constant 0 : index
    %c0_213 = arith.constant 0 : index
    %c640 = arith.constant 640 : index
    %500 = vector.load %arg15[%c0_212, %c0_213, %c640] : memref<1x2x1024xf32, #tpu.memory_space<vmem>>, vector<1x2x128xf32>
    %501 = vector.shape_cast %500 : vector<1x2x128xf32> to vector<2x128xf32>
    %502 = vector.shape_cast %499 : vector<2x128xf32> to vector<1x2x128xf32>
    tpu.vector_store %arg15[%c0_212, %c0_213, %c640], %502 {strides = array<i32>} : memref<1x2x1024xf32, #tpu.memory_space<vmem>>, vector<1x2x128xf32>,
    %c6_214 = arith.constant 6 : index
    %c0_215 = arith.constant 0 : index
    %c0_216 = arith.constant 0 : index
    %c0_217 = arith.constant 0 : index
    %503 = vector.load %arg13[%c6_214, %c0_215, %c0_216, %c0_217] : memref<8x1x2x512xf32, #tpu.memory_space<vmem>>, vector<1x1x2x512xf32>
    %504 = vector.shape_cast %503 : vector<1x1x2x512xf32> to vector<2x512xf32>
    %cst_218 = arith.constant dense<0.000000e+00> : vector<2x512xf32>
    %505 = tpu.matmul %499, %267, %cst_218 {dimension_numbers = #tpu.dot_dimension_numbers<[1], [0], [0], [1], [0, 0, 1, 1], [], []>} : vector<2x128xf32>, vector<128x512xf32>, vector<2x512xf32> -> vector<2x512xf32>
    %506 = arith.addf %504, %505 : vector<2x512xf32>
    %507 = vector.extract_strided_slice %506 {offsets = [0, 0], sizes = [2, 384], strides = [1, 1]} : vector<2x512xf32> to vector<2x384xf32>
    %508 = arith.negf %507 : vector<2x384xf32>
    %509 = math.exp %508 : vector<2x384xf32>
    %cst_219 = arith.constant 1.000000e+00 : f32
    %510 = vector.broadcast %cst_219 : f32 to vector<2x384xf32>
    %511 = arith.addf %510, %509 : vector<2x384xf32>
    %512 = arith.divf %510, %511 : vector<2x384xf32>
    %513 = vector.extract_strided_slice %506 {offsets = [0, 384], sizes = [2, 128], strides = [1, 1]} : vector<2x512xf32> to vector<2x128xf32>
    %514 = math.tanh %513 : vector<2x128xf32>
    %515 = vector.extract_strided_slice %512 {offsets = [0, 128], sizes = [2, 128], strides = [1, 1]} : vector<2x384xf32> to vector<2x128xf32>
    %516 = arith.mulf %515, %496 : vector<2x128xf32>
    %517 = vector.extract_strided_slice %512 {offsets = [0, 0], sizes = [2, 128], strides = [1, 1]} : vector<2x384xf32> to vector<2x128xf32>
    %518 = arith.mulf %517, %514 : vector<2x128xf32>
    %519 = arith.addf %516, %518 : vector<2x128xf32>
    %520 = vector.extract_strided_slice %512 {offsets = [0, 256], sizes = [2, 128], strides = [1, 1]} : vector<2x384xf32> to vector<2x128xf32>
    %521 = math.tanh %519 : vector<2x128xf32>
    %522 = arith.mulf %520, %521 : vector<2x128xf32>
    %c0_220 = arith.constant 0 : index
    %c0_221 = arith.constant 0 : index
    %c768 = arith.constant 768 : index
    %523 = vector.load %arg15[%c0_220, %c0_221, %c768] : memref<1x2x1024xf32, #tpu.memory_space<vmem>>, vector<1x2x128xf32>
    %524 = vector.shape_cast %523 : vector<1x2x128xf32> to vector<2x128xf32>
    %525 = vector.shape_cast %522 : vector<2x128xf32> to vector<1x2x128xf32>
    tpu.vector_store %arg15[%c0_220, %c0_221, %c768], %525 {strides = array<i32>} : memref<1x2x1024xf32, #tpu.memory_space<vmem>>, vector<1x2x128xf32>,
    %c7_222 = arith.constant 7 : index
    %c0_223 = arith.constant 0 : index
    %c0_224 = arith.constant 0 : index
    %c0_225 = arith.constant 0 : index
    %526 = vector.load %arg13[%c7_222, %c0_223, %c0_224, %c0_225] : memref<8x1x2x512xf32, #tpu.memory_space<vmem>>, vector<1x1x2x512xf32>
    %527 = vector.shape_cast %526 : vector<1x1x2x512xf32> to vector<2x512xf32>
    %cst_226 = arith.constant dense<0.000000e+00> : vector<2x512xf32>
    %528 = tpu.matmul %522, %267, %cst_226 {dimension_numbers = #tpu.dot_dimension_numbers<[1], [0], [0], [1], [0, 0, 1, 1], [], []>} : vector<2x128xf32>, vector<128x512xf32>, vector<2x512xf32> -> vector<2x512xf32>
    %529 = arith.addf %527, %528 : vector<2x512xf32>
    %530 = vector.extract_strided_slice %529 {offsets = [0, 0], sizes = [2, 384], strides = [1, 1]} : vector<2x512xf32> to vector<2x384xf32>
    %531 = arith.negf %530 : vector<2x384xf32>
    %532 = math.exp %531 : vector<2x384xf32>
    %cst_227 = arith.constant 1.000000e+00 : f32
    %533 = vector.broadcast %cst_227 : f32 to vector<2x384xf32>
    %534 = arith.addf %533, %532 : vector<2x384xf32>
    %535 = arith.divf %533, %534 : vector<2x384xf32>
    %536 = vector.extract_strided_slice %529 {offsets = [0, 384], sizes = [2, 128], strides = [1, 1]} : vector<2x512xf32> to vector<2x128xf32>
    %537 = math.tanh %536 : vector<2x128xf32>
    %538 = vector.extract_strided_slice %535 {offsets = [0, 128], sizes = [2, 128], strides = [1, 1]} : vector<2x384xf32> to vector<2x128xf32>
    %539 = arith.mulf %538, %519 : vector<2x128xf32>
    %540 = vector.extract_strided_slice %535 {offsets = [0, 0], sizes = [2, 128], strides = [1, 1]} : vector<2x384xf32> to vector<2x128xf32>
    %541 = arith.mulf %540, %537 : vector<2x128xf32>
    %542 = arith.addf %539, %541 : vector<2x128xf32>
    %543 = vector.extract_strided_slice %535 {offsets = [0, 256], sizes = [2, 128], strides = [1, 1]} : vector<2x384xf32> to vector<2x128xf32>
    %544 = math.tanh %542 : vector<2x128xf32>
    %545 = arith.mulf %543, %544 : vector<2x128xf32>
    %c0_228 = arith.constant 0 : index
    %c0_229 = arith.constant 0 : index
    %c896 = arith.constant 896 : index
    %546 = vector.load %arg15[%c0_228, %c0_229, %c896] : memref<1x2x1024xf32, #tpu.memory_space<vmem>>, vector<1x2x128xf32>
    %547 = vector.shape_cast %546 : vector<1x2x128xf32> to vector<2x128xf32>
    %548 = vector.shape_cast %545 : vector<2x128xf32> to vector<1x2x128xf32>
    tpu.vector_store %arg15[%c0_228, %c0_229, %c896], %548 {strides = array<i32>} : memref<1x2x1024xf32, #tpu.memory_space<vmem>>, vector<1x2x128xf32>,
    %c0_230 = arith.constant 0 : index
    %c0_231 = arith.constant 0 : index
    %549 = vector.load %arg10[%c0_230, %c0_231] : memref<1024x128xf32, #tpu.memory_space<vmem>>, vector<1024x128xf32>
    %c0_232 = arith.constant 0 : index
    %c0_233 = arith.constant 0 : index
    %550 = vector.load %arg11[%c0_232, %c0_233] : memref<1x128xf32, #tpu.memory_space<vmem>>, vector<1x128xf32>
    %c0_234 = arith.constant 0 : index
    %c0_235 = arith.constant 0 : index
    %c0_236 = arith.constant 0 : index
    %551 = vector.load %arg15[%c0_234, %c0_235, %c0_236] : memref<1x2x1024xf32, #tpu.memory_space<vmem>>, vector<1x2x1024xf32>
    %552 = vector.shape_cast %551 : vector<1x2x1024xf32> to vector<2x1024xf32>
    %cst_237 = arith.constant dense<0.000000e+00> : vector<2x128xf32>
    %553 = tpu.matmul %552, %549, %cst_237 {dimension_numbers = #tpu.dot_dimension_numbers<[1], [0], [0], [1], [0, 0, 1, 1], [], []>} : vector<2x1024xf32>, vector<1024x128xf32>, vector<2x128xf32> -> vector<2x128xf32>
    %554 = vector.broadcast %550 : vector<1x128xf32> to vector<2x128xf32>
    %555 = arith.addf %553, %554 : vector<2x128xf32>
    %c0_238 = arith.constant 0 : index
    %c0_239 = arith.constant 0 : index
    %556 = vector.load %arg12[%c0_238, %c0_239] : memref<2x128xf32, #tpu.memory_space<vmem>>, vector<2x128xf32>
    tpu.vector_store %arg12[%c0_238, %c0_239], %555 {strides = array<i32>} : memref<2x128xf32, #tpu.memory_space<vmem>>, vector<2x128xf32>,
    return
  }
  func.func @transform_0(%arg0: i32) -> (i32, i32) {
    %c0_i32 = arith.constant 0 : i32
    %c0_i32_0 = arith.constant 0 : i32
    return %arg0, %c0_i32 : i32, i32
  }
  func.func @transform_1(%arg0: i32) -> (i32, i32) {
    %c0_i32 = arith.constant 0 : i32
    %c0_i32_0 = arith.constant 0 : i32
    %c0_i32_1 = arith.constant 0 : i32
    return %c0_i32, %c0_i32_0 : i32, i32
  }
  func.func @transform_2(%arg0: i32) -> (i32, i32) {
    %c0_i32 = arith.constant 0 : i32
    %c0_i32_0 = arith.constant 0 : i32
    %c0_i32_1 = arith.constant 0 : i32
    return %c0_i32, %c0_i32_0 : i32, i32
  }
  func.func @transform_3(%arg0: i32) -> (i32, i32) {
    %c0_i32 = arith.constant 0 : i32
    %c0_i32_0 = arith.constant 0 : i32
    %c0_i32_1 = arith.constant 0 : i32
    return %c0_i32, %c0_i32_0 : i32, i32
  }
  func.func @transform_4(%arg0: i32) -> (i32, i32) {
    %c0_i32 = arith.constant 0 : i32
    %c0_i32_0 = arith.constant 0 : i32
    %c0_i32_1 = arith.constant 0 : i32
    return %c0_i32, %c0_i32_0 : i32, i32
  }
  func.func @transform_5(%arg0: i32) -> (i32, i32) {
    %c0_i32 = arith.constant 0 : i32
    %c0_i32_0 = arith.constant 0 : i32
    %c0_i32_1 = arith.constant 0 : i32
    return %c0_i32, %c0_i32_0 : i32, i32
  }
  func.func @transform_6(%arg0: i32) -> (i32, i32) {
    %c0_i32 = arith.constant 0 : i32
    %c0_i32_0 = arith.constant 0 : i32
    %c0_i32_1 = arith.constant 0 : i32
    return %c0_i32, %c0_i32_0 : i32, i32
  }
  func.func @transform_7(%arg0: i32) -> (i32, i32) {
    %c0_i32 = arith.constant 0 : i32
    %c0_i32_0 = arith.constant 0 : i32
    %c0_i32_1 = arith.constant 0 : i32
    return %c0_i32, %c0_i32_0 : i32, i32
  }
  func.func @transform_8(%arg0: i32) -> (i32, i32) {
    %c0_i32 = arith.constant 0 : i32
    %c0_i32_0 = arith.constant 0 : i32
    %c0_i32_1 = arith.constant 0 : i32
    return %c0_i32, %c0_i32_0 : i32, i32
  }
  func.func @transform_9(%arg0: i32) -> (i32, i32) {
    %c0_i32 = arith.constant 0 : i32
    %c0_i32_0 = arith.constant 0 : i32
    %c0_i32_1 = arith.constant 0 : i32
    return %c0_i32, %c0_i32_0 : i32, i32
  }
  func.func @transform_10(%arg0: i32) -> (i32, i32) {
    %c0_i32 = arith.constant 0 : i32
    %c0_i32_0 = arith.constant 0 : i32
    %c0_i32_1 = arith.constant 0 : i32
    return %c0_i32, %c0_i32_0 : i32, i32
  }
  func.func @transform_11(%arg0: i32) -> (i32, i32) {
    %c0_i32 = arith.constant 0 : i32
    %c0_i32_0 = arith.constant 0 : i32
    return %arg0, %c0_i32 : i32, i32
  }
}

</mosaic_0001>

<llo_original>
// kernel: tpu_custom_call.1
$region0: #{tpu_custom_call.1}
  #allocation0 [shape = 'u32[]', space=smem, size = 0x4, offset = 0x4, fixed_abs, tag = 'smem constant byte address 0x4 - core index']
  #allocation1 [shape = 'u32[144,128]{1,0:T(1,128)}', space=vmem, size = 0x12000, scoped, tag = 'internal scratch']
  #allocation2 [shape = 'f32[8,1,2,512]{3,2,1,0:T(2,128)}', space=vmem, size = 0x8000, scoped, tag = 'scratch operand']
  #allocation3 [shape = 'f32[8,1,2,128]{3,2,1,0:T(2,128)}', space=vmem, size = 0x2000, scoped, tag = 'scratch operand']
  #allocation4 [shape = 'f32[1,2,1024]{2,1,0:T(2,128)}', space=vmem, size = 0x2000, scoped, tag = 'scratch operand']
  %s0 = inlined_call_operand.hbm [shape: f32[2,16], index: 0, kind: input, shape index: {}]
  %s1 = inlined_call_operand.hbm [shape: f32[16,4096], index: 1, kind: input, shape index: {}]
  %s2 = inlined_call_operand.hbm [shape: f32[16,4096], index: 2, kind: input, shape index: {}]
  %s3 = inlined_call_operand.hbm [shape: f32[128,512], index: 3, kind: input, shape index: {}]
  %s4 = inlined_call_operand.vmem [shape: f32[1,512], index: 4, kind: input, shape index: {}]
  %s5 = inlined_call_operand.hbm [shape: f32[128,512], index: 5, kind: input, shape index: {}]
  %s6 = inlined_call_operand.hbm [shape: f32[128,512], index: 6, kind: input, shape index: {}]
  %s7 = inlined_call_operand.hbm [shape: f32[128,512], index: 7, kind: input, shape index: {}]
  %s8 = inlined_call_operand.vmem [shape: f32[1,512], index: 8, kind: input, shape index: {}]
  %s9 = inlined_call_operand.hbm [shape: f32[1024,128], index: 9, kind: input, shape index: {}]
  %s10 = inlined_call_operand.vmem [shape: f32[1,128], index: 10, kind: input, shape index: {}]
  %s11 = inlined_call_operand.hbm [shape: f32[2,128], index: 11, kind: output, shape index: {}]
  %s12 = sld [smem:[#allocation0]]
  $region86: #{tpu_custom_call.1} parent=0
    _
  %s14 = ssub.s32 1, %s12
  %s15 = scalar_select 0, %s14, %s12
  $region1: #{tpu_custom_call.1} parent=0
    #allocation5 [shape = 'u8[1024]{0}', space=vmem, size = 0x400, scoped, tag = 'input window, operand 0, single buffered']
    #allocation6 [shape = 's32[1]{0}', space=sflag, size = 0x4, scoped, tag = 'scoped memory for tpu_custom_call.1']
    #allocation7 [shape = 's32[1]{0}', space=sflag, size = 0x4, scoped, tag = 'scoped memory for tpu_custom_call.1']
    #allocation8 [shape = 'u8[262144]{0}', space=vmem, size = 0x40000, scoped, tag = 'input window, operand 1, single buffered']
    #allocation9 [shape = 's32[1]{0}', space=sflag, size = 0x4, scoped, tag = 'scoped memory for tpu_custom_call.1']
    #allocation10 [shape = 'u8[262144]{0}', space=vmem, size = 0x40000, scoped, tag = 'input window, operand 2, single buffered']
    #allocation11 [shape = 'u8[262144]{0}', space=vmem, size = 0x40000, scoped, tag = 'input window, operand 3, single buffered']
    #allocation12 [shape = 's32[1]{0}', space=sflag, size = 0x4, scoped, tag = 'scoped memory for tpu_custom_call.1']
    #allocation13 [shape = 'u8[262144]{0}', space=vmem, size = 0x40000, scoped, tag = 'input window, operand 5, single buffered']
    #allocation14 [shape = 'u8[262144]{0}', space=vmem, size = 0x40000, scoped, tag = 'input window, operand 6, single buffered']
    #allocation15 [shape = 's32[1]{0}', space=sflag, size = 0x4, scoped, tag = 'scoped memory for tpu_custom_call.1']
    #allocation16 [shape = 'u8[262144]{0}', space=vmem, size = 0x40000, scoped, tag = 'input window, operand 7, single buffered']
    #allocation17 [shape = 'u8[524288]{0}', space=vmem, size = 0x80000, scoped, tag = 'input window, operand 9, single buffered']
    #allocation18 [shape = 's32[1]{0}', space=sflag, size = 0x4, scoped, tag = 'scoped memory for tpu_custom_call.1']
    #allocation19 [shape = 'u8[1024]{0}', space=vmem, size = 0x400, scoped, tag = 'output window, operand 0, single buffered']
    %16 = vsyncpa [#allocation6], 0
    %17 = vsyncpa [#allocation9], 0
    %18 = vsyncpa [#allocation12], 0
    %19 = vsyncpa [#allocation15], 0
    %20 = vsyncpa [#allocation18], 0
    %21 = vsyncpa [#allocation7], 0
    // Predicated region
    $region2: #{tpu_custom_call.1} parent=1 // pred_check
      _
    $region3: #{tpu_custom_call.1} parent=1 // pred_check_branch
      %23 = sbr.rel (0) target = $region5
    $region4: #{tpu_custom_call.1} parent=1 // pred_region
      %s25 = ssub.s32 32, 32
      %26 = vsyncadd [#allocation6], %s25
      %s28 = sshll.u32 [#allocation5], 4
      %s29 = int_to_ptr.vmem [resolvable:$true] %s28
      %31 = dma.hbm_to_vmem [thread:$0]  %s0, 32, %s29, [#allocation6]
    $region5: #{tpu_custom_call.1} parent=1 // pred_fallthru
      _
    // Predicated region
    $region6: #{tpu_custom_call.1} parent=1 // pred_check
      _
    $region7: #{tpu_custom_call.1} parent=1 // pred_check_branch
      %33 = sbr.rel (0) target = $region9
    $region8: #{tpu_custom_call.1} parent=1 // pred_region
      %s35 = ssub.s32 8192, 8192
      %36 = vsyncadd [#allocation9], %s35
      %s37 = sshll.u32 [#allocation8], 4
      %s38 = int_to_ptr.vmem [resolvable:$true] %s37
      %43 = dma.hbm_to_vmem [thread:$0]  %s1, 8192, %s38, [#allocation9], 4096, 4096, 256
    $region9: #{tpu_custom_call.1} parent=1 // pred_fallthru
      _
    // Predicated region
    $region10: #{tpu_custom_call.1} parent=1 // pred_check
      _
    $region11: #{tpu_custom_call.1} parent=1 // pred_check_branch
      %45 = sbr.rel (0) target = $region13
    $region12: #{tpu_custom_call.1} parent=1 // pred_region
      %s47 = ssub.s32 8192, 8192
      %48 = vsyncadd [#allocation9], %s47
      %s49 = sshll.u32 [#allocation10], 4
      %s50 = int_to_ptr.vmem [resolvable:$true] %s49
      %55 = dma.hbm_to_vmem [thread:$0]  %s2, 8192, %s50, [#allocation9], 4096, 4096, 256
    $region13: #{tpu_custom_call.1} parent=1 // pred_fallthru
      _
    // Predicated region
    $region14: #{tpu_custom_call.1} parent=1 // pred_check
      _
    $region15: #{tpu_custom_call.1} parent=1 // pred_check_branch
      %57 = sbr.rel (0) target = $region17
    $region16: #{tpu_custom_call.1} parent=1 // pred_region
      %s59 = ssub.s32 8192, 8192
      %60 = vsyncadd [#allocation12], %s59
      %s61 = sshll.u32 [#allocation11], 4
      %s62 = int_to_ptr.vmem [resolvable:$true] %s61
      %67 = dma.hbm_to_vmem [thread:$0]  %s3, 8192, %s62, [#allocation12], 512, 512, 32
    $region17: #{tpu_custom_call.1} parent=1 // pred_fallthru
      _
    // Predicated region
    $region18: #{tpu_custom_call.1} parent=1 // pred_check
      _
    $region19: #{tpu_custom_call.1} parent=1 // pred_check_branch
      %69 = sbr.rel (0) target = $region21
    $region20: #{tpu_custom_call.1} parent=1 // pred_region
      _
    $region21: #{tpu_custom_call.1} parent=1 // pred_fallthru
      _
    // Predicated region
    $region22: #{tpu_custom_call.1} parent=1 // pred_check
      _
    $region23: #{tpu_custom_call.1} parent=1 // pred_check_branch
      %71 = sbr.rel (0) target = $region25
    $region24: #{tpu_custom_call.1} parent=1 // pred_region
      %s73 = ssub.s32 8192, 8192
      %74 = vsyncadd [#allocation12], %s73
      %s75 = sshll.u32 [#allocation13], 4
      %s76 = int_to_ptr.vmem [resolvable:$true] %s75
      %81 = dma.hbm_to_vmem [thread:$0]  %s5, 8192, %s76, [#allocation12], 512, 512, 32
    $region25: #{tpu_custom_call.1} parent=1 // pred_fallthru
      _
    // Predicated region
    $region26: #{tpu_custom_call.1} parent=1 // pred_check
      _
    $region27: #{tpu_custom_call.1} parent=1 // pred_check_branch
      %83 = sbr.rel (0) target = $region29
    $region28: #{tpu_custom_call.1} parent=1 // pred_region
      %s85 = ssub.s32 8192, 8192
      %86 = vsyncadd [#allocation15], %s85
      %s87 = sshll.u32 [#allocation14], 4
      %s88 = int_to_ptr.vmem [resolvable:$true] %s87
      %93 = dma.hbm_to_vmem [thread:$0]  %s6, 8192, %s88, [#allocation15], 512, 512, 32
    $region29: #{tpu_custom_call.1} parent=1 // pred_fallthru
      _
    // Predicated region
    $region30: #{tpu_custom_call.1} parent=1 // pred_check
      _
    $region31: #{tpu_custom_call.1} parent=1 // pred_check_branch
      %95 = sbr.rel (0) target = $region33
    $region32: #{tpu_custom_call.1} parent=1 // pred_region
      %s97 = ssub.s32 8192, 8192
      %98 = vsyncadd [#allocation15], %s97
      %s99 = sshll.u32 [#allocation16], 4
      %s100 = int_to_ptr.vmem [resolvable:$true] %s99
      %105 = dma.hbm_to_vmem [thread:$0]  %s7, 8192, %s100, [#allocation15], 512, 512, 32
    $region33: #{tpu_custom_call.1} parent=1 // pred_fallthru
      _
    // Predicated region
    $region34: #{tpu_custom_call.1} parent=1 // pred_check
      _
    $region35: #{tpu_custom_call.1} parent=1 // pred_check_branch
      %107 = sbr.rel (0) target = $region37
    $region36: #{tpu_custom_call.1} parent=1 // pred_region
      _
    $region37: #{tpu_custom_call.1} parent=1 // pred_fallthru
      _
    // Predicated region
    $region38: #{tpu_custom_call.1} parent=1 // pred_check
      _
    $region39: #{tpu_custom_call.1} parent=1 // pred_check_branch
      %109 = sbr.rel (0) target = $region41
    $region40: #{tpu_custom_call.1} parent=1 // pred_region
      %s111 = ssub.s32 16384, 16384
      %112 = vsyncadd [#allocation18], %s111
      %s113 = sshll.u32 [#allocation17], 4
      %s114 = int_to_ptr.vmem [resolvable:$true] %s113
      %119 = dma.hbm_to_vmem [thread:$0]  %s9, 16384, %s114, [#allocation18], 128, 128, 8
    $region41: #{tpu_custom_call.1} parent=1 // pred_fallthru
      _
    // Predicated region
    $region42: #{tpu_custom_call.1} parent=1 // pred_check
      _
    $region43: #{tpu_custom_call.1} parent=1 // pred_check_branch
      %121 = sbr.rel (0) target = $region45
    $region44: #{tpu_custom_call.1} parent=1 // pred_region
      _
    $region45: #{tpu_custom_call.1} parent=1 // pred_fallthru
      _
    // Predicated region
    $region46: #{tpu_custom_call.1} parent=1 // pred_check
      _
    $region47: #{tpu_custom_call.1} parent=1 // pred_check_branch
      %123 = sbr.rel (0) target = $region49
    $region48: #{tpu_custom_call.1} parent=1 // pred_region
      %124 = dma.done [#allocation6], 32
    $region49: #{tpu_custom_call.1} parent=1 // pred_fallthru
      _
    // Predicated region
    $region50: #{tpu_custom_call.1} parent=1 // pred_check
      _
    $region51: #{tpu_custom_call.1} parent=1 // pred_check_branch
      %126 = sbr.rel (0) target = $region53
    $region52: #{tpu_custom_call.1} parent=1 // pred_region
      %127 = dma.done [#allocation9], 8192
    $region53: #{tpu_custom_call.1} parent=1 // pred_fallthru
      _
    // Predicated region
    $region54: #{tpu_custom_call.1} parent=1 // pred_check
      _
    $region55: #{tpu_custom_call.1} parent=1 // pred_check_branch
      %129 = sbr.rel (0) target = $region57
    $region56: #{tpu_custom_call.1} parent=1 // pred_region
      %130 = dma.done [#allocation9], 8192
    $region57: #{tpu_custom_call.1} parent=1 // pred_fallthru
      _
    // Predicated region
    $region58: #{tpu_custom_call.1} parent=1 // pred_check
      _
    $region59: #{tpu_custom_call.1} parent=1 // pred_check_branch
      %132 = sbr.rel (0) target = $region61
    $region60: #{tpu_custom_call.1} parent=1 // pred_region
      %133 = dma.done [#allocation12], 8192
    $region61: #{tpu_custom_call.1} parent=1 // pred_fallthru
      _
    // Predicated region
    $region62: #{tpu_custom_call.1} parent=1 // pred_check
      _
    $region63: #{tpu_custom_call.1} parent=1 // pred_check_branch
      %135 = sbr.rel (0) target = $region65
    $region64: #{tpu_custom_call.1} parent=1 // pred_region
      %136 = dma.done [#allocation12], 8192
    $region65: #{tpu_custom_call.1} parent=1 // pred_fallthru
      _
    // Predicated region
    $region66: #{tpu_custom_call.1} parent=1 // pred_check
      _
    $region67: #{tpu_custom_call.1} parent=1 // pred_check_branch
      %138 = sbr.rel (0) target = $region69
    $region68: #{tpu_custom_call.1} parent=1 // pred_region
      %139 = dma.done [#allocation15], 8192
    $region69: #{tpu_custom_call.1} parent=1 // pred_fallthru
      _
    // Predicated region
    $region70: #{tpu_custom_call.1} parent=1 // pred_check
      _
    $region71: #{tpu_custom_call.1} parent=1 // pred_check_branch
      %141 = sbr.rel (0) target = $region73
    $region72: #{tpu_custom_call.1} parent=1 // pred_region
      %142 = dma.done [#allocation15], 8192
    $region73: #{tpu_custom_call.1} parent=1 // pred_fallthru
      _
    // Predicated region
    $region74: #{tpu_custom_call.1} parent=1 // pred_check
      _
    $region75: #{tpu_custom_call.1} parent=1 // pred_check_branch
      %144 = sbr.rel (0) target = $region77
    $region76: #{tpu_custom_call.1} parent=1 // pred_region
      %145 = dma.done [#allocation18], 16384
    $region77: #{tpu_custom_call.1} parent=1 // pred_fallthru
      _
    %v146 = vld [vmem:[#allocation8] sm:$0xff]
    %v147 = vld [vmem:[#allocation8 + $0x8] sm:$0xff]
    %v148 = vld [vmem:[#allocation8 + $0x10] sm:$0xff]
    %v149 = vld [vmem:[#allocation8 + $0x18] sm:$0xff]
    %v150 = vld [vmem:[#allocation8 + $0x20] sm:$0xff]
    %v151 = vld [vmem:[#allocation8 + $0x28] sm:$0xff]
    %v152 = vld [vmem:[#allocation8 + $0x30] sm:$0xff]
    %v153 = vld [vmem:[#allocation8 + $0x38] sm:$0xff]
    %v154 = vld [vmem:[#allocation8 + $0x40] sm:$0xff]
    %v155 = vld [vmem:[#allocation8 + $0x48] sm:$0xff]
    %v156 = vld [vmem:[#allocation8 + $0x50] sm:$0xff]
    %v157 = vld [vmem:[#allocation8 + $0x58] sm:$0xff]
    %v158 = vld [vmem:[#allocation8 + $0x60] sm:$0xff]
    %v159 = vld [vmem:[#allocation8 + $0x68] sm:$0xff]
    %v160 = vld [vmem:[#allocation8 + $0x70] sm:$0xff]
    %v161 = vld [vmem:[#allocation8 + $0x78] sm:$0xff]
    %v162 = vld [vmem:[#allocation8 + $0x80] sm:$0xff]
    %v163 = vld [vmem:[#allocation8 + $0x88] sm:$0xff]
    %v164 = vld [vmem:[#allocation8 + $0x90] sm:$0xff]
    %v165 = vld [vmem:[#allocation8 + $0x98] sm:$0xff]
    %v166 = vld [vmem:[#allocation8 + $0xa0] sm:$0xff]
    %v167 = vld [vmem:[#allocation8 + $0xa8] sm:$0xff]
    %v168 = vld [vmem:[#allocation8 + $0xb0] sm:$0xff]
    %v169 = vld [vmem:[#allocation8 + $0xb8] sm:$0xff]
    %v170 = vld [vmem:[#allocation8 + $0xc0] sm:$0xff]
    %v171 = vld [vmem:[#allocation8 + $0xc8] sm:$0xff]
    %v172 = vld [vmem:[#allocation8 + $0xd0] sm:$0xff]
    %v173 = vld [vmem:[#allocation8 + $0xd8] sm:$0xff]
    %v174 = vld [vmem:[#allocation8 + $0xe0] sm:$0xff]
    %v175 = vld [vmem:[#allocation8 + $0xe8] sm:$0xff]
    %v176 = vld [vmem:[#allocation8 + $0xf0] sm:$0xff]
    %v177 = vld [vmem:[#allocation8 + $0xf8] sm:$0xff]
    %v178 = vld [vmem:[#allocation8 + $0x100] sm:$0xff]
    %v179 = vld [vmem:[#allocation8 + $0x108] sm:$0xff]
    %v180 = vld [vmem:[#allocation8 + $0x110] sm:$0xff]
    %v181 = vld [vmem:[#allocation8 + $0x118] sm:$0xff]
    %v182 = vld [vmem:[#allocation8 + $0x120] sm:$0xff]
    %v183 = vld [vmem:[#allocation8 + $0x128] sm:$0xff]
    %v184 = vld [vmem:[#allocation8 + $0x130] sm:$0xff]
    %v185 = vld [vmem:[#allocation8 + $0x138] sm:$0xff]
    %v186 = vld [vmem:[#allocation8 + $0x140] sm:$0xff]
    %v187 = vld [vmem:[#allocation8 + $0x148] sm:$0xff]
    %v188 = vld [vmem:[#allocation8 + $0x150] sm:$0xff]
    %v189 = vld [vmem:[#allocation8 + $0x158] sm:$0xff]
    %v190 = vld [vmem:[#allocation8 + $0x160] sm:$0xff]
    %v191 = vld [vmem:[#allocation8 + $0x168] sm:$0xff]
    %v192 = vld [vmem:[#allocation8 + $0x170] sm:$0xff]
    %v193 = vld [vmem:[#allocation8 + $0x178] sm:$0xff]
    %v194 = vld [vmem:[#allocation8 + $0x180] sm:$0xff]
    %v195 = vld [vmem:[#allocation8 + $0x188] sm:$0xff]
    %v196 = vld [vmem:[#allocation8 + $0x190] sm:$0xff]
    %v197 = vld [vmem:[#allocation8 + $0x198] sm:$0xff]
    %v198 = vld [vmem:[#allocation8 + $0x1a0] sm:$0xff]
    %v199 = vld [vmem:[#allocation8 + $0x1a8] sm:$0xff]
    %v200 = vld [vmem:[#allocation8 + $0x1b0] sm:$0xff]
    %v201 = vld [vmem:[#allocation8 + $0x1b8] sm:$0xff]
    %v202 = vld [vmem:[#allocation8 + $0x1c0] sm:$0xff]
    %v203 = vld [vmem:[#allocation8 + $0x1c8] sm:$0xff]
    %v204 = vld [vmem:[#allocation8 + $0x1d0] sm:$0xff]
    %v205 = vld [vmem:[#allocation8 + $0x1d8] sm:$0xff]
    %v206 = vld [vmem:[#allocation8 + $0x1e0] sm:$0xff]
    %v207 = vld [vmem:[#allocation8 + $0x1e8] sm:$0xff]
    %v208 = vld [vmem:[#allocation8 + $0x1f0] sm:$0xff]
    %v209 = vld [vmem:[#allocation8 + $0x1f8] sm:$0xff]
    %v210 = vld [vmem:[#allocation10] sm:$0xff]
    %v211 = vld [vmem:[#allocation10 + $0x8] sm:$0xff]
    %v212 = vld [vmem:[#allocation10 + $0x10] sm:$0xff]
    %v213 = vld [vmem:[#allocation10 + $0x18] sm:$0xff]
    %v214 = vld [vmem:[#allocation10 + $0x20] sm:$0xff]
    %v215 = vld [vmem:[#allocation10 + $0x28] sm:$0xff]
    %v216 = vld [vmem:[#allocation10 + $0x30] sm:$0xff]
    %v217 = vld [vmem:[#allocation10 + $0x38] sm:$0xff]
    %v218 = vld [vmem:[#allocation10 + $0x40] sm:$0xff]
    %v219 = vld [vmem:[#allocation10 + $0x48] sm:$0xff]
    %v220 = vld [vmem:[#allocation10 + $0x50] sm:$0xff]
    %v221 = vld [vmem:[#allocation10 + $0x58] sm:$0xff]
    %v222 = vld [vmem:[#allocation10 + $0x60] sm:$0xff]
    %v223 = vld [vmem:[#allocation10 + $0x68] sm:$0xff]
    %v224 = vld [vmem:[#allocation10 + $0x70] sm:$0xff]
    %v225 = vld [vmem:[#allocation10 + $0x78] sm:$0xff]
    %v226 = vld [vmem:[#allocation10 + $0x80] sm:$0xff]
    %v227 = vld [vmem:[#allocation10 + $0x88] sm:$0xff]
    %v228 = vld [vmem:[#allocation10 + $0x90] sm:$0xff]
    %v229 = vld [vmem:[#allocation10 + $0x98] sm:$0xff]
    %v230 = vld [vmem:[#allocation10 + $0xa0] sm:$0xff]
    %v231 = vld [vmem:[#allocation10 + $0xa8] sm:$0xff]
    %v232 = vld [vmem:[#allocation10 + $0xb0] sm:$0xff]
    %v233 = vld [vmem:[#allocation10 + $0xb8] sm:$0xff]
    %v234 = vld [vmem:[#allocation10 + $0xc0] sm:$0xff]
    %v235 = vld [vmem:[#allocation10 + $0xc8] sm:$0xff]
    %v236 = vld [vmem:[#allocation10 + $0xd0] sm:$0xff]
    %v237 = vld [vmem:[#allocation10 + $0xd8] sm:$0xff]
    %v238 = vld [vmem:[#allocation10 + $0xe0] sm:$0xff]
    %v239 = vld [vmem:[#allocation10 + $0xe8] sm:$0xff]
    %v240 = vld [vmem:[#allocation10 + $0xf0] sm:$0xff]
    %v241 = vld [vmem:[#allocation10 + $0xf8] sm:$0xff]
    %v242 = vld [vmem:[#allocation10 + $0x100] sm:$0xff]
    %v243 = vld [vmem:[#allocation10 + $0x108] sm:$0xff]
    %v244 = vld [vmem:[#allocation10 + $0x110] sm:$0xff]
    %v245 = vld [vmem:[#allocation10 + $0x118] sm:$0xff]
    %v246 = vld [vmem:[#allocation10 + $0x120] sm:$0xff]
    %v247 = vld [vmem:[#allocation10 + $0x128] sm:$0xff]
    %v248 = vld [vmem:[#allocation10 + $0x130] sm:$0xff]
    %v249 = vld [vmem:[#allocation10 + $0x138] sm:$0xff]
    %v250 = vld [vmem:[#allocation10 + $0x140] sm:$0xff]
    %v251 = vld [vmem:[#allocation10 + $0x148] sm:$0xff]
    %v252 = vld [vmem:[#allocation10 + $0x150] sm:$0xff]
    %v253 = vld [vmem:[#allocation10 + $0x158] sm:$0xff]
    %v254 = vld [vmem:[#allocation10 + $0x160] sm:$0xff]
    %v255 = vld [vmem:[#allocation10 + $0x168] sm:$0xff]
    %v256 = vld [vmem:[#allocation10 + $0x170] sm:$0xff]
    %v257 = vld [vmem:[#allocation10 + $0x178] sm:$0xff]
    %v258 = vld [vmem:[#allocation10 + $0x180] sm:$0xff]
    %v259 = vld [vmem:[#allocation10 + $0x188] sm:$0xff]
    %v260 = vld [vmem:[#allocation10 + $0x190] sm:$0xff]
    %v261 = vld [vmem:[#allocation10 + $0x198] sm:$0xff]
    %v262 = vld [vmem:[#allocation10 + $0x1a0] sm:$0xff]
    %v263 = vld [vmem:[#allocation10 + $0x1a8] sm:$0xff]
    %v264 = vld [vmem:[#allocation10 + $0x1b0] sm:$0xff]
    %v265 = vld [vmem:[#allocation10 + $0x1b8] sm:$0xff]
    %v266 = vld [vmem:[#allocation10 + $0x1c0] sm:$0xff]
    %v267 = vld [vmem:[#allocation10 + $0x1c8] sm:$0xff]
    %v268 = vld [vmem:[#allocation10 + $0x1d0] sm:$0xff]
    %v269 = vld [vmem:[#allocation10 + $0x1d8] sm:$0xff]
    %v270 = vld [vmem:[#allocation10 + $0x1e0] sm:$0xff]
    %v271 = vld [vmem:[#allocation10 + $0x1e8] sm:$0xff]
    %v272 = vld [vmem:[#allocation10 + $0x1f0] sm:$0xff]
    %v273 = vld [vmem:[#allocation10 + $0x1f8] sm:$0xff]
    %v274 = vld [vmem:[#allocation11] sm:$0xff]
    %v275 = vld [vmem:[#allocation11 + $0x8] sm:$0xff]
    %v276 = vld [vmem:[#allocation11 + $0x10] sm:$0xff]
    %v277 = vld [vmem:[#allocation11 + $0x18] sm:$0xff]
    %v278 = vld [vmem:[#allocation11 + $0x20] sm:$0xff]
    %v279 = vld [vmem:[#allocation11 + $0x28] sm:$0xff]
    %v280 = vld [vmem:[#allocation11 + $0x30] sm:$0xff]
    %v281 = vld [vmem:[#allocation11 + $0x38] sm:$0xff]
    %v282 = vld [vmem:[#allocation11 + $0x40] sm:$0xff]
    %v283 = vld [vmem:[#allocation11 + $0x48] sm:$0xff]
    %v284 = vld [vmem:[#allocation11 + $0x50] sm:$0xff]
    %v285 = vld [vmem:[#allocation11 + $0x58] sm:$0xff]
    %v286 = vld [vmem:[#allocation11 + $0x60] sm:$0xff]
    %v287 = vld [vmem:[#allocation11 + $0x68] sm:$0xff]
    %v288 = vld [vmem:[#allocation11 + $0x70] sm:$0xff]
    %v289 = vld [vmem:[#allocation11 + $0x78] sm:$0xff]
    %v290 = vld [vmem:[#allocation11 + $0x80] sm:$0xff]
    %v291 = vld [vmem:[#allocation11 + $0x88] sm:$0xff]
    %v292 = vld [vmem:[#allocation11 + $0x90] sm:$0xff]
    %v293 = vld [vmem:[#allocation11 + $0x98] sm:$0xff]
    %v294 = vld [vmem:[#allocation11 + $0xa0] sm:$0xff]
    %v295 = vld [vmem:[#allocation11 + $0xa8] sm:$0xff]
    %v296 = vld [vmem:[#allocation11 + $0xb0] sm:$0xff]
    %v297 = vld [vmem:[#allocation11 + $0xb8] sm:$0xff]
    %v298 = vld [vmem:[#allocation11 + $0xc0] sm:$0xff]
    %v299 = vld [vmem:[#allocation11 + $0xc8] sm:$0xff]
    %v300 = vld [vmem:[#allocation11 + $0xd0] sm:$0xff]
    %v301 = vld [vmem:[#allocation11 + $0xd8] sm:$0xff]
    %v302 = vld [vmem:[#allocation11 + $0xe0] sm:$0xff]
    %v303 = vld [vmem:[#allocation11 + $0xe8] sm:$0xff]
    %v304 = vld [vmem:[#allocation11 + $0xf0] sm:$0xff]
    %v305 = vld [vmem:[#allocation11 + $0xf8] sm:$0xff]
    %v306 = vld [vmem:[#allocation11 + $0x100] sm:$0xff]
    %v307 = vld [vmem:[#allocation11 + $0x108] sm:$0xff]
    %v308 = vld [vmem:[#allocation11 + $0x110] sm:$0xff]
    %v309 = vld [vmem:[#allocation11 + $0x118] sm:$0xff]
    %v310 = vld [vmem:[#allocation11 + $0x120] sm:$0xff]
    %v311 = vld [vmem:[#allocation11 + $0x128] sm:$0xff]
    %v312 = vld [vmem:[#allocation11 + $0x130] sm:$0xff]
    %v313 = vld [vmem:[#allocation11 + $0x138] sm:$0xff]
    %v314 = vld [vmem:[#allocation11 + $0x140] sm:$0xff]
    %v315 = vld [vmem:[#allocation11 + $0x148] sm:$0xff]
    %v316 = vld [vmem:[#allocation11 + $0x150] sm:$0xff]
    %v317 = vld [vmem:[#allocation11 + $0x158] sm:$0xff]
    %v318 = vld [vmem:[#allocation11 + $0x160] sm:$0xff]
    %v319 = vld [vmem:[#allocation11 + $0x168] sm:$0xff]
    %v320 = vld [vmem:[#allocation11 + $0x170] sm:$0xff]
    %v321 = vld [vmem:[#allocation11 + $0x178] sm:$0xff]
    %v322 = vld [vmem:[#allocation11 + $0x180] sm:$0xff]
    %v323 = vld [vmem:[#allocation11 + $0x188] sm:$0xff]
    %v324 = vld [vmem:[#allocation11 + $0x190] sm:$0xff]
    %v325 = vld [vmem:[#allocation11 + $0x198] sm:$0xff]
    %v326 = vld [vmem:[#allocation11 + $0x1a0] sm:$0xff]
    %v327 = vld [vmem:[#allocation11 + $0x1a8] sm:$0xff]
    %v328 = vld [vmem:[#allocation11 + $0x1b0] sm:$0xff]
    %v329 = vld [vmem:[#allocation11 + $0x1b8] sm:$0xff]
    %v330 = vld [vmem:[#allocation11 + $0x1c0] sm:$0xff]
    %v331 = vld [vmem:[#allocation11 + $0x1c8] sm:$0xff]
    %v332 = vld [vmem:[#allocation11 + $0x1d0] sm:$0xff]
    %v333 = vld [vmem:[#allocation11 + $0x1d8] sm:$0xff]
    %v334 = vld [vmem:[#allocation11 + $0x1e0] sm:$0xff]
    %v335 = vld [vmem:[#allocation11 + $0x1e8] sm:$0xff]
    %v336 = vld [vmem:[#allocation11 + $0x1f0] sm:$0xff]
    %v337 = vld [vmem:[#allocation11 + $0x1f8] sm:$0xff]
    %v338 = vld [vmem:[%s4] sm:$0xf]
    %v339 = vld [vmem:[#allocation5] sm:$0x3]
    %vm340 = vcmask 130048
    %v342 = vsel %vm340, %v339, 0
    %344 = vmatprep.subr.mxu0 %v147
    %345 = vmatpush1.msra.mxu0 %v146
    %346 = vmatprep.subr.mxu0 %v179
    %347 = vmatpush1.msra.mxu0 %v178
    %348 = vmatprep.subr.mxu0 0.0
    %349 = vmatpush1.msra.mxu0 0.0
    %350 = vmatprep.subr.mxu0 0.0
    %351 = vmatpush1.msra.mxu0 0.0
    %352 = vmatprep.subr.mxu0 0.0
    %353 = vmatpush1.msra.mxu0 0.0
    %354 = vmatprep.subr.mxu0 0.0
    %355 = vmatpush1.msra.mxu0 0.0
    %356 = vmatprep.subr.mxu0 0.0
    %357 = vmatpush1.msra.mxu0 0.0
    %358 = vmatprep.subr.mxu0 0.0
    %359 = vmatpush1.msra.mxu0 0.0
    %360 = vmatprep.subr.mxu0 0.0
    %361 = vmatpush1.msra.mxu0 0.0
    %362 = vmatprep.subr.mxu0 0.0
    %363 = vmatpush1.msra.mxu0 0.0
    %364 = vmatprep.subr.mxu0 0.0
    %365 = vmatpush1.msra.mxu0 0.0
    %366 = vmatprep.subr.mxu0 0.0
    %367 = vmatpush1.msra.mxu0 0.0
    %368 = vmatprep.subr.mxu0 0.0
    %369 = vmatpush1.msra.mxu0 0.0
    %370 = vmatprep.subr.mxu0 0.0
    %371 = vmatpush1.msra.mxu0 0.0
    %372 = vmatprep.subr.mxu0 0.0
    %373 = vmatpush1.msra.mxu0 0.0
    %374 = vmatprep.subr.mxu0 0.0
    %375 = vmatpush1.msra.mxu0 0.0
    %376 = vmatprep.subr.mxu0 0.0
    %377 = vmatpush1.msra.mxu0 0.0
    %378 = vmatprep.subr.mxu0 0.0
    %379 = vmatpush1.msra.mxu0 0.0
    %380 = vmatprep.subr.mxu0 0.0
    %381 = vmatpush1.msra.mxu0 0.0
    %382 = vmatprep.subr.mxu0 0.0
    %383 = vmatpush1.msra.mxu0 0.0
    %384 = vmatprep.subr.mxu0 0.0
    %385 = vmatpush1.msra.mxu0 0.0
    %386 = vmatprep.subr.mxu0 0.0
    %387 = vmatpush1.msra.mxu0 0.0
    %388 = vmatprep.subr.mxu0 0.0
    %389 = vmatpush1.msra.mxu0 0.0
    %390 = vmatprep.subr.mxu0 0.0
    %391 = vmatpush1.msra.mxu0 0.0
    %392 = vmatprep.subr.mxu0 0.0
    %393 = vmatpush1.msra.mxu0 0.0
    %394 = vmatprep.subr.mxu0 0.0
    %395 = vmatpush1.msra.mxu0 0.0
    %396 = vmatprep.subr.mxu0 0.0
    %397 = vmatpush1.msra.mxu0 0.0
    %398 = vmatprep.subr.mxu0 0.0
    %399 = vmatpush1.msra.mxu0 0.0
    %400 = vmatprep.subr.mxu0 0.0
    %401 = vmatpush1.msra.mxu0 0.0
    %402 = vmatprep.subr.mxu0 0.0
    %403 = vmatpush1.msra.mxu0 0.0
    %404 = vmatprep.subr.mxu0 0.0
    %405 = vmatpush1.msra.mxu0 0.0
    %406 = vmatprep.subr.mxu0 0.0
    %407 = vmatpush1.msra.mxu0 0.0
    %408 = vmatprep.mubr.f32.mxu0 0.0
    %409 = vmatmul.mubr.f32.gmra.mrb[0].mxu0 %v342
    %v410 = vpop.f32.mrb[0].mxu0
    %v411 = vadd.f32 0.0, %v410
    %v412 = vpop.f32.mrb[0].mxu0
    %v413 = vadd.f32 0.0, %v412
    %414 = vdwg.mxu0
    %415 = vmatprep.subr.mxu0 %v149
    %416 = vmatpush1.msra.mxu0 %v148
    %417 = vmatprep.subr.mxu0 %v181
    %418 = vmatpush1.msra.mxu0 %v180
    %419 = vmatprep.subr.mxu0 0.0
    %420 = vmatpush1.msra.mxu0 0.0
    %421 = vmatprep.subr.mxu0 0.0
    %422 = vmatpush1.msra.mxu0 0.0
    %423 = vmatprep.subr.mxu0 0.0
    %424 = vmatpush1.msra.mxu0 0.0
    %425 = vmatprep.subr.mxu0 0.0
    %426 = vmatpush1.msra.mxu0 0.0
    %427 = vmatprep.subr.mxu0 0.0
    %428 = vmatpush1.msra.mxu0 0.0
    %429 = vmatprep.subr.mxu0 0.0
    %430 = vmatpush1.msra.mxu0 0.0
    %431 = vmatprep.subr.mxu0 0.0
    %432 = vmatpush1.msra.mxu0 0.0
    %433 = vmatprep.subr.mxu0 0.0
    %434 = vmatpush1.msra.mxu0 0.0
    %435 = vmatprep.subr.mxu0 0.0
    %436 = vmatpush1.msra.mxu0 0.0
    %437 = vmatprep.subr.mxu0 0.0
    %438 = vmatpush1.msra.mxu0 0.0
    %439 = vmatprep.subr.mxu0 0.0
    %440 = vmatpush1.msra.mxu0 0.0
    %441 = vmatprep.subr.mxu0 0.0
    %442 = vmatpush1.msra.mxu0 0.0
    %443 = vmatprep.subr.mxu0 0.0
    %444 = vmatpush1.msra.mxu0 0.0
    %445 = vmatprep.subr.mxu0 0.0
    %446 = vmatpush1.msra.mxu0 0.0
    %447 = vmatprep.subr.mxu0 0.0
    %448 = vmatpush1.msra.mxu0 0.0
    %449 = vmatprep.subr.mxu0 0.0
    %450 = vmatpush1.msra.mxu0 0.0
    %451 = vmatprep.subr.mxu0 0.0
    %452 = vmatpush1.msra.mxu0 0.0
    %453 = vmatprep.subr.mxu0 0.0
    %454 = vmatpush1.msra.mxu0 0.0
    %455 = vmatprep.subr.mxu0 0.0
    %456 = vmatpush1.msra.mxu0 0.0
    %457 = vmatprep.subr.mxu0 0.0
    %458 = vmatpush1.msra.mxu0 0.0
    %459 = vmatprep.subr.mxu0 0.0
    %460 = vmatpush1.msra.mxu0 0.0
    %461 = vmatprep.subr.mxu0 0.0
    %462 = vmatpush1.msra.mxu0 0.0
    %463 = vmatprep.subr.mxu0 0.0
    %464 = vmatpush1.msra.mxu0 0.0
    %465 = vmatprep.subr.mxu0 0.0
    %466 = vmatpush1.msra.mxu0 0.0
    %467 = vmatprep.subr.mxu0 0.0
    %468 = vmatpush1.msra.mxu0 0.0
    %469 = vmatprep.subr.mxu0 0.0
    %470 = vmatpush1.msra.mxu0 0.0
    %471 = vmatprep.subr.mxu0 0.0
    %472 = vmatpush1.msra.mxu0 0.0
    %473 = vmatprep.subr.mxu0 0.0
    %474 = vmatpush1.msra.mxu0 0.0
    %475 = vmatprep.subr.mxu0 0.0
    %476 = vmatpush1.msra.mxu0 0.0
    %477 = vmatprep.subr.mxu0 0.0
    %478 = vmatpush1.msra.mxu0 0.0
    %479 = vmatprep.mubr.f32.mxu0 0.0
    %480 = vmatmul.mubr.f32.gmra.mrb[0].mxu0 %v342
    %v481 = vpop.f32.mrb[0].mxu0
    %v482 = vadd.f32 0.0, %v481
    %v483 = vpop.f32.mrb[0].mxu0
    %v484 = vadd.f32 0.0, %v483
    %485 = vdwg.mxu0
    %486 = vmatprep.subr.mxu0 %v151
    %487 = vmatpush1.msra.mxu0 %v150
    %488 = vmatprep.subr.mxu0 %v183
    %489 = vmatpush1.msra.mxu0 %v182
    %490 = vmatprep.subr.mxu0 0.0
    %491 = vmatpush1.msra.mxu0 0.0
    %492 = vmatprep.subr.mxu0 0.0
    %493 = vmatpush1.msra.mxu0 0.0
    %494 = vmatprep.subr.mxu0 0.0
    %495 = vmatpush1.msra.mxu0 0.0
    %496 = vmatprep.subr.mxu0 0.0
    %497 = vmatpush1.msra.mxu0 0.0
    %498 = vmatprep.subr.mxu0 0.0
    %499 = vmatpush1.msra.mxu0 0.0
    %500 = vmatprep.subr.mxu0 0.0
    %501 = vmatpush1.msra.mxu0 0.0
    %502 = vmatprep.subr.mxu0 0.0
    %503 = vmatpush1.msra.mxu0 0.0
    %504 = vmatprep.subr.mxu0 0.0
    %505 = vmatpush1.msra.mxu0 0.0
    %506 = vmatprep.subr.mxu0 0.0
    %507 = vmatpush1.msra.mxu0 0.0
    %508 = vmatprep.subr.mxu0 0.0
    %509 = vmatpush1.msra.mxu0 0.0
    %510 = vmatprep.subr.mxu0 0.0
    %511 = vmatpush1.msra.mxu0 0.0
    %512 = vmatprep.subr.mxu0 0.0
    %513 = vmatpush1.msra.mxu0 0.0
    %514 = vmatprep.subr.mxu0 0.0
    %515 = vmatpush1.msra.mxu0 0.0
    %516 = vmatprep.subr.mxu0 0.0
    %517 = vmatpush1.msra.mxu0 0.0
    %518 = vmatprep.subr.mxu0 0.0
    %519 = vmatpush1.msra.mxu0 0.0
    %520 = vmatprep.subr.mxu0 0.0
    %521 = vmatpush1.msra.mxu0 0.0
    %522 = vmatprep.subr.mxu0 0.0
    %523 = vmatpush1.msra.mxu0 0.0
    %524 = vmatprep.subr.mxu0 0.0
    %525 = vmatpush1.msra.mxu0 0.0
    %526 = vmatprep.subr.mxu0 0.0
    %527 = vmatpush1.msra.mxu0 0.0
    %528 = vmatprep.subr.mxu0 0.0
    %529 = vmatpush1.msra.mxu0 0.0
    %530 = vmatprep.subr.mxu0 0.0
    %531 = vmatpush1.msra.mxu0 0.0
    %532 = vmatprep.subr.mxu0 0.0
    %533 = vmatpush1.msra.mxu0 0.0
    %534 = vmatprep.subr.mxu0 0.0
    %535 = vmatpush1.msra.mxu0 0.0
    %536 = vmatprep.subr.mxu0 0.0
    %537 = vmatpush1.msra.mxu0 0.0
    %538 = vmatprep.subr.mxu0 0.0
    %539 = vmatpush1.msra.mxu0 0.0
    %540 = vmatprep.subr.mxu0 0.0
    %541 = vmatpush1.msra.mxu0 0.0
    %542 = vmatprep.subr.mxu0 0.0
    %543 = vmatpush1.msra.mxu0 0.0
    %544 = vmatprep.subr.mxu0 0.0
    %545 = vmatpush1.msra.mxu0 0.0
    %546 = vmatprep.subr.mxu0 0.0
    %547 = vmatpush1.msra.mxu0 0.0
    %548 = vmatprep.subr.mxu0 0.0
    %549 = vmatpush1.msra.mxu0 0.0
    %550 = vmatprep.mubr.f32.mxu0 0.0
    %551 = vmatmul.mubr.f32.gmra.mrb[0].mxu0 %v342
    %v552 = vpop.f32.mrb[0].mxu0
    %v553 = vadd.f32 0.0, %v552
    %v554 = vpop.f32.mrb[0].mxu0
    %v555 = vadd.f32 0.0, %v554
    %556 = vdwg.mxu0
    %557 = vmatprep.subr.mxu0 %v153
    %558 = vmatpush1.msra.mxu0 %v152
    %559 = vmatprep.subr.mxu0 %v185
    %560 = vmatpush1.msra.mxu0 %v184
    %561 = vmatprep.subr.mxu0 0.0
    %562 = vmatpush1.msra.mxu0 0.0
    %563 = vmatprep.subr.mxu0 0.0
    %564 = vmatpush1.msra.mxu0 0.0
    %565 = vmatprep.subr.mxu0 0.0
    %566 = vmatpush1.msra.mxu0 0.0
    %567 = vmatprep.subr.mxu0 0.0
    %568 = vmatpush1.msra.mxu0 0.0
    %569 = vmatprep.subr.mxu0 0.0
    %570 = vmatpush1.msra.mxu0 0.0
    %571 = vmatprep.subr.mxu0 0.0
    %572 = vmatpush1.msra.mxu0 0.0
    %573 = vmatprep.subr.mxu0 0.0
    %574 = vmatpush1.msra.mxu0 0.0
    %575 = vmatprep.subr.mxu0 0.0
    %576 = vmatpush1.msra.mxu0 0.0
    %577 = vmatprep.subr.mxu0 0.0
    %578 = vmatpush1.msra.mxu0 0.0
    %579 = vmatprep.subr.mxu0 0.0
    %580 = vmatpush1.msra.mxu0 0.0
    %581 = vmatprep.subr.mxu0 0.0
    %582 = vmatpush1.msra.mxu0 0.0
    %583 = vmatprep.subr.mxu0 0.0
    %584 = vmatpush1.msra.mxu0 0.0
    %585 = vmatprep.subr.mxu0 0.0
    %586 = vmatpush1.msra.mxu0 0.0
    %587 = vmatprep.subr.mxu0 0.0
    %588 = vmatpush1.msra.mxu0 0.0
    %589 = vmatprep.subr.mxu0 0.0
    %590 = vmatpush1.msra.mxu0 0.0
    %591 = vmatprep.subr.mxu0 0.0
    %592 = vmatpush1.msra.mxu0 0.0
    %593 = vmatprep.subr.mxu0 0.0
    %594 = vmatpush1.msra.mxu0 0.0
    %595 = vmatprep.subr.mxu0 0.0
    %596 = vmatpush1.msra.mxu0 0.0
    %597 = vmatprep.subr.mxu0 0.0
    %598 = vmatpush1.msra.mxu0 0.0
    %599 = vmatprep.subr.mxu0 0.0
    %600 = vmatpush1.msra.mxu0 0.0
    %601 = vmatprep.subr.mxu0 0.0
    %602 = vmatpush1.msra.mxu0 0.0
    %603 = vmatprep.subr.mxu0 0.0
    %604 = vmatpush1.msra.mxu0 0.0
    %605 = vmatprep.subr.mxu0 0.0
    %606 = vmatpush1.msra.mxu0 0.0
    %607 = vmatprep.subr.mxu0 0.0
    %608 = vmatpush1.msra.mxu0 0.0
    %609 = vmatprep.subr.mxu0 0.0
    %610 = vmatpush1.msra.mxu0 0.0
    %611 = vmatprep.subr.mxu0 0.0
    %612 = vmatpush1.msra.mxu0 0.0
    %613 = vmatprep.subr.mxu0 0.0
    %614 = vmatpush1.msra.mxu0 0.0
    %615 = vmatprep.subr.mxu0 0.0
    %616 = vmatpush1.msra.mxu0 0.0
    %617 = vmatprep.subr.mxu0 0.0
    %618 = vmatpush1.msra.mxu0 0.0
    %619 = vmatprep.subr.mxu0 0.0
    %620 = vmatpush1.msra.mxu0 0.0
    %621 = vmatprep.mubr.f32.mxu0 0.0
    %622 = vmatmul.mubr.f32.gmra.mrb[0].mxu0 %v342
    %v623 = vpop.f32.mrb[0].mxu0
    %v624 = vadd.f32 0.0, %v623
    %v625 = vpop.f32.mrb[0].mxu0
    %v626 = vadd.f32 0.0, %v625
    %627 = vdwg.mxu0
    %628 = vmatprep.subr.mxu0 %v155
    %629 = vmatpush1.msra.mxu0 %v154
    %630 = vmatprep.subr.mxu0 %v187
    %631 = vmatpush1.msra.mxu0 %v186
    %632 = vmatprep.subr.mxu0 0.0
    %633 = vmatpush1.msra.mxu0 0.0
    %634 = vmatprep.subr.mxu0 0.0
    %635 = vmatpush1.msra.mxu0 0.0
    %636 = vmatprep.subr.mxu0 0.0
    %637 = vmatpush1.msra.mxu0 0.0
    %638 = vmatprep.subr.mxu0 0.0
    %639 = vmatpush1.msra.mxu0 0.0
    %640 = vmatprep.subr.mxu0 0.0
    %641 = vmatpush1.msra.mxu0 0.0
    %642 = vmatprep.subr.mxu0 0.0
    %643 = vmatpush1.msra.mxu0 0.0
    %644 = vmatprep.subr.mxu0 0.0
    %645 = vmatpush1.msra.mxu0 0.0
    %646 = vmatprep.subr.mxu0 0.0
    %647 = vmatpush1.msra.mxu0 0.0
    %648 = vmatprep.subr.mxu0 0.0
    %649 = vmatpush1.msra.mxu0 0.0
    %650 = vmatprep.subr.mxu0 0.0
    %651 = vmatpush1.msra.mxu0 0.0
    %652 = vmatprep.subr.mxu0 0.0
    %653 = vmatpush1.msra.mxu0 0.0
    %654 = vmatprep.subr.mxu0 0.0
    %655 = vmatpush1.msra.mxu0 0.0
    %656 = vmatprep.subr.mxu0 0.0
    %657 = vmatpush1.msra.mxu0 0.0
    %658 = vmatprep.subr.mxu0 0.0
    %659 = vmatpush1.msra.mxu0 0.0
    %660 = vmatprep.subr.mxu0 0.0
    %661 = vmatpush1.msra.mxu0 0.0
    %662 = vmatprep.subr.mxu0 0.0
    %663 = vmatpush1.msra.mxu0 0.0
    %664 = vmatprep.subr.mxu0 0.0
    %665 = vmatpush1.msra.mxu0 0.0
    %666 = vmatprep.subr.mxu0 0.0
    %667 = vmatpush1.msra.mxu0 0.0
    %668 = vmatprep.subr.mxu0 0.0
    %669 = vmatpush1.msra.mxu0 0.0
    %670 = vmatprep.subr.mxu0 0.0
    %671 = vmatpush1.msra.mxu0 0.0
    %672 = vmatprep.subr.mxu0 0.0
    %673 = vmatpush1.msra.mxu0 0.0
    %674 = vmatprep.subr.mxu0 0.0
    %675 = vmatpush1.msra.mxu0 0.0
    %676 = vmatprep.subr.mxu0 0.0
    %677 = vmatpush1.msra.mxu0 0.0
    %678 = vmatprep.subr.mxu0 0.0
    %679 = vmatpush1.msra.mxu0 0.0
    %680 = vmatprep.subr.mxu0 0.0
    %681 = vmatpush1.msra.mxu0 0.0
    %682 = vmatprep.subr.mxu0 0.0
    %683 = vmatpush1.msra.mxu0 0.0
    %684 = vmatprep.subr.mxu0 0.0
    %685 = vmatpush1.msra.mxu0 0.0
    %686 = vmatprep.subr.mxu0 0.0
    %687 = vmatpush1.msra.mxu0 0.0
    %688 = vmatprep.subr.mxu0 0.0
    %689 = vmatpush1.msra.mxu0 0.0
    %690 = vmatprep.subr.mxu0 0.0
    %691 = vmatpush1.msra.mxu0 0.0
    %692 = vmatprep.mubr.f32.mxu0 0.0
    %693 = vmatmul.mubr.f32.gmra.mrb[0].mxu0 %v342
    %v694 = vpop.f32.mrb[0].mxu0
    %v695 = vadd.f32 0.0, %v694
    %v696 = vpop.f32.mrb[0].mxu0
    %v697 = vadd.f32 0.0, %v696
    %698 = vdwg.mxu0
    %699 = vmatprep.subr.mxu0 %v157
    %700 = vmatpush1.msra.mxu0 %v156
    %701 = vmatprep.subr.mxu0 %v189
    %702 = vmatpush1.msra.mxu0 %v188
    %703 = vmatprep.subr.mxu0 0.0
    %704 = vmatpush1.msra.mxu0 0.0
    %705 = vmatprep.subr.mxu0 0.0
    %706 = vmatpush1.msra.mxu0 0.0
    %707 = vmatprep.subr.mxu0 0.0
    %708 = vmatpush1.msra.mxu0 0.0
    %709 = vmatprep.subr.mxu0 0.0
    %710 = vmatpush1.msra.mxu0 0.0
    %711 = vmatprep.subr.mxu0 0.0
    %712 = vmatpush1.msra.mxu0 0.0
    %713 = vmatprep.subr.mxu0 0.0
    %714 = vmatpush1.msra.mxu0 0.0
    %715 = vmatprep.subr.mxu0 0.0
    %716 = vmatpush1.msra.mxu0 0.0
    %717 = vmatprep.subr.mxu0 0.0
    %718 = vmatpush1.msra.mxu0 0.0
    %719 = vmatprep.subr.mxu0 0.0
    %720 = vmatpush1.msra.mxu0 0.0
    %721 = vmatprep.subr.mxu0 0.0
    %722 = vmatpush1.msra.mxu0 0.0
    %723 = vmatprep.subr.mxu0 0.0
    %724 = vmatpush1.msra.mxu0 0.0
    %725 = vmatprep.subr.mxu0 0.0
    %726 = vmatpush1.msra.mxu0 0.0
    %727 = vmatprep.subr.mxu0 0.0
    %728 = vmatpush1.msra.mxu0 0.0
    %729 = vmatprep.subr.mxu0 0.0
    %730 = vmatpush1.msra.mxu0 0.0
    %731 = vmatprep.subr.mxu0 0.0
    %732 = vmatpush1.msra.mxu0 0.0
    %733 = vmatprep.subr.mxu0 0.0
    %734 = vmatpush1.msra.mxu0 0.0
    %735 = vmatprep.subr.mxu0 0.0
    %736 = vmatpush1.msra.mxu0 0.0
    %737 = vmatprep.subr.mxu0 0.0
    %738 = vmatpush1.msra.mxu0 0.0
    %739 = vmatprep.subr.mxu0 0.0
    %740 = vmatpush1.msra.mxu0 0.0
    %741 = vmatprep.subr.mxu0 0.0
    %742 = vmatpush1.msra.mxu0 0.0
    %743 = vmatprep.subr.mxu0 0.0
    %744 = vmatpush1.msra.mxu0 0.0
    %745 = vmatprep.subr.mxu0 0.0
    %746 = vmatpush1.msra.mxu0 0.0
    %747 = vmatprep.subr.mxu0 0.0
    %748 = vmatpush1.msra.mxu0 0.0
    %749 = vmatprep.subr.mxu0 0.0
    %750 = vmatpush1.msra.mxu0 0.0
    %751 = vmatprep.subr.mxu0 0.0
    %752 = vmatpush1.msra.mxu0 0.0
    %753 = vmatprep.subr.mxu0 0.0
    %754 = vmatpush1.msra.mxu0 0.0
    %755 = vmatprep.subr.mxu0 0.0
    %756 = vmatpush1.msra.mxu0 0.0
    %757 = vmatprep.subr.mxu0 0.0
    %758 = vmatpush1.msra.mxu0 0.0
    %759 = vmatprep.subr.mxu0 0.0
    %760 = vmatpush1.msra.mxu0 0.0
    %761 = vmatprep.subr.mxu0 0.0
    %762 = vmatpush1.msra.mxu0 0.0
    %763 = vmatprep.mubr.f32.mxu0 0.0
    %764 = vmatmul.mubr.f32.gmra.mrb[0].mxu0 %v342
    %v765 = vpop.f32.mrb[0].mxu0
    %v766 = vadd.f32 0.0, %v765
    %v767 = vpop.f32.mrb[0].mxu0
    %v768 = vadd.f32 0.0, %v767
    %769 = vdwg.mxu0
    %770 = vmatprep.subr.mxu0 %v159
    %771 = vmatpush1.msra.mxu0 %v158
    %772 = vmatprep.subr.mxu0 %v191
    %773 = vmatpush1.msra.mxu0 %v190
    %774 = vmatprep.subr.mxu0 0.0
    %775 = vmatpush1.msra.mxu0 0.0
    %776 = vmatprep.subr.mxu0 0.0
    %777 = vmatpush1.msra.mxu0 0.0
    %778 = vmatprep.subr.mxu0 0.0
    %779 = vmatpush1.msra.mxu0 0.0
    %780 = vmatprep.subr.mxu0 0.0
    %781 = vmatpush1.msra.mxu0 0.0
    %782 = vmatprep.subr.mxu0 0.0
    %783 = vmatpush1.msra.mxu0 0.0
    %784 = vmatprep.subr.mxu0 0.0
    %785 = vmatpush1.msra.mxu0 0.0
    %786 = vmatprep.subr.mxu0 0.0
    %787 = vmatpush1.msra.mxu0 0.0
    %788 = vmatprep.subr.mxu0 0.0
    %789 = vmatpush1.msra.mxu0 0.0
    %790 = vmatprep.subr.mxu0 0.0
    %791 = vmatpush1.msra.mxu0 0.0
    %792 = vmatprep.subr.mxu0 0.0
    %793 = vmatpush1.msra.mxu0 0.0
    %794 = vmatprep.subr.mxu0 0.0
    %795 = vmatpush1.msra.mxu0 0.0
    %796 = vmatprep.subr.mxu0 0.0
    %797 = vmatpush1.msra.mxu0 0.0
    %798 = vmatprep.subr.mxu0 0.0
    %799 = vmatpush1.msra.mxu0 0.0
    %800 = vmatprep.subr.mxu0 0.0
    %801 = vmatpush1.msra.mxu0 0.0
    %802 = vmatprep.subr.mxu0 0.0
    %803 = vmatpush1.msra.mxu0 0.0
    %804 = vmatprep.subr.mxu0 0.0
    %805 = vmatpush1.msra.mxu0 0.0
    %806 = vmatprep.subr.mxu0 0.0
    %807 = vmatpush1.msra.mxu0 0.0
    %808 = vmatprep.subr.mxu0 0.0
    %809 = vmatpush1.msra.mxu0 0.0
    %810 = vmatprep.subr.mxu0 0.0
    %811 = vmatpush1.msra.mxu0 0.0
    %812 = vmatprep.subr.mxu0 0.0
    %813 = vmatpush1.msra.mxu0 0.0
    %814 = vmatprep.subr.mxu0 0.0
    %815 = vmatpush1.msra.mxu0 0.0
    %816 = vmatprep.subr.mxu0 0.0
    %817 = vmatpush1.msra.mxu0 0.0
    %818 = vmatprep.subr.mxu0 0.0
    %819 = vmatpush1.msra.mxu0 0.0
    %820 = vmatprep.subr.mxu0 0.0
    %821 = vmatpush1.msra.mxu0 0.0
    %822 = vmatprep.subr.mxu0 0.0
    %823 = vmatpush1.msra.mxu0 0.0
    %824 = vmatprep.subr.mxu0 0.0
    %825 = vmatpush1.msra.mxu0 0.0
    %826 = vmatprep.subr.mxu0 0.0
    %827 = vmatpush1.msra.mxu0 0.0
    %828 = vmatprep.subr.mxu0 0.0
    %829 = vmatpush1.msra.mxu0 0.0
    %830 = vmatprep.subr.mxu0 0.0
    %831 = vmatpush1.msra.mxu0 0.0
    %832 = vmatprep.subr.mxu0 0.0
    %833 = vmatpush1.msra.mxu0 0.0
    %834 = vmatprep.mubr.f32.mxu0 0.0
    %835 = vmatmul.mubr.f32.gmra.mrb[0].mxu0 %v342
    %v836 = vpop.f32.mrb[0].mxu0
    %v837 = vadd.f32 0.0, %v836
    %v838 = vpop.f32.mrb[0].mxu0
    %v839 = vadd.f32 0.0, %v838
    %840 = vdwg.mxu0
    %841 = vmatprep.subr.mxu0 %v161
    %842 = vmatpush1.msra.mxu0 %v160
    %843 = vmatprep.subr.mxu0 %v193
    %844 = vmatpush1.msra.mxu0 %v192
    %845 = vmatprep.subr.mxu0 0.0
    %846 = vmatpush1.msra.mxu0 0.0
    %847 = vmatprep.subr.mxu0 0.0
    %848 = vmatpush1.msra.mxu0 0.0
    %849 = vmatprep.subr.mxu0 0.0
    %850 = vmatpush1.msra.mxu0 0.0
    %851 = vmatprep.subr.mxu0 0.0
    %852 = vmatpush1.msra.mxu0 0.0
    %853 = vmatprep.subr.mxu0 0.0
    %854 = vmatpush1.msra.mxu0 0.0
    %855 = vmatprep.subr.mxu0 0.0
    %856 = vmatpush1.msra.mxu0 0.0
    %857 = vmatprep.subr.mxu0 0.0
    %858 = vmatpush1.msra.mxu0 0.0
    %859 = vmatprep.subr.mxu0 0.0
    %860 = vmatpush1.msra.mxu0 0.0
    %861 = vmatprep.subr.mxu0 0.0
    %862 = vmatpush1.msra.mxu0 0.0
    %863 = vmatprep.subr.mxu0 0.0
    %864 = vmatpush1.msra.mxu0 0.0
    %865 = vmatprep.subr.mxu0 0.0
    %866 = vmatpush1.msra.mxu0 0.0
    %867 = vmatprep.subr.mxu0 0.0
    %868 = vmatpush1.msra.mxu0 0.0
    %869 = vmatprep.subr.mxu0 0.0
    %870 = vmatpush1.msra.mxu0 0.0
    %871 = vmatprep.subr.mxu0 0.0
    %872 = vmatpush1.msra.mxu0 0.0
    %873 = vmatprep.subr.mxu0 0.0
    %874 = vmatpush1.msra.mxu0 0.0
    %875 = vmatprep.subr.mxu0 0.0
    %876 = vmatpush1.msra.mxu0 0.0
    %877 = vmatprep.subr.mxu0 0.0
    %878 = vmatpush1.msra.mxu0 0.0
    %879 = vmatprep.subr.mxu0 0.0
    %880 = vmatpush1.msra.mxu0 0.0
    %881 = vmatprep.subr.mxu0 0.0
    %882 = vmatpush1.msra.mxu0 0.0
    %883 = vmatprep.subr.mxu0 0.0
    %884 = vmatpush1.msra.mxu0 0.0
    %885 = vmatprep.subr.mxu0 0.0
    %886 = vmatpush1.msra.mxu0 0.0
    %887 = vmatprep.subr.mxu0 0.0
    %888 = vmatpush1.msra.mxu0 0.0
    %889 = vmatprep.subr.mxu0 0.0
    %890 = vmatpush1.msra.mxu0 0.0
    %891 = vmatprep.subr.mxu0 0.0
    %892 = vmatpush1.msra.mxu0 0.0
    %893 = vmatprep.subr.mxu0 0.0
    %894 = vmatpush1.msra.mxu0 0.0
    %895 = vmatprep.subr.mxu0 0.0
    %896 = vmatpush1.msra.mxu0 0.0
    %897 = vmatprep.subr.mxu0 0.0
    %898 = vmatpush1.msra.mxu0 0.0
    %899 = vmatprep.subr.mxu0 0.0
    %900 = vmatpush1.msra.mxu0 0.0
    %901 = vmatprep.subr.mxu0 0.0
    %902 = vmatpush1.msra.mxu0 0.0
    %903 = vmatprep.subr.mxu0 0.0
    %904 = vmatpush1.msra.mxu0 0.0
    %905 = vmatprep.mubr.f32.mxu0 0.0
    %906 = vmatmul.mubr.f32.gmra.mrb[0].mxu0 %v342
    %v907 = vpop.f32.mrb[0].mxu0
    %v908 = vadd.f32 0.0, %v907
    %v909 = vpop.f32.mrb[0].mxu0
    %v910 = vadd.f32 0.0, %v909
    %911 = vdwg.mxu0
    %912 = vmatprep.subr.mxu0 %v163
    %913 = vmatpush1.msra.mxu0 %v162
    %914 = vmatprep.subr.mxu0 %v195
    %915 = vmatpush1.msra.mxu0 %v194
    %916 = vmatprep.subr.mxu0 0.0
    %917 = vmatpush1.msra.mxu0 0.0
    %918 = vmatprep.subr.mxu0 0.0
    %919 = vmatpush1.msra.mxu0 0.0
    %920 = vmatprep.subr.mxu0 0.0
    %921 = vmatpush1.msra.mxu0 0.0
    %922 = vmatprep.subr.mxu0 0.0
    %923 = vmatpush1.msra.mxu0 0.0
    %924 = vmatprep.subr.mxu0 0.0
    %925 = vmatpush1.msra.mxu0 0.0
    %926 = vmatprep.subr.mxu0 0.0
    %927 = vmatpush1.msra.mxu0 0.0
    %928 = vmatprep.subr.mxu0 0.0
    %929 = vmatpush1.msra.mxu0 0.0
    %930 = vmatprep.subr.mxu0 0.0
    %931 = vmatpush1.msra.mxu0 0.0
    %932 = vmatprep.subr.mxu0 0.0
    %933 = vmatpush1.msra.mxu0 0.0
    %934 = vmatprep.subr.mxu0 0.0
    %935 = vmatpush1.msra.mxu0 0.0
    %936 = vmatprep.subr.mxu0 0.0
    %937 = vmatpush1.msra.mxu0 0.0
    %938 = vmatprep.subr.mxu0 0.0
    %939 = vmatpush1.msra.mxu0 0.0
    %940 = vmatprep.subr.mxu0 0.0
    %941 = vmatpush1.msra.mxu0 0.0
    %942 = vmatprep.subr.mxu0 0.0
    %943 = vmatpush1.msra.mxu0 0.0
    %944 = vmatprep.subr.mxu0 0.0
    %945 = vmatpush1.msra.mxu0 0.0
    %946 = vmatprep.subr.mxu0 0.0
    %947 = vmatpush1.msra.mxu0 0.0
    %948 = vmatprep.subr.mxu0 0.0
    %949 = vmatpush1.msra.mxu0 0.0
    %950 = vmatprep.subr.mxu0 0.0
    %951 = vmatpush1.msra.mxu0 0.0
    %952 = vmatprep.subr.mxu0 0.0
    %953 = vmatpush1.msra.mxu0 0.0
    %954 = vmatprep.subr.mxu0 0.0
    %955 = vmatpush1.msra.mxu0 0.0
    %956 = vmatprep.subr.mxu0 0.0
    %957 = vmatpush1.msra.mxu0 0.0
    %958 = vmatprep.subr.mxu0 0.0
    %959 = vmatpush1.msra.mxu0 0.0
    %960 = vmatprep.subr.mxu0 0.0
    %961 = vmatpush1.msra.mxu0 0.0
    %962 = vmatprep.subr.mxu0 0.0
    %963 = vmatpush1.msra.mxu0 0.0
    %964 = vmatprep.subr.mxu0 0.0
    %965 = vmatpush1.msra.mxu0 0.0
    %966 = vmatprep.subr.mxu0 0.0
    %967 = vmatpush1.msra.mxu0 0.0
    %968 = vmatprep.subr.mxu0 0.0
    %969 = vmatpush1.msra.mxu0 0.0
    %970 = vmatprep.subr.mxu0 0.0
    %971 = vmatpush1.msra.mxu0 0.0
    %972 = vmatprep.subr.mxu0 0.0
    %973 = vmatpush1.msra.mxu0 0.0
    %974 = vmatprep.subr.mxu0 0.0
    %975 = vmatpush1.msra.mxu0 0.0
    %976 = vmatprep.mubr.f32.mxu0 0.0
    %977 = vmatmul.mubr.f32.gmra.mrb[0].mxu0 %v342
    %v978 = vpop.f32.mrb[0].mxu0
    %v979 = vadd.f32 0.0, %v978
    %v980 = vpop.f32.mrb[0].mxu0
    %v981 = vadd.f32 0.0, %v980
    %982 = vdwg.mxu0
    %983 = vmatprep.subr.mxu0 %v165
    %984 = vmatpush1.msra.mxu0 %v164
    %985 = vmatprep.subr.mxu0 %v197
    %986 = vmatpush1.msra.mxu0 %v196
    %987 = vmatprep.subr.mxu0 0.0
    %988 = vmatpush1.msra.mxu0 0.0
    %989 = vmatprep.subr.mxu0 0.0
    %990 = vmatpush1.msra.mxu0 0.0
    %991 = vmatprep.subr.mxu0 0.0
    %992 = vmatpush1.msra.mxu0 0.0
    %993 = vmatprep.subr.mxu0 0.0
    %994 = vmatpush1.msra.mxu0 0.0
    %995 = vmatprep.subr.mxu0 0.0
    %996 = vmatpush1.msra.mxu0 0.0
    %997 = vmatprep.subr.mxu0 0.0
    %998 = vmatpush1.msra.mxu0 0.0
    %999 = vmatprep.subr.mxu0 0.0
    %1000 = vmatpush1.msra.mxu0 0.0
    %1001 = vmatprep.subr.mxu0 0.0
    %1002 = vmatpush1.msra.mxu0 0.0
    %1003 = vmatprep.subr.mxu0 0.0
    %1004 = vmatpush1.msra.mxu0 0.0
    %1005 = vmatprep.subr.mxu0 0.0
    %1006 = vmatpush1.msra.mxu0 0.0
    %1007 = vmatprep.subr.mxu0 0.0
    %1008 = vmatpush1.msra.mxu0 0.0
    %1009 = vmatprep.subr.mxu0 0.0
    %1010 = vmatpush1.msra.mxu0 0.0
    %1011 = vmatprep.subr.mxu0 0.0
    %1012 = vmatpush1.msra.mxu0 0.0
    %1013 = vmatprep.subr.mxu0 0.0
    %1014 = vmatpush1.msra.mxu0 0.0
    %1015 = vmatprep.subr.mxu0 0.0
    %1016 = vmatpush1.msra.mxu0 0.0
    %1017 = vmatprep.subr.mxu0 0.0
    %1018 = vmatpush1.msra.mxu0 0.0
    %1019 = vmatprep.subr.mxu0 0.0
    %1020 = vmatpush1.msra.mxu0 0.0
    %1021 = vmatprep.subr.mxu0 0.0
    %1022 = vmatpush1.msra.mxu0 0.0
    %1023 = vmatprep.subr.mxu0 0.0
    %1024 = vmatpush1.msra.mxu0 0.0
    %1025 = vmatprep.subr.mxu0 0.0
    %1026 = vmatpush1.msra.mxu0 0.0
    %1027 = vmatprep.subr.mxu0 0.0
    %1028 = vmatpush1.msra.mxu0 0.0
    %1029 = vmatprep.subr.mxu0 0.0
    %1030 = vmatpush1.msra.mxu0 0.0
    %1031 = vmatprep.subr.mxu0 0.0
    %1032 = vmatpush1.msra.mxu0 0.0
    %1033 = vmatprep.subr.mxu0 0.0
    %1034 = vmatpush1.msra.mxu0 0.0
    %1035 = vmatprep.subr.mxu0 0.0
    %1036 = vmatpush1.msra.mxu0 0.0
    %1037 = vmatprep.subr.mxu0 0.0
    %1038 = vmatpush1.msra.mxu0 0.0
    %1039 = vmatprep.subr.mxu0 0.0
    %1040 = vmatpush1.msra.mxu0 0.0
    %1041 = vmatprep.subr.mxu0 0.0
    %1042 = vmatpush1.msra.mxu0 0.0
    %1043 = vmatprep.subr.mxu0 0.0
    %1044 = vmatpush1.msra.mxu0 0.0
    %1045 = vmatprep.subr.mxu0 0.0
    %1046 = vmatpush1.msra.mxu0 0.0
    %1047 = vmatprep.mubr.f32.mxu0 0.0
    %1048 = vmatmul.mubr.f32.gmra.mrb[0].mxu0 %v342
    %v1049 = vpop.f32.mrb[0].mxu0
    %v1050 = vadd.f32 0.0, %v1049
    %v1051 = vpop.f32.mrb[0].mxu0
    %v1052 = vadd.f32 0.0, %v1051
    %1053 = vdwg.mxu0
    %1054 = vmatprep.subr.mxu0 %v167
    %1055 = vmatpush1.msra.mxu0 %v166
    %1056 = vmatprep.subr.mxu0 %v199
    %1057 = vmatpush1.msra.mxu0 %v198
    %1058 = vmatprep.subr.mxu0 0.0
    %1059 = vmatpush1.msra.mxu0 0.0
    %1060 = vmatprep.subr.mxu0 0.0
    %1061 = vmatpush1.msra.mxu0 0.0
    %1062 = vmatprep.subr.mxu0 0.0
    %1063 = vmatpush1.msra.mxu0 0.0
    %1064 = vmatprep.subr.mxu0 0.0
    %1065 = vmatpush1.msra.mxu0 0.0
    %1066 = vmatprep.subr.mxu0 0.0
    %1067 = vmatpush1.msra.mxu0 0.0
    %1068 = vmatprep.subr.mxu0 0.0
    %1069 = vmatpush1.msra.mxu0 0.0
    %1070 = vmatprep.subr.mxu0 0.0
    %1071 = vmatpush1.msra.mxu0 0.0
    %1072 = vmatprep.subr.mxu0 0.0
    %1073 = vmatpush1.msra.mxu0 0.0
    %1074 = vmatprep.subr.mxu0 0.0
    %1075 = vmatpush1.msra.mxu0 0.0
    %1076 = vmatprep.subr.mxu0 0.0
    %1077 = vmatpush1.msra.mxu0 0.0
    %1078 = vmatprep.subr.mxu0 0.0
    %1079 = vmatpush1.msra.mxu0 0.0
    %1080 = vmatprep.subr.mxu0 0.0
    %1081 = vmatpush1.msra.mxu0 0.0
    %1082 = vmatprep.subr.mxu0 0.0
    %1083 = vmatpush1.msra.mxu0 0.0
    %1084 = vmatprep.subr.mxu0 0.0
    %1085 = vmatpush1.msra.mxu0 0.0
    %1086 = vmatprep.subr.mxu0 0.0
    %1087 = vmatpush1.msra.mxu0 0.0
    %1088 = vmatprep.subr.mxu0 0.0
    %1089 = vmatpush1.msra.mxu0 0.0
    %1090 = vmatprep.subr.mxu0 0.0
    %1091 = vmatpush1.msra.mxu0 0.0
    %1092 = vmatprep.subr.mxu0 0.0
    %1093 = vmatpush1.msra.mxu0 0.0
    %1094 = vmatprep.subr.mxu0 0.0
    %1095 = vmatpush1.msra.mxu0 0.0
    %1096 = vmatprep.subr.mxu0 0.0
    %1097 = vmatpush1.msra.mxu0 0.0
    %1098 = vmatprep.subr.mxu0 0.0
    %1099 = vmatpush1.msra.mxu0 0.0
    %1100 = vmatprep.subr.mxu0 0.0
    %1101 = vmatpush1.msra.mxu0 0.0
    %1102 = vmatprep.subr.mxu0 0.0
    %1103 = vmatpush1.msra.mxu0 0.0
    %1104 = vmatprep.subr.mxu0 0.0
    %1105 = vmatpush1.msra.mxu0 0.0
    %1106 = vmatprep.subr.mxu0 0.0
    %1107 = vmatpush1.msra.mxu0 0.0
    %1108 = vmatprep.subr.mxu0 0.0
    %1109 = vmatpush1.msra.mxu0 0.0
    %1110 = vmatprep.subr.mxu0 0.0
    %1111 = vmatpush1.msra.mxu0 0.0
    %1112 = vmatprep.subr.mxu0 0.0
    %1113 = vmatpush1.msra.mxu0 0.0
    %1114 = vmatprep.subr.mxu0 0.0
    %1115 = vmatpush1.msra.mxu0 0.0
    %1116 = vmatprep.subr.mxu0 0.0
    %1117 = vmatpush1.msra.mxu0 0.0
    %1118 = vmatprep.mubr.f32.mxu0 0.0
    %1119 = vmatmul.mubr.f32.gmra.mrb[0].mxu0 %v342
    %v1120 = vpop.f32.mrb[0].mxu0
    %v1121 = vadd.f32 0.0, %v1120
    %v1122 = vpop.f32.mrb[0].mxu0
    %v1123 = vadd.f32 0.0, %v1122
    %1124 = vdwg.mxu0
    %1125 = vmatprep.subr.mxu0 %v169
    %1126 = vmatpush1.msra.mxu0 %v168
    %1127 = vmatprep.subr.mxu0 %v201
    %1128 = vmatpush1.msra.mxu0 %v200
    %1129 = vmatprep.subr.mxu0 0.0
    %1130 = vmatpush1.msra.mxu0 0.0
    %1131 = vmatprep.subr.mxu0 0.0
    %1132 = vmatpush1.msra.mxu0 0.0
    %1133 = vmatprep.subr.mxu0 0.0
    %1134 = vmatpush1.msra.mxu0 0.0
    %1135 = vmatprep.subr.mxu0 0.0
    %1136 = vmatpush1.msra.mxu0 0.0
    %1137 = vmatprep.subr.mxu0 0.0
    %1138 = vmatpush1.msra.mxu0 0.0
    %1139 = vmatprep.subr.mxu0 0.0
    %1140 = vmatpush1.msra.mxu0 0.0
    %1141 = vmatprep.subr.mxu0 0.0
    %1142 = vmatpush1.msra.mxu0 0.0
    %1143 = vmatprep.subr.mxu0 0.0
    %1144 = vmatpush1.msra.mxu0 0.0
    %1145 = vmatprep.subr.mxu0 0.0
    %1146 = vmatpush1.msra.mxu0 0.0
    %1147 = vmatprep.subr.mxu0 0.0
    %1148 = vmatpush1.msra.mxu0 0.0
    %1149 = vmatprep.subr.mxu0 0.0
    %1150 = vmatpush1.msra.mxu0 0.0
    %1151 = vmatprep.subr.mxu0 0.0
    %1152 = vmatpush1.msra.mxu0 0.0
    %1153 = vmatprep.subr.mxu0 0.0
    %1154 = vmatpush1.msra.mxu0 0.0
    %1155 = vmatprep.subr.mxu0 0.0
    %1156 = vmatpush1.msra.mxu0 0.0
    %1157 = vmatprep.subr.mxu0 0.0
    %1158 = vmatpush1.msra.mxu0 0.0
    %1159 = vmatprep.subr.mxu0 0.0
    %1160 = vmatpush1.msra.mxu0 0.0
    %1161 = vmatprep.subr.mxu0 0.0
    %1162 = vmatpush1.msra.mxu0 0.0
    %1163 = vmatprep.subr.mxu0 0.0
    %1164 = vmatpush1.msra.mxu0 0.0
    %1165 = vmatprep.subr.mxu0 0.0
    %1166 = vmatpush1.msra.mxu0 0.0
    %1167 = vmatprep.subr.mxu0 0.0
    %1168 = vmatpush1.msra.mxu0 0.0
    %1169 = vmatprep.subr.mxu0 0.0
    %1170 = vmatpush1.msra.mxu0 0.0
    %1171 = vmatprep.subr.mxu0 0.0
    %1172 = vmatpush1.msra.mxu0 0.0
    %1173 = vmatprep.subr.mxu0 0.0
    %1174 = vmatpush1.msra.mxu0 0.0
    %1175 = vmatprep.subr.mxu0 0.0
    %1176 = vmatpush1.msra.mxu0 0.0
    %1177 = vmatprep.subr.mxu0 0.0
    %1178 = vmatpush1.msra.mxu0 0.0
    %1179 = vmatprep.subr.mxu0 0.0
    %1180 = vmatpush1.msra.mxu0 0.0
    %1181 = vmatprep.subr.mxu0 0.0
    %1182 = vmatpush1.msra.mxu0 0.0
    %1183 = vmatprep.subr.mxu0 0.0
    %1184 = vmatpush1.msra.mxu0 0.0
    %1185 = vmatprep.subr.mxu0 0.0
    %1186 = vmatpush1.msra.mxu0 0.0
    %1187 = vmatprep.subr.mxu0 0.0
    %1188 = vmatpush1.msra.mxu0 0.0
    %1189 = vmatprep.mubr.f32.mxu0 0.0
    %1190 = vmatmul.mubr.f32.gmra.mrb[0].mxu0 %v342
    %v1191 = vpop.f32.mrb[0].mxu0
    %v1192 = vadd.f32 0.0, %v1191
    %v1193 = vpop.f32.mrb[0].mxu0
    %v1194 = vadd.f32 0.0, %v1193
    %1195 = vdwg.mxu0
    %1196 = vmatprep.subr.mxu0 %v171
    %1197 = vmatpush1.msra.mxu0 %v170
    %1198 = vmatprep.subr.mxu0 %v203
    %1199 = vmatpush1.msra.mxu0 %v202
    %1200 = vmatprep.subr.mxu0 0.0
    %1201 = vmatpush1.msra.mxu0 0.0
    %1202 = vmatprep.subr.mxu0 0.0
    %1203 = vmatpush1.msra.mxu0 0.0
    %1204 = vmatprep.subr.mxu0 0.0
    %1205 = vmatpush1.msra.mxu0 0.0
    %1206 = vmatprep.subr.mxu0 0.0
    %1207 = vmatpush1.msra.mxu0 0.0
    %1208 = vmatprep.subr.mxu0 0.0
    %1209 = vmatpush1.msra.mxu0 0.0
    %1210 = vmatprep.subr.mxu0 0.0
    %1211 = vmatpush1.msra.mxu0 0.0
    %1212 = vmatprep.subr.mxu0 0.0
    %1213 = vmatpush1.msra.mxu0 0.0
    %1214 = vmatprep.subr.mxu0 0.0
    %1215 = vmatpush1.msra.mxu0 0.0
    %1216 = vmatprep.subr.mxu0 0.0
    %1217 = vmatpush1.msra.mxu0 0.0
    %1218 = vmatprep.subr.mxu0 0.0
    %1219 = vmatpush1.msra.mxu0 0.0
    %1220 = vmatprep.subr.mxu0 0.0
    %1221 = vmatpush1.msra.mxu0 0.0
    %1222 = vmatprep.subr.mxu0 0.0
    %1223 = vmatpush1.msra.mxu0 0.0
    %1224 = vmatprep.subr.mxu0 0.0
    %1225 = vmatpush1.msra.mxu0 0.0
    %1226 = vmatprep.subr.mxu0 0.0
    %1227 = vmatpush1.msra.mxu0 0.0
    %1228 = vmatprep.subr.mxu0 0.0
    %1229 = vmatpush1.msra.mxu0 0.0
    %1230 = vmatprep.subr.mxu0 0.0
    %1231 = vmatpush1.msra.mxu0 0.0
    %1232 = vmatprep.subr.mxu0 0.0
    %1233 = vmatpush1.msra.mxu0 0.0
    %1234 = vmatprep.subr.mxu0 0.0
    %1235 = vmatpush1.msra.mxu0 0.0
    %1236 = vmatprep.subr.mxu0 0.0
    %1237 = vmatpush1.msra.mxu0 0.0
    %1238 = vmatprep.subr.mxu0 0.0
    %1239 = vmatpush1.msra.mxu0 0.0
    %1240 = vmatprep.subr.mxu0 0.0
    %1241 = vmatpush1.msra.mxu0 0.0
    %1242 = vmatprep.subr.mxu0 0.0
    %1243 = vmatpush1.msra.mxu0 0.0
    %1244 = vmatprep.subr.mxu0 0.0
    %1245 = vmatpush1.msra.mxu0 0.0
    %1246 = vmatprep.subr.mxu0 0.0
    %1247 = vmatpush1.msra.mxu0 0.0
    %1248 = vmatprep.subr.mxu0 0.0
    %1249 = vmatpush1.msra.mxu0 0.0
    %1250 = vmatprep.subr.mxu0 0.0
    %1251 = vmatpush1.msra.mxu0 0.0
    %1252 = vmatprep.subr.mxu0 0.0
    %1253 = vmatpush1.msra.mxu0 0.0
    %1254 = vmatprep.subr.mxu0 0.0
    %1255 = vmatpush1.msra.mxu0 0.0
    %1256 = vmatprep.subr.mxu0 0.0
    %1257 = vmatpush1.msra.mxu0 0.0
    %1258 = vmatprep.subr.mxu0 0.0
    %1259 = vmatpush1.msra.mxu0 0.0
    %1260 = vmatprep.mubr.f32.mxu0 0.0
    %1261 = vmatmul.mubr.f32.gmra.mrb[0].mxu0 %v342
    %v1262 = vpop.f32.mrb[0].mxu0
    %v1263 = vadd.f32 0.0, %v1262
    %v1264 = vpop.f32.mrb[0].mxu0
    %v1265 = vadd.f32 0.0, %v1264
    %1266 = vdwg.mxu0
    %1267 = vmatprep.subr.mxu0 %v173
    %1268 = vmatpush1.msra.mxu0 %v172
    %1269 = vmatprep.subr.mxu0 %v205
    %1270 = vmatpush1.msra.mxu0 %v204
    %1271 = vmatprep.subr.mxu0 0.0
    %1272 = vmatpush1.msra.mxu0 0.0
    %1273 = vmatprep.subr.mxu0 0.0
    %1274 = vmatpush1.msra.mxu0 0.0
    %1275 = vmatprep.subr.mxu0 0.0
    %1276 = vmatpush1.msra.mxu0 0.0
    %1277 = vmatprep.subr.mxu0 0.0
    %1278 = vmatpush1.msra.mxu0 0.0
    %1279 = vmatprep.subr.mxu0 0.0
    %1280 = vmatpush1.msra.mxu0 0.0
    %1281 = vmatprep.subr.mxu0 0.0
    %1282 = vmatpush1.msra.mxu0 0.0
    %1283 = vmatprep.subr.mxu0 0.0
    %1284 = vmatpush1.msra.mxu0 0.0
    %1285 = vmatprep.subr.mxu0 0.0
    %1286 = vmatpush1.msra.mxu0 0.0
    %1287 = vmatprep.subr.mxu0 0.0
    %1288 = vmatpush1.msra.mxu0 0.0
    %1289 = vmatprep.subr.mxu0 0.0
    %1290 = vmatpush1.msra.mxu0 0.0
    %1291 = vmatprep.subr.mxu0 0.0
    %1292 = vmatpush1.msra.mxu0 0.0
    %1293 = vmatprep.subr.mxu0 0.0
    %1294 = vmatpush1.msra.mxu0 0.0
    %1295 = vmatprep.subr.mxu0 0.0
    %1296 = vmatpush1.msra.mxu0 0.0
    %1297 = vmatprep.subr.mxu0 0.0
    %1298 = vmatpush1.msra.mxu0 0.0
    %1299 = vmatprep.subr.mxu0 0.0
    %1300 = vmatpush1.msra.mxu0 0.0
    %1301 = vmatprep.subr.mxu0 0.0
    %1302 = vmatpush1.msra.mxu0 0.0
    %1303 = vmatprep.subr.mxu0 0.0
    %1304 = vmatpush1.msra.mxu0 0.0
    %1305 = vmatprep.subr.mxu0 0.0
    %1306 = vmatpush1.msra.mxu0 0.0
    %1307 = vmatprep.subr.mxu0 0.0
    %1308 = vmatpush1.msra.mxu0 0.0
    %1309 = vmatprep.subr.mxu0 0.0
    %1310 = vmatpush1.msra.mxu0 0.0
    %1311 = vmatprep.subr.mxu0 0.0
    %1312 = vmatpush1.msra.mxu0 0.0
    %1313 = vmatprep.subr.mxu0 0.0
    %1314 = vmatpush1.msra.mxu0 0.0
    %1315 = vmatprep.subr.mxu0 0.0
    %1316 = vmatpush1.msra.mxu0 0.0
    %1317 = vmatprep.subr.mxu0 0.0
    %1318 = vmatpush1.msra.mxu0 0.0
    %1319 = vmatprep.subr.mxu0 0.0
    %1320 = vmatpush1.msra.mxu0 0.0
    %1321 = vmatprep.subr.mxu0 0.0
    %1322 = vmatpush1.msra.mxu0 0.0
    %1323 = vmatprep.subr.mxu0 0.0
    %1324 = vmatpush1.msra.mxu0 0.0
    %1325 = vmatprep.subr.mxu0 0.0
    %1326 = vmatpush1.msra.mxu0 0.0
    %1327 = vmatprep.subr.mxu0 0.0
    %1328 = vmatpush1.msra.mxu0 0.0
    %1329 = vmatprep.subr.mxu0 0.0
    %1330 = vmatpush1.msra.mxu0 0.0
    %1331 = vmatprep.mubr.f32.mxu0 0.0
    %1332 = vmatmul.mubr.f32.gmra.mrb[0].mxu0 %v342
    %v1333 = vpop.f32.mrb[0].mxu0
    %v1334 = vadd.f32 0.0, %v1333
    %v1335 = vpop.f32.mrb[0].mxu0
    %v1336 = vadd.f32 0.0, %v1335
    %1337 = vdwg.mxu0
    %1338 = vmatprep.subr.mxu0 %v175
    %1339 = vmatpush1.msra.mxu0 %v174
    %1340 = vmatprep.subr.mxu0 %v207
    %1341 = vmatpush1.msra.mxu0 %v206
    %1342 = vmatprep.subr.mxu0 0.0
    %1343 = vmatpush1.msra.mxu0 0.0
    %1344 = vmatprep.subr.mxu0 0.0
    %1345 = vmatpush1.msra.mxu0 0.0
    %1346 = vmatprep.subr.mxu0 0.0
    %1347 = vmatpush1.msra.mxu0 0.0
    %1348 = vmatprep.subr.mxu0 0.0
    %1349 = vmatpush1.msra.mxu0 0.0
    %1350 = vmatprep.subr.mxu0 0.0
    %1351 = vmatpush1.msra.mxu0 0.0
    %1352 = vmatprep.subr.mxu0 0.0
    %1353 = vmatpush1.msra.mxu0 0.0
    %1354 = vmatprep.subr.mxu0 0.0
    %1355 = vmatpush1.msra.mxu0 0.0
    %1356 = vmatprep.subr.mxu0 0.0
    %1357 = vmatpush1.msra.mxu0 0.0
    %1358 = vmatprep.subr.mxu0 0.0
    %1359 = vmatpush1.msra.mxu0 0.0
    %1360 = vmatprep.subr.mxu0 0.0
    %1361 = vmatpush1.msra.mxu0 0.0
    %1362 = vmatprep.subr.mxu0 0.0
    %1363 = vmatpush1.msra.mxu0 0.0
    %1364 = vmatprep.subr.mxu0 0.0
    %1365 = vmatpush1.msra.mxu0 0.0
    %1366 = vmatprep.subr.mxu0 0.0
    %1367 = vmatpush1.msra.mxu0 0.0
    %1368 = vmatprep.subr.mxu0 0.0
    %1369 = vmatpush1.msra.mxu0 0.0
    %1370 = vmatprep.subr.mxu0 0.0
    %1371 = vmatpush1.msra.mxu0 0.0
    %1372 = vmatprep.subr.mxu0 0.0
    %1373 = vmatpush1.msra.mxu0 0.0
    %1374 = vmatprep.subr.mxu0 0.0
    %1375 = vmatpush1.msra.mxu0 0.0
    %1376 = vmatprep.subr.mxu0 0.0
    %1377 = vmatpush1.msra.mxu0 0.0
    %1378 = vmatprep.subr.mxu0 0.0
    %1379 = vmatpush1.msra.mxu0 0.0
    %1380 = vmatprep.subr.mxu0 0.0
    %1381 = vmatpush1.msra.mxu0 0.0
    %1382 = vmatprep.subr.mxu0 0.0
    %1383 = vmatpush1.msra.mxu0 0.0
    %1384 = vmatprep.subr.mxu0 0.0
    %1385 = vmatpush1.msra.mxu0 0.0
    %1386 = vmatprep.subr.mxu0 0.0
    %1387 = vmatpush1.msra.mxu0 0.0
    %1388 = vmatprep.subr.mxu0 0.0
    %1389 = vmatpush1.msra.mxu0 0.0
    %1390 = vmatprep.subr.mxu0 0.0
    %1391 = vmatpush1.msra.mxu0 0.0
    %1392 = vmatprep.subr.mxu0 0.0
    %1393 = vmatpush1.msra.mxu0 0.0
    %1394 = vmatprep.subr.mxu0 0.0
    %1395 = vmatpush1.msra.mxu0 0.0
    %1396 = vmatprep.subr.mxu0 0.0
    %1397 = vmatpush1.msra.mxu0 0.0
    %1398 = vmatprep.subr.mxu0 0.0
    %1399 = vmatpush1.msra.mxu0 0.0
    %1400 = vmatprep.subr.mxu0 0.0
    %1401 = vmatpush1.msra.mxu0 0.0
    %1402 = vmatprep.mubr.f32.mxu0 0.0
    %1403 = vmatmul.mubr.f32.gmra.mrb[0].mxu0 %v342
    %v1404 = vpop.f32.mrb[0].mxu0
    %v1405 = vadd.f32 0.0, %v1404
    %v1406 = vpop.f32.mrb[0].mxu0
    %v1407 = vadd.f32 0.0, %v1406
    %1408 = vdwg.mxu0
    %1409 = vmatprep.subr.mxu0 %v177
    %1410 = vmatpush1.msra.mxu0 %v176
    %1411 = vmatprep.subr.mxu0 %v209
    %1412 = vmatpush1.msra.mxu0 %v208
    %1413 = vmatprep.subr.mxu0 0.0
    %1414 = vmatpush1.msra.mxu0 0.0
    %1415 = vmatprep.subr.mxu0 0.0
    %1416 = vmatpush1.msra.mxu0 0.0
    %1417 = vmatprep.subr.mxu0 0.0
    %1418 = vmatpush1.msra.mxu0 0.0
    %1419 = vmatprep.subr.mxu0 0.0
    %1420 = vmatpush1.msra.mxu0 0.0
    %1421 = vmatprep.subr.mxu0 0.0
    %1422 = vmatpush1.msra.mxu0 0.0
    %1423 = vmatprep.subr.mxu0 0.0
    %1424 = vmatpush1.msra.mxu0 0.0
    %1425 = vmatprep.subr.mxu0 0.0
    %1426 = vmatpush1.msra.mxu0 0.0
    %1427 = vmatprep.subr.mxu0 0.0
    %1428 = vmatpush1.msra.mxu0 0.0
    %1429 = vmatprep.subr.mxu0 0.0
    %1430 = vmatpush1.msra.mxu0 0.0
    %1431 = vmatprep.subr.mxu0 0.0
    %1432 = vmatpush1.msra.mxu0 0.0
    %1433 = vmatprep.subr.mxu0 0.0
    %1434 = vmatpush1.msra.mxu0 0.0
    %1435 = vmatprep.subr.mxu0 0.0
    %1436 = vmatpush1.msra.mxu0 0.0
    %1437 = vmatprep.subr.mxu0 0.0
    %1438 = vmatpush1.msra.mxu0 0.0
    %1439 = vmatprep.subr.mxu0 0.0
    %1440 = vmatpush1.msra.mxu0 0.0
    %1441 = vmatprep.subr.mxu0 0.0
    %1442 = vmatpush1.msra.mxu0 0.0
    %1443 = vmatprep.subr.mxu0 0.0
    %1444 = vmatpush1.msra.mxu0 0.0
    %1445 = vmatprep.subr.mxu0 0.0
    %1446 = vmatpush1.msra.mxu0 0.0
    %1447 = vmatprep.subr.mxu0 0.0
    %1448 = vmatpush1.msra.mxu0 0.0
    %1449 = vmatprep.subr.mxu0 0.0
    %1450 = vmatpush1.msra.mxu0 0.0
    %1451 = vmatprep.subr.mxu0 0.0
    %1452 = vmatpush1.msra.mxu0 0.0
    %1453 = vmatprep.subr.mxu0 0.0
    %1454 = vmatpush1.msra.mxu0 0.0
    %1455 = vmatprep.subr.mxu0 0.0
    %1456 = vmatpush1.msra.mxu0 0.0
    %1457 = vmatprep.subr.mxu0 0.0
    %1458 = vmatpush1.msra.mxu0 0.0
    %1459 = vmatprep.subr.mxu0 0.0
    %1460 = vmatpush1.msra.mxu0 0.0
    %1461 = vmatprep.subr.mxu0 0.0
    %1462 = vmatpush1.msra.mxu0 0.0
    %1463 = vmatprep.subr.mxu0 0.0
    %1464 = vmatpush1.msra.mxu0 0.0
    %1465 = vmatprep.subr.mxu0 0.0
    %1466 = vmatpush1.msra.mxu0 0.0
    %1467 = vmatprep.subr.mxu0 0.0
    %1468 = vmatpush1.msra.mxu0 0.0
    %1469 = vmatprep.subr.mxu0 0.0
    %1470 = vmatpush1.msra.mxu0 0.0
    %1471 = vmatprep.subr.mxu0 0.0
    %1472 = vmatpush1.msra.mxu0 0.0
    %1473 = vmatprep.mubr.f32.mxu0 0.0
    %1474 = vmatmul.mubr.f32.gmra.mrb[0].mxu0 %v342
    %v1475 = vpop.f32.mrb[0].mxu0
    %v1476 = vadd.f32 0.0, %v1475
    %v1477 = vpop.f32.mrb[0].mxu0
    %v1478 = vadd.f32 0.0, %v1477
    %1479 = vdwg.mxu0
    %1480 = vmatprep.subr.mxu0 %v211
    %1481 = vmatpush1.msra.mxu0 %v210
    %1482 = vmatprep.subr.mxu0 %v243
    %1483 = vmatpush1.msra.mxu0 %v242
    %1484 = vmatprep.subr.mxu0 0.0
    %1485 = vmatpush1.msra.mxu0 0.0
    %1486 = vmatprep.subr.mxu0 0.0
    %1487 = vmatpush1.msra.mxu0 0.0
    %1488 = vmatprep.subr.mxu0 0.0
    %1489 = vmatpush1.msra.mxu0 0.0
    %1490 = vmatprep.subr.mxu0 0.0
    %1491 = vmatpush1.msra.mxu0 0.0
    %1492 = vmatprep.subr.mxu0 0.0
    %1493 = vmatpush1.msra.mxu0 0.0
    %1494 = vmatprep.subr.mxu0 0.0
    %1495 = vmatpush1.msra.mxu0 0.0
    %1496 = vmatprep.subr.mxu0 0.0
    %1497 = vmatpush1.msra.mxu0 0.0
    %1498 = vmatprep.subr.mxu0 0.0
    %1499 = vmatpush1.msra.mxu0 0.0
    %1500 = vmatprep.subr.mxu0 0.0
    %1501 = vmatpush1.msra.mxu0 0.0
    %1502 = vmatprep.subr.mxu0 0.0
    %1503 = vmatpush1.msra.mxu0 0.0
    %1504 = vmatprep.subr.mxu0 0.0
    %1505 = vmatpush1.msra.mxu0 0.0
    %1506 = vmatprep.subr.mxu0 0.0
    %1507 = vmatpush1.msra.mxu0 0.0
    %1508 = vmatprep.subr.mxu0 0.0
    %1509 = vmatpush1.msra.mxu0 0.0
    %1510 = vmatprep.subr.mxu0 0.0
    %1511 = vmatpush1.msra.mxu0 0.0
    %1512 = vmatprep.subr.mxu0 0.0
    %1513 = vmatpush1.msra.mxu0 0.0
    %1514 = vmatprep.subr.mxu0 0.0
    %1515 = vmatpush1.msra.mxu0 0.0
    %1516 = vmatprep.subr.mxu0 0.0
    %1517 = vmatpush1.msra.mxu0 0.0
    %1518 = vmatprep.subr.mxu0 0.0
    %1519 = vmatpush1.msra.mxu0 0.0
    %1520 = vmatprep.subr.mxu0 0.0
    %1521 = vmatpush1.msra.mxu0 0.0
    %1522 = vmatprep.subr.mxu0 0.0
    %1523 = vmatpush1.msra.mxu0 0.0
    %1524 = vmatprep.subr.mxu0 0.0
    %1525 = vmatpush1.msra.mxu0 0.0
    %1526 = vmatprep.subr.mxu0 0.0
    %1527 = vmatpush1.msra.mxu0 0.0
    %1528 = vmatprep.subr.mxu0 0.0
    %1529 = vmatpush1.msra.mxu0 0.0
    %1530 = vmatprep.subr.mxu0 0.0
    %1531 = vmatpush1.msra.mxu0 0.0
    %1532 = vmatprep.subr.mxu0 0.0
    %1533 = vmatpush1.msra.mxu0 0.0
    %1534 = vmatprep.subr.mxu0 0.0
    %1535 = vmatpush1.msra.mxu0 0.0
    %1536 = vmatprep.subr.mxu0 0.0
    %1537 = vmatpush1.msra.mxu0 0.0
    %1538 = vmatprep.subr.mxu0 0.0
    %1539 = vmatpush1.msra.mxu0 0.0
    %1540 = vmatprep.subr.mxu0 0.0
    %1541 = vmatpush1.msra.mxu0 0.0
    %1542 = vmatprep.subr.mxu0 0.0
    %1543 = vmatpush1.msra.mxu0 0.0
    %1544 = vmatprep.mubr.f32.mxu0 0.0
    %1545 = vmatmul.mubr.f32.gmra.mrb[0].mxu0 %v342
    %v1546 = vpop.f32.mrb[0].mxu0
    %v1547 = vadd.f32 0.0, %v1546
    %v1548 = vpop.f32.mrb[0].mxu0
    %v1549 = vadd.f32 0.0, %v1548
    %1550 = vdwg.mxu0
    %1551 = vmatprep.subr.mxu0 %v213
    %1552 = vmatpush1.msra.mxu0 %v212
    %1553 = vmatprep.subr.mxu0 %v245
    %1554 = vmatpush1.msra.mxu0 %v244
    %1555 = vmatprep.subr.mxu0 0.0
    %1556 = vmatpush1.msra.mxu0 0.0
    %1557 = vmatprep.subr.mxu0 0.0
    %1558 = vmatpush1.msra.mxu0 0.0
    %1559 = vmatprep.subr.mxu0 0.0
    %1560 = vmatpush1.msra.mxu0 0.0
    %1561 = vmatprep.subr.mxu0 0.0
    %1562 = vmatpush1.msra.mxu0 0.0
    %1563 = vmatprep.subr.mxu0 0.0
    %1564 = vmatpush1.msra.mxu0 0.0
    %1565 = vmatprep.subr.mxu0 0.0
    %1566 = vmatpush1.msra.mxu0 0.0
    %1567 = vmatprep.subr.mxu0 0.0
    %1568 = vmatpush1.msra.mxu0 0.0
    %1569 = vmatprep.subr.mxu0 0.0
    %1570 = vmatpush1.msra.mxu0 0.0
    %1571 = vmatprep.subr.mxu0 0.0
    %1572 = vmatpush1.msra.mxu0 0.0
    %1573 = vmatprep.subr.mxu0 0.0
    %1574 = vmatpush1.msra.mxu0 0.0
    %1575 = vmatprep.subr.mxu0 0.0
    %1576 = vmatpush1.msra.mxu0 0.0
    %1577 = vmatprep.subr.mxu0 0.0
    %1578 = vmatpush1.msra.mxu0 0.0
    %1579 = vmatprep.subr.mxu0 0.0
    %1580 = vmatpush1.msra.mxu0 0.0
    %1581 = vmatprep.subr.mxu0 0.0
    %1582 = vmatpush1.msra.mxu0 0.0
    %1583 = vmatprep.subr.mxu0 0.0
    %1584 = vmatpush1.msra.mxu0 0.0
    %1585 = vmatprep.subr.mxu0 0.0
    %1586 = vmatpush1.msra.mxu0 0.0
    %1587 = vmatprep.subr.mxu0 0.0
    %1588 = vmatpush1.msra.mxu0 0.0
    %1589 = vmatprep.subr.mxu0 0.0
    %1590 = vmatpush1.msra.mxu0 0.0
    %1591 = vmatprep.subr.mxu0 0.0
    %1592 = vmatpush1.msra.mxu0 0.0
    %1593 = vmatprep.subr.mxu0 0.0
    %1594 = vmatpush1.msra.mxu0 0.0
    %1595 = vmatprep.subr.mxu0 0.0
    %1596 = vmatpush1.msra.mxu0 0.0
    %1597 = vmatprep.subr.mxu0 0.0
    %1598 = vmatpush1.msra.mxu0 0.0
    %1599 = vmatprep.subr.mxu0 0.0
    %1600 = vmatpush1.msra.mxu0 0.0
    %1601 = vmatprep.subr.mxu0 0.0
    %1602 = vmatpush1.msra.mxu0 0.0
    %1603 = vmatprep.subr.mxu0 0.0
    %1604 = vmatpush1.msra.mxu0 0.0
    %1605 = vmatprep.subr.mxu0 0.0
    %1606 = vmatpush1.msra.mxu0 0.0
    %1607 = vmatprep.subr.mxu0 0.0
    %1608 = vmatpush1.msra.mxu0 0.0
    %1609 = vmatprep.subr.mxu0 0.0
    %1610 = vmatpush1.msra.mxu0 0.0
    %1611 = vmatprep.subr.mxu0 0.0
    %1612 = vmatpush1.msra.mxu0 0.0
    %1613 = vmatprep.subr.mxu0 0.0
    %1614 = vmatpush1.msra.mxu0 0.0
    %1615 = vmatprep.mubr.f32.mxu0 0.0
    %1616 = vmatmul.mubr.f32.gmra.mrb[0].mxu0 %v342
    %v1617 = vpop.f32.mrb[0].mxu0
    %v1618 = vadd.f32 0.0, %v1617
    %v1619 = vpop.f32.mrb[0].mxu0
    %v1620 = vadd.f32 0.0, %v1619
    %1621 = vdwg.mxu0
    %1622 = vmatprep.subr.mxu0 %v215
    %1623 = vmatpush1.msra.mxu0 %v214
    %1624 = vmatprep.subr.mxu0 %v247
    %1625 = vmatpush1.msra.mxu0 %v246
    %1626 = vmatprep.subr.mxu0 0.0
    %1627 = vmatpush1.msra.mxu0 0.0
    %1628 = vmatprep.subr.mxu0 0.0
    %1629 = vmatpush1.msra.mxu0 0.0
    %1630 = vmatprep.subr.mxu0 0.0
    %1631 = vmatpush1.msra.mxu0 0.0
    %1632 = vmatprep.subr.mxu0 0.0
    %1633 = vmatpush1.msra.mxu0 0.0
    %1634 = vmatprep.subr.mxu0 0.0
    %1635 = vmatpush1.msra.mxu0 0.0
    %1636 = vmatprep.subr.mxu0 0.0
    %1637 = vmatpush1.msra.mxu0 0.0
    %1638 = vmatprep.subr.mxu0 0.0
    %1639 = vmatpush1.msra.mxu0 0.0
    %1640 = vmatprep.subr.mxu0 0.0
    %1641 = vmatpush1.msra.mxu0 0.0
    %1642 = vmatprep.subr.mxu0 0.0
    %1643 = vmatpush1.msra.mxu0 0.0
    %1644 = vmatprep.subr.mxu0 0.0
    %1645 = vmatpush1.msra.mxu0 0.0
    %1646 = vmatprep.subr.mxu0 0.0
    %1647 = vmatpush1.msra.mxu0 0.0
    %1648 = vmatprep.subr.mxu0 0.0
    %1649 = vmatpush1.msra.mxu0 0.0
    %1650 = vmatprep.subr.mxu0 0.0
    %1651 = vmatpush1.msra.mxu0 0.0
    %1652 = vmatprep.subr.mxu0 0.0
    %1653 = vmatpush1.msra.mxu0 0.0
    %1654 = vmatprep.subr.mxu0 0.0
    %1655 = vmatpush1.msra.mxu0 0.0
    %1656 = vmatprep.subr.mxu0 0.0
    %1657 = vmatpush1.msra.mxu0 0.0
    %1658 = vmatprep.subr.mxu0 0.0
    %1659 = vmatpush1.msra.mxu0 0.0
    %1660 = vmatprep.subr.mxu0 0.0
    %1661 = vmatpush1.msra.mxu0 0.0
    %1662 = vmatprep.subr.mxu0 0.0
    %1663 = vmatpush1.msra.mxu0 0.0
    %1664 = vmatprep.subr.mxu0 0.0
    %1665 = vmatpush1.msra.mxu0 0.0
    %1666 = vmatprep.subr.mxu0 0.0
    %1667 = vmatpush1.msra.mxu0 0.0
    %1668 = vmatprep.subr.mxu0 0.0
    %1669 = vmatpush1.msra.mxu0 0.0
    %1670 = vmatprep.subr.mxu0 0.0
    %1671 = vmatpush1.msra.mxu0 0.0
    %1672 = vmatprep.subr.mxu0 0.0
    %1673 = vmatpush1.msra.mxu0 0.0
    %1674 = vmatprep.subr.mxu0 0.0
    %1675 = vmatpush1.msra.mxu0 0.0
    %1676 = vmatprep.subr.mxu0 0.0
    %1677 = vmatpush1.msra.mxu0 0.0
    %1678 = vmatprep.subr.mxu0 0.0
    %1679 = vmatpush1.msra.mxu0 0.0
    %1680 = vmatprep.subr.mxu0 0.0
    %1681 = vmatpush1.msra.mxu0 0.0
    %1682 = vmatprep.subr.mxu0 0.0
    %1683 = vmatpush1.msra.mxu0 0.0
    %1684 = vmatprep.subr.mxu0 0.0
    %1685 = vmatpush1.msra.mxu0 0.0
    %1686 = vmatprep.mubr.f32.mxu0 0.0
    %1687 = vmatmul.mubr.f32.gmra.mrb[0].mxu0 %v342
    %v1688 = vpop.f32.mrb[0].mxu0
    %v1689 = vadd.f32 0.0, %v1688
    %v1690 = vpop.f32.mrb[0].mxu0
    %v1691 = vadd.f32 0.0, %v1690
    %1692 = vdwg.mxu0
    %1693 = vmatprep.subr.mxu0 %v217
    %1694 = vmatpush1.msra.mxu0 %v216
    %1695 = vmatprep.subr.mxu0 %v249
    %1696 = vmatpush1.msra.mxu0 %v248
    %1697 = vmatprep.subr.mxu0 0.0
    %1698 = vmatpush1.msra.mxu0 0.0
    %1699 = vmatprep.subr.mxu0 0.0
    %1700 = vmatpush1.msra.mxu0 0.0
    %1701 = vmatprep.subr.mxu0 0.0
    %1702 = vmatpush1.msra.mxu0 0.0
    %1703 = vmatprep.subr.mxu0 0.0
    %1704 = vmatpush1.msra.mxu0 0.0
    %1705 = vmatprep.subr.mxu0 0.0
    %1706 = vmatpush1.msra.mxu0 0.0
    %1707 = vmatprep.subr.mxu0 0.0
    %1708 = vmatpush1.msra.mxu0 0.0
    %1709 = vmatprep.subr.mxu0 0.0
    %1710 = vmatpush1.msra.mxu0 0.0
    %1711 = vmatprep.subr.mxu0 0.0
    %1712 = vmatpush1.msra.mxu0 0.0
    %1713 = vmatprep.subr.mxu0 0.0
    %1714 = vmatpush1.msra.mxu0 0.0
    %1715 = vmatprep.subr.mxu0 0.0
    %1716 = vmatpush1.msra.mxu0 0.0
    %1717 = vmatprep.subr.mxu0 0.0
    %1718 = vmatpush1.msra.mxu0 0.0
    %1719 = vmatprep.subr.mxu0 0.0
    %1720 = vmatpush1.msra.mxu0 0.0
    %1721 = vmatprep.subr.mxu0 0.0
    %1722 = vmatpush1.msra.mxu0 0.0
    %1723 = vmatprep.subr.mxu0 0.0
    %1724 = vmatpush1.msra.mxu0 0.0
    %1725 = vmatprep.subr.mxu0 0.0
    %1726 = vmatpush1.msra.mxu0 0.0
    %1727 = vmatprep.subr.mxu0 0.0
    %1728 = vmatpush1.msra.mxu0 0.0
    %1729 = vmatprep.subr.mxu0 0.0
    %1730 = vmatpush1.msra.mxu0 0.0
    %1731 = vmatprep.subr.mxu0 0.0
    %1732 = vmatpush1.msra.mxu0 0.0
    %1733 = vmatprep.subr.mxu0 0.0
    %1734 = vmatpush1.msra.mxu0 0.0
    %1735 = vmatprep.subr.mxu0 0.0
    %1736 = vmatpush1.msra.mxu0 0.0
    %1737 = vmatprep.subr.mxu0 0.0
    %1738 = vmatpush1.msra.mxu0 0.0
    %1739 = vmatprep.subr.mxu0 0.0
    %1740 = vmatpush1.msra.mxu0 0.0
    %1741 = vmatprep.subr.mxu0 0.0
    %1742 = vmatpush1.msra.mxu0 0.0
    %1743 = vmatprep.subr.mxu0 0.0
    %1744 = vmatpush1.msra.mxu0 0.0
    %1745 = vmatprep.subr.mxu0 0.0
    %1746 = vmatpush1.msra.mxu0 0.0
    %1747 = vmatprep.subr.mxu0 0.0
    %1748 = vmatpush1.msra.mxu0 0.0
    %1749 = vmatprep.subr.mxu0 0.0
    %1750 = vmatpush1.msra.mxu0 0.0
    %1751 = vmatprep.subr.mxu0 0.0
    %1752 = vmatpush1.msra.mxu0 0.0
    %1753 = vmatprep.subr.mxu0 0.0
    %1754 = vmatpush1.msra.mxu0 0.0
    %1755 = vmatprep.subr.mxu0 0.0
    %1756 = vmatpush1.msra.mxu0 0.0
    %1757 = vmatprep.mubr.f32.mxu0 0.0
    %1758 = vmatmul.mubr.f32.gmra.mrb[0].mxu0 %v342
    %v1759 = vpop.f32.mrb[0].mxu0
    %v1760 = vadd.f32 0.0, %v1759
    %v1761 = vpop.f32.mrb[0].mxu0
    %v1762 = vadd.f32 0.0, %v1761
    %1763 = vdwg.mxu0
    %1764 = vmatprep.subr.mxu0 %v219
    %1765 = vmatpush1.msra.mxu0 %v218
    %1766 = vmatprep.subr.mxu0 %v251
    %1767 = vmatpush1.msra.mxu0 %v250
    %1768 = vmatprep.subr.mxu0 0.0
    %1769 = vmatpush1.msra.mxu0 0.0
    %1770 = vmatprep.subr.mxu0 0.0
    %1771 = vmatpush1.msra.mxu0 0.0
    %1772 = vmatprep.subr.mxu0 0.0
    %1773 = vmatpush1.msra.mxu0 0.0
    %1774 = vmatprep.subr.mxu0 0.0
    %1775 = vmatpush1.msra.mxu0 0.0
    %1776 = vmatprep.subr.mxu0 0.0
    %1777 = vmatpush1.msra.mxu0 0.0
    %1778 = vmatprep.subr.mxu0 0.0
    %1779 = vmatpush1.msra.mxu0 0.0
    %1780 = vmatprep.subr.mxu0 0.0
    %1781 = vmatpush1.msra.mxu0 0.0
    %1782 = vmatprep.subr.mxu0 0.0
    %1783 = vmatpush1.msra.mxu0 0.0
    %1784 = vmatprep.subr.mxu0 0.0
    %1785 = vmatpush1.msra.mxu0 0.0
    %1786 = vmatprep.subr.mxu0 0.0
    %1787 = vmatpush1.msra.mxu0 0.0
    %1788 = vmatprep.subr.mxu0 0.0
    %1789 = vmatpush1.msra.mxu0 0.0
    %1790 = vmatprep.subr.mxu0 0.0
    %1791 = vmatpush1.msra.mxu0 0.0
    %1792 = vmatprep.subr.mxu0 0.0
    %1793 = vmatpush1.msra.mxu0 0.0
    %1794 = vmatprep.subr.mxu0 0.0
    %1795 = vmatpush1.msra.mxu0 0.0
    %1796 = vmatprep.subr.mxu0 0.0
    %1797 = vmatpush1.msra.mxu0 0.0
    %1798 = vmatprep.subr.mxu0 0.0
    %1799 = vmatpush1.msra.mxu0 0.0
    %1800 = vmatprep.subr.mxu0 0.0
    %1801 = vmatpush1.msra.mxu0 0.0
    %1802 = vmatprep.subr.mxu0 0.0
    %1803 = vmatpush1.msra.mxu0 0.0
    %1804 = vmatprep.subr.mxu0 0.0
    %1805 = vmatpush1.msra.mxu0 0.0
    %1806 = vmatprep.subr.mxu0 0.0
    %1807 = vmatpush1.msra.mxu0 0.0
    %1808 = vmatprep.subr.mxu0 0.0
    %1809 = vmatpush1.msra.mxu0 0.0
    %1810 = vmatprep.subr.mxu0 0.0
    %1811 = vmatpush1.msra.mxu0 0.0
    %1812 = vmatprep.subr.mxu0 0.0
    %1813 = vmatpush1.msra.mxu0 0.0
    %1814 = vmatprep.subr.mxu0 0.0
    %1815 = vmatpush1.msra.mxu0 0.0
    %1816 = vmatprep.subr.mxu0 0.0
    %1817 = vmatpush1.msra.mxu0 0.0
    %1818 = vmatprep.subr.mxu0 0.0
    %1819 = vmatpush1.msra.mxu0 0.0
    %1820 = vmatprep.subr.mxu0 0.0
    %1821 = vmatpush1.msra.mxu0 0.0
    %1822 = vmatprep.subr.mxu0 0.0
    %1823 = vmatpush1.msra.mxu0 0.0
    %1824 = vmatprep.subr.mxu0 0.0
    %1825 = vmatpush1.msra.mxu0 0.0
    %1826 = vmatprep.subr.mxu0 0.0
    %1827 = vmatpush1.msra.mxu0 0.0
    %1828 = vmatprep.mubr.f32.mxu0 0.0
    %1829 = vmatmul.mubr.f32.gmra.mrb[0].mxu0 %v342
    %v1830 = vpop.f32.mrb[0].mxu0
    %v1831 = vadd.f32 0.0, %v1830
    %v1832 = vpop.f32.mrb[0].mxu0
    %v1833 = vadd.f32 0.0, %v1832
    %1834 = vdwg.mxu0
    %1835 = vmatprep.subr.mxu0 %v221
    %1836 = vmatpush1.msra.mxu0 %v220
    %1837 = vmatprep.subr.mxu0 %v253
    %1838 = vmatpush1.msra.mxu0 %v252
    %1839 = vmatprep.subr.mxu0 0.0
    %1840 = vmatpush1.msra.mxu0 0.0
    %1841 = vmatprep.subr.mxu0 0.0
    %1842 = vmatpush1.msra.mxu0 0.0
    %1843 = vmatprep.subr.mxu0 0.0
    %1844 = vmatpush1.msra.mxu0 0.0
    %1845 = vmatprep.subr.mxu0 0.0
    %1846 = vmatpush1.msra.mxu0 0.0
    %1847 = vmatprep.subr.mxu0 0.0
    %1848 = vmatpush1.msra.mxu0 0.0
    %1849 = vmatprep.subr.mxu0 0.0
    %1850 = vmatpush1.msra.mxu0 0.0
    %1851 = vmatprep.subr.mxu0 0.0
    %1852 = vmatpush1.msra.mxu0 0.0
    %1853 = vmatprep.subr.mxu0 0.0
    %1854 = vmatpush1.msra.mxu0 0.0
    %1855 = vmatprep.subr.mxu0 0.0
    %1856 = vmatpush1.msra.mxu0 0.0
    %1857 = vmatprep.subr.mxu0 0.0
    %1858 = vmatpush1.msra.mxu0 0.0
    %1859 = vmatprep.subr.mxu0 0.0
    %1860 = vmatpush1.msra.mxu0 0.0
    %1861 = vmatprep.subr.mxu0 0.0
    %1862 = vmatpush1.msra.mxu0 0.0
    %1863 = vmatprep.subr.mxu0 0.0
    %1864 = vmatpush1.msra.mxu0 0.0
    %1865 = vmatprep.subr.mxu0 0.0
    %1866 = vmatpush1.msra.mxu0 0.0
    %1867 = vmatprep.subr.mxu0 0.0
    %1868 = vmatpush1.msra.mxu0 0.0
    %1869 = vmatprep.subr.mxu0 0.0
    %1870 = vmatpush1.msra.mxu0 0.0
    %1871 = vmatprep.subr.mxu0 0.0
    %1872 = vmatpush1.msra.mxu0 0.0
    %1873 = vmatprep.subr.mxu0 0.0
    %1874 = vmatpush1.msra.mxu0 0.0
    %1875 = vmatprep.subr.mxu0 0.0
    %1876 = vmatpush1.msra.mxu0 0.0
    %1877 = vmatprep.subr.mxu0 0.0
    %1878 = vmatpush1.msra.mxu0 0.0
    %1879 = vmatprep.subr.mxu0 0.0
    %1880 = vmatpush1.msra.mxu0 0.0
    %1881 = vmatprep.subr.mxu0 0.0
    %1882 = vmatpush1.msra.mxu0 0.0
    %1883 = vmatprep.subr.mxu0 0.0
    %1884 = vmatpush1.msra.mxu0 0.0
    %1885 = vmatprep.subr.mxu0 0.0
    %1886 = vmatpush1.msra.mxu0 0.0
    %1887 = vmatprep.subr.mxu0 0.0
    %1888 = vmatpush1.msra.mxu0 0.0
    %1889 = vmatprep.subr.mxu0 0.0
    %1890 = vmatpush1.msra.mxu0 0.0
    %1891 = vmatprep.subr.mxu0 0.0
    %1892 = vmatpush1.msra.mxu0 0.0
    %1893 = vmatprep.subr.mxu0 0.0
    %1894 = vmatpush1.msra.mxu0 0.0
    %1895 = vmatprep.subr.mxu0 0.0
    %1896 = vmatpush1.msra.mxu0 0.0
    %1897 = vmatprep.subr.mxu0 0.0
    %1898 = vmatpush1.msra.mxu0 0.0
    %1899 = vmatprep.mubr.f32.mxu0 0.0
    %1900 = vmatmul.mubr.f32.gmra.mrb[0].mxu0 %v342
    %v1901 = vpop.f32.mrb[0].mxu0
    %v1902 = vadd.f32 0.0, %v1901
    %v1903 = vpop.f32.mrb[0].mxu0
    %v1904 = vadd.f32 0.0, %v1903
    %1905 = vdwg.mxu0
    %1906 = vmatprep.subr.mxu0 %v223
    %1907 = vmatpush1.msra.mxu0 %v222
    %1908 = vmatprep.subr.mxu0 %v255
    %1909 = vmatpush1.msra.mxu0 %v254
    %1910 = vmatprep.subr.mxu0 0.0
    %1911 = vmatpush1.msra.mxu0 0.0
    %1912 = vmatprep.subr.mxu0 0.0
    %1913 = vmatpush1.msra.mxu0 0.0
    %1914 = vmatprep.subr.mxu0 0.0
    %1915 = vmatpush1.msra.mxu0 0.0
    %1916 = vmatprep.subr.mxu0 0.0
    %1917 = vmatpush1.msra.mxu0 0.0
    %1918 = vmatprep.subr.mxu0 0.0
    %1919 = vmatpush1.msra.mxu0 0.0
    %1920 = vmatprep.subr.mxu0 0.0
    %1921 = vmatpush1.msra.mxu0 0.0
    %1922 = vmatprep.subr.mxu0 0.0
    %1923 = vmatpush1.msra.mxu0 0.0
    %1924 = vmatprep.subr.mxu0 0.0
    %1925 = vmatpush1.msra.mxu0 0.0
    %1926 = vmatprep.subr.mxu0 0.0
    %1927 = vmatpush1.msra.mxu0 0.0
    %1928 = vmatprep.subr.mxu0 0.0
    %1929 = vmatpush1.msra.mxu0 0.0
    %1930 = vmatprep.subr.mxu0 0.0
    %1931 = vmatpush1.msra.mxu0 0.0
    %1932 = vmatprep.subr.mxu0 0.0
    %1933 = vmatpush1.msra.mxu0 0.0
    %1934 = vmatprep.subr.mxu0 0.0
    %1935 = vmatpush1.msra.mxu0 0.0
    %1936 = vmatprep.subr.mxu0 0.0
    %1937 = vmatpush1.msra.mxu0 0.0
    %1938 = vmatprep.subr.mxu0 0.0
    %1939 = vmatpush1.msra.mxu0 0.0
    %1940 = vmatprep.subr.mxu0 0.0
    %1941 = vmatpush1.msra.mxu0 0.0
    %1942 = vmatprep.subr.mxu0 0.0
    %1943 = vmatpush1.msra.mxu0 0.0
    %1944 = vmatprep.subr.mxu0 0.0
    %1945 = vmatpush1.msra.mxu0 0.0
    %1946 = vmatprep.subr.mxu0 0.0
    %1947 = vmatpush1.msra.mxu0 0.0
    %1948 = vmatprep.subr.mxu0 0.0
    %1949 = vmatpush1.msra.mxu0 0.0
    %1950 = vmatprep.subr.mxu0 0.0
    %1951 = vmatpush1.msra.mxu0 0.0
    %1952 = vmatprep.subr.mxu0 0.0
    %1953 = vmatpush1.msra.mxu0 0.0
    %1954 = vmatprep.subr.mxu0 0.0
    %1955 = vmatpush1.msra.mxu0 0.0
    %1956 = vmatprep.subr.mxu0 0.0
    %1957 = vmatpush1.msra.mxu0 0.0
    %1958 = vmatprep.subr.mxu0 0.0
    %1959 = vmatpush1.msra.mxu0 0.0
    %1960 = vmatprep.subr.mxu0 0.0
    %1961 = vmatpush1.msra.mxu0 0.0
    %1962 = vmatprep.subr.mxu0 0.0
    %1963 = vmatpush1.msra.mxu0 0.0
    %1964 = vmatprep.subr.mxu0 0.0
    %1965 = vmatpush1.msra.mxu0 0.0
    %1966 = vmatprep.subr.mxu0 0.0
    %1967 = vmatpush1.msra.mxu0 0.0
    %1968 = vmatprep.subr.mxu0 0.0
    %1969 = vmatpush1.msra.mxu0 0.0
    %1970 = vmatprep.mubr.f32.mxu0 0.0
    %1971 = vmatmul.mubr.f32.gmra.mrb[0].mxu0 %v342
    %v1972 = vpop.f32.mrb[0].mxu0
    %v1973 = vadd.f32 0.0, %v1972
    %v1974 = vpop.f32.mrb[0].mxu0
    %v1975 = vadd.f32 0.0, %v1974
    %1976 = vdwg.mxu0
    %1977 = vmatprep.subr.mxu0 %v225
    %1978 = vmatpush1.msra.mxu0 %v224
    %1979 = vmatprep.subr.mxu0 %v257
    %1980 = vmatpush1.msra.mxu0 %v256
    %1981 = vmatprep.subr.mxu0 0.0
    %1982 = vmatpush1.msra.mxu0 0.0
    %1983 = vmatprep.subr.mxu0 0.0
    %1984 = vmatpush1.msra.mxu0 0.0
    %1985 = vmatprep.subr.mxu0 0.0
    %1986 = vmatpush1.msra.mxu0 0.0
    %1987 = vmatprep.subr.mxu0 0.0
    %1988 = vmatpush1.msra.mxu0 0.0
    %1989 = vmatprep.subr.mxu0 0.0
    %1990 = vmatpush1.msra.mxu0 0.0
    %1991 = vmatprep.subr.mxu0 0.0
    %1992 = vmatpush1.msra.mxu0 0.0
    %1993 = vmatprep.subr.mxu0 0.0
    %1994 = vmatpush1.msra.mxu0 0.0
    %1995 = vmatprep.subr.mxu0 0.0
    %1996 = vmatpush1.msra.mxu0 0.0
    %1997 = vmatprep.subr.mxu0 0.0
    %1998 = vmatpush1.msra.mxu0 0.0
    %1999 = vmatprep.subr.mxu0 0.0
    %2000 = vmatpush1.msra.mxu0 0.0
    %2001 = vmatprep.subr.mxu0 0.0
    %2002 = vmatpush1.msra.mxu0 0.0
    %2003 = vmatprep.subr.mxu0 0.0
    %2004 = vmatpush1.msra.mxu0 0.0
    %2005 = vmatprep.subr.mxu0 0.0
    %2006 = vmatpush1.msra.mxu0 0.0
    %2007 = vmatprep.subr.mxu0 0.0
    %2008 = vmatpush1.msra.mxu0 0.0
    %2009 = vmatprep.subr.mxu0 0.0
    %2010 = vmatpush1.msra.mxu0 0.0
    %2011 = vmatprep.subr.mxu0 0.0
    %2012 = vmatpush1.msra.mxu0 0.0
    %2013 = vmatprep.subr.mxu0 0.0
    %2014 = vmatpush1.msra.mxu0 0.0
    %2015 = vmatprep.subr.mxu0 0.0
    %2016 = vmatpush1.msra.mxu0 0.0
    %2017 = vmatprep.subr.mxu0 0.0
    %2018 = vmatpush1.msra.mxu0 0.0
    %2019 = vmatprep.subr.mxu0 0.0
    %2020 = vmatpush1.msra.mxu0 0.0
    %2021 = vmatprep.subr.mxu0 0.0
    %2022 = vmatpush1.msra.mxu0 0.0
    %2023 = vmatprep.subr.mxu0 0.0
    %2024 = vmatpush1.msra.mxu0 0.0
    %2025 = vmatprep.subr.mxu0 0.0
    %2026 = vmatpush1.msra.mxu0 0.0
    %2027 = vmatprep.subr.mxu0 0.0
    %2028 = vmatpush1.msra.mxu0 0.0
    %2029 = vmatprep.subr.mxu0 0.0
    %2030 = vmatpush1.msra.mxu0 0.0
    %2031 = vmatprep.subr.mxu0 0.0
    %2032 = vmatpush1.msra.mxu0 0.0
    %2033 = vmatprep.subr.mxu0 0.0
    %2034 = vmatpush1.msra.mxu0 0.0
    %2035 = vmatprep.subr.mxu0 0.0
    %2036 = vmatpush1.msra.mxu0 0.0
    %2037 = vmatprep.subr.mxu0 0.0
    %2038 = vmatpush1.msra.mxu0 0.0
    %2039 = vmatprep.subr.mxu0 0.0
    %2040 = vmatpush1.msra.mxu0 0.0
    %2041 = vmatprep.mubr.f32.mxu0 0.0
    %2042 = vmatmul.mubr.f32.gmra.mrb[0].mxu0 %v342
    %v2043 = vpop.f32.mrb[0].mxu0
    %v2044 = vadd.f32 0.0, %v2043
    %v2045 = vpop.f32.mrb[0].mxu0
    %v2046 = vadd.f32 0.0, %v2045
    %2047 = vdwg.mxu0
    %2048 = vmatprep.subr.mxu0 %v227
    %2049 = vmatpush1.msra.mxu0 %v226
    %2050 = vmatprep.subr.mxu0 %v259
    %2051 = vmatpush1.msra.mxu0 %v258
    %2052 = vmatprep.subr.mxu0 0.0
    %2053 = vmatpush1.msra.mxu0 0.0
    %2054 = vmatprep.subr.mxu0 0.0
    %2055 = vmatpush1.msra.mxu0 0.0
    %2056 = vmatprep.subr.mxu0 0.0
    %2057 = vmatpush1.msra.mxu0 0.0
    %2058 = vmatprep.subr.mxu0 0.0
    %2059 = vmatpush1.msra.mxu0 0.0
    %2060 = vmatprep.subr.mxu0 0.0
    %2061 = vmatpush1.msra.mxu0 0.0
    %2062 = vmatprep.subr.mxu0 0.0
    %2063 = vmatpush1.msra.mxu0 0.0
    %2064 = vmatprep.subr.mxu0 0.0
    %2065 = vmatpush1.msra.mxu0 0.0
    %2066 = vmatprep.subr.mxu0 0.0
    %2067 = vmatpush1.msra.mxu0 0.0
    %2068 = vmatprep.subr.mxu0 0.0
    %2069 = vmatpush1.msra.mxu0 0.0
    %2070 = vmatprep.subr.mxu0 0.0
    %2071 = vmatpush1.msra.mxu0 0.0
    %2072 = vmatprep.subr.mxu0 0.0
    %2073 = vmatpush1.msra.mxu0 0.0
    %2074 = vmatprep.subr.mxu0 0.0
    %2075 = vmatpush1.msra.mxu0 0.0
    %2076 = vmatprep.subr.mxu0 0.0
    %2077 = vmatpush1.msra.mxu0 0.0
    %2078 = vmatprep.subr.mxu0 0.0
    %2079 = vmatpush1.msra.mxu0 0.0
    %2080 = vmatprep.subr.mxu0 0.0
    %2081 = vmatpush1.msra.mxu0 0.0
    %2082 = vmatprep.subr.mxu0 0.0
    %2083 = vmatpush1.msra.mxu0 0.0
    %2084 = vmatprep.subr.mxu0 0.0
    %2085 = vmatpush1.msra.mxu0 0.0
    %2086 = vmatprep.subr.mxu0 0.0
    %2087 = vmatpush1.msra.mxu0 0.0
    %2088 = vmatprep.subr.mxu0 0.0
    %2089 = vmatpush1.msra.mxu0 0.0
    %2090 = vmatprep.subr.mxu0 0.0
    %2091 = vmatpush1.msra.mxu0 0.0
    %2092 = vmatprep.subr.mxu0 0.0
    %2093 = vmatpush1.msra.mxu0 0.0
    %2094 = vmatprep.subr.mxu0 0.0
    %2095 = vmatpush1.msra.mxu0 0.0
    %2096 = vmatprep.subr.mxu0 0.0
    %2097 = vmatpush1.msra.mxu0 0.0
    %2098 = vmatprep.subr.mxu0 0.0
    %2099 = vmatpush1.msra.mxu0 0.0
    %2100 = vmatprep.subr.mxu0 0.0
    %2101 = vmatpush1.msra.mxu0 0.0
    %2102 = vmatprep.subr.mxu0 0.0
    %2103 = vmatpush1.msra.mxu0 0.0
    %2104 = vmatprep.subr.mxu0 0.0
    %2105 = vmatpush1.msra.mxu0 0.0
    %2106 = vmatprep.subr.mxu0 0.0
    %2107 = vmatpush1.msra.mxu0 0.0
    %2108 = vmatprep.subr.mxu0 0.0
    %2109 = vmatpush1.msra.mxu0 0.0
    %2110 = vmatprep.subr.mxu0 0.0
    %2111 = vmatpush1.msra.mxu0 0.0
    %2112 = vmatprep.mubr.f32.mxu0 0.0
    %2113 = vmatmul.mubr.f32.gmra.mrb[0].mxu0 %v342
    %v2114 = vpop.f32.mrb[0].mxu0
    %v2115 = vadd.f32 0.0, %v2114
    %v2116 = vpop.f32.mrb[0].mxu0
    %v2117 = vadd.f32 0.0, %v2116
    %2118 = vdwg.mxu0
    %2119 = vmatprep.subr.mxu0 %v229
    %2120 = vmatpush1.msra.mxu0 %v228
    %2121 = vmatprep.subr.mxu0 %v261
    %2122 = vmatpush1.msra.mxu0 %v260
    %2123 = vmatprep.subr.mxu0 0.0
    %2124 = vmatpush1.msra.mxu0 0.0
    %2125 = vmatprep.subr.mxu0 0.0
    %2126 = vmatpush1.msra.mxu0 0.0
    %2127 = vmatprep.subr.mxu0 0.0
    %2128 = vmatpush1.msra.mxu0 0.0
    %2129 = vmatprep.subr.mxu0 0.0
    %2130 = vmatpush1.msra.mxu0 0.0
    %2131 = vmatprep.subr.mxu0 0.0
    %2132 = vmatpush1.msra.mxu0 0.0
    %2133 = vmatprep.subr.mxu0 0.0
    %2134 = vmatpush1.msra.mxu0 0.0
    %2135 = vmatprep.subr.mxu0 0.0
    %2136 = vmatpush1.msra.mxu0 0.0
    %2137 = vmatprep.subr.mxu0 0.0
    %2138 = vmatpush1.msra.mxu0 0.0
    %2139 = vmatprep.subr.mxu0 0.0
    %2140 = vmatpush1.msra.mxu0 0.0
    %2141 = vmatprep.subr.mxu0 0.0
    %2142 = vmatpush1.msra.mxu0 0.0
    %2143 = vmatprep.subr.mxu0 0.0
    %2144 = vmatpush1.msra.mxu0 0.0
    %2145 = vmatprep.subr.mxu0 0.0
    %2146 = vmatpush1.msra.mxu0 0.0
    %2147 = vmatprep.subr.mxu0 0.0
    %2148 = vmatpush1.msra.mxu0 0.0
    %2149 = vmatprep.subr.mxu0 0.0
    %2150 = vmatpush1.msra.mxu0 0.0
    %2151 = vmatprep.subr.mxu0 0.0
    %2152 = vmatpush1.msra.mxu0 0.0
    %2153 = vmatprep.subr.mxu0 0.0
    %2154 = vmatpush1.msra.mxu0 0.0
    %2155 = vmatprep.subr.mxu0 0.0
    %2156 = vmatpush1.msra.mxu0 0.0
    %2157 = vmatprep.subr.mxu0 0.0
    %2158 = vmatpush1.msra.mxu0 0.0
    %2159 = vmatprep.subr.mxu0 0.0
    %2160 = vmatpush1.msra.mxu0 0.0
    %2161 = vmatprep.subr.mxu0 0.0
    %2162 = vmatpush1.msra.mxu0 0.0
    %2163 = vmatprep.subr.mxu0 0.0
    %2164 = vmatpush1.msra.mxu0 0.0
    %2165 = vmatprep.subr.mxu0 0.0
    %2166 = vmatpush1.msra.mxu0 0.0
    %2167 = vmatprep.subr.mxu0 0.0
    %2168 = vmatpush1.msra.mxu0 0.0
    %2169 = vmatprep.subr.mxu0 0.0
    %2170 = vmatpush1.msra.mxu0 0.0
    %2171 = vmatprep.subr.mxu0 0.0
    %2172 = vmatpush1.msra.mxu0 0.0
    %2173 = vmatprep.subr.mxu0 0.0
    %2174 = vmatpush1.msra.mxu0 0.0
    %2175 = vmatprep.subr.mxu0 0.0
    %2176 = vmatpush1.msra.mxu0 0.0
    %2177 = vmatprep.subr.mxu0 0.0
    %2178 = vmatpush1.msra.mxu0 0.0
    %2179 = vmatprep.subr.mxu0 0.0
    %2180 = vmatpush1.msra.mxu0 0.0
    %2181 = vmatprep.subr.mxu0 0.0
    %2182 = vmatpush1.msra.mxu0 0.0
    %2183 = vmatprep.mubr.f32.mxu0 0.0
    %2184 = vmatmul.mubr.f32.gmra.mrb[0].mxu0 %v342
    %v2185 = vpop.f32.mrb[0].mxu0
    %v2186 = vadd.f32 0.0, %v2185
    %v2187 = vpop.f32.mrb[0].mxu0
    %v2188 = vadd.f32 0.0, %v2187
    %2189 = vdwg.mxu0
    %2190 = vmatprep.subr.mxu0 %v231
    %2191 = vmatpush1.msra.mxu0 %v230
    %2192 = vmatprep.subr.mxu0 %v263
    %2193 = vmatpush1.msra.mxu0 %v262
    %2194 = vmatprep.subr.mxu0 0.0
    %2195 = vmatpush1.msra.mxu0 0.0
    %2196 = vmatprep.subr.mxu0 0.0
    %2197 = vmatpush1.msra.mxu0 0.0
    %2198 = vmatprep.subr.mxu0 0.0
    %2199 = vmatpush1.msra.mxu0 0.0
    %2200 = vmatprep.subr.mxu0 0.0
    %2201 = vmatpush1.msra.mxu0 0.0
    %2202 = vmatprep.subr.mxu0 0.0
    %2203 = vmatpush1.msra.mxu0 0.0
    %2204 = vmatprep.subr.mxu0 0.0
    %2205 = vmatpush1.msra.mxu0 0.0
    %2206 = vmatprep.subr.mxu0 0.0
    %2207 = vmatpush1.msra.mxu0 0.0
    %2208 = vmatprep.subr.mxu0 0.0
    %2209 = vmatpush1.msra.mxu0 0.0
    %2210 = vmatprep.subr.mxu0 0.0
    %2211 = vmatpush1.msra.mxu0 0.0
    %2212 = vmatprep.subr.mxu0 0.0
    %2213 = vmatpush1.msra.mxu0 0.0
    %2214 = vmatprep.subr.mxu0 0.0
    %2215 = vmatpush1.msra.mxu0 0.0
    %2216 = vmatprep.subr.mxu0 0.0
    %2217 = vmatpush1.msra.mxu0 0.0
    %2218 = vmatprep.subr.mxu0 0.0
    %2219 = vmatpush1.msra.mxu0 0.0
    %2220 = vmatprep.subr.mxu0 0.0
    %2221 = vmatpush1.msra.mxu0 0.0
    %2222 = vmatprep.subr.mxu0 0.0
    %2223 = vmatpush1.msra.mxu0 0.0
    %2224 = vmatprep.subr.mxu0 0.0
    %2225 = vmatpush1.msra.mxu0 0.0
    %2226 = vmatprep.subr.mxu0 0.0
    %2227 = vmatpush1.msra.mxu0 0.0
    %2228 = vmatprep.subr.mxu0 0.0
    %2229 = vmatpush1.msra.mxu0 0.0
    %2230 = vmatprep.subr.mxu0 0.0
    %2231 = vmatpush1.msra.mxu0 0.0
    %2232 = vmatprep.subr.mxu0 0.0
    %2233 = vmatpush1.msra.mxu0 0.0
    %2234 = vmatprep.subr.mxu0 0.0
    %2235 = vmatpush1.msra.mxu0 0.0
    %2236 = vmatprep.subr.mxu0 0.0
    %2237 = vmatpush1.msra.mxu0 0.0
    %2238 = vmatprep.subr.mxu0 0.0
    %2239 = vmatpush1.msra.mxu0 0.0
    %2240 = vmatprep.subr.mxu0 0.0
    %2241 = vmatpush1.msra.mxu0 0.0
    %2242 = vmatprep.subr.mxu0 0.0
    %2243 = vmatpush1.msra.mxu0 0.0
    %2244 = vmatprep.subr.mxu0 0.0
    %2245 = vmatpush1.msra.mxu0 0.0
    %2246 = vmatprep.subr.mxu0 0.0
    %2247 = vmatpush1.msra.mxu0 0.0
    %2248 = vmatprep.subr.mxu0 0.0
    %2249 = vmatpush1.msra.mxu0 0.0
    %2250 = vmatprep.subr.mxu0 0.0
    %2251 = vmatpush1.msra.mxu0 0.0
    %2252 = vmatprep.subr.mxu0 0.0
    %2253 = vmatpush1.msra.mxu0 0.0
    %2254 = vmatprep.mubr.f32.mxu0 0.0
    %2255 = vmatmul.mubr.f32.gmra.mrb[0].mxu0 %v342
    %v2256 = vpop.f32.mrb[0].mxu0
    %v2257 = vadd.f32 0.0, %v2256
    %v2258 = vpop.f32.mrb[0].mxu0
    %v2259 = vadd.f32 0.0, %v2258
    %2260 = vdwg.mxu0
    %2261 = vmatprep.subr.mxu0 %v233
    %2262 = vmatpush1.msra.mxu0 %v232
    %2263 = vmatprep.subr.mxu0 %v265
    %2264 = vmatpush1.msra.mxu0 %v264
    %2265 = vmatprep.subr.mxu0 0.0
    %2266 = vmatpush1.msra.mxu0 0.0
    %2267 = vmatprep.subr.mxu0 0.0
    %2268 = vmatpush1.msra.mxu0 0.0
    %2269 = vmatprep.subr.mxu0 0.0
    %2270 = vmatpush1.msra.mxu0 0.0
    %2271 = vmatprep.subr.mxu0 0.0
    %2272 = vmatpush1.msra.mxu0 0.0
    %2273 = vmatprep.subr.mxu0 0.0
    %2274 = vmatpush1.msra.mxu0 0.0
    %2275 = vmatprep.subr.mxu0 0.0
    %2276 = vmatpush1.msra.mxu0 0.0
    %2277 = vmatprep.subr.mxu0 0.0
    %2278 = vmatpush1.msra.mxu0 0.0
    %2279 = vmatprep.subr.mxu0 0.0
    %2280 = vmatpush1.msra.mxu0 0.0
    %2281 = vmatprep.subr.mxu0 0.0
    %2282 = vmatpush1.msra.mxu0 0.0
    %2283 = vmatprep.subr.mxu0 0.0
    %2284 = vmatpush1.msra.mxu0 0.0
    %2285 = vmatprep.subr.mxu0 0.0
    %2286 = vmatpush1.msra.mxu0 0.0
    %2287 = vmatprep.subr.mxu0 0.0
    %2288 = vmatpush1.msra.mxu0 0.0
    %2289 = vmatprep.subr.mxu0 0.0
    %2290 = vmatpush1.msra.mxu0 0.0
    %2291 = vmatprep.subr.mxu0 0.0
    %2292 = vmatpush1.msra.mxu0 0.0
    %2293 = vmatprep.subr.mxu0 0.0
    %2294 = vmatpush1.msra.mxu0 0.0
    %2295 = vmatprep.subr.mxu0 0.0
    %2296 = vmatpush1.msra.mxu0 0.0
    %2297 = vmatprep.subr.mxu0 0.0
    %2298 = vmatpush1.msra.mxu0 0.0
    %2299 = vmatprep.subr.mxu0 0.0
    %2300 = vmatpush1.msra.mxu0 0.0
    %2301 = vmatprep.subr.mxu0 0.0
    %2302 = vmatpush1.msra.mxu0 0.0
    %2303 = vmatprep.subr.mxu0 0.0
    %2304 = vmatpush1.msra.mxu0 0.0
    %2305 = vmatprep.subr.mxu0 0.0
    %2306 = vmatpush1.msra.mxu0 0.0
    %2307 = vmatprep.subr.mxu0 0.0
    %2308 = vmatpush1.msra.mxu0 0.0
    %2309 = vmatprep.subr.mxu0 0.0
    %2310 = vmatpush1.msra.mxu0 0.0
    %2311 = vmatprep.subr.mxu0 0.0
    %2312 = vmatpush1.msra.mxu0 0.0
    %2313 = vmatprep.subr.mxu0 0.0
    %2314 = vmatpush1.msra.mxu0 0.0
    %2315 = vmatprep.subr.mxu0 0.0
    %2316 = vmatpush1.msra.mxu0 0.0
    %2317 = vmatprep.subr.mxu0 0.0
    %2318 = vmatpush1.msra.mxu0 0.0
    %2319 = vmatprep.subr.mxu0 0.0
    %2320 = vmatpush1.msra.mxu0 0.0
    %2321 = vmatprep.subr.mxu0 0.0
    %2322 = vmatpush1.msra.mxu0 0.0
    %2323 = vmatprep.subr.mxu0 0.0
    %2324 = vmatpush1.msra.mxu0 0.0
    %2325 = vmatprep.mubr.f32.mxu0 0.0
    %2326 = vmatmul.mubr.f32.gmra.mrb[0].mxu0 %v342
    %v2327 = vpop.f32.mrb[0].mxu0
    %v2328 = vadd.f32 0.0, %v2327
    %v2329 = vpop.f32.mrb[0].mxu0
    %v2330 = vadd.f32 0.0, %v2329
    %2331 = vdwg.mxu0
    %2332 = vmatprep.subr.mxu0 %v235
    %2333 = vmatpush1.msra.mxu0 %v234
    %2334 = vmatprep.subr.mxu0 %v267
    %2335 = vmatpush1.msra.mxu0 %v266
    %2336 = vmatprep.subr.mxu0 0.0
    %2337 = vmatpush1.msra.mxu0 0.0
    %2338 = vmatprep.subr.mxu0 0.0
    %2339 = vmatpush1.msra.mxu0 0.0
    %2340 = vmatprep.subr.mxu0 0.0
    %2341 = vmatpush1.msra.mxu0 0.0
    %2342 = vmatprep.subr.mxu0 0.0
    %2343 = vmatpush1.msra.mxu0 0.0
    %2344 = vmatprep.subr.mxu0 0.0
    %2345 = vmatpush1.msra.mxu0 0.0
    %2346 = vmatprep.subr.mxu0 0.0
    %2347 = vmatpush1.msra.mxu0 0.0
    %2348 = vmatprep.subr.mxu0 0.0
    %2349 = vmatpush1.msra.mxu0 0.0
    %2350 = vmatprep.subr.mxu0 0.0
    %2351 = vmatpush1.msra.mxu0 0.0
    %2352 = vmatprep.subr.mxu0 0.0
    %2353 = vmatpush1.msra.mxu0 0.0
    %2354 = vmatprep.subr.mxu0 0.0
    %2355 = vmatpush1.msra.mxu0 0.0
    %2356 = vmatprep.subr.mxu0 0.0
    %2357 = vmatpush1.msra.mxu0 0.0
    %2358 = vmatprep.subr.mxu0 0.0
    %2359 = vmatpush1.msra.mxu0 0.0
    %2360 = vmatprep.subr.mxu0 0.0
    %2361 = vmatpush1.msra.mxu0 0.0
    %2362 = vmatprep.subr.mxu0 0.0
    %2363 = vmatpush1.msra.mxu0 0.0
    %2364 = vmatprep.subr.mxu0 0.0
    %2365 = vmatpush1.msra.mxu0 0.0
    %2366 = vmatprep.subr.mxu0 0.0
    %2367 = vmatpush1.msra.mxu0 0.0
    %2368 = vmatprep.subr.mxu0 0.0
    %2369 = vmatpush1.msra.mxu0 0.0
    %2370 = vmatprep.subr.mxu0 0.0
    %2371 = vmatpush1.msra.mxu0 0.0
    %2372 = vmatprep.subr.mxu0 0.0
    %2373 = vmatpush1.msra.mxu0 0.0
    %2374 = vmatprep.subr.mxu0 0.0
    %2375 = vmatpush1.msra.mxu0 0.0
    %2376 = vmatprep.subr.mxu0 0.0
    %2377 = vmatpush1.msra.mxu0 0.0
    %2378 = vmatprep.subr.mxu0 0.0
    %2379 = vmatpush1.msra.mxu0 0.0
    %2380 = vmatprep.subr.mxu0 0.0
    %2381 = vmatpush1.msra.mxu0 0.0
    %2382 = vmatprep.subr.mxu0 0.0
    %2383 = vmatpush1.msra.mxu0 0.0
    %2384 = vmatprep.subr.mxu0 0.0
    %2385 = vmatpush1.msra.mxu0 0.0
    %2386 = vmatprep.subr.mxu0 0.0
    %2387 = vmatpush1.msra.mxu0 0.0
    %2388 = vmatprep.subr.mxu0 0.0
    %2389 = vmatpush1.msra.mxu0 0.0
    %2390 = vmatprep.subr.mxu0 0.0
    %2391 = vmatpush1.msra.mxu0 0.0
    %2392 = vmatprep.subr.mxu0 0.0
    %2393 = vmatpush1.msra.mxu0 0.0
    %2394 = vmatprep.subr.mxu0 0.0
    %2395 = vmatpush1.msra.mxu0 0.0
    %2396 = vmatprep.mubr.f32.mxu0 0.0
    %2397 = vmatmul.mubr.f32.gmra.mrb[0].mxu0 %v342
    %v2398 = vpop.f32.mrb[0].mxu0
    %v2399 = vadd.f32 0.0, %v2398
    %v2400 = vpop.f32.mrb[0].mxu0
    %v2401 = vadd.f32 0.0, %v2400
    %2402 = vdwg.mxu0
    %2403 = vmatprep.subr.mxu0 %v237
    %2404 = vmatpush1.msra.mxu0 %v236
    %2405 = vmatprep.subr.mxu0 %v269
    %2406 = vmatpush1.msra.mxu0 %v268
    %2407 = vmatprep.subr.mxu0 0.0
    %2408 = vmatpush1.msra.mxu0 0.0
    %2409 = vmatprep.subr.mxu0 0.0
    %2410 = vmatpush1.msra.mxu0 0.0
    %2411 = vmatprep.subr.mxu0 0.0
    %2412 = vmatpush1.msra.mxu0 0.0
    %2413 = vmatprep.subr.mxu0 0.0
    %2414 = vmatpush1.msra.mxu0 0.0
    %2415 = vmatprep.subr.mxu0 0.0
    %2416 = vmatpush1.msra.mxu0 0.0
    %2417 = vmatprep.subr.mxu0 0.0
    %2418 = vmatpush1.msra.mxu0 0.0
    %2419 = vmatprep.subr.mxu0 0.0
    %2420 = vmatpush1.msra.mxu0 0.0
    %2421 = vmatprep.subr.mxu0 0.0
    %2422 = vmatpush1.msra.mxu0 0.0
    %2423 = vmatprep.subr.mxu0 0.0
    %2424 = vmatpush1.msra.mxu0 0.0
    %2425 = vmatprep.subr.mxu0 0.0
    %2426 = vmatpush1.msra.mxu0 0.0
    %2427 = vmatprep.subr.mxu0 0.0
    %2428 = vmatpush1.msra.mxu0 0.0
    %2429 = vmatprep.subr.mxu0 0.0
    %2430 = vmatpush1.msra.mxu0 0.0
    %2431 = vmatprep.subr.mxu0 0.0
    %2432 = vmatpush1.msra.mxu0 0.0
    %2433 = vmatprep.subr.mxu0 0.0
    %2434 = vmatpush1.msra.mxu0 0.0
    %2435 = vmatprep.subr.mxu0 0.0
    %2436 = vmatpush1.msra.mxu0 0.0
    %2437 = vmatprep.subr.mxu0 0.0
    %2438 = vmatpush1.msra.mxu0 0.0
    %2439 = vmatprep.subr.mxu0 0.0
    %2440 = vmatpush1.msra.mxu0 0.0
    %2441 = vmatprep.subr.mxu0 0.0
    %2442 = vmatpush1.msra.mxu0 0.0
    %2443 = vmatprep.subr.mxu0 0.0
    %2444 = vmatpush1.msra.mxu0 0.0
    %2445 = vmatprep.subr.mxu0 0.0
    %2446 = vmatpush1.msra.mxu0 0.0
    %2447 = vmatprep.subr.mxu0 0.0
    %2448 = vmatpush1.msra.mxu0 0.0
    %2449 = vmatprep.subr.mxu0 0.0
    %2450 = vmatpush1.msra.mxu0 0.0
    %2451 = vmatprep.subr.mxu0 0.0
    %2452 = vmatpush1.msra.mxu0 0.0
    %2453 = vmatprep.subr.mxu0 0.0
    %2454 = vmatpush1.msra.mxu0 0.0
    %2455 = vmatprep.subr.mxu0 0.0
    %2456 = vmatpush1.msra.mxu0 0.0
    %2457 = vmatprep.subr.mxu0 0.0
    %2458 = vmatpush1.msra.mxu0 0.0
    %2459 = vmatprep.subr.mxu0 0.0
    %2460 = vmatpush1.msra.mxu0 0.0
    %2461 = vmatprep.subr.mxu0 0.0
    %2462 = vmatpush1.msra.mxu0 0.0
    %2463 = vmatprep.subr.mxu0 0.0
    %2464 = vmatpush1.msra.mxu0 0.0
    %2465 = vmatprep.subr.mxu0 0.0
    %2466 = vmatpush1.msra.mxu0 0.0
    %2467 = vmatprep.mubr.f32.mxu0 0.0
    %2468 = vmatmul.mubr.f32.gmra.mrb[0].mxu0 %v342
    %v2469 = vpop.f32.mrb[0].mxu0
    %v2470 = vadd.f32 0.0, %v2469
    %v2471 = vpop.f32.mrb[0].mxu0
    %v2472 = vadd.f32 0.0, %v2471
    %2473 = vdwg.mxu0
    %2474 = vmatprep.subr.mxu0 %v239
    %2475 = vmatpush1.msra.mxu0 %v238
    %2476 = vmatprep.subr.mxu0 %v271
    %2477 = vmatpush1.msra.mxu0 %v270
    %2478 = vmatprep.subr.mxu0 0.0
    %2479 = vmatpush1.msra.mxu0 0.0
    %2480 = vmatprep.subr.mxu0 0.0
    %2481 = vmatpush1.msra.mxu0 0.0
    %2482 = vmatprep.subr.mxu0 0.0
    %2483 = vmatpush1.msra.mxu0 0.0
    %2484 = vmatprep.subr.mxu0 0.0
    %2485 = vmatpush1.msra.mxu0 0.0
    %2486 = vmatprep.subr.mxu0 0.0
    %2487 = vmatpush1.msra.mxu0 0.0
    %2488 = vmatprep.subr.mxu0 0.0
    %2489 = vmatpush1.msra.mxu0 0.0
    %2490 = vmatprep.subr.mxu0 0.0
    %2491 = vmatpush1.msra.mxu0 0.0
    %2492 = vmatprep.subr.mxu0 0.0
    %2493 = vmatpush1.msra.mxu0 0.0
    %2494 = vmatprep.subr.mxu0 0.0
    %2495 = vmatpush1.msra.mxu0 0.0
    %2496 = vmatprep.subr.mxu0 0.0
    %2497 = vmatpush1.msra.mxu0 0.0
    %2498 = vmatprep.subr.mxu0 0.0
    %2499 = vmatpush1.msra.mxu0 0.0
    %2500 = vmatprep.subr.mxu0 0.0
    %2501 = vmatpush1.msra.mxu0 0.0
    %2502 = vmatprep.subr.mxu0 0.0
    %2503 = vmatpush1.msra.mxu0 0.0
    %2504 = vmatprep.subr.mxu0 0.0
    %2505 = vmatpush1.msra.mxu0 0.0
    %2506 = vmatprep.subr.mxu0 0.0
    %2507 = vmatpush1.msra.mxu0 0.0
    %2508 = vmatprep.subr.mxu0 0.0
    %2509 = vmatpush1.msra.mxu0 0.0
    %2510 = vmatprep.subr.mxu0 0.0
    %2511 = vmatpush1.msra.mxu0 0.0
    %2512 = vmatprep.subr.mxu0 0.0
    %2513 = vmatpush1.msra.mxu0 0.0
    %2514 = vmatprep.subr.mxu0 0.0
    %2515 = vmatpush1.msra.mxu0 0.0
    %2516 = vmatprep.subr.mxu0 0.0
    %2517 = vmatpush1.msra.mxu0 0.0
    %2518 = vmatprep.subr.mxu0 0.0
    %2519 = vmatpush1.msra.mxu0 0.0
    %2520 = vmatprep.subr.mxu0 0.0
    %2521 = vmatpush1.msra.mxu0 0.0
    %2522 = vmatprep.subr.mxu0 0.0
    %2523 = vmatpush1.msra.mxu0 0.0
    %2524 = vmatprep.subr.mxu0 0.0
    %2525 = vmatpush1.msra.mxu0 0.0
    %2526 = vmatprep.subr.mxu0 0.0
    %2527 = vmatpush1.msra.mxu0 0.0
    %2528 = vmatprep.subr.mxu0 0.0
    %2529 = vmatpush1.msra.mxu0 0.0
    %2530 = vmatprep.subr.mxu0 0.0
    %2531 = vmatpush1.msra.mxu0 0.0
    %2532 = vmatprep.subr.mxu0 0.0
    %2533 = vmatpush1.msra.mxu0 0.0
    %2534 = vmatprep.subr.mxu0 0.0
    %2535 = vmatpush1.msra.mxu0 0.0
    %2536 = vmatprep.subr.mxu0 0.0
    %2537 = vmatpush1.msra.mxu0 0.0
    %2538 = vmatprep.mubr.f32.mxu0 0.0
    %2539 = vmatmul.mubr.f32.gmra.mrb[0].mxu0 %v342
    %v2540 = vpop.f32.mrb[0].mxu0
    %v2541 = vadd.f32 0.0, %v2540
    %v2542 = vpop.f32.mrb[0].mxu0
    %v2543 = vadd.f32 0.0, %v2542
    %2544 = vdwg.mxu0
    %2545 = vmatprep.subr.mxu0 %v241
    %2546 = vmatpush1.msra.mxu0 %v240
    %2547 = vmatprep.subr.mxu0 %v273
    %2548 = vmatpush1.msra.mxu0 %v272
    %2549 = vmatprep.subr.mxu0 0.0
    %2550 = vmatpush1.msra.mxu0 0.0
    %2551 = vmatprep.subr.mxu0 0.0
    %2552 = vmatpush1.msra.mxu0 0.0
    %2553 = vmatprep.subr.mxu0 0.0
    %2554 = vmatpush1.msra.mxu0 0.0
    %2555 = vmatprep.subr.mxu0 0.0
    %2556 = vmatpush1.msra.mxu0 0.0
    %2557 = vmatprep.subr.mxu0 0.0
    %2558 = vmatpush1.msra.mxu0 0.0
    %2559 = vmatprep.subr.mxu0 0.0
    %2560 = vmatpush1.msra.mxu0 0.0
    %2561 = vmatprep.subr.mxu0 0.0
    %2562 = vmatpush1.msra.mxu0 0.0
    %2563 = vmatprep.subr.mxu0 0.0
    %2564 = vmatpush1.msra.mxu0 0.0
    %2565 = vmatprep.subr.mxu0 0.0
    %2566 = vmatpush1.msra.mxu0 0.0
    %2567 = vmatprep.subr.mxu0 0.0
    %2568 = vmatpush1.msra.mxu0 0.0
    %2569 = vmatprep.subr.mxu0 0.0
    %2570 = vmatpush1.msra.mxu0 0.0
    %2571 = vmatprep.subr.mxu0 0.0
    %2572 = vmatpush1.msra.mxu0 0.0
    %2573 = vmatprep.subr.mxu0 0.0
    %2574 = vmatpush1.msra.mxu0 0.0
    %2575 = vmatprep.subr.mxu0 0.0
    %2576 = vmatpush1.msra.mxu0 0.0
    %2577 = vmatprep.subr.mxu0 0.0
    %2578 = vmatpush1.msra.mxu0 0.0
    %2579 = vmatprep.subr.mxu0 0.0
    %2580 = vmatpush1.msra.mxu0 0.0
    %2581 = vmatprep.subr.mxu0 0.0
    %2582 = vmatpush1.msra.mxu0 0.0
    %2583 = vmatprep.subr.mxu0 0.0
    %2584 = vmatpush1.msra.mxu0 0.0
    %2585 = vmatprep.subr.mxu0 0.0
    %2586 = vmatpush1.msra.mxu0 0.0
    %2587 = vmatprep.subr.mxu0 0.0
    %2588 = vmatpush1.msra.mxu0 0.0
    %2589 = vmatprep.subr.mxu0 0.0
    %2590 = vmatpush1.msra.mxu0 0.0
    %2591 = vmatprep.subr.mxu0 0.0
    %2592 = vmatpush1.msra.mxu0 0.0
    %2593 = vmatprep.subr.mxu0 0.0
    %2594 = vmatpush1.msra.mxu0 0.0
    %2595 = vmatprep.subr.mxu0 0.0
    %2596 = vmatpush1.msra.mxu0 0.0
    %2597 = vmatprep.subr.mxu0 0.0
    %2598 = vmatpush1.msra.mxu0 0.0
    %2599 = vmatprep.subr.mxu0 0.0
    %2600 = vmatpush1.msra.mxu0 0.0
    %2601 = vmatprep.subr.mxu0 0.0
    %2602 = vmatpush1.msra.mxu0 0.0
    %2603 = vmatprep.subr.mxu0 0.0
    %2604 = vmatpush1.msra.mxu0 0.0
    %2605 = vmatprep.subr.mxu0 0.0
    %2606 = vmatpush1.msra.mxu0 0.0
    %2607 = vmatprep.subr.mxu0 0.0
    %2608 = vmatpush1.msra.mxu0 0.0
    %2609 = vmatprep.mubr.f32.mxu0 0.0
    %2610 = vmatmul.mubr.f32.gmra.mrb[0].mxu0 %v342
    %v2611 = vpop.f32.mrb[0].mxu0
    %v2612 = vadd.f32 0.0, %v2611
    %v2613 = vpop.f32.mrb[0].mxu0
    %v2614 = vadd.f32 0.0, %v2613
    %2615 = vdwg.mxu0
    %v2616 = vadd.f32 %v411, %v2541
    %v2617 = vadd.f32 %v413, %v2543
    %v2618 = vadd.f32 %v482, %v2612
    %v2619 = vadd.f32 %v484, %v2614
    %v2621 = vlaneseq
    %v2622 = vshrl.u32 %v2621, 7
    %v2623 = vsub.s32 0, %v2622
    %v2624 = vrot.slane %v338, %v2623
    %v2625 = vlaneseq
    %v2626 = vshrl.u32 %v2625, 7
    %v2627 = vsub.s32 1, %v2626
    %v2628 = vrot.slane %v338, %v2627
    %v2629 = vlaneseq
    %v2630 = vshrl.u32 %v2629, 7
    %v2631 = vsub.s32 2, %v2630
    %v2632 = vrot.slane %v338, %v2631
    %v2633 = vlaneseq
    %v2634 = vshrl.u32 %v2633, 7
    %v2635 = vsub.s32 3, %v2634
    %v2636 = vrot.slane %v338, %v2635
    %v2641 = vadd.f32 %v2616, %v2624
    %v2642 = vadd.f32 %v2617, %v2628
    %v2643 = vadd.f32 %v2618, %v2632
    %v2644 = vadd.f32 %v2619, %v2636
    %v2649 = vcombine.low %v2641, %v2642
    %v2650 = vcombine.low %v2643, %v2644
    %v2652 = vunpack.c.l.s4 1983009808
    %v2653 = vunpack.c.0.s8 %v2652
    %v2654 = vlaneseq
    %v2655 = vshrl.u32 %v2654, 7
    %v2656 = vsub.s32 %v2653, %v2655
    %v2657 = vrot.slane %v2649, %v2656
    %v2659 = vunpack.c.l.s4 1983009808
    %v2660 = vunpack.c.0.s8 %v2659
    %v2661 = vlaneseq
    %v2662 = vshrl.u32 %v2661, 7
    %v2663 = vsub.s32 %v2660, %v2662
    %v2664 = vrot.slane %v2650, %v2663
    %v2665 = vcombine.low %v2657, %v2664
    %2667 = vst [vmem:[#allocation2] sm:$0xff] %v2665
    %v2668 = vadd.f32 %v553, %v2399
    %v2669 = vadd.f32 %v555, %v2401
    %v2670 = vadd.f32 %v624, %v2470
    %v2671 = vadd.f32 %v626, %v2472
    %v2672 = vadd.f32 %v2668, %v2624
    %v2673 = vadd.f32 %v2669, %v2628
    %v2674 = vadd.f32 %v2670, %v2632
    %v2675 = vadd.f32 %v2671, %v2636
    %v2680 = vcombine.low %v2672, %v2673
    %v2681 = vcombine.low %v2674, %v2675
    %v2683 = vunpack.c.l.s4 1983009808
    %v2684 = vunpack.c.0.s8 %v2683
    %v2685 = vlaneseq
    %v2686 = vshrl.u32 %v2685, 7
    %v2687 = vsub.s32 %v2684, %v2686
    %v2688 = vrot.slane %v2680, %v2687
    %v2690 = vunpack.c.l.s4 1983009808
    %v2691 = vunpack.c.0.s8 %v2690
    %v2692 = vlaneseq
    %v2693 = vshrl.u32 %v2692, 7
    %v2694 = vsub.s32 %v2691, %v2693
    %v2695 = vrot.slane %v2681, %v2694
    %v2696 = vcombine.low %v2688, %v2695
    %s2698 = scalar_lea.vmem [#allocation2], 8
    %2699 = vst [vmem:[%s2698] sm:$0xff] %v2696
    %v2700 = vadd.f32 %v695, %v2257
    %v2701 = vadd.f32 %v697, %v2259
    %v2702 = vadd.f32 %v766, %v2328
    %v2703 = vadd.f32 %v768, %v2330
    %v2704 = vadd.f32 %v2700, %v2624
    %v2705 = vadd.f32 %v2701, %v2628
    %v2706 = vadd.f32 %v2702, %v2632
    %v2707 = vadd.f32 %v2703, %v2636
    %v2712 = vcombine.low %v2704, %v2705
    %v2713 = vcombine.low %v2706, %v2707
    %v2715 = vunpack.c.l.s4 1983009808
    %v2716 = vunpack.c.0.s8 %v2715
    %v2717 = vlaneseq
    %v2718 = vshrl.u32 %v2717, 7
    %v2719 = vsub.s32 %v2716, %v2718
    %v2720 = vrot.slane %v2712, %v2719
    %v2722 = vunpack.c.l.s4 1983009808
    %v2723 = vunpack.c.0.s8 %v2722
    %v2724 = vlaneseq
    %v2725 = vshrl.u32 %v2724, 7
    %v2726 = vsub.s32 %v2723, %v2725
    %v2727 = vrot.slane %v2713, %v2726
    %v2728 = vcombine.low %v2720, %v2727
    %s2730 = scalar_lea.vmem [#allocation2], 16
    %2731 = vst [vmem:[%s2730] sm:$0xff] %v2728
    %v2732 = vadd.f32 %v837, %v2115
    %v2733 = vadd.f32 %v839, %v2117
    %v2734 = vadd.f32 %v908, %v2186
    %v2735 = vadd.f32 %v910, %v2188
    %v2736 = vadd.f32 %v2732, %v2624
    %v2737 = vadd.f32 %v2733, %v2628
    %v2738 = vadd.f32 %v2734, %v2632
    %v2739 = vadd.f32 %v2735, %v2636
    %v2744 = vcombine.low %v2736, %v2737
    %v2745 = vcombine.low %v2738, %v2739
    %v2747 = vunpack.c.l.s4 1983009808
    %v2748 = vunpack.c.0.s8 %v2747
    %v2749 = vlaneseq
    %v2750 = vshrl.u32 %v2749, 7
    %v2751 = vsub.s32 %v2748, %v2750
    %v2752 = vrot.slane %v2744, %v2751
    %v2754 = vunpack.c.l.s4 1983009808
    %v2755 = vunpack.c.0.s8 %v2754
    %v2756 = vlaneseq
    %v2757 = vshrl.u32 %v2756, 7
    %v2758 = vsub.s32 %v2755, %v2757
    %v2759 = vrot.slane %v2745, %v2758
    %v2760 = vcombine.low %v2752, %v2759
    %s2762 = scalar_lea.vmem [#allocation2], 24
    %2763 = vst [vmem:[%s2762] sm:$0xff] %v2760
    %v2764 = vadd.f32 %v979, %v1973
    %v2765 = vadd.f32 %v981, %v1975
    %v2766 = vadd.f32 %v1050, %v2044
    %v2767 = vadd.f32 %v1052, %v2046
    %v2768 = vadd.f32 %v2764, %v2624
    %v2769 = vadd.f32 %v2765, %v2628
    %v2770 = vadd.f32 %v2766, %v2632
    %v2771 = vadd.f32 %v2767, %v2636
    %v2776 = vcombine.low %v2768, %v2769
    %v2777 = vcombine.low %v2770, %v2771
    %v2779 = vunpack.c.l.s4 1983009808
    %v2780 = vunpack.c.0.s8 %v2779
    %v2781 = vlaneseq
    %v2782 = vshrl.u32 %v2781, 7
    %v2783 = vsub.s32 %v2780, %v2782
    %v2784 = vrot.slane %v2776, %v2783
    %v2786 = vunpack.c.l.s4 1983009808
    %v2787 = vunpack.c.0.s8 %v2786
    %v2788 = vlaneseq
    %v2789 = vshrl.u32 %v2788, 7
    %v2790 = vsub.s32 %v2787, %v2789
    %v2791 = vrot.slane %v2777, %v2790
    %v2792 = vcombine.low %v2784, %v2791
    %s2794 = scalar_lea.vmem [#allocation2], 32
    %2795 = vst [vmem:[%s2794] sm:$0xff] %v2792
    %v2796 = vadd.f32 %v1121, %v1831
    %v2797 = vadd.f32 %v1123, %v1833
    %v2798 = vadd.f32 %v1192, %v1902
    %v2799 = vadd.f32 %v1194, %v1904
    %v2800 = vadd.f32 %v2796, %v2624
    %v2801 = vadd.f32 %v2797, %v2628
    %v2802 = vadd.f32 %v2798, %v2632
    %v2803 = vadd.f32 %v2799, %v2636
    %v2808 = vcombine.low %v2800, %v2801
    %v2809 = vcombine.low %v2802, %v2803
    %v2811 = vunpack.c.l.s4 1983009808
    %v2812 = vunpack.c.0.s8 %v2811
    %v2813 = vlaneseq
    %v2814 = vshrl.u32 %v2813, 7
    %v2815 = vsub.s32 %v2812, %v2814
    %v2816 = vrot.slane %v2808, %v2815
    %v2818 = vunpack.c.l.s4 1983009808
    %v2819 = vunpack.c.0.s8 %v2818
    %v2820 = vlaneseq
    %v2821 = vshrl.u32 %v2820, 7
    %v2822 = vsub.s32 %v2819, %v2821
    %v2823 = vrot.slane %v2809, %v2822
    %v2824 = vcombine.low %v2816, %v2823
    %s2826 = scalar_lea.vmem [#allocation2], 40
    %2827 = vst [vmem:[%s2826] sm:$0xff] %v2824
    %v2828 = vadd.f32 %v1263, %v1689
    %v2829 = vadd.f32 %v1265, %v1691
    %v2830 = vadd.f32 %v1334, %v1760
    %v2831 = vadd.f32 %v1336, %v1762
    %v2832 = vadd.f32 %v2828, %v2624
    %v2833 = vadd.f32 %v2829, %v2628
    %v2834 = vadd.f32 %v2830, %v2632
    %v2835 = vadd.f32 %v2831, %v2636
    %v2840 = vcombine.low %v2832, %v2833
    %v2841 = vcombine.low %v2834, %v2835
    %v2843 = vunpack.c.l.s4 1983009808
    %v2844 = vunpack.c.0.s8 %v2843
    %v2845 = vlaneseq
    %v2846 = vshrl.u32 %v2845, 7
    %v2847 = vsub.s32 %v2844, %v2846
    %v2848 = vrot.slane %v2840, %v2847
    %v2850 = vunpack.c.l.s4 1983009808
    %v2851 = vunpack.c.0.s8 %v2850
    %v2852 = vlaneseq
    %v2853 = vshrl.u32 %v2852, 7
    %v2854 = vsub.s32 %v2851, %v2853
    %v2855 = vrot.slane %v2841, %v2854
    %v2856 = vcombine.low %v2848, %v2855
    %s2858 = scalar_lea.vmem [#allocation2], 48
    %2859 = vst [vmem:[%s2858] sm:$0xff] %v2856
    %v2860 = vadd.f32 %v1405, %v1547
    %v2861 = vadd.f32 %v1407, %v1549
    %v2862 = vadd.f32 %v1476, %v1618
    %v2863 = vadd.f32 %v1478, %v1620
    %v2864 = vadd.f32 %v2860, %v2624
    %v2865 = vadd.f32 %v2861, %v2628
    %v2866 = vadd.f32 %v2862, %v2632
    %v2867 = vadd.f32 %v2863, %v2636
    %v2872 = vcombine.low %v2864, %v2865
    %v2873 = vcombine.low %v2866, %v2867
    %v2875 = vunpack.c.l.s4 1983009808
    %v2876 = vunpack.c.0.s8 %v2875
    %v2877 = vlaneseq
    %v2878 = vshrl.u32 %v2877, 7
    %v2879 = vsub.s32 %v2876, %v2878
    %v2880 = vrot.slane %v2872, %v2879
    %v2882 = vunpack.c.l.s4 1983009808
    %v2883 = vunpack.c.0.s8 %v2882
    %v2884 = vlaneseq
    %v2885 = vshrl.u32 %v2884, 7
    %v2886 = vsub.s32 %v2883, %v2885
    %v2887 = vrot.slane %v2873, %v2886
    %v2888 = vcombine.low %v2880, %v2887
    %s2890 = scalar_lea.vmem [#allocation2], 56
    %2891 = vst [vmem:[%s2890] sm:$0xff] %v2888
    %v2892 = vld [vmem:[#allocation2] sm:$0xff]
    %2893 = vmatprep.subr.mxu0 %v275
    %2894 = vmatpush1.msra.mxu0 %v274
    %2895 = vmatprep.subr.mxu0 %v279
    %2896 = vmatpush1.msra.mxu0 %v278
    %2897 = vmatprep.subr.mxu0 %v283
    %2898 = vmatpush1.msra.mxu0 %v282
    %2899 = vmatprep.subr.mxu0 %v287
    %2900 = vmatpush1.msra.mxu0 %v286
    %2901 = vmatprep.subr.mxu0 %v291
    %2902 = vmatpush1.msra.mxu0 %v290
    %2903 = vmatprep.subr.mxu0 %v295
    %2904 = vmatpush1.msra.mxu0 %v294
    %2905 = vmatprep.subr.mxu0 %v299
    %2906 = vmatpush1.msra.mxu0 %v298
    %2907 = vmatprep.subr.mxu0 %v303
    %2908 = vmatpush1.msra.mxu0 %v302
    %2909 = vmatprep.subr.mxu0 %v307
    %2910 = vmatpush1.msra.mxu0 %v306
    %2911 = vmatprep.subr.mxu0 %v311
    %2912 = vmatpush1.msra.mxu0 %v310
    %2913 = vmatprep.subr.mxu0 %v315
    %2914 = vmatpush1.msra.mxu0 %v314
    %2915 = vmatprep.subr.mxu0 %v319
    %2916 = vmatpush1.msra.mxu0 %v318
    %2917 = vmatprep.subr.mxu0 %v323
    %2918 = vmatpush1.msra.mxu0 %v322
    %2919 = vmatprep.subr.mxu0 %v327
    %2920 = vmatpush1.msra.mxu0 %v326
    %2921 = vmatprep.subr.mxu0 %v331
    %2922 = vmatpush1.msra.mxu0 %v330
    %2923 = vmatprep.subr.mxu0 %v335
    %2924 = vmatpush1.msra.mxu0 %v334
    %2925 = vmatprep.subr.mxu0 0.0
    %2926 = vmatpush1.msra.mxu0 0.0
    %2927 = vmatprep.subr.mxu0 0.0
    %2928 = vmatpush1.msra.mxu0 0.0
    %2929 = vmatprep.subr.mxu0 0.0
    %2930 = vmatpush1.msra.mxu0 0.0
    %2931 = vmatprep.subr.mxu0 0.0
    %2932 = vmatpush1.msra.mxu0 0.0
    %2933 = vmatprep.subr.mxu0 0.0
    %2934 = vmatpush1.msra.mxu0 0.0
    %2935 = vmatprep.subr.mxu0 0.0
    %2936 = vmatpush1.msra.mxu0 0.0
    %2937 = vmatprep.subr.mxu0 0.0
    %2938 = vmatpush1.msra.mxu0 0.0
    %2939 = vmatprep.subr.mxu0 0.0
    %2940 = vmatpush1.msra.mxu0 0.0
    %2941 = vmatprep.subr.mxu0 0.0
    %2942 = vmatpush1.msra.mxu0 0.0
    %2943 = vmatprep.subr.mxu0 0.0
    %2944 = vmatpush1.msra.mxu0 0.0
    %2945 = vmatprep.subr.mxu0 0.0
    %2946 = vmatpush1.msra.mxu0 0.0
    %2947 = vmatprep.subr.mxu0 0.0
    %2948 = vmatpush1.msra.mxu0 0.0
    %2949 = vmatprep.subr.mxu0 0.0
    %2950 = vmatpush1.msra.mxu0 0.0
    %2951 = vmatprep.subr.mxu0 0.0
    %2952 = vmatpush1.msra.mxu0 0.0
    %2953 = vmatprep.subr.mxu0 0.0
    %2954 = vmatpush1.msra.mxu0 0.0
    %2955 = vmatprep.subr.mxu0 0.0
    %2956 = vmatpush1.msra.mxu0 0.0
    %2957 = vmatprep.mubr.f32.mxu0 0.0
    %2958 = vmatmul.mubr.f32.gmra.mrb[0].mxu0 0.0
    %v2959 = vpop.f32.mrb[0].mxu0
    %v2960 = vadd.f32 0.0, %v2959
    %v2961 = vpop.f32.mrb[0].mxu0
    %v2962 = vadd.f32 0.0, %v2961
    %2963 = vdwg.mxu0
    %2964 = vmatprep.subr.mxu0 %v277
    %2965 = vmatpush1.msra.mxu0 %v276
    %2966 = vmatprep.subr.mxu0 %v281
    %2967 = vmatpush1.msra.mxu0 %v280
    %2968 = vmatprep.subr.mxu0 %v285
    %2969 = vmatpush1.msra.mxu0 %v284
    %2970 = vmatprep.subr.mxu0 %v289
    %2971 = vmatpush1.msra.mxu0 %v288
    %2972 = vmatprep.subr.mxu0 %v293
    %2973 = vmatpush1.msra.mxu0 %v292
    %2974 = vmatprep.subr.mxu0 %v297
    %2975 = vmatpush1.msra.mxu0 %v296
    %2976 = vmatprep.subr.mxu0 %v301
    %2977 = vmatpush1.msra.mxu0 %v300
    %2978 = vmatprep.subr.mxu0 %v305
    %2979 = vmatpush1.msra.mxu0 %v304
    %2980 = vmatprep.subr.mxu0 %v309
    %2981 = vmatpush1.msra.mxu0 %v308
    %2982 = vmatprep.subr.mxu0 %v313
    %2983 = vmatpush1.msra.mxu0 %v312
    %2984 = vmatprep.subr.mxu0 %v317
    %2985 = vmatpush1.msra.mxu0 %v316
    %2986 = vmatprep.subr.mxu0 %v321
    %2987 = vmatpush1.msra.mxu0 %v320
    %2988 = vmatprep.subr.mxu0 %v325
    %2989 = vmatpush1.msra.mxu0 %v324
    %2990 = vmatprep.subr.mxu0 %v329
    %2991 = vmatpush1.msra.mxu0 %v328
    %2992 = vmatprep.subr.mxu0 %v333
    %2993 = vmatpush1.msra.mxu0 %v332
    %2994 = vmatprep.subr.mxu0 %v337
    %2995 = vmatpush1.msra.mxu0 %v336
    %2996 = vmatprep.subr.mxu0 0.0
    %2997 = vmatpush1.msra.mxu0 0.0
    %2998 = vmatprep.subr.mxu0 0.0
    %2999 = vmatpush1.msra.mxu0 0.0
    %3000 = vmatprep.subr.mxu0 0.0
    %3001 = vmatpush1.msra.mxu0 0.0
    %3002 = vmatprep.subr.mxu0 0.0
    %3003 = vmatpush1.msra.mxu0 0.0
    %3004 = vmatprep.subr.mxu0 0.0
    %3005 = vmatpush1.msra.mxu0 0.0
    %3006 = vmatprep.subr.mxu0 0.0
    %3007 = vmatpush1.msra.mxu0 0.0
    %3008 = vmatprep.subr.mxu0 0.0
    %3009 = vmatpush1.msra.mxu0 0.0
    %3010 = vmatprep.subr.mxu0 0.0
    %3011 = vmatpush1.msra.mxu0 0.0
    %3012 = vmatprep.subr.mxu0 0.0
    %3013 = vmatpush1.msra.mxu0 0.0
    %3014 = vmatprep.subr.mxu0 0.0
    %3015 = vmatpush1.msra.mxu0 0.0
    %3016 = vmatprep.subr.mxu0 0.0
    %3017 = vmatpush1.msra.mxu0 0.0
    %3018 = vmatprep.subr.mxu0 0.0
    %3019 = vmatpush1.msra.mxu0 0.0
    %3020 = vmatprep.subr.mxu0 0.0
    %3021 = vmatpush1.msra.mxu0 0.0
    %3022 = vmatprep.subr.mxu0 0.0
    %3023 = vmatpush1.msra.mxu0 0.0
    %3024 = vmatprep.subr.mxu0 0.0
    %3025 = vmatpush1.msra.mxu0 0.0
    %3026 = vmatprep.subr.mxu0 0.0
    %3027 = vmatpush1.msra.mxu0 0.0
    %3028 = vmatprep.mubr.f32.mxu0 0.0
    %3029 = vmatmul.mubr.f32.gmra.mrb[0].mxu0 0.0
    %v3030 = vpop.f32.mrb[0].mxu0
    %v3031 = vadd.f32 0.0, %v3030
    %v3032 = vpop.f32.mrb[0].mxu0
    %v3033 = vadd.f32 0.0, %v3032
    %3034 = vdwg.mxu0
    %v3039 = vcombine.low %v2960, %v2962
    %v3040 = vcombine.low %v3031, %v3033
    %v3042 = vunpack.c.l.s4 1983009808
    %v3043 = vunpack.c.0.s8 %v3042
    %v3044 = vlaneseq
    %v3045 = vshrl.u32 %v3044, 7
    %v3046 = vsub.s32 %v3043, %v3045
    %v3047 = vrot.slane %v3039, %v3046
    %v3049 = vunpack.c.l.s4 1983009808
    %v3050 = vunpack.c.0.s8 %v3049
    %v3051 = vlaneseq
    %v3052 = vshrl.u32 %v3051, 7
    %v3053 = vsub.s32 %v3050, %v3052
    %v3054 = vrot.slane %v3040, %v3053
    %v3055 = vcombine.low %v3047, %v3054
    %v3057 = vadd.f32 %v2892, %v3055
    %v3058 = vxor.u32 %v3057, 2147483648
    %v3059 = vmul.f32 %v3058, 1.442695
    %v3060 = vpow.pop %v3059
    %v3061 = vadd.f32 %v3060, 1.0
    %v3062 = vrcp.pop %v3061
    %v3063 = vmul.f32 1.0, %v3062
    %v3065 = vrot.slane %v3057, 6
    %v3067 = vtanh.pop %v3065
    %v3069 = vrot.slane %v3063, 2
    %v3071 = vmul.f32 %v3069, 0.0
    %v3072 = vmul.f32 %v3063, %v3067
    %v3073 = vadd.f32 %v3071, %v3072
    %v3074 = vtanh.pop %v3073
    %v3075 = vrot.slane %v3063, 4
    %v3077 = vmul.f32 %v3075, %v3074
    %3078 = vst [vmem:[#allocation3] sm:$0x3] %v3077
    %v3079 = vld [vmem:[%s2698] sm:$0xff]
    %3080 = vmatprep.subr.mxu0 %v275
    %3081 = vmatpush1.msra.mxu0 %v274
    %3082 = vmatprep.subr.mxu0 %v279
    %3083 = vmatpush1.msra.mxu0 %v278
    %3084 = vmatprep.subr.mxu0 %v283
    %3085 = vmatpush1.msra.mxu0 %v282
    %3086 = vmatprep.subr.mxu0 %v287
    %3087 = vmatpush1.msra.mxu0 %v286
    %3088 = vmatprep.subr.mxu0 %v291
    %3089 = vmatpush1.msra.mxu0 %v290
    %3090 = vmatprep.subr.mxu0 %v295
    %3091 = vmatpush1.msra.mxu0 %v294
    %3092 = vmatprep.subr.mxu0 %v299
    %3093 = vmatpush1.msra.mxu0 %v298
    %3094 = vmatprep.subr.mxu0 %v303
    %3095 = vmatpush1.msra.mxu0 %v302
    %3096 = vmatprep.subr.mxu0 %v307
    %3097 = vmatpush1.msra.mxu0 %v306
    %3098 = vmatprep.subr.mxu0 %v311
    %3099 = vmatpush1.msra.mxu0 %v310
    %3100 = vmatprep.subr.mxu0 %v315
    %3101 = vmatpush1.msra.mxu0 %v314
    %3102 = vmatprep.subr.mxu0 %v319
    %3103 = vmatpush1.msra.mxu0 %v318
    %3104 = vmatprep.subr.mxu0 %v323
    %3105 = vmatpush1.msra.mxu0 %v322
    %3106 = vmatprep.subr.mxu0 %v327
    %3107 = vmatpush1.msra.mxu0 %v326
    %3108 = vmatprep.subr.mxu0 %v331
    %3109 = vmatpush1.msra.mxu0 %v330
    %3110 = vmatprep.subr.mxu0 %v335
    %3111 = vmatpush1.msra.mxu0 %v334
    %3112 = vmatprep.subr.mxu0 0.0
    %3113 = vmatpush1.msra.mxu0 0.0
    %3114 = vmatprep.subr.mxu0 0.0
    %3115 = vmatpush1.msra.mxu0 0.0
    %3116 = vmatprep.subr.mxu0 0.0
    %3117 = vmatpush1.msra.mxu0 0.0
    %3118 = vmatprep.subr.mxu0 0.0
    %3119 = vmatpush1.msra.mxu0 0.0
    %3120 = vmatprep.subr.mxu0 0.0
    %3121 = vmatpush1.msra.mxu0 0.0
    %3122 = vmatprep.subr.mxu0 0.0
    %3123 = vmatpush1.msra.mxu0 0.0
    %3124 = vmatprep.subr.mxu0 0.0
    %3125 = vmatpush1.msra.mxu0 0.0
    %3126 = vmatprep.subr.mxu0 0.0
    %3127 = vmatpush1.msra.mxu0 0.0
    %3128 = vmatprep.subr.mxu0 0.0
    %3129 = vmatpush1.msra.mxu0 0.0
    %3130 = vmatprep.subr.mxu0 0.0
    %3131 = vmatpush1.msra.mxu0 0.0
    %3132 = vmatprep.subr.mxu0 0.0
    %3133 = vmatpush1.msra.mxu0 0.0
    %3134 = vmatprep.subr.mxu0 0.0
    %3135 = vmatpush1.msra.mxu0 0.0
    %3136 = vmatprep.subr.mxu0 0.0
    %3137 = vmatpush1.msra.mxu0 0.0
    %3138 = vmatprep.subr.mxu0 0.0
    %3139 = vmatpush1.msra.mxu0 0.0
    %3140 = vmatprep.subr.mxu0 0.0
    %3141 = vmatpush1.msra.mxu0 0.0
    %3142 = vmatprep.subr.mxu0 0.0
    %3143 = vmatpush1.msra.mxu0 0.0
    %3144 = vmatprep.mubr.f32.mxu0 0.0
    %3145 = vmatmul.mubr.f32.gmra.mrb[0].mxu0 %v3077
    %v3146 = vpop.f32.mrb[0].mxu0
    %v3147 = vadd.f32 0.0, %v3146
    %v3148 = vpop.f32.mrb[0].mxu0
    %v3149 = vadd.f32 0.0, %v3148
    %3150 = vdwg.mxu0
    %3151 = vmatprep.subr.mxu0 %v277
    %3152 = vmatpush1.msra.mxu0 %v276
    %3153 = vmatprep.subr.mxu0 %v281
    %3154 = vmatpush1.msra.mxu0 %v280
    %3155 = vmatprep.subr.mxu0 %v285
    %3156 = vmatpush1.msra.mxu0 %v284
    %3157 = vmatprep.subr.mxu0 %v289
    %3158 = vmatpush1.msra.mxu0 %v288
    %3159 = vmatprep.subr.mxu0 %v293
    %3160 = vmatpush1.msra.mxu0 %v292
    %3161 = vmatprep.subr.mxu0 %v297
    %3162 = vmatpush1.msra.mxu0 %v296
    %3163 = vmatprep.subr.mxu0 %v301
    %3164 = vmatpush1.msra.mxu0 %v300
    %3165 = vmatprep.subr.mxu0 %v305
    %3166 = vmatpush1.msra.mxu0 %v304
    %3167 = vmatprep.subr.mxu0 %v309
    %3168 = vmatpush1.msra.mxu0 %v308
    %3169 = vmatprep.subr.mxu0 %v313
    %3170 = vmatpush1.msra.mxu0 %v312
    %3171 = vmatprep.subr.mxu0 %v317
    %3172 = vmatpush1.msra.mxu0 %v316
    %3173 = vmatprep.subr.mxu0 %v321
    %3174 = vmatpush1.msra.mxu0 %v320
    %3175 = vmatprep.subr.mxu0 %v325
    %3176 = vmatpush1.msra.mxu0 %v324
    %3177 = vmatprep.subr.mxu0 %v329
    %3178 = vmatpush1.msra.mxu0 %v328
    %3179 = vmatprep.subr.mxu0 %v333
    %3180 = vmatpush1.msra.mxu0 %v332
    %3181 = vmatprep.subr.mxu0 %v337
    %3182 = vmatpush1.msra.mxu0 %v336
    %3183 = vmatprep.subr.mxu0 0.0
    %3184 = vmatpush1.msra.mxu0 0.0
    %3185 = vmatprep.subr.mxu0 0.0
    %3186 = vmatpush1.msra.mxu0 0.0
    %3187 = vmatprep.subr.mxu0 0.0
    %3188 = vmatpush1.msra.mxu0 0.0
    %3189 = vmatprep.subr.mxu0 0.0
    %3190 = vmatpush1.msra.mxu0 0.0
    %3191 = vmatprep.subr.mxu0 0.0
    %3192 = vmatpush1.msra.mxu0 0.0
    %3193 = vmatprep.subr.mxu0 0.0
    %3194 = vmatpush1.msra.mxu0 0.0
    %3195 = vmatprep.subr.mxu0 0.0
    %3196 = vmatpush1.msra.mxu0 0.0
    %3197 = vmatprep.subr.mxu0 0.0
    %3198 = vmatpush1.msra.mxu0 0.0
    %3199 = vmatprep.subr.mxu0 0.0
    %3200 = vmatpush1.msra.mxu0 0.0
    %3201 = vmatprep.subr.mxu0 0.0
    %3202 = vmatpush1.msra.mxu0 0.0
    %3203 = vmatprep.subr.mxu0 0.0
    %3204 = vmatpush1.msra.mxu0 0.0
    %3205 = vmatprep.subr.mxu0 0.0
    %3206 = vmatpush1.msra.mxu0 0.0
    %3207 = vmatprep.subr.mxu0 0.0
    %3208 = vmatpush1.msra.mxu0 0.0
    %3209 = vmatprep.subr.mxu0 0.0
    %3210 = vmatpush1.msra.mxu0 0.0
    %3211 = vmatprep.subr.mxu0 0.0
    %3212 = vmatpush1.msra.mxu0 0.0
    %3213 = vmatprep.subr.mxu0 0.0
    %3214 = vmatpush1.msra.mxu0 0.0
    %3215 = vmatprep.mubr.f32.mxu0 0.0
    %3216 = vmatmul.mubr.f32.gmra.mrb[0].mxu0 %v3077
    %v3217 = vpop.f32.mrb[0].mxu0
    %v3218 = vadd.f32 0.0, %v3217
    %v3219 = vpop.f32.mrb[0].mxu0
    %v3220 = vadd.f32 0.0, %v3219
    %3221 = vdwg.mxu0
    %v3226 = vcombine.low %v3147, %v3149
    %v3227 = vcombine.low %v3218, %v3220
    %v3229 = vunpack.c.l.s4 1983009808
    %v3230 = vunpack.c.0.s8 %v3229
    %v3231 = vlaneseq
    %v3232 = vshrl.u32 %v3231, 7
    %v3233 = vsub.s32 %v3230, %v3232
    %v3234 = vrot.slane %v3226, %v3233
    %v3236 = vunpack.c.l.s4 1983009808
    %v3237 = vunpack.c.0.s8 %v3236
    %v3238 = vlaneseq
    %v3239 = vshrl.u32 %v3238, 7
    %v3240 = vsub.s32 %v3237, %v3239
    %v3241 = vrot.slane %v3227, %v3240
    %v3242 = vcombine.low %v3234, %v3241
    %v3244 = vadd.f32 %v3079, %v3242
    %v3245 = vxor.u32 %v3244, 2147483648
    %v3246 = vmul.f32 %v3245, 1.442695
    %v3247 = vpow.pop %v3246
    %v3248 = vadd.f32 %v3247, 1.0
    %v3249 = vrcp.pop %v3248
    %v3250 = vmul.f32 1.0, %v3249
    %v3252 = vrot.slane %v3244, 6
    %v3254 = vtanh.pop %v3252
    %v3256 = vrot.slane %v3250, 2
    %v3258 = vmul.f32 %v3256, %v3073
    %v3259 = vmul.f32 %v3250, %v3254
    %v3260 = vadd.f32 %v3258, %v3259
    %v3261 = vtanh.pop %v3260
    %v3262 = vrot.slane %v3250, 4
    %v3264 = vmul.f32 %v3262, %v3261
    %s3265 = scalar_lea.vmem [#allocation3], 2
    %3266 = vst [vmem:[%s3265] sm:$0x3] %v3264
    %v3267 = vld [vmem:[%s2730] sm:$0xff]
    %3268 = vmatprep.subr.mxu0 %v275
    %3269 = vmatpush1.msra.mxu0 %v274
    %3270 = vmatprep.subr.mxu0 %v279
    %3271 = vmatpush1.msra.mxu0 %v278
    %3272 = vmatprep.subr.mxu0 %v283
    %3273 = vmatpush1.msra.mxu0 %v282
    %3274 = vmatprep.subr.mxu0 %v287
    %3275 = vmatpush1.msra.mxu0 %v286
    %3276 = vmatprep.subr.mxu0 %v291
    %3277 = vmatpush1.msra.mxu0 %v290
    %3278 = vmatprep.subr.mxu0 %v295
    %3279 = vmatpush1.msra.mxu0 %v294
    %3280 = vmatprep.subr.mxu0 %v299
    %3281 = vmatpush1.msra.mxu0 %v298
    %3282 = vmatprep.subr.mxu0 %v303
    %3283 = vmatpush1.msra.mxu0 %v302
    %3284 = vmatprep.subr.mxu0 %v307
    %3285 = vmatpush1.msra.mxu0 %v306
    %3286 = vmatprep.subr.mxu0 %v311
    %3287 = vmatpush1.msra.mxu0 %v310
    %3288 = vmatprep.subr.mxu0 %v315
    %3289 = vmatpush1.msra.mxu0 %v314
    %3290 = vmatprep.subr.mxu0 %v319
    %3291 = vmatpush1.msra.mxu0 %v318
    %3292 = vmatprep.subr.mxu0 %v323
    %3293 = vmatpush1.msra.mxu0 %v322
    %3294 = vmatprep.subr.mxu0 %v327
    %3295 = vmatpush1.msra.mxu0 %v326
    %3296 = vmatprep.subr.mxu0 %v331
    %3297 = vmatpush1.msra.mxu0 %v330
    %3298 = vmatprep.subr.mxu0 %v335
    %3299 = vmatpush1.msra.mxu0 %v334
    %3300 = vmatprep.subr.mxu0 0.0
    %3301 = vmatpush1.msra.mxu0 0.0
    %3302 = vmatprep.subr.mxu0 0.0
    %3303 = vmatpush1.msra.mxu0 0.0
    %3304 = vmatprep.subr.mxu0 0.0
    %3305 = vmatpush1.msra.mxu0 0.0
    %3306 = vmatprep.subr.mxu0 0.0
    %3307 = vmatpush1.msra.mxu0 0.0
    %3308 = vmatprep.subr.mxu0 0.0
    %3309 = vmatpush1.msra.mxu0 0.0
    %3310 = vmatprep.subr.mxu0 0.0
    %3311 = vmatpush1.msra.mxu0 0.0
    %3312 = vmatprep.subr.mxu0 0.0
    %3313 = vmatpush1.msra.mxu0 0.0
    %3314 = vmatprep.subr.mxu0 0.0
    %3315 = vmatpush1.msra.mxu0 0.0
    %3316 = vmatprep.subr.mxu0 0.0
    %3317 = vmatpush1.msra.mxu0 0.0
    %3318 = vmatprep.subr.mxu0 0.0
    %3319 = vmatpush1.msra.mxu0 0.0
    %3320 = vmatprep.subr.mxu0 0.0
    %3321 = vmatpush1.msra.mxu0 0.0
    %3322 = vmatprep.subr.mxu0 0.0
    %3323 = vmatpush1.msra.mxu0 0.0
    %3324 = vmatprep.subr.mxu0 0.0
    %3325 = vmatpush1.msra.mxu0 0.0
    %3326 = vmatprep.subr.mxu0 0.0
    %3327 = vmatpush1.msra.mxu0 0.0
    %3328 = vmatprep.subr.mxu0 0.0
    %3329 = vmatpush1.msra.mxu0 0.0
    %3330 = vmatprep.subr.mxu0 0.0
    %3331 = vmatpush1.msra.mxu0 0.0
    %3332 = vmatprep.mubr.f32.mxu0 0.0
    %3333 = vmatmul.mubr.f32.gmra.mrb[0].mxu0 %v3264
    %v3334 = vpop.f32.mrb[0].mxu0
    %v3335 = vadd.f32 0.0, %v3334
    %v3336 = vpop.f32.mrb[0].mxu0
    %v3337 = vadd.f32 0.0, %v3336
    %3338 = vdwg.mxu0
    %3339 = vmatprep.subr.mxu0 %v277
    %3340 = vmatpush1.msra.mxu0 %v276
    %3341 = vmatprep.subr.mxu0 %v281
    %3342 = vmatpush1.msra.mxu0 %v280
    %3343 = vmatprep.subr.mxu0 %v285
    %3344 = vmatpush1.msra.mxu0 %v284
    %3345 = vmatprep.subr.mxu0 %v289
    %3346 = vmatpush1.msra.mxu0 %v288
    %3347 = vmatprep.subr.mxu0 %v293
    %3348 = vmatpush1.msra.mxu0 %v292
    %3349 = vmatprep.subr.mxu0 %v297
    %3350 = vmatpush1.msra.mxu0 %v296
    %3351 = vmatprep.subr.mxu0 %v301
    %3352 = vmatpush1.msra.mxu0 %v300
    %3353 = vmatprep.subr.mxu0 %v305
    %3354 = vmatpush1.msra.mxu0 %v304
    %3355 = vmatprep.subr.mxu0 %v309
    %3356 = vmatpush1.msra.mxu0 %v308
    %3357 = vmatprep.subr.mxu0 %v313
    %3358 = vmatpush1.msra.mxu0 %v312
    %3359 = vmatprep.subr.mxu0 %v317
    %3360 = vmatpush1.msra.mxu0 %v316
    %3361 = vmatprep.subr.mxu0 %v321
    %3362 = vmatpush1.msra.mxu0 %v320
    %3363 = vmatprep.subr.mxu0 %v325
    %3364 = vmatpush1.msra.mxu0 %v324
    %3365 = vmatprep.subr.mxu0 %v329
    %3366 = vmatpush1.msra.mxu0 %v328
    %3367 = vmatprep.subr.mxu0 %v333
    %3368 = vmatpush1.msra.mxu0 %v332
    %3369 = vmatprep.subr.mxu0 %v337
    %3370 = vmatpush1.msra.mxu0 %v336
    %3371 = vmatprep.subr.mxu0 0.0
    %3372 = vmatpush1.msra.mxu0 0.0
    %3373 = vmatprep.subr.mxu0 0.0
    %3374 = vmatpush1.msra.mxu0 0.0
    %3375 = vmatprep.subr.mxu0 0.0
    %3376 = vmatpush1.msra.mxu0 0.0
    %3377 = vmatprep.subr.mxu0 0.0
    %3378 = vmatpush1.msra.mxu0 0.0
    %3379 = vmatprep.subr.mxu0 0.0
    %3380 = vmatpush1.msra.mxu0 0.0
    %3381 = vmatprep.subr.mxu0 0.0
    %3382 = vmatpush1.msra.mxu0 0.0
    %3383 = vmatprep.subr.mxu0 0.0
    %3384 = vmatpush1.msra.mxu0 0.0
    %3385 = vmatprep.subr.mxu0 0.0
    %3386 = vmatpush1.msra.mxu0 0.0
    %3387 = vmatprep.subr.mxu0 0.0
    %3388 = vmatpush1.msra.mxu0 0.0
    %3389 = vmatprep.subr.mxu0 0.0
    %3390 = vmatpush1.msra.mxu0 0.0
    %3391 = vmatprep.subr.mxu0 0.0
    %3392 = vmatpush1.msra.mxu0 0.0
    %3393 = vmatprep.subr.mxu0 0.0
    %3394 = vmatpush1.msra.mxu0 0.0
    %3395 = vmatprep.subr.mxu0 0.0
    %3396 = vmatpush1.msra.mxu0 0.0
    %3397 = vmatprep.subr.mxu0 0.0
    %3398 = vmatpush1.msra.mxu0 0.0
    %3399 = vmatprep.subr.mxu0 0.0
    %3400 = vmatpush1.msra.mxu0 0.0
    %3401 = vmatprep.subr.mxu0 0.0
    %3402 = vmatpush1.msra.mxu0 0.0
    %3403 = vmatprep.mubr.f32.mxu0 0.0
    %3404 = vmatmul.mubr.f32.gmra.mrb[0].mxu0 %v3264
    %v3405 = vpop.f32.mrb[0].mxu0
    %v3406 = vadd.f32 0.0, %v3405
    %v3407 = vpop.f32.mrb[0].mxu0
    %v3408 = vadd.f32 0.0, %v3407
    %3409 = vdwg.mxu0
    %v3414 = vcombine.low %v3335, %v3337
    %v3415 = vcombine.low %v3406, %v3408
    %v3417 = vunpack.c.l.s4 1983009808
    %v3418 = vunpack.c.0.s8 %v3417
    %v3419 = vlaneseq
    %v3420 = vshrl.u32 %v3419, 7
    %v3421 = vsub.s32 %v3418, %v3420
    %v3422 = vrot.slane %v3414, %v3421
    %v3424 = vunpack.c.l.s4 1983009808
    %v3425 = vunpack.c.0.s8 %v3424
    %v3426 = vlaneseq
    %v3427 = vshrl.u32 %v3426, 7
    %v3428 = vsub.s32 %v3425, %v3427
    %v3429 = vrot.slane %v3415, %v3428
    %v3430 = vcombine.low %v3422, %v3429
    %v3432 = vadd.f32 %v3267, %v3430
    %v3433 = vxor.u32 %v3432, 2147483648
    %v3434 = vmul.f32 %v3433, 1.442695
    %v3435 = vpow.pop %v3434
    %v3436 = vadd.f32 %v3435, 1.0
    %v3437 = vrcp.pop %v3436
    %v3438 = vmul.f32 1.0, %v3437
    %v3440 = vrot.slane %v3432, 6
    %v3442 = vtanh.pop %v3440
    %v3444 = vrot.slane %v3438, 2
    %v3446 = vmul.f32 %v3444, %v3260
    %v3447 = vmul.f32 %v3438, %v3442
    %v3448 = vadd.f32 %v3446, %v3447
    %v3449 = vtanh.pop %v3448
    %v3450 = vrot.slane %v3438, 4
    %v3452 = vmul.f32 %v3450, %v3449
    %s3453 = scalar_lea.vmem [#allocation3], 4
    %3454 = vst [vmem:[%s3453] sm:$0x3] %v3452
    %v3455 = vld [vmem:[%s2762] sm:$0xff]
    %3456 = vmatprep.subr.mxu0 %v275
    %3457 = vmatpush1.msra.mxu0 %v274
    %3458 = vmatprep.subr.mxu0 %v279
    %3459 = vmatpush1.msra.mxu0 %v278
    %3460 = vmatprep.subr.mxu0 %v283
    %3461 = vmatpush1.msra.mxu0 %v282
    %3462 = vmatprep.subr.mxu0 %v287
    %3463 = vmatpush1.msra.mxu0 %v286
    %3464 = vmatprep.subr.mxu0 %v291
    %3465 = vmatpush1.msra.mxu0 %v290
    %3466 = vmatprep.subr.mxu0 %v295
    %3467 = vmatpush1.msra.mxu0 %v294
    %3468 = vmatprep.subr.mxu0 %v299
    %3469 = vmatpush1.msra.mxu0 %v298
    %3470 = vmatprep.subr.mxu0 %v303
    %3471 = vmatpush1.msra.mxu0 %v302
    %3472 = vmatprep.subr.mxu0 %v307
    %3473 = vmatpush1.msra.mxu0 %v306
    %3474 = vmatprep.subr.mxu0 %v311
    %3475 = vmatpush1.msra.mxu0 %v310
    %3476 = vmatprep.subr.mxu0 %v315
    %3477 = vmatpush1.msra.mxu0 %v314
    %3478 = vmatprep.subr.mxu0 %v319
    %3479 = vmatpush1.msra.mxu0 %v318
    %3480 = vmatprep.subr.mxu0 %v323
    %3481 = vmatpush1.msra.mxu0 %v322
    %3482 = vmatprep.subr.mxu0 %v327
    %3483 = vmatpush1.msra.mxu0 %v326
    %3484 = vmatprep.subr.mxu0 %v331
    %3485 = vmatpush1.msra.mxu0 %v330
    %3486 = vmatprep.subr.mxu0 %v335
    %3487 = vmatpush1.msra.mxu0 %v334
    %3488 = vmatprep.subr.mxu0 0.0
    %3489 = vmatpush1.msra.mxu0 0.0
    %3490 = vmatprep.subr.mxu0 0.0
    %3491 = vmatpush1.msra.mxu0 0.0
    %3492 = vmatprep.subr.mxu0 0.0
    %3493 = vmatpush1.msra.mxu0 0.0
    %3494 = vmatprep.subr.mxu0 0.0
    %3495 = vmatpush1.msra.mxu0 0.0
    %3496 = vmatprep.subr.mxu0 0.0
    %3497 = vmatpush1.msra.mxu0 0.0
    %3498 = vmatprep.subr.mxu0 0.0
    %3499 = vmatpush1.msra.mxu0 0.0
    %3500 = vmatprep.subr.mxu0 0.0
    %3501 = vmatpush1.msra.mxu0 0.0
    %3502 = vmatprep.subr.mxu0 0.0
    %3503 = vmatpush1.msra.mxu0 0.0
    %3504 = vmatprep.subr.mxu0 0.0
    %3505 = vmatpush1.msra.mxu0 0.0
    %3506 = vmatprep.subr.mxu0 0.0
    %3507 = vmatpush1.msra.mxu0 0.0
    %3508 = vmatprep.subr.mxu0 0.0
    %3509 = vmatpush1.msra.mxu0 0.0
    %3510 = vmatprep.subr.mxu0 0.0
    %3511 = vmatpush1.msra.mxu0 0.0
    %3512 = vmatprep.subr.mxu0 0.0
    %3513 = vmatpush1.msra.mxu0 0.0
    %3514 = vmatprep.subr.mxu0 0.0
    %3515 = vmatpush1.msra.mxu0 0.0
    %3516 = vmatprep.subr.mxu0 0.0
    %3517 = vmatpush1.msra.mxu0 0.0
    %3518 = vmatprep.subr.mxu0 0.0
    %3519 = vmatpush1.msra.mxu0 0.0
    %3520 = vmatprep.mubr.f32.mxu0 0.0
    %3521 = vmatmul.mubr.f32.gmra.mrb[0].mxu0 %v3452
    %v3522 = vpop.f32.mrb[0].mxu0
    %v3523 = vadd.f32 0.0, %v3522
    %v3524 = vpop.f32.mrb[0].mxu0
    %v3525 = vadd.f32 0.0, %v3524
    %3526 = vdwg.mxu0
    %3527 = vmatprep.subr.mxu0 %v277
    %3528 = vmatpush1.msra.mxu0 %v276
    %3529 = vmatprep.subr.mxu0 %v281
    %3530 = vmatpush1.msra.mxu0 %v280
    %3531 = vmatprep.subr.mxu0 %v285
    %3532 = vmatpush1.msra.mxu0 %v284
    %3533 = vmatprep.subr.mxu0 %v289
    %3534 = vmatpush1.msra.mxu0 %v288
    %3535 = vmatprep.subr.mxu0 %v293
    %3536 = vmatpush1.msra.mxu0 %v292
    %3537 = vmatprep.subr.mxu0 %v297
    %3538 = vmatpush1.msra.mxu0 %v296
    %3539 = vmatprep.subr.mxu0 %v301
    %3540 = vmatpush1.msra.mxu0 %v300
    %3541 = vmatprep.subr.mxu0 %v305
    %3542 = vmatpush1.msra.mxu0 %v304
    %3543 = vmatprep.subr.mxu0 %v309
    %3544 = vmatpush1.msra.mxu0 %v308
    %3545 = vmatprep.subr.mxu0 %v313
    %3546 = vmatpush1.msra.mxu0 %v312
    %3547 = vmatprep.subr.mxu0 %v317
    %3548 = vmatpush1.msra.mxu0 %v316
    %3549 = vmatprep.subr.mxu0 %v321
    %3550 = vmatpush1.msra.mxu0 %v320
    %3551 = vmatprep.subr.mxu0 %v325
    %3552 = vmatpush1.msra.mxu0 %v324
    %3553 = vmatprep.subr.mxu0 %v329
    %3554 = vmatpush1.msra.mxu0 %v328
    %3555 = vmatprep.subr.mxu0 %v333
    %3556 = vmatpush1.msra.mxu0 %v332
    %3557 = vmatprep.subr.mxu0 %v337
    %3558 = vmatpush1.msra.mxu0 %v336
    %3559 = vmatprep.subr.mxu0 0.0
    %3560 = vmatpush1.msra.mxu0 0.0
    %3561 = vmatprep.subr.mxu0 0.0
    %3562 = vmatpush1.msra.mxu0 0.0
    %3563 = vmatprep.subr.mxu0 0.0
    %3564 = vmatpush1.msra.mxu0 0.0
    %3565 = vmatprep.subr.mxu0 0.0
    %3566 = vmatpush1.msra.mxu0 0.0
    %3567 = vmatprep.subr.mxu0 0.0
    %3568 = vmatpush1.msra.mxu0 0.0
    %3569 = vmatprep.subr.mxu0 0.0
    %3570 = vmatpush1.msra.mxu0 0.0
    %3571 = vmatprep.subr.mxu0 0.0
    %3572 = vmatpush1.msra.mxu0 0.0
    %3573 = vmatprep.subr.mxu0 0.0
    %3574 = vmatpush1.msra.mxu0 0.0
    %3575 = vmatprep.subr.mxu0 0.0
    %3576 = vmatpush1.msra.mxu0 0.0
    %3577 = vmatprep.subr.mxu0 0.0
    %3578 = vmatpush1.msra.mxu0 0.0
    %3579 = vmatprep.subr.mxu0 0.0
    %3580 = vmatpush1.msra.mxu0 0.0
    %3581 = vmatprep.subr.mxu0 0.0
    %3582 = vmatpush1.msra.mxu0 0.0
    %3583 = vmatprep.subr.mxu0 0.0
    %3584 = vmatpush1.msra.mxu0 0.0
    %3585 = vmatprep.subr.mxu0 0.0
    %3586 = vmatpush1.msra.mxu0 0.0
    %3587 = vmatprep.subr.mxu0 0.0
    %3588 = vmatpush1.msra.mxu0 0.0
    %3589 = vmatprep.subr.mxu0 0.0
    %3590 = vmatpush1.msra.mxu0 0.0
    %3591 = vmatprep.mubr.f32.mxu0 0.0
    %3592 = vmatmul.mubr.f32.gmra.mrb[0].mxu0 %v3452
    %v3593 = vpop.f32.mrb[0].mxu0
    %v3594 = vadd.f32 0.0, %v3593
    %v3595 = vpop.f32.mrb[0].mxu0
    %v3596 = vadd.f32 0.0, %v3595
    %3597 = vdwg.mxu0
    %v3602 = vcombine.low %v3523, %v3525
    %v3603 = vcombine.low %v3594, %v3596
    %v3605 = vunpack.c.l.s4 1983009808
    %v3606 = vunpack.c.0.s8 %v3605
    %v3607 = vlaneseq
    %v3608 = vshrl.u32 %v3607, 7
    %v3609 = vsub.s32 %v3606, %v3608
    %v3610 = vrot.slane %v3602, %v3609
    %v3612 = vunpack.c.l.s4 1983009808
    %v3613 = vunpack.c.0.s8 %v3612
    %v3614 = vlaneseq
    %v3615 = vshrl.u32 %v3614, 7
    %v3616 = vsub.s32 %v3613, %v3615
    %v3617 = vrot.slane %v3603, %v3616
    %v3618 = vcombine.low %v3610, %v3617
    %v3620 = vadd.f32 %v3455, %v3618
    %v3621 = vxor.u32 %v3620, 2147483648
    %v3622 = vmul.f32 %v3621, 1.442695
    %v3623 = vpow.pop %v3622
    %v3624 = vadd.f32 %v3623, 1.0
    %v3625 = vrcp.pop %v3624
    %v3626 = vmul.f32 1.0, %v3625
    %v3628 = vrot.slane %v3620, 6
    %v3630 = vtanh.pop %v3628
    %v3632 = vrot.slane %v3626, 2
    %v3634 = vmul.f32 %v3632, %v3448
    %v3635 = vmul.f32 %v3626, %v3630
    %v3636 = vadd.f32 %v3634, %v3635
    %v3637 = vtanh.pop %v3636
    %v3638 = vrot.slane %v3626, 4
    %v3640 = vmul.f32 %v3638, %v3637
    %s3641 = scalar_lea.vmem [#allocation3], 6
    %3642 = vst [vmem:[%s3641] sm:$0x3] %v3640
    %v3643 = vld [vmem:[%s2794] sm:$0xff]
    %3644 = vmatprep.subr.mxu0 %v275
    %3645 = vmatpush1.msra.mxu0 %v274
    %3646 = vmatprep.subr.mxu0 %v279
    %3647 = vmatpush1.msra.mxu0 %v278
    %3648 = vmatprep.subr.mxu0 %v283
    %3649 = vmatpush1.msra.mxu0 %v282
    %3650 = vmatprep.subr.mxu0 %v287
    %3651 = vmatpush1.msra.mxu0 %v286
    %3652 = vmatprep.subr.mxu0 %v291
    %3653 = vmatpush1.msra.mxu0 %v290
    %3654 = vmatprep.subr.mxu0 %v295
    %3655 = vmatpush1.msra.mxu0 %v294
    %3656 = vmatprep.subr.mxu0 %v299
    %3657 = vmatpush1.msra.mxu0 %v298
    %3658 = vmatprep.subr.mxu0 %v303
    %3659 = vmatpush1.msra.mxu0 %v302
    %3660 = vmatprep.subr.mxu0 %v307
    %3661 = vmatpush1.msra.mxu0 %v306
    %3662 = vmatprep.subr.mxu0 %v311
    %3663 = vmatpush1.msra.mxu0 %v310
    %3664 = vmatprep.subr.mxu0 %v315
    %3665 = vmatpush1.msra.mxu0 %v314
    %3666 = vmatprep.subr.mxu0 %v319
    %3667 = vmatpush1.msra.mxu0 %v318
    %3668 = vmatprep.subr.mxu0 %v323
    %3669 = vmatpush1.msra.mxu0 %v322
    %3670 = vmatprep.subr.mxu0 %v327
    %3671 = vmatpush1.msra.mxu0 %v326
    %3672 = vmatprep.subr.mxu0 %v331
    %3673 = vmatpush1.msra.mxu0 %v330
    %3674 = vmatprep.subr.mxu0 %v335
    %3675 = vmatpush1.msra.mxu0 %v334
    %3676 = vmatprep.subr.mxu0 0.0
    %3677 = vmatpush1.msra.mxu0 0.0
    %3678 = vmatprep.subr.mxu0 0.0
    %3679 = vmatpush1.msra.mxu0 0.0
    %3680 = vmatprep.subr.mxu0 0.0
    %3681 = vmatpush1.msra.mxu0 0.0
    %3682 = vmatprep.subr.mxu0 0.0
    %3683 = vmatpush1.msra.mxu0 0.0
    %3684 = vmatprep.subr.mxu0 0.0
    %3685 = vmatpush1.msra.mxu0 0.0
    %3686 = vmatprep.subr.mxu0 0.0
    %3687 = vmatpush1.msra.mxu0 0.0
    %3688 = vmatprep.subr.mxu0 0.0
    %3689 = vmatpush1.msra.mxu0 0.0
    %3690 = vmatprep.subr.mxu0 0.0
    %3691 = vmatpush1.msra.mxu0 0.0
    %3692 = vmatprep.subr.mxu0 0.0
    %3693 = vmatpush1.msra.mxu0 0.0
    %3694 = vmatprep.subr.mxu0 0.0
    %3695 = vmatpush1.msra.mxu0 0.0
    %3696 = vmatprep.subr.mxu0 0.0
    %3697 = vmatpush1.msra.mxu0 0.0
    %3698 = vmatprep.subr.mxu0 0.0
    %3699 = vmatpush1.msra.mxu0 0.0
    %3700 = vmatprep.subr.mxu0 0.0
    %3701 = vmatpush1.msra.mxu0 0.0
    %3702 = vmatprep.subr.mxu0 0.0
    %3703 = vmatpush1.msra.mxu0 0.0
    %3704 = vmatprep.subr.mxu0 0.0
    %3705 = vmatpush1.msra.mxu0 0.0
    %3706 = vmatprep.subr.mxu0 0.0
    %3707 = vmatpush1.msra.mxu0 0.0
    %3708 = vmatprep.mubr.f32.mxu0 0.0
    %3709 = vmatmul.mubr.f32.gmra.mrb[0].mxu0 %v3640
    %v3710 = vpop.f32.mrb[0].mxu0
    %v3711 = vadd.f32 0.0, %v3710
    %v3712 = vpop.f32.mrb[0].mxu0
    %v3713 = vadd.f32 0.0, %v3712
    %3714 = vdwg.mxu0
    %3715 = vmatprep.subr.mxu0 %v277
    %3716 = vmatpush1.msra.mxu0 %v276
    %3717 = vmatprep.subr.mxu0 %v281
    %3718 = vmatpush1.msra.mxu0 %v280
    %3719 = vmatprep.subr.mxu0 %v285
    %3720 = vmatpush1.msra.mxu0 %v284
    %3721 = vmatprep.subr.mxu0 %v289
    %3722 = vmatpush1.msra.mxu0 %v288
    %3723 = vmatprep.subr.mxu0 %v293
    %3724 = vmatpush1.msra.mxu0 %v292
    %3725 = vmatprep.subr.mxu0 %v297
    %3726 = vmatpush1.msra.mxu0 %v296
    %3727 = vmatprep.subr.mxu0 %v301
    %3728 = vmatpush1.msra.mxu0 %v300
    %3729 = vmatprep.subr.mxu0 %v305
    %3730 = vmatpush1.msra.mxu0 %v304
    %3731 = vmatprep.subr.mxu0 %v309
    %3732 = vmatpush1.msra.mxu0 %v308
    %3733 = vmatprep.subr.mxu0 %v313
    %3734 = vmatpush1.msra.mxu0 %v312
    %3735 = vmatprep.subr.mxu0 %v317
    %3736 = vmatpush1.msra.mxu0 %v316
    %3737 = vmatprep.subr.mxu0 %v321
    %3738 = vmatpush1.msra.mxu0 %v320
    %3739 = vmatprep.subr.mxu0 %v325
    %3740 = vmatpush1.msra.mxu0 %v324
    %3741 = vmatprep.subr.mxu0 %v329
    %3742 = vmatpush1.msra.mxu0 %v328
    %3743 = vmatprep.subr.mxu0 %v333
    %3744 = vmatpush1.msra.mxu0 %v332
    %3745 = vmatprep.subr.mxu0 %v337
    %3746 = vmatpush1.msra.mxu0 %v336
    %3747 = vmatprep.subr.mxu0 0.0
    %3748 = vmatpush1.msra.mxu0 0.0
    %3749 = vmatprep.subr.mxu0 0.0
    %3750 = vmatpush1.msra.mxu0 0.0
    %3751 = vmatprep.subr.mxu0 0.0
    %3752 = vmatpush1.msra.mxu0 0.0
    %3753 = vmatprep.subr.mxu0 0.0
    %3754 = vmatpush1.msra.mxu0 0.0
    %3755 = vmatprep.subr.mxu0 0.0
    %3756 = vmatpush1.msra.mxu0 0.0
    %3757 = vmatprep.subr.mxu0 0.0
    %3758 = vmatpush1.msra.mxu0 0.0
    %3759 = vmatprep.subr.mxu0 0.0
    %3760 = vmatpush1.msra.mxu0 0.0
    %3761 = vmatprep.subr.mxu0 0.0
    %3762 = vmatpush1.msra.mxu0 0.0
    %3763 = vmatprep.subr.mxu0 0.0
    %3764 = vmatpush1.msra.mxu0 0.0
    %3765 = vmatprep.subr.mxu0 0.0
    %3766 = vmatpush1.msra.mxu0 0.0
    %3767 = vmatprep.subr.mxu0 0.0
    %3768 = vmatpush1.msra.mxu0 0.0
    %3769 = vmatprep.subr.mxu0 0.0
    %3770 = vmatpush1.msra.mxu0 0.0
    %3771 = vmatprep.subr.mxu0 0.0
    %3772 = vmatpush1.msra.mxu0 0.0
    %3773 = vmatprep.subr.mxu0 0.0
    %3774 = vmatpush1.msra.mxu0 0.0
    %3775 = vmatprep.subr.mxu0 0.0
    %3776 = vmatpush1.msra.mxu0 0.0
    %3777 = vmatprep.subr.mxu0 0.0
    %3778 = vmatpush1.msra.mxu0 0.0
    %3779 = vmatprep.mubr.f32.mxu0 0.0
    %3780 = vmatmul.mubr.f32.gmra.mrb[0].mxu0 %v3640
    %v3781 = vpop.f32.mrb[0].mxu0
    %v3782 = vadd.f32 0.0, %v3781
    %v3783 = vpop.f32.mrb[0].mxu0
    %v3784 = vadd.f32 0.0, %v3783
    %3785 = vdwg.mxu0
    %v3790 = vcombine.low %v3711, %v3713
    %v3791 = vcombine.low %v3782, %v3784
    %v3793 = vunpack.c.l.s4 1983009808
    %v3794 = vunpack.c.0.s8 %v3793
    %v3795 = vlaneseq
    %v3796 = vshrl.u32 %v3795, 7
    %v3797 = vsub.s32 %v3794, %v3796
    %v3798 = vrot.slane %v3790, %v3797
    %v3800 = vunpack.c.l.s4 1983009808
    %v3801 = vunpack.c.0.s8 %v3800
    %v3802 = vlaneseq
    %v3803 = vshrl.u32 %v3802, 7
    %v3804 = vsub.s32 %v3801, %v3803
    %v3805 = vrot.slane %v3791, %v3804
    %v3806 = vcombine.low %v3798, %v3805
    %v3808 = vadd.f32 %v3643, %v3806
    %v3809 = vxor.u32 %v3808, 2147483648
    %v3810 = vmul.f32 %v3809, 1.442695
    %v3811 = vpow.pop %v3810
    %v3812 = vadd.f32 %v3811, 1.0
    %v3813 = vrcp.pop %v3812
    %v3814 = vmul.f32 1.0, %v3813
    %v3816 = vrot.slane %v3808, 6
    %v3818 = vtanh.pop %v3816
    %v3820 = vrot.slane %v3814, 2
    %v3822 = vmul.f32 %v3820, %v3636
    %v3823 = vmul.f32 %v3814, %v3818
    %v3824 = vadd.f32 %v3822, %v3823
    %v3825 = vtanh.pop %v3824
    %v3826 = vrot.slane %v3814, 4
    %v3828 = vmul.f32 %v3826, %v3825
    %s3829 = scalar_lea.vmem [#allocation3], 8
    %3830 = vst [vmem:[%s3829] sm:$0x3] %v3828
    %v3831 = vld [vmem:[%s2826] sm:$0xff]
    %3832 = vmatprep.subr.mxu0 %v275
    %3833 = vmatpush1.msra.mxu0 %v274
    %3834 = vmatprep.subr.mxu0 %v279
    %3835 = vmatpush1.msra.mxu0 %v278
    %3836 = vmatprep.subr.mxu0 %v283
    %3837 = vmatpush1.msra.mxu0 %v282
    %3838 = vmatprep.subr.mxu0 %v287
    %3839 = vmatpush1.msra.mxu0 %v286
    %3840 = vmatprep.subr.mxu0 %v291
    %3841 = vmatpush1.msra.mxu0 %v290
    %3842 = vmatprep.subr.mxu0 %v295
    %3843 = vmatpush1.msra.mxu0 %v294
    %3844 = vmatprep.subr.mxu0 %v299
    %3845 = vmatpush1.msra.mxu0 %v298
    %3846 = vmatprep.subr.mxu0 %v303
    %3847 = vmatpush1.msra.mxu0 %v302
    %3848 = vmatprep.subr.mxu0 %v307
    %3849 = vmatpush1.msra.mxu0 %v306
    %3850 = vmatprep.subr.mxu0 %v311
    %3851 = vmatpush1.msra.mxu0 %v310
    %3852 = vmatprep.subr.mxu0 %v315
    %3853 = vmatpush1.msra.mxu0 %v314
    %3854 = vmatprep.subr.mxu0 %v319
    %3855 = vmatpush1.msra.mxu0 %v318
    %3856 = vmatprep.subr.mxu0 %v323
    %3857 = vmatpush1.msra.mxu0 %v322
    %3858 = vmatprep.subr.mxu0 %v327
    %3859 = vmatpush1.msra.mxu0 %v326
    %3860 = vmatprep.subr.mxu0 %v331
    %3861 = vmatpush1.msra.mxu0 %v330
    %3862 = vmatprep.subr.mxu0 %v335
    %3863 = vmatpush1.msra.mxu0 %v334
    %3864 = vmatprep.subr.mxu0 0.0
    %3865 = vmatpush1.msra.mxu0 0.0
    %3866 = vmatprep.subr.mxu0 0.0
    %3867 = vmatpush1.msra.mxu0 0.0
    %3868 = vmatprep.subr.mxu0 0.0
    %3869 = vmatpush1.msra.mxu0 0.0
    %3870 = vmatprep.subr.mxu0 0.0
    %3871 = vmatpush1.msra.mxu0 0.0
    %3872 = vmatprep.subr.mxu0 0.0
    %3873 = vmatpush1.msra.mxu0 0.0
    %3874 = vmatprep.subr.mxu0 0.0
    %3875 = vmatpush1.msra.mxu0 0.0
    %3876 = vmatprep.subr.mxu0 0.0
    %3877 = vmatpush1.msra.mxu0 0.0
    %3878 = vmatprep.subr.mxu0 0.0
    %3879 = vmatpush1.msra.mxu0 0.0
    %3880 = vmatprep.subr.mxu0 0.0
    %3881 = vmatpush1.msra.mxu0 0.0
    %3882 = vmatprep.subr.mxu0 0.0
    %3883 = vmatpush1.msra.mxu0 0.0
    %3884 = vmatprep.subr.mxu0 0.0
    %3885 = vmatpush1.msra.mxu0 0.0
    %3886 = vmatprep.subr.mxu0 0.0
    %3887 = vmatpush1.msra.mxu0 0.0
    %3888 = vmatprep.subr.mxu0 0.0
    %3889 = vmatpush1.msra.mxu0 0.0
    %3890 = vmatprep.subr.mxu0 0.0
    %3891 = vmatpush1.msra.mxu0 0.0
    %3892 = vmatprep.subr.mxu0 0.0
    %3893 = vmatpush1.msra.mxu0 0.0
    %3894 = vmatprep.subr.mxu0 0.0
    %3895 = vmatpush1.msra.mxu0 0.0
    %3896 = vmatprep.mubr.f32.mxu0 0.0
    %3897 = vmatmul.mubr.f32.gmra.mrb[0].mxu0 %v3828
    %v3898 = vpop.f32.mrb[0].mxu0
    %v3899 = vadd.f32 0.0, %v3898
    %v3900 = vpop.f32.mrb[0].mxu0
    %v3901 = vadd.f32 0.0, %v3900
    %3902 = vdwg.mxu0
    %3903 = vmatprep.subr.mxu0 %v277
    %3904 = vmatpush1.msra.mxu0 %v276
    %3905 = vmatprep.subr.mxu0 %v281
    %3906 = vmatpush1.msra.mxu0 %v280
    %3907 = vmatprep.subr.mxu0 %v285
    %3908 = vmatpush1.msra.mxu0 %v284
    %3909 = vmatprep.subr.mxu0 %v289
    %3910 = vmatpush1.msra.mxu0 %v288
    %3911 = vmatprep.subr.mxu0 %v293
    %3912 = vmatpush1.msra.mxu0 %v292
    %3913 = vmatprep.subr.mxu0 %v297
    %3914 = vmatpush1.msra.mxu0 %v296
    %3915 = vmatprep.subr.mxu0 %v301
    %3916 = vmatpush1.msra.mxu0 %v300
    %3917 = vmatprep.subr.mxu0 %v305
    %3918 = vmatpush1.msra.mxu0 %v304
    %3919 = vmatprep.subr.mxu0 %v309
    %3920 = vmatpush1.msra.mxu0 %v308
    %3921 = vmatprep.subr.mxu0 %v313
    %3922 = vmatpush1.msra.mxu0 %v312
    %3923 = vmatprep.subr.mxu0 %v317
    %3924 = vmatpush1.msra.mxu0 %v316
    %3925 = vmatprep.subr.mxu0 %v321
    %3926 = vmatpush1.msra.mxu0 %v320
    %3927 = vmatprep.subr.mxu0 %v325
    %3928 = vmatpush1.msra.mxu0 %v324
    %3929 = vmatprep.subr.mxu0 %v329
    %3930 = vmatpush1.msra.mxu0 %v328
    %3931 = vmatprep.subr.mxu0 %v333
    %3932 = vmatpush1.msra.mxu0 %v332
    %3933 = vmatprep.subr.mxu0 %v337
    %3934 = vmatpush1.msra.mxu0 %v336
    %3935 = vmatprep.subr.mxu0 0.0
    %3936 = vmatpush1.msra.mxu0 0.0
    %3937 = vmatprep.subr.mxu0 0.0
    %3938 = vmatpush1.msra.mxu0 0.0
    %3939 = vmatprep.subr.mxu0 0.0
    %3940 = vmatpush1.msra.mxu0 0.0
    %3941 = vmatprep.subr.mxu0 0.0
    %3942 = vmatpush1.msra.mxu0 0.0
    %3943 = vmatprep.subr.mxu0 0.0
    %3944 = vmatpush1.msra.mxu0 0.0
    %3945 = vmatprep.subr.mxu0 0.0
    %3946 = vmatpush1.msra.mxu0 0.0
    %3947 = vmatprep.subr.mxu0 0.0
    %3948 = vmatpush1.msra.mxu0 0.0
    %3949 = vmatprep.subr.mxu0 0.0
    %3950 = vmatpush1.msra.mxu0 0.0
    %3951 = vmatprep.subr.mxu0 0.0
    %3952 = vmatpush1.msra.mxu0 0.0
    %3953 = vmatprep.subr.mxu0 0.0
    %3954 = vmatpush1.msra.mxu0 0.0
    %3955 = vmatprep.subr.mxu0 0.0
    %3956 = vmatpush1.msra.mxu0 0.0
    %3957 = vmatprep.subr.mxu0 0.0
    %3958 = vmatpush1.msra.mxu0 0.0
    %3959 = vmatprep.subr.mxu0 0.0
    %3960 = vmatpush1.msra.mxu0 0.0
    %3961 = vmatprep.subr.mxu0 0.0
    %3962 = vmatpush1.msra.mxu0 0.0
    %3963 = vmatprep.subr.mxu0 0.0
    %3964 = vmatpush1.msra.mxu0 0.0
    %3965 = vmatprep.subr.mxu0 0.0
    %3966 = vmatpush1.msra.mxu0 0.0
    %3967 = vmatprep.mubr.f32.mxu0 0.0
    %3968 = vmatmul.mubr.f32.gmra.mrb[0].mxu0 %v3828
    %v3969 = vpop.f32.mrb[0].mxu0
    %v3970 = vadd.f32 0.0, %v3969
    %v3971 = vpop.f32.mrb[0].mxu0
    %v3972 = vadd.f32 0.0, %v3971
    %3973 = vdwg.mxu0
    %v3978 = vcombine.low %v3899, %v3901
    %v3979 = vcombine.low %v3970, %v3972
    %v3981 = vunpack.c.l.s4 1983009808
    %v3982 = vunpack.c.0.s8 %v3981
    %v3983 = vlaneseq
    %v3984 = vshrl.u32 %v3983, 7
    %v3985 = vsub.s32 %v3982, %v3984
    %v3986 = vrot.slane %v3978, %v3985
    %v3988 = vunpack.c.l.s4 1983009808
    %v3989 = vunpack.c.0.s8 %v3988
    %v3990 = vlaneseq
    %v3991 = vshrl.u32 %v3990, 7
    %v3992 = vsub.s32 %v3989, %v3991
    %v3993 = vrot.slane %v3979, %v3992
    %v3994 = vcombine.low %v3986, %v3993
    %v3996 = vadd.f32 %v3831, %v3994
    %v3997 = vxor.u32 %v3996, 2147483648
    %v3998 = vmul.f32 %v3997, 1.442695
    %v3999 = vpow.pop %v3998
    %v4000 = vadd.f32 %v3999, 1.0
    %v4001 = vrcp.pop %v4000
    %v4002 = vmul.f32 1.0, %v4001
    %v4004 = vrot.slane %v3996, 6
    %v4006 = vtanh.pop %v4004
    %v4008 = vrot.slane %v4002, 2
    %v4010 = vmul.f32 %v4008, %v3824
    %v4011 = vmul.f32 %v4002, %v4006
    %v4012 = vadd.f32 %v4010, %v4011
    %v4013 = vtanh.pop %v4012
    %v4014 = vrot.slane %v4002, 4
    %v4016 = vmul.f32 %v4014, %v4013
    %s4017 = scalar_lea.vmem [#allocation3], 10
    %4018 = vst [vmem:[%s4017] sm:$0x3] %v4016
    %v4019 = vld [vmem:[%s2858] sm:$0xff]
    %4020 = vmatprep.subr.mxu0 %v275
    %4021 = vmatpush1.msra.mxu0 %v274
    %4022 = vmatprep.subr.mxu0 %v279
    %4023 = vmatpush1.msra.mxu0 %v278
    %4024 = vmatprep.subr.mxu0 %v283
    %4025 = vmatpush1.msra.mxu0 %v282
    %4026 = vmatprep.subr.mxu0 %v287
    %4027 = vmatpush1.msra.mxu0 %v286
    %4028 = vmatprep.subr.mxu0 %v291
    %4029 = vmatpush1.msra.mxu0 %v290
    %4030 = vmatprep.subr.mxu0 %v295
    %4031 = vmatpush1.msra.mxu0 %v294
    %4032 = vmatprep.subr.mxu0 %v299
    %4033 = vmatpush1.msra.mxu0 %v298
    %4034 = vmatprep.subr.mxu0 %v303
    %4035 = vmatpush1.msra.mxu0 %v302
    %4036 = vmatprep.subr.mxu0 %v307
    %4037 = vmatpush1.msra.mxu0 %v306
    %4038 = vmatprep.subr.mxu0 %v311
    %4039 = vmatpush1.msra.mxu0 %v310
    %4040 = vmatprep.subr.mxu0 %v315
    %4041 = vmatpush1.msra.mxu0 %v314
    %4042 = vmatprep.subr.mxu0 %v319
    %4043 = vmatpush1.msra.mxu0 %v318
    %4044 = vmatprep.subr.mxu0 %v323
    %4045 = vmatpush1.msra.mxu0 %v322
    %4046 = vmatprep.subr.mxu0 %v327
    %4047 = vmatpush1.msra.mxu0 %v326
    %4048 = vmatprep.subr.mxu0 %v331
    %4049 = vmatpush1.msra.mxu0 %v330
    %4050 = vmatprep.subr.mxu0 %v335
    %4051 = vmatpush1.msra.mxu0 %v334
    %4052 = vmatprep.subr.mxu0 0.0
    %4053 = vmatpush1.msra.mxu0 0.0
    %4054 = vmatprep.subr.mxu0 0.0
    %4055 = vmatpush1.msra.mxu0 0.0
    %4056 = vmatprep.subr.mxu0 0.0
    %4057 = vmatpush1.msra.mxu0 0.0
    %4058 = vmatprep.subr.mxu0 0.0
    %4059 = vmatpush1.msra.mxu0 0.0
    %4060 = vmatprep.subr.mxu0 0.0
    %4061 = vmatpush1.msra.mxu0 0.0
    %4062 = vmatprep.subr.mxu0 0.0
    %4063 = vmatpush1.msra.mxu0 0.0
    %4064 = vmatprep.subr.mxu0 0.0
    %4065 = vmatpush1.msra.mxu0 0.0
    %4066 = vmatprep.subr.mxu0 0.0
    %4067 = vmatpush1.msra.mxu0 0.0
    %4068 = vmatprep.subr.mxu0 0.0
    %4069 = vmatpush1.msra.mxu0 0.0
    %4070 = vmatprep.subr.mxu0 0.0
    %4071 = vmatpush1.msra.mxu0 0.0
    %4072 = vmatprep.subr.mxu0 0.0
    %4073 = vmatpush1.msra.mxu0 0.0
    %4074 = vmatprep.subr.mxu0 0.0
    %4075 = vmatpush1.msra.mxu0 0.0
    %4076 = vmatprep.subr.mxu0 0.0
    %4077 = vmatpush1.msra.mxu0 0.0
    %4078 = vmatprep.subr.mxu0 0.0
    %4079 = vmatpush1.msra.mxu0 0.0
    %4080 = vmatprep.subr.mxu0 0.0
    %4081 = vmatpush1.msra.mxu0 0.0
    %4082 = vmatprep.subr.mxu0 0.0
    %4083 = vmatpush1.msra.mxu0 0.0
    %4084 = vmatprep.mubr.f32.mxu0 0.0
    %4085 = vmatmul.mubr.f32.gmra.mrb[0].mxu0 %v4016
    %v4086 = vpop.f32.mrb[0].mxu0
    %v4087 = vadd.f32 0.0, %v4086
    %v4088 = vpop.f32.mrb[0].mxu0
    %v4089 = vadd.f32 0.0, %v4088
    %4090 = vdwg.mxu0
    %4091 = vmatprep.subr.mxu0 %v277
    %4092 = vmatpush1.msra.mxu0 %v276
    %4093 = vmatprep.subr.mxu0 %v281
    %4094 = vmatpush1.msra.mxu0 %v280
    %4095 = vmatprep.subr.mxu0 %v285
    %4096 = vmatpush1.msra.mxu0 %v284
    %4097 = vmatprep.subr.mxu0 %v289
    %4098 = vmatpush1.msra.mxu0 %v288
    %4099 = vmatprep.subr.mxu0 %v293
    %4100 = vmatpush1.msra.mxu0 %v292
    %4101 = vmatprep.subr.mxu0 %v297
    %4102 = vmatpush1.msra.mxu0 %v296
    %4103 = vmatprep.subr.mxu0 %v301
    %4104 = vmatpush1.msra.mxu0 %v300
    %4105 = vmatprep.subr.mxu0 %v305
    %4106 = vmatpush1.msra.mxu0 %v304
    %4107 = vmatprep.subr.mxu0 %v309
    %4108 = vmatpush1.msra.mxu0 %v308
    %4109 = vmatprep.subr.mxu0 %v313
    %4110 = vmatpush1.msra.mxu0 %v312
    %4111 = vmatprep.subr.mxu0 %v317
    %4112 = vmatpush1.msra.mxu0 %v316
    %4113 = vmatprep.subr.mxu0 %v321
    %4114 = vmatpush1.msra.mxu0 %v320
    %4115 = vmatprep.subr.mxu0 %v325
    %4116 = vmatpush1.msra.mxu0 %v324
    %4117 = vmatprep.subr.mxu0 %v329
    %4118 = vmatpush1.msra.mxu0 %v328
    %4119 = vmatprep.subr.mxu0 %v333
    %4120 = vmatpush1.msra.mxu0 %v332
    %4121 = vmatprep.subr.mxu0 %v337
    %4122 = vmatpush1.msra.mxu0 %v336
    %4123 = vmatprep.subr.mxu0 0.0
    %4124 = vmatpush1.msra.mxu0 0.0
    %4125 = vmatprep.subr.mxu0 0.0
    %4126 = vmatpush1.msra.mxu0 0.0
    %4127 = vmatprep.subr.mxu0 0.0
    %4128 = vmatpush1.msra.mxu0 0.0
    %4129 = vmatprep.subr.mxu0 0.0
    %4130 = vmatpush1.msra.mxu0 0.0
    %4131 = vmatprep.subr.mxu0 0.0
    %4132 = vmatpush1.msra.mxu0 0.0
    %4133 = vmatprep.subr.mxu0 0.0
    %4134 = vmatpush1.msra.mxu0 0.0
    %4135 = vmatprep.subr.mxu0 0.0
    %4136 = vmatpush1.msra.mxu0 0.0
    %4137 = vmatprep.subr.mxu0 0.0
    %4138 = vmatpush1.msra.mxu0 0.0
    %4139 = vmatprep.subr.mxu0 0.0
    %4140 = vmatpush1.msra.mxu0 0.0
    %4141 = vmatprep.subr.mxu0 0.0
    %4142 = vmatpush1.msra.mxu0 0.0
    %4143 = vmatprep.subr.mxu0 0.0
    %4144 = vmatpush1.msra.mxu0 0.0
    %4145 = vmatprep.subr.mxu0 0.0
    %4146 = vmatpush1.msra.mxu0 0.0
    %4147 = vmatprep.subr.mxu0 0.0
    %4148 = vmatpush1.msra.mxu0 0.0
    %4149 = vmatprep.subr.mxu0 0.0
    %4150 = vmatpush1.msra.mxu0 0.0
    %4151 = vmatprep.subr.mxu0 0.0
    %4152 = vmatpush1.msra.mxu0 0.0
    %4153 = vmatprep.subr.mxu0 0.0
    %4154 = vmatpush1.msra.mxu0 0.0
    %4155 = vmatprep.mubr.f32.mxu0 0.0
    %4156 = vmatmul.mubr.f32.gmra.mrb[0].mxu0 %v4016
    %v4157 = vpop.f32.mrb[0].mxu0
    %v4158 = vadd.f32 0.0, %v4157
    %v4159 = vpop.f32.mrb[0].mxu0
    %v4160 = vadd.f32 0.0, %v4159
    %4161 = vdwg.mxu0
    %v4166 = vcombine.low %v4087, %v4089
    %v4167 = vcombine.low %v4158, %v4160
    %v4169 = vunpack.c.l.s4 1983009808
    %v4170 = vunpack.c.0.s8 %v4169
    %v4171 = vlaneseq
    %v4172 = vshrl.u32 %v4171, 7
    %v4173 = vsub.s32 %v4170, %v4172
    %v4174 = vrot.slane %v4166, %v4173
    %v4176 = vunpack.c.l.s4 1983009808
    %v4177 = vunpack.c.0.s8 %v4176
    %v4178 = vlaneseq
    %v4179 = vshrl.u32 %v4178, 7
    %v4180 = vsub.s32 %v4177, %v4179
    %v4181 = vrot.slane %v4167, %v4180
    %v4182 = vcombine.low %v4174, %v4181
    %v4184 = vadd.f32 %v4019, %v4182
    %v4185 = vxor.u32 %v4184, 2147483648
    %v4186 = vmul.f32 %v4185, 1.442695
    %v4187 = vpow.pop %v4186
    %v4188 = vadd.f32 %v4187, 1.0
    %v4189 = vrcp.pop %v4188
    %v4190 = vmul.f32 1.0, %v4189
    %v4192 = vrot.slane %v4184, 6
    %v4194 = vtanh.pop %v4192
    %v4196 = vrot.slane %v4190, 2
    %v4198 = vmul.f32 %v4196, %v4012
    %v4199 = vmul.f32 %v4190, %v4194
    %v4200 = vadd.f32 %v4198, %v4199
    %v4201 = vtanh.pop %v4200
    %v4202 = vrot.slane %v4190, 4
    %v4204 = vmul.f32 %v4202, %v4201
    %s4205 = scalar_lea.vmem [#allocation3], 12
    %4206 = vst [vmem:[%s4205] sm:$0x3] %v4204
    %v4207 = vld [vmem:[%s2890] sm:$0xff]
    %4208 = vmatprep.subr.mxu0 %v275
    %4209 = vmatpush1.msra.mxu0 %v274
    %4210 = vmatprep.subr.mxu0 %v279
    %4211 = vmatpush1.msra.mxu0 %v278
    %4212 = vmatprep.subr.mxu0 %v283
    %4213 = vmatpush1.msra.mxu0 %v282
    %4214 = vmatprep.subr.mxu0 %v287
    %4215 = vmatpush1.msra.mxu0 %v286
    %4216 = vmatprep.subr.mxu0 %v291
    %4217 = vmatpush1.msra.mxu0 %v290
    %4218 = vmatprep.subr.mxu0 %v295
    %4219 = vmatpush1.msra.mxu0 %v294
    %4220 = vmatprep.subr.mxu0 %v299
    %4221 = vmatpush1.msra.mxu0 %v298
    %4222 = vmatprep.subr.mxu0 %v303
    %4223 = vmatpush1.msra.mxu0 %v302
    %4224 = vmatprep.subr.mxu0 %v307
    %4225 = vmatpush1.msra.mxu0 %v306
    %4226 = vmatprep.subr.mxu0 %v311
    %4227 = vmatpush1.msra.mxu0 %v310
    %4228 = vmatprep.subr.mxu0 %v315
    %4229 = vmatpush1.msra.mxu0 %v314
    %4230 = vmatprep.subr.mxu0 %v319
    %4231 = vmatpush1.msra.mxu0 %v318
    %4232 = vmatprep.subr.mxu0 %v323
    %4233 = vmatpush1.msra.mxu0 %v322
    %4234 = vmatprep.subr.mxu0 %v327
    %4235 = vmatpush1.msra.mxu0 %v326
    %4236 = vmatprep.subr.mxu0 %v331
    %4237 = vmatpush1.msra.mxu0 %v330
    %4238 = vmatprep.subr.mxu0 %v335
    %4239 = vmatpush1.msra.mxu0 %v334
    %4240 = vmatprep.subr.mxu0 0.0
    %4241 = vmatpush1.msra.mxu0 0.0
    %4242 = vmatprep.subr.mxu0 0.0
    %4243 = vmatpush1.msra.mxu0 0.0
    %4244 = vmatprep.subr.mxu0 0.0
    %4245 = vmatpush1.msra.mxu0 0.0
    %4246 = vmatprep.subr.mxu0 0.0
    %4247 = vmatpush1.msra.mxu0 0.0
    %4248 = vmatprep.subr.mxu0 0.0
    %4249 = vmatpush1.msra.mxu0 0.0
    %4250 = vmatprep.subr.mxu0 0.0
    %4251 = vmatpush1.msra.mxu0 0.0
    %4252 = vmatprep.subr.mxu0 0.0
    %4253 = vmatpush1.msra.mxu0 0.0
    %4254 = vmatprep.subr.mxu0 0.0
    %4255 = vmatpush1.msra.mxu0 0.0
    %4256 = vmatprep.subr.mxu0 0.0
    %4257 = vmatpush1.msra.mxu0 0.0
    %4258 = vmatprep.subr.mxu0 0.0
    %4259 = vmatpush1.msra.mxu0 0.0
    %4260 = vmatprep.subr.mxu0 0.0
    %4261 = vmatpush1.msra.mxu0 0.0
    %4262 = vmatprep.subr.mxu0 0.0
    %4263 = vmatpush1.msra.mxu0 0.0
    %4264 = vmatprep.subr.mxu0 0.0
    %4265 = vmatpush1.msra.mxu0 0.0
    %4266 = vmatprep.subr.mxu0 0.0
    %4267 = vmatpush1.msra.mxu0 0.0
    %4268 = vmatprep.subr.mxu0 0.0
    %4269 = vmatpush1.msra.mxu0 0.0
    %4270 = vmatprep.subr.mxu0 0.0
    %4271 = vmatpush1.msra.mxu0 0.0
    %4272 = vmatprep.mubr.f32.mxu0 0.0
    %4273 = vmatmul.mubr.f32.gmra.mrb[0].mxu0 %v4204
    %v4274 = vpop.f32.mrb[0].mxu0
    %v4275 = vadd.f32 0.0, %v4274
    %v4276 = vpop.f32.mrb[0].mxu0
    %v4277 = vadd.f32 0.0, %v4276
    %4278 = vdwg.mxu0
    %4279 = vmatprep.subr.mxu0 %v277
    %4280 = vmatpush1.msra.mxu0 %v276
    %4281 = vmatprep.subr.mxu0 %v281
    %4282 = vmatpush1.msra.mxu0 %v280
    %4283 = vmatprep.subr.mxu0 %v285
    %4284 = vmatpush1.msra.mxu0 %v284
    %4285 = vmatprep.subr.mxu0 %v289
    %4286 = vmatpush1.msra.mxu0 %v288
    %4287 = vmatprep.subr.mxu0 %v293
    %4288 = vmatpush1.msra.mxu0 %v292
    %4289 = vmatprep.subr.mxu0 %v297
    %4290 = vmatpush1.msra.mxu0 %v296
    %4291 = vmatprep.subr.mxu0 %v301
    %4292 = vmatpush1.msra.mxu0 %v300
    %4293 = vmatprep.subr.mxu0 %v305
    %4294 = vmatpush1.msra.mxu0 %v304
    %4295 = vmatprep.subr.mxu0 %v309
    %4296 = vmatpush1.msra.mxu0 %v308
    %4297 = vmatprep.subr.mxu0 %v313
    %4298 = vmatpush1.msra.mxu0 %v312
    %4299 = vmatprep.subr.mxu0 %v317
    %4300 = vmatpush1.msra.mxu0 %v316
    %4301 = vmatprep.subr.mxu0 %v321
    %4302 = vmatpush1.msra.mxu0 %v320
    %4303 = vmatprep.subr.mxu0 %v325
    %4304 = vmatpush1.msra.mxu0 %v324
    %4305 = vmatprep.subr.mxu0 %v329
    %4306 = vmatpush1.msra.mxu0 %v328
    %4307 = vmatprep.subr.mxu0 %v333
    %4308 = vmatpush1.msra.mxu0 %v332
    %4309 = vmatprep.subr.mxu0 %v337
    %4310 = vmatpush1.msra.mxu0 %v336
    %4311 = vmatprep.subr.mxu0 0.0
    %4312 = vmatpush1.msra.mxu0 0.0
    %4313 = vmatprep.subr.mxu0 0.0
    %4314 = vmatpush1.msra.mxu0 0.0
    %4315 = vmatprep.subr.mxu0 0.0
    %4316 = vmatpush1.msra.mxu0 0.0
    %4317 = vmatprep.subr.mxu0 0.0
    %4318 = vmatpush1.msra.mxu0 0.0
    %4319 = vmatprep.subr.mxu0 0.0
    %4320 = vmatpush1.msra.mxu0 0.0
    %4321 = vmatprep.subr.mxu0 0.0
    %4322 = vmatpush1.msra.mxu0 0.0
    %4323 = vmatprep.subr.mxu0 0.0
    %4324 = vmatpush1.msra.mxu0 0.0
    %4325 = vmatprep.subr.mxu0 0.0
    %4326 = vmatpush1.msra.mxu0 0.0
    %4327 = vmatprep.subr.mxu0 0.0
    %4328 = vmatpush1.msra.mxu0 0.0
    %4329 = vmatprep.subr.mxu0 0.0
    %4330 = vmatpush1.msra.mxu0 0.0
    %4331 = vmatprep.subr.mxu0 0.0
    %4332 = vmatpush1.msra.mxu0 0.0
    %4333 = vmatprep.subr.mxu0 0.0
    %4334 = vmatpush1.msra.mxu0 0.0
    %4335 = vmatprep.subr.mxu0 0.0
    %4336 = vmatpush1.msra.mxu0 0.0
    %4337 = vmatprep.subr.mxu0 0.0
    %4338 = vmatpush1.msra.mxu0 0.0
    %4339 = vmatprep.subr.mxu0 0.0
    %4340 = vmatpush1.msra.mxu0 0.0
    %4341 = vmatprep.subr.mxu0 0.0
    %4342 = vmatpush1.msra.mxu0 0.0
    %4343 = vmatprep.mubr.f32.mxu0 0.0
    %4344 = vmatmul.mubr.f32.gmra.mrb[0].mxu0 %v4204
    %v4345 = vpop.f32.mrb[0].mxu0
    %v4346 = vadd.f32 0.0, %v4345
    %v4347 = vpop.f32.mrb[0].mxu0
    %v4348 = vadd.f32 0.0, %v4347
    %4349 = vdwg.mxu0
    %v4354 = vcombine.low %v4275, %v4277
    %v4355 = vcombine.low %v4346, %v4348
    %v4357 = vunpack.c.l.s4 1983009808
    %v4358 = vunpack.c.0.s8 %v4357
    %v4359 = vlaneseq
    %v4360 = vshrl.u32 %v4359, 7
    %v4361 = vsub.s32 %v4358, %v4360
    %v4362 = vrot.slane %v4354, %v4361
    %v4364 = vunpack.c.l.s4 1983009808
    %v4365 = vunpack.c.0.s8 %v4364
    %v4366 = vlaneseq
    %v4367 = vshrl.u32 %v4366, 7
    %v4368 = vsub.s32 %v4365, %v4367
    %v4369 = vrot.slane %v4355, %v4368
    %v4370 = vcombine.low %v4362, %v4369
    %v4372 = vadd.f32 %v4207, %v4370
    %v4373 = vxor.u32 %v4372, 2147483648
    %v4374 = vmul.f32 %v4373, 1.442695
    %v4375 = vpow.pop %v4374
    %v4376 = vadd.f32 %v4375, 1.0
    %v4377 = vrcp.pop %v4376
    %v4378 = vmul.f32 1.0, %v4377
    %v4380 = vrot.slane %v4372, 6
    %v4382 = vtanh.pop %v4380
    %v4384 = vrot.slane %v4378, 2
    %v4386 = vmul.f32 %v4384, %v4200
    %v4387 = vmul.f32 %v4378, %v4382
    %v4388 = vadd.f32 %v4386, %v4387
    %v4389 = vtanh.pop %v4388
    %v4390 = vrot.slane %v4378, 4
    %v4392 = vmul.f32 %v4390, %v4389
    %s4393 = scalar_lea.vmem [#allocation3], 14
    %4394 = vst [vmem:[%s4393] sm:$0x3] %v4392
    %v4395 = vld [vmem:[#allocation13] sm:$0xff]
    %v4396 = vld [vmem:[#allocation13 + $0x8] sm:$0xff]
    %v4397 = vld [vmem:[#allocation13 + $0x10] sm:$0xff]
    %v4398 = vld [vmem:[#allocation13 + $0x18] sm:$0xff]
    %v4399 = vld [vmem:[#allocation13 + $0x20] sm:$0xff]
    %v4400 = vld [vmem:[#allocation13 + $0x28] sm:$0xff]
    %v4401 = vld [vmem:[#allocation13 + $0x30] sm:$0xff]
    %v4402 = vld [vmem:[#allocation13 + $0x38] sm:$0xff]
    %v4403 = vld [vmem:[#allocation13 + $0x40] sm:$0xff]
    %v4404 = vld [vmem:[#allocation13 + $0x48] sm:$0xff]
    %v4405 = vld [vmem:[#allocation13 + $0x50] sm:$0xff]
    %v4406 = vld [vmem:[#allocation13 + $0x58] sm:$0xff]
    %v4407 = vld [vmem:[#allocation13 + $0x60] sm:$0xff]
    %v4408 = vld [vmem:[#allocation13 + $0x68] sm:$0xff]
    %v4409 = vld [vmem:[#allocation13 + $0x70] sm:$0xff]
    %v4410 = vld [vmem:[#allocation13 + $0x78] sm:$0xff]
    %v4411 = vld [vmem:[#allocation13 + $0x80] sm:$0xff]
    %v4412 = vld [vmem:[#allocation13 + $0x88] sm:$0xff]
    %v4413 = vld [vmem:[#allocation13 + $0x90] sm:$0xff]
    %v4414 = vld [vmem:[#allocation13 + $0x98] sm:$0xff]
    %v4415 = vld [vmem:[#allocation13 + $0xa0] sm:$0xff]
    %v4416 = vld [vmem:[#allocation13 + $0xa8] sm:$0xff]
    %v4417 = vld [vmem:[#allocation13 + $0xb0] sm:$0xff]
    %v4418 = vld [vmem:[#allocation13 + $0xb8] sm:$0xff]
    %v4419 = vld [vmem:[#allocation13 + $0xc0] sm:$0xff]
    %v4420 = vld [vmem:[#allocation13 + $0xc8] sm:$0xff]
    %v4421 = vld [vmem:[#allocation13 + $0xd0] sm:$0xff]
    %v4422 = vld [vmem:[#allocation13 + $0xd8] sm:$0xff]
    %v4423 = vld [vmem:[#allocation13 + $0xe0] sm:$0xff]
    %v4424 = vld [vmem:[#allocation13 + $0xe8] sm:$0xff]
    %v4425 = vld [vmem:[#allocation13 + $0xf0] sm:$0xff]
    %v4426 = vld [vmem:[#allocation13 + $0xf8] sm:$0xff]
    %v4427 = vld [vmem:[#allocation13 + $0x100] sm:$0xff]
    %v4428 = vld [vmem:[#allocation13 + $0x108] sm:$0xff]
    %v4429 = vld [vmem:[#allocation13 + $0x110] sm:$0xff]
    %v4430 = vld [vmem:[#allocation13 + $0x118] sm:$0xff]
    %v4431 = vld [vmem:[#allocation13 + $0x120] sm:$0xff]
    %v4432 = vld [vmem:[#allocation13 + $0x128] sm:$0xff]
    %v4433 = vld [vmem:[#allocation13 + $0x130] sm:$0xff]
    %v4434 = vld [vmem:[#allocation13 + $0x138] sm:$0xff]
    %v4435 = vld [vmem:[#allocation13 + $0x140] sm:$0xff]
    %v4436 = vld [vmem:[#allocation13 + $0x148] sm:$0xff]
    %v4437 = vld [vmem:[#allocation13 + $0x150] sm:$0xff]
    %v4438 = vld [vmem:[#allocation13 + $0x158] sm:$0xff]
    %v4439 = vld [vmem:[#allocation13 + $0x160] sm:$0xff]
    %v4440 = vld [vmem:[#allocation13 + $0x168] sm:$0xff]
    %v4441 = vld [vmem:[#allocation13 + $0x170] sm:$0xff]
    %v4442 = vld [vmem:[#allocation13 + $0x178] sm:$0xff]
    %v4443 = vld [vmem:[#allocation13 + $0x180] sm:$0xff]
    %v4444 = vld [vmem:[#allocation13 + $0x188] sm:$0xff]
    %v4445 = vld [vmem:[#allocation13 + $0x190] sm:$0xff]
    %v4446 = vld [vmem:[#allocation13 + $0x198] sm:$0xff]
    %v4447 = vld [vmem:[#allocation13 + $0x1a0] sm:$0xff]
    %v4448 = vld [vmem:[#allocation13 + $0x1a8] sm:$0xff]
    %v4449 = vld [vmem:[#allocation13 + $0x1b0] sm:$0xff]
    %v4450 = vld [vmem:[#allocation13 + $0x1b8] sm:$0xff]
    %v4451 = vld [vmem:[#allocation13 + $0x1c0] sm:$0xff]
    %v4452 = vld [vmem:[#allocation13 + $0x1c8] sm:$0xff]
    %v4453 = vld [vmem:[#allocation13 + $0x1d0] sm:$0xff]
    %v4454 = vld [vmem:[#allocation13 + $0x1d8] sm:$0xff]
    %v4455 = vld [vmem:[#allocation13 + $0x1e0] sm:$0xff]
    %v4456 = vld [vmem:[#allocation13 + $0x1e8] sm:$0xff]
    %v4457 = vld [vmem:[#allocation13 + $0x1f0] sm:$0xff]
    %v4458 = vld [vmem:[#allocation13 + $0x1f8] sm:$0xff]
    %v4459 = vld [vmem:[#allocation14] sm:$0xff]
    %v4460 = vld [vmem:[#allocation14 + $0x8] sm:$0xff]
    %v4461 = vld [vmem:[#allocation14 + $0x10] sm:$0xff]
    %v4462 = vld [vmem:[#allocation14 + $0x18] sm:$0xff]
    %v4463 = vld [vmem:[#allocation14 + $0x20] sm:$0xff]
    %v4464 = vld [vmem:[#allocation14 + $0x28] sm:$0xff]
    %v4465 = vld [vmem:[#allocation14 + $0x30] sm:$0xff]
    %v4466 = vld [vmem:[#allocation14 + $0x38] sm:$0xff]
    %v4467 = vld [vmem:[#allocation14 + $0x40] sm:$0xff]
    %v4468 = vld [vmem:[#allocation14 + $0x48] sm:$0xff]
    %v4469 = vld [vmem:[#allocation14 + $0x50] sm:$0xff]
    %v4470 = vld [vmem:[#allocation14 + $0x58] sm:$0xff]
    %v4471 = vld [vmem:[#allocation14 + $0x60] sm:$0xff]
    %v4472 = vld [vmem:[#allocation14 + $0x68] sm:$0xff]
    %v4473 = vld [vmem:[#allocation14 + $0x70] sm:$0xff]
    %v4474 = vld [vmem:[#allocation14 + $0x78] sm:$0xff]
    %v4475 = vld [vmem:[#allocation14 + $0x80] sm:$0xff]
    %v4476 = vld [vmem:[#allocation14 + $0x88] sm:$0xff]
    %v4477 = vld [vmem:[#allocation14 + $0x90] sm:$0xff]
    %v4478 = vld [vmem:[#allocation14 + $0x98] sm:$0xff]
    %v4479 = vld [vmem:[#allocation14 + $0xa0] sm:$0xff]
    %v4480 = vld [vmem:[#allocation14 + $0xa8] sm:$0xff]
    %v4481 = vld [vmem:[#allocation14 + $0xb0] sm:$0xff]
    %v4482 = vld [vmem:[#allocation14 + $0xb8] sm:$0xff]
    %v4483 = vld [vmem:[#allocation14 + $0xc0] sm:$0xff]
    %v4484 = vld [vmem:[#allocation14 + $0xc8] sm:$0xff]
    %v4485 = vld [vmem:[#allocation14 + $0xd0] sm:$0xff]
    %v4486 = vld [vmem:[#allocation14 + $0xd8] sm:$0xff]
    %v4487 = vld [vmem:[#allocation14 + $0xe0] sm:$0xff]
    %v4488 = vld [vmem:[#allocation14 + $0xe8] sm:$0xff]
    %v4489 = vld [vmem:[#allocation14 + $0xf0] sm:$0xff]
    %v4490 = vld [vmem:[#allocation14 + $0xf8] sm:$0xff]
    %v4491 = vld [vmem:[#allocation14 + $0x100] sm:$0xff]
    %v4492 = vld [vmem:[#allocation14 + $0x108] sm:$0xff]
    %v4493 = vld [vmem:[#allocation14 + $0x110] sm:$0xff]
    %v4494 = vld [vmem:[#allocation14 + $0x118] sm:$0xff]
    %v4495 = vld [vmem:[#allocation14 + $0x120] sm:$0xff]
    %v4496 = vld [vmem:[#allocation14 + $0x128] sm:$0xff]
    %v4497 = vld [vmem:[#allocation14 + $0x130] sm:$0xff]
    %v4498 = vld [vmem:[#allocation14 + $0x138] sm:$0xff]
    %v4499 = vld [vmem:[#allocation14 + $0x140] sm:$0xff]
    %v4500 = vld [vmem:[#allocation14 + $0x148] sm:$0xff]
    %v4501 = vld [vmem:[#allocation14 + $0x150] sm:$0xff]
    %v4502 = vld [vmem:[#allocation14 + $0x158] sm:$0xff]
    %v4503 = vld [vmem:[#allocation14 + $0x160] sm:$0xff]
    %v4504 = vld [vmem:[#allocation14 + $0x168] sm:$0xff]
    %v4505 = vld [vmem:[#allocation14 + $0x170] sm:$0xff]
    %v4506 = vld [vmem:[#allocation14 + $0x178] sm:$0xff]
    %v4507 = vld [vmem:[#allocation14 + $0x180] sm:$0xff]
    %v4508 = vld [vmem:[#allocation14 + $0x188] sm:$0xff]
    %v4509 = vld [vmem:[#allocation14 + $0x190] sm:$0xff]
    %v4510 = vld [vmem:[#allocation14 + $0x198] sm:$0xff]
    %v4511 = vld [vmem:[#allocation14 + $0x1a0] sm:$0xff]
    %v4512 = vld [vmem:[#allocation14 + $0x1a8] sm:$0xff]
    %v4513 = vld [vmem:[#allocation14 + $0x1b0] sm:$0xff]
    %v4514 = vld [vmem:[#allocation14 + $0x1b8] sm:$0xff]
    %v4515 = vld [vmem:[#allocation14 + $0x1c0] sm:$0xff]
    %v4516 = vld [vmem:[#allocation14 + $0x1c8] sm:$0xff]
    %v4517 = vld [vmem:[#allocation14 + $0x1d0] sm:$0xff]
    %v4518 = vld [vmem:[#allocation14 + $0x1d8] sm:$0xff]
    %v4519 = vld [vmem:[#allocation14 + $0x1e0] sm:$0xff]
    %v4520 = vld [vmem:[#allocation14 + $0x1e8] sm:$0xff]
    %v4521 = vld [vmem:[#allocation14 + $0x1f0] sm:$0xff]
    %v4522 = vld [vmem:[#allocation14 + $0x1f8] sm:$0xff]
    %v4523 = vld [vmem:[#allocation16] sm:$0xff]
    %v4524 = vld [vmem:[#allocation16 + $0x8] sm:$0xff]
    %v4525 = vld [vmem:[#allocation16 + $0x10] sm:$0xff]
    %v4526 = vld [vmem:[#allocation16 + $0x18] sm:$0xff]
    %v4527 = vld [vmem:[#allocation16 + $0x20] sm:$0xff]
    %v4528 = vld [vmem:[#allocation16 + $0x28] sm:$0xff]
    %v4529 = vld [vmem:[#allocation16 + $0x30] sm:$0xff]
    %v4530 = vld [vmem:[#allocation16 + $0x38] sm:$0xff]
    %v4531 = vld [vmem:[#allocation16 + $0x40] sm:$0xff]
    %v4532 = vld [vmem:[#allocation16 + $0x48] sm:$0xff]
    %v4533 = vld [vmem:[#allocation16 + $0x50] sm:$0xff]
    %v4534 = vld [vmem:[#allocation16 + $0x58] sm:$0xff]
    %v4535 = vld [vmem:[#allocation16 + $0x60] sm:$0xff]
    %v4536 = vld [vmem:[#allocation16 + $0x68] sm:$0xff]
    %v4537 = vld [vmem:[#allocation16 + $0x70] sm:$0xff]
    %v4538 = vld [vmem:[#allocation16 + $0x78] sm:$0xff]
    %v4539 = vld [vmem:[#allocation16 + $0x80] sm:$0xff]
    %v4540 = vld [vmem:[#allocation16 + $0x88] sm:$0xff]
    %v4541 = vld [vmem:[#allocation16 + $0x90] sm:$0xff]
    %v4542 = vld [vmem:[#allocation16 + $0x98] sm:$0xff]
    %v4543 = vld [vmem:[#allocation16 + $0xa0] sm:$0xff]
    %v4544 = vld [vmem:[#allocation16 + $0xa8] sm:$0xff]
    %v4545 = vld [vmem:[#allocation16 + $0xb0] sm:$0xff]
    %v4546 = vld [vmem:[#allocation16 + $0xb8] sm:$0xff]
    %v4547 = vld [vmem:[#allocation16 + $0xc0] sm:$0xff]
    %v4548 = vld [vmem:[#allocation16 + $0xc8] sm:$0xff]
    %v4549 = vld [vmem:[#allocation16 + $0xd0] sm:$0xff]
    %v4550 = vld [vmem:[#allocation16 + $0xd8] sm:$0xff]
    %v4551 = vld [vmem:[#allocation16 + $0xe0] sm:$0xff]
    %v4552 = vld [vmem:[#allocation16 + $0xe8] sm:$0xff]
    %v4553 = vld [vmem:[#allocation16 + $0xf0] sm:$0xff]
    %v4554 = vld [vmem:[#allocation16 + $0xf8] sm:$0xff]
    %v4555 = vld [vmem:[#allocation16 + $0x100] sm:$0xff]
    %v4556 = vld [vmem:[#allocation16 + $0x108] sm:$0xff]
    %v4557 = vld [vmem:[#allocation16 + $0x110] sm:$0xff]
    %v4558 = vld [vmem:[#allocation16 + $0x118] sm:$0xff]
    %v4559 = vld [vmem:[#allocation16 + $0x120] sm:$0xff]
    %v4560 = vld [vmem:[#allocation16 + $0x128] sm:$0xff]
    %v4561 = vld [vmem:[#allocation16 + $0x130] sm:$0xff]
    %v4562 = vld [vmem:[#allocation16 + $0x138] sm:$0xff]
    %v4563 = vld [vmem:[#allocation16 + $0x140] sm:$0xff]
    %v4564 = vld [vmem:[#allocation16 + $0x148] sm:$0xff]
    %v4565 = vld [vmem:[#allocation16 + $0x150] sm:$0xff]
    %v4566 = vld [vmem:[#allocation16 + $0x158] sm:$0xff]
    %v4567 = vld [vmem:[#allocation16 + $0x160] sm:$0xff]
    %v4568 = vld [vmem:[#allocation16 + $0x168] sm:$0xff]
    %v4569 = vld [vmem:[#allocation16 + $0x170] sm:$0xff]
    %v4570 = vld [vmem:[#allocation16 + $0x178] sm:$0xff]
    %v4571 = vld [vmem:[#allocation16 + $0x180] sm:$0xff]
    %v4572 = vld [vmem:[#allocation16 + $0x188] sm:$0xff]
    %v4573 = vld [vmem:[#allocation16 + $0x190] sm:$0xff]
    %v4574 = vld [vmem:[#allocation16 + $0x198] sm:$0xff]
    %v4575 = vld [vmem:[#allocation16 + $0x1a0] sm:$0xff]
    %v4576 = vld [vmem:[#allocation16 + $0x1a8] sm:$0xff]
    %v4577 = vld [vmem:[#allocation16 + $0x1b0] sm:$0xff]
    %v4578 = vld [vmem:[#allocation16 + $0x1b8] sm:$0xff]
    %v4579 = vld [vmem:[#allocation16 + $0x1c0] sm:$0xff]
    %v4580 = vld [vmem:[#allocation16 + $0x1c8] sm:$0xff]
    %v4581 = vld [vmem:[#allocation16 + $0x1d0] sm:$0xff]
    %v4582 = vld [vmem:[#allocation16 + $0x1d8] sm:$0xff]
    %v4583 = vld [vmem:[#allocation16 + $0x1e0] sm:$0xff]
    %v4584 = vld [vmem:[#allocation16 + $0x1e8] sm:$0xff]
    %v4585 = vld [vmem:[#allocation16 + $0x1f0] sm:$0xff]
    %v4586 = vld [vmem:[#allocation16 + $0x1f8] sm:$0xff]
    %v4587 = vld [vmem:[%s8] sm:$0xf]
    %v4588 = vld [vmem:[#allocation3] sm:$0x3]
    %v4589 = vld [vmem:[#allocation3 + $0x2] sm:$0x3]
    %v4590 = vld [vmem:[#allocation3 + $0x4] sm:$0x3]
    %v4591 = vld [vmem:[#allocation3 + $0x6] sm:$0x3]
    %v4592 = vld [vmem:[#allocation3 + $0x8] sm:$0x3]
    %v4593 = vld [vmem:[#allocation3 + $0xa] sm:$0x3]
    %v4594 = vld [vmem:[#allocation3 + $0xc] sm:$0x3]
    %v4595 = vld [vmem:[#allocation3 + $0xe] sm:$0x3]
    %v4604 = vcombine.low %v4588, %v4589
    %v4605 = vcombine.low %v4590, %v4591
    %v4607 = vunpack.c.l.s4 1983009808
    %v4608 = vunpack.c.0.s8 %v4607
    %v4609 = vlaneseq
    %v4610 = vshrl.u32 %v4609, 7
    %v4611 = vsub.s32 %v4608, %v4610
    %v4612 = vrot.slane %v4604, %v4611
    %v4614 = vunpack.c.l.s4 1983009808
    %v4615 = vunpack.c.0.s8 %v4614
    %v4616 = vlaneseq
    %v4617 = vshrl.u32 %v4616, 7
    %v4618 = vsub.s32 %v4615, %v4617
    %v4619 = vrot.slane %v4605, %v4618
    %v4620 = vcombine.low %v4612, %v4619
    %v4621 = vcombine.low %v4592, %v4593
    %v4622 = vcombine.low %v4594, %v4595
    %v4624 = vunpack.c.l.s4 1983009808
    %v4625 = vunpack.c.0.s8 %v4624
    %v4626 = vlaneseq
    %v4627 = vshrl.u32 %v4626, 7
    %v4628 = vsub.s32 %v4625, %v4627
    %v4629 = vrot.slane %v4621, %v4628
    %v4631 = vunpack.c.l.s4 1983009808
    %v4632 = vunpack.c.0.s8 %v4631
    %v4633 = vlaneseq
    %v4634 = vshrl.u32 %v4633, 7
    %v4635 = vsub.s32 %v4632, %v4634
    %v4636 = vrot.slane %v4622, %v4635
    %v4637 = vcombine.low %v4629, %v4636
    %4640 = vmatprep.subr.mxu0 %v4396
    %4641 = vmatpush1.msra.mxu0 %v4395
    %4642 = vmatprep.subr.mxu0 %v4400
    %4643 = vmatpush1.msra.mxu0 %v4399
    %4644 = vmatprep.subr.mxu0 %v4404
    %4645 = vmatpush1.msra.mxu0 %v4403
    %4646 = vmatprep.subr.mxu0 %v4408
    %4647 = vmatpush1.msra.mxu0 %v4407
    %4648 = vmatprep.subr.mxu0 %v4412
    %4649 = vmatpush1.msra.mxu0 %v4411
    %4650 = vmatprep.subr.mxu0 %v4416
    %4651 = vmatpush1.msra.mxu0 %v4415
    %4652 = vmatprep.subr.mxu0 %v4420
    %4653 = vmatpush1.msra.mxu0 %v4419
    %4654 = vmatprep.subr.mxu0 %v4424
    %4655 = vmatpush1.msra.mxu0 %v4423
    %4656 = vmatprep.subr.mxu0 %v4428
    %4657 = vmatpush1.msra.mxu0 %v4427
    %4658 = vmatprep.subr.mxu0 %v4432
    %4659 = vmatpush1.msra.mxu0 %v4431
    %4660 = vmatprep.subr.mxu0 %v4436
    %4661 = vmatpush1.msra.mxu0 %v4435
    %4662 = vmatprep.subr.mxu0 %v4440
    %4663 = vmatpush1.msra.mxu0 %v4439
    %4664 = vmatprep.subr.mxu0 %v4444
    %4665 = vmatpush1.msra.mxu0 %v4443
    %4666 = vmatprep.subr.mxu0 %v4448
    %4667 = vmatpush1.msra.mxu0 %v4447
    %4668 = vmatprep.subr.mxu0 %v4452
    %4669 = vmatpush1.msra.mxu0 %v4451
    %4670 = vmatprep.subr.mxu0 %v4456
    %4671 = vmatpush1.msra.mxu0 %v4455
    %4672 = vmatprep.subr.mxu0 0.0
    %4673 = vmatpush1.msra.mxu0 0.0
    %4674 = vmatprep.subr.mxu0 0.0
    %4675 = vmatpush1.msra.mxu0 0.0
    %4676 = vmatprep.subr.mxu0 0.0
    %4677 = vmatpush1.msra.mxu0 0.0
    %4678 = vmatprep.subr.mxu0 0.0
    %4679 = vmatpush1.msra.mxu0 0.0
    %4680 = vmatprep.subr.mxu0 0.0
    %4681 = vmatpush1.msra.mxu0 0.0
    %4682 = vmatprep.subr.mxu0 0.0
    %4683 = vmatpush1.msra.mxu0 0.0
    %4684 = vmatprep.subr.mxu0 0.0
    %4685 = vmatpush1.msra.mxu0 0.0
    %4686 = vmatprep.subr.mxu0 0.0
    %4687 = vmatpush1.msra.mxu0 0.0
    %4688 = vmatprep.subr.mxu0 0.0
    %4689 = vmatpush1.msra.mxu0 0.0
    %4690 = vmatprep.subr.mxu0 0.0
    %4691 = vmatpush1.msra.mxu0 0.0
    %4692 = vmatprep.subr.mxu0 0.0
    %4693 = vmatpush1.msra.mxu0 0.0
    %4694 = vmatprep.subr.mxu0 0.0
    %4695 = vmatpush1.msra.mxu0 0.0
    %4696 = vmatprep.subr.mxu0 0.0
    %4697 = vmatpush1.msra.mxu0 0.0
    %4698 = vmatprep.subr.mxu0 0.0
    %4699 = vmatpush1.msra.mxu0 0.0
    %4700 = vmatprep.subr.mxu0 0.0
    %4701 = vmatpush1.msra.mxu0 0.0
    %4702 = vmatprep.subr.mxu0 0.0
    %4703 = vmatpush1.msra.mxu0 0.0
    %4704 = vmatprep.mubr.f32.mxu0 0.0
    %4705 = vmatmul.mubr.f32.gmra.mrb[0].mxu0 %v4620
    %v4706 = vpop.f32.mrb[0].mxu0
    %v4707 = vadd.f32 0.0, %v4706
    %v4708 = vpop.f32.mrb[0].mxu0
    %v4709 = vadd.f32 0.0, %v4708
    %4710 = vmatprep.mubr.f32.mxu0 0.0
    %4711 = vmatmul.mubr.f32.gmra.mrb[0].mxu0 %v4637
    %v4712 = vpop.f32.mrb[0].mxu0
    %v4713 = vadd.f32 0.0, %v4712
    %v4714 = vpop.f32.mrb[0].mxu0
    %v4715 = vadd.f32 0.0, %v4714
    %4716 = vdwg.mxu0
    %4717 = vmatprep.subr.mxu0 %v4398
    %4718 = vmatpush1.msra.mxu0 %v4397
    %4719 = vmatprep.subr.mxu0 %v4402
    %4720 = vmatpush1.msra.mxu0 %v4401
    %4721 = vmatprep.subr.mxu0 %v4406
    %4722 = vmatpush1.msra.mxu0 %v4405
    %4723 = vmatprep.subr.mxu0 %v4410
    %4724 = vmatpush1.msra.mxu0 %v4409
    %4725 = vmatprep.subr.mxu0 %v4414
    %4726 = vmatpush1.msra.mxu0 %v4413
    %4727 = vmatprep.subr.mxu0 %v4418
    %4728 = vmatpush1.msra.mxu0 %v4417
    %4729 = vmatprep.subr.mxu0 %v4422
    %4730 = vmatpush1.msra.mxu0 %v4421
    %4731 = vmatprep.subr.mxu0 %v4426
    %4732 = vmatpush1.msra.mxu0 %v4425
    %4733 = vmatprep.subr.mxu0 %v4430
    %4734 = vmatpush1.msra.mxu0 %v4429
    %4735 = vmatprep.subr.mxu0 %v4434
    %4736 = vmatpush1.msra.mxu0 %v4433
    %4737 = vmatprep.subr.mxu0 %v4438
    %4738 = vmatpush1.msra.mxu0 %v4437
    %4739 = vmatprep.subr.mxu0 %v4442
    %4740 = vmatpush1.msra.mxu0 %v4441
    %4741 = vmatprep.subr.mxu0 %v4446
    %4742 = vmatpush1.msra.mxu0 %v4445
    %4743 = vmatprep.subr.mxu0 %v4450
    %4744 = vmatpush1.msra.mxu0 %v4449
    %4745 = vmatprep.subr.mxu0 %v4454
    %4746 = vmatpush1.msra.mxu0 %v4453
    %4747 = vmatprep.subr.mxu0 %v4458
    %4748 = vmatpush1.msra.mxu0 %v4457
    %4749 = vmatprep.subr.mxu0 0.0
    %4750 = vmatpush1.msra.mxu0 0.0
    %4751 = vmatprep.subr.mxu0 0.0
    %4752 = vmatpush1.msra.mxu0 0.0
    %4753 = vmatprep.subr.mxu0 0.0
    %4754 = vmatpush1.msra.mxu0 0.0
    %4755 = vmatprep.subr.mxu0 0.0
    %4756 = vmatpush1.msra.mxu0 0.0
    %4757 = vmatprep.subr.mxu0 0.0
    %4758 = vmatpush1.msra.mxu0 0.0
    %4759 = vmatprep.subr.mxu0 0.0
    %4760 = vmatpush1.msra.mxu0 0.0
    %4761 = vmatprep.subr.mxu0 0.0
    %4762 = vmatpush1.msra.mxu0 0.0
    %4763 = vmatprep.subr.mxu0 0.0
    %4764 = vmatpush1.msra.mxu0 0.0
    %4765 = vmatprep.subr.mxu0 0.0
    %4766 = vmatpush1.msra.mxu0 0.0
    %4767 = vmatprep.subr.mxu0 0.0
    %4768 = vmatpush1.msra.mxu0 0.0
    %4769 = vmatprep.subr.mxu0 0.0
    %4770 = vmatpush1.msra.mxu0 0.0
    %4771 = vmatprep.subr.mxu0 0.0
    %4772 = vmatpush1.msra.mxu0 0.0
    %4773 = vmatprep.subr.mxu0 0.0
    %4774 = vmatpush1.msra.mxu0 0.0
    %4775 = vmatprep.subr.mxu0 0.0
    %4776 = vmatpush1.msra.mxu0 0.0
    %4777 = vmatprep.subr.mxu0 0.0
    %4778 = vmatpush1.msra.mxu0 0.0
    %4779 = vmatprep.subr.mxu0 0.0
    %4780 = vmatpush1.msra.mxu0 0.0
    %4781 = vmatprep.mubr.f32.mxu0 0.0
    %4782 = vmatmul.mubr.f32.gmra.mrb[0].mxu0 %v4620
    %v4783 = vpop.f32.mrb[0].mxu0
    %v4784 = vadd.f32 0.0, %v4783
    %v4785 = vpop.f32.mrb[0].mxu0
    %v4786 = vadd.f32 0.0, %v4785
    %4787 = vmatprep.mubr.f32.mxu0 0.0
    %4788 = vmatmul.mubr.f32.gmra.mrb[0].mxu0 %v4637
    %v4789 = vpop.f32.mrb[0].mxu0
    %v4790 = vadd.f32 0.0, %v4789
    %v4791 = vpop.f32.mrb[0].mxu0
    %v4792 = vadd.f32 0.0, %v4791
    %4793 = vdwg.mxu0
    %4794 = vmatprep.subr.mxu0 %v4460
    %4795 = vmatpush1.msra.mxu0 %v4459
    %4796 = vmatprep.subr.mxu0 %v4464
    %4797 = vmatpush1.msra.mxu0 %v4463
    %4798 = vmatprep.subr.mxu0 %v4468
    %4799 = vmatpush1.msra.mxu0 %v4467
    %4800 = vmatprep.subr.mxu0 %v4472
    %4801 = vmatpush1.msra.mxu0 %v4471
    %4802 = vmatprep.subr.mxu0 %v4476
    %4803 = vmatpush1.msra.mxu0 %v4475
    %4804 = vmatprep.subr.mxu0 %v4480
    %4805 = vmatpush1.msra.mxu0 %v4479
    %4806 = vmatprep.subr.mxu0 %v4484
    %4807 = vmatpush1.msra.mxu0 %v4483
    %4808 = vmatprep.subr.mxu0 %v4488
    %4809 = vmatpush1.msra.mxu0 %v4487
    %4810 = vmatprep.subr.mxu0 %v4492
    %4811 = vmatpush1.msra.mxu0 %v4491
    %4812 = vmatprep.subr.mxu0 %v4496
    %4813 = vmatpush1.msra.mxu0 %v4495
    %4814 = vmatprep.subr.mxu0 %v4500
    %4815 = vmatpush1.msra.mxu0 %v4499
    %4816 = vmatprep.subr.mxu0 %v4504
    %4817 = vmatpush1.msra.mxu0 %v4503
    %4818 = vmatprep.subr.mxu0 %v4508
    %4819 = vmatpush1.msra.mxu0 %v4507
    %4820 = vmatprep.subr.mxu0 %v4512
    %4821 = vmatpush1.msra.mxu0 %v4511
    %4822 = vmatprep.subr.mxu0 %v4516
    %4823 = vmatpush1.msra.mxu0 %v4515
    %4824 = vmatprep.subr.mxu0 %v4520
    %4825 = vmatpush1.msra.mxu0 %v4519
    %4826 = vmatprep.subr.mxu0 0.0
    %4827 = vmatpush1.msra.mxu0 0.0
    %4828 = vmatprep.subr.mxu0 0.0
    %4829 = vmatpush1.msra.mxu0 0.0
    %4830 = vmatprep.subr.mxu0 0.0
    %4831 = vmatpush1.msra.mxu0 0.0
    %4832 = vmatprep.subr.mxu0 0.0
    %4833 = vmatpush1.msra.mxu0 0.0
    %4834 = vmatprep.subr.mxu0 0.0
    %4835 = vmatpush1.msra.mxu0 0.0
    %4836 = vmatprep.subr.mxu0 0.0
    %4837 = vmatpush1.msra.mxu0 0.0
    %4838 = vmatprep.subr.mxu0 0.0
    %4839 = vmatpush1.msra.mxu0 0.0
    %4840 = vmatprep.subr.mxu0 0.0
    %4841 = vmatpush1.msra.mxu0 0.0
    %4842 = vmatprep.subr.mxu0 0.0
    %4843 = vmatpush1.msra.mxu0 0.0
    %4844 = vmatprep.subr.mxu0 0.0
    %4845 = vmatpush1.msra.mxu0 0.0
    %4846 = vmatprep.subr.mxu0 0.0
    %4847 = vmatpush1.msra.mxu0 0.0
    %4848 = vmatprep.subr.mxu0 0.0
    %4849 = vmatpush1.msra.mxu0 0.0
    %4850 = vmatprep.subr.mxu0 0.0
    %4851 = vmatpush1.msra.mxu0 0.0
    %4852 = vmatprep.subr.mxu0 0.0
    %4853 = vmatpush1.msra.mxu0 0.0
    %4854 = vmatprep.subr.mxu0 0.0
    %4855 = vmatpush1.msra.mxu0 0.0
    %4856 = vmatprep.subr.mxu0 0.0
    %4857 = vmatpush1.msra.mxu0 0.0
    %4858 = vmatprep.mubr.f32.mxu0 0.0
    %4859 = vmatmul.mubr.f32.gmra.mrb[0].mxu0 %v4620
    %v4860 = vpop.f32.mrb[0].mxu0
    %v4861 = vadd.f32 0.0, %v4860
    %v4862 = vpop.f32.mrb[0].mxu0
    %v4863 = vadd.f32 0.0, %v4862
    %4864 = vmatprep.mubr.f32.mxu0 0.0
    %4865 = vmatmul.mubr.f32.gmra.mrb[0].mxu0 %v4637
    %v4866 = vpop.f32.mrb[0].mxu0
    %v4867 = vadd.f32 0.0, %v4866
    %v4868 = vpop.f32.mrb[0].mxu0
    %v4869 = vadd.f32 0.0, %v4868
    %4870 = vdwg.mxu0
    %4871 = vmatprep.subr.mxu0 %v4462
    %4872 = vmatpush1.msra.mxu0 %v4461
    %4873 = vmatprep.subr.mxu0 %v4466
    %4874 = vmatpush1.msra.mxu0 %v4465
    %4875 = vmatprep.subr.mxu0 %v4470
    %4876 = vmatpush1.msra.mxu0 %v4469
    %4877 = vmatprep.subr.mxu0 %v4474
    %4878 = vmatpush1.msra.mxu0 %v4473
    %4879 = vmatprep.subr.mxu0 %v4478
    %4880 = vmatpush1.msra.mxu0 %v4477
    %4881 = vmatprep.subr.mxu0 %v4482
    %4882 = vmatpush1.msra.mxu0 %v4481
    %4883 = vmatprep.subr.mxu0 %v4486
    %4884 = vmatpush1.msra.mxu0 %v4485
    %4885 = vmatprep.subr.mxu0 %v4490
    %4886 = vmatpush1.msra.mxu0 %v4489
    %4887 = vmatprep.subr.mxu0 %v4494
    %4888 = vmatpush1.msra.mxu0 %v4493
    %4889 = vmatprep.subr.mxu0 %v4498
    %4890 = vmatpush1.msra.mxu0 %v4497
    %4891 = vmatprep.subr.mxu0 %v4502
    %4892 = vmatpush1.msra.mxu0 %v4501
    %4893 = vmatprep.subr.mxu0 %v4506
    %4894 = vmatpush1.msra.mxu0 %v4505
    %4895 = vmatprep.subr.mxu0 %v4510
    %4896 = vmatpush1.msra.mxu0 %v4509
    %4897 = vmatprep.subr.mxu0 %v4514
    %4898 = vmatpush1.msra.mxu0 %v4513
    %4899 = vmatprep.subr.mxu0 %v4518
    %4900 = vmatpush1.msra.mxu0 %v4517
    %4901 = vmatprep.subr.mxu0 %v4522
    %4902 = vmatpush1.msra.mxu0 %v4521
    %4903 = vmatprep.subr.mxu0 0.0
    %4904 = vmatpush1.msra.mxu0 0.0
    %4905 = vmatprep.subr.mxu0 0.0
    %4906 = vmatpush1.msra.mxu0 0.0
    %4907 = vmatprep.subr.mxu0 0.0
    %4908 = vmatpush1.msra.mxu0 0.0
    %4909 = vmatprep.subr.mxu0 0.0
    %4910 = vmatpush1.msra.mxu0 0.0
    %4911 = vmatprep.subr.mxu0 0.0
    %4912 = vmatpush1.msra.mxu0 0.0
    %4913 = vmatprep.subr.mxu0 0.0
    %4914 = vmatpush1.msra.mxu0 0.0
    %4915 = vmatprep.subr.mxu0 0.0
    %4916 = vmatpush1.msra.mxu0 0.0
    %4917 = vmatprep.subr.mxu0 0.0
    %4918 = vmatpush1.msra.mxu0 0.0
    %4919 = vmatprep.subr.mxu0 0.0
    %4920 = vmatpush1.msra.mxu0 0.0
    %4921 = vmatprep.subr.mxu0 0.0
    %4922 = vmatpush1.msra.mxu0 0.0
    %4923 = vmatprep.subr.mxu0 0.0
    %4924 = vmatpush1.msra.mxu0 0.0
    %4925 = vmatprep.subr.mxu0 0.0
    %4926 = vmatpush1.msra.mxu0 0.0
    %4927 = vmatprep.subr.mxu0 0.0
    %4928 = vmatpush1.msra.mxu0 0.0
    %4929 = vmatprep.subr.mxu0 0.0
    %4930 = vmatpush1.msra.mxu0 0.0
    %4931 = vmatprep.subr.mxu0 0.0
    %4932 = vmatpush1.msra.mxu0 0.0
    %4933 = vmatprep.subr.mxu0 0.0
    %4934 = vmatpush1.msra.mxu0 0.0
    %4935 = vmatprep.mubr.f32.mxu0 0.0
    %4936 = vmatmul.mubr.f32.gmra.mrb[0].mxu0 %v4620
    %v4937 = vpop.f32.mrb[0].mxu0
    %v4938 = vadd.f32 0.0, %v4937
    %v4939 = vpop.f32.mrb[0].mxu0
    %v4940 = vadd.f32 0.0, %v4939
    %4941 = vmatprep.mubr.f32.mxu0 0.0
    %4942 = vmatmul.mubr.f32.gmra.mrb[0].mxu0 %v4637
    %v4943 = vpop.f32.mrb[0].mxu0
    %v4944 = vadd.f32 0.0, %v4943
    %v4945 = vpop.f32.mrb[0].mxu0
    %v4946 = vadd.f32 0.0, %v4945
    %4947 = vdwg.mxu0
    %v4956 = vcombine.low %v4707, %v4709
    %v4957 = vcombine.high %v4707, %v4709
    %v4958 = vcombine.low %v4784, %v4786
    %v4959 = vcombine.high %v4784, %v4786
    %v4961 = vunpack.c.l.s4 1983009808
    %v4962 = vunpack.c.0.s8 %v4961
    %v4963 = vlaneseq
    %v4964 = vshrl.u32 %v4963, 7
    %v4965 = vsub.s32 %v4962, %v4964
    %v4966 = vrot.slane %v4956, %v4965
    %v4968 = vunpack.c.l.s4 1983009808
    %v4969 = vunpack.c.0.s8 %v4968
    %v4970 = vlaneseq
    %v4971 = vshrl.u32 %v4970, 7
    %v4972 = vsub.s32 %v4969, %v4971
    %v4973 = vrot.slane %v4957, %v4972
    %v4975 = vunpack.c.l.s4 1983009808
    %v4976 = vunpack.c.0.s8 %v4975
    %v4977 = vlaneseq
    %v4978 = vshrl.u32 %v4977, 7
    %v4979 = vsub.s32 %v4976, %v4978
    %v4980 = vrot.slane %v4958, %v4979
    %v4982 = vunpack.c.l.s4 1983009808
    %v4983 = vunpack.c.0.s8 %v4982
    %v4984 = vlaneseq
    %v4985 = vshrl.u32 %v4984, 7
    %v4986 = vsub.s32 %v4983, %v4985
    %v4987 = vrot.slane %v4959, %v4986
    %v4988 = vcombine.low %v4966, %v4980
    %v4989 = vcombine.high %v4966, %v4980
    %v4990 = vcombine.low %v4973, %v4987
    %v4991 = vcombine.high %v4973, %v4987
    %v4992 = vcombine.low %v4713, %v4715
    %v4993 = vcombine.high %v4713, %v4715
    %v4994 = vcombine.low %v4790, %v4792
    %v4995 = vcombine.high %v4790, %v4792
    %v4997 = vunpack.c.l.s4 1983009808
    %v4998 = vunpack.c.0.s8 %v4997
    %v4999 = vlaneseq
    %v5000 = vshrl.u32 %v4999, 7
    %v5001 = vsub.s32 %v4998, %v5000
    %v5002 = vrot.slane %v4992, %v5001
    %v5004 = vunpack.c.l.s4 1983009808
    %v5005 = vunpack.c.0.s8 %v5004
    %v5006 = vlaneseq
    %v5007 = vshrl.u32 %v5006, 7
    %v5008 = vsub.s32 %v5005, %v5007
    %v5009 = vrot.slane %v4993, %v5008
    %v5011 = vunpack.c.l.s4 1983009808
    %v5012 = vunpack.c.0.s8 %v5011
    %v5013 = vlaneseq
    %v5014 = vshrl.u32 %v5013, 7
    %v5015 = vsub.s32 %v5012, %v5014
    %v5016 = vrot.slane %v4994, %v5015
    %v5018 = vunpack.c.l.s4 1983009808
    %v5019 = vunpack.c.0.s8 %v5018
    %v5020 = vlaneseq
    %v5021 = vshrl.u32 %v5020, 7
    %v5022 = vsub.s32 %v5019, %v5021
    %v5023 = vrot.slane %v4995, %v5022
    %v5024 = vcombine.low %v5002, %v5016
    %v5025 = vcombine.high %v5002, %v5016
    %v5026 = vcombine.low %v5009, %v5023
    %v5027 = vcombine.high %v5009, %v5023
    %v5044 = vcombine.low %v4861, %v4863
    %v5045 = vcombine.high %v4861, %v4863
    %v5046 = vcombine.low %v4938, %v4940
    %v5047 = vcombine.high %v4938, %v4940
    %v5049 = vunpack.c.l.s4 1983009808
    %v5050 = vunpack.c.0.s8 %v5049
    %v5051 = vlaneseq
    %v5052 = vshrl.u32 %v5051, 7
    %v5053 = vsub.s32 %v5050, %v5052
    %v5054 = vrot.slane %v5044, %v5053
    %v5056 = vunpack.c.l.s4 1983009808
    %v5057 = vunpack.c.0.s8 %v5056
    %v5058 = vlaneseq
    %v5059 = vshrl.u32 %v5058, 7
    %v5060 = vsub.s32 %v5057, %v5059
    %v5061 = vrot.slane %v5045, %v5060
    %v5063 = vunpack.c.l.s4 1983009808
    %v5064 = vunpack.c.0.s8 %v5063
    %v5065 = vlaneseq
    %v5066 = vshrl.u32 %v5065, 7
    %v5067 = vsub.s32 %v5064, %v5066
    %v5068 = vrot.slane %v5046, %v5067
    %v5070 = vunpack.c.l.s4 1983009808
    %v5071 = vunpack.c.0.s8 %v5070
    %v5072 = vlaneseq
    %v5073 = vshrl.u32 %v5072, 7
    %v5074 = vsub.s32 %v5071, %v5073
    %v5075 = vrot.slane %v5047, %v5074
    %v5076 = vcombine.low %v5054, %v5068
    %v5077 = vcombine.high %v5054, %v5068
    %v5078 = vcombine.low %v5061, %v5075
    %v5079 = vcombine.high %v5061, %v5075
    %v5080 = vcombine.low %v4867, %v4869
    %v5081 = vcombine.high %v4867, %v4869
    %v5082 = vcombine.low %v4944, %v4946
    %v5083 = vcombine.high %v4944, %v4946
    %v5085 = vunpack.c.l.s4 1983009808
    %v5086 = vunpack.c.0.s8 %v5085
    %v5087 = vlaneseq
    %v5088 = vshrl.u32 %v5087, 7
    %v5089 = vsub.s32 %v5086, %v5088
    %v5090 = vrot.slane %v5080, %v5089
    %v5092 = vunpack.c.l.s4 1983009808
    %v5093 = vunpack.c.0.s8 %v5092
    %v5094 = vlaneseq
    %v5095 = vshrl.u32 %v5094, 7
    %v5096 = vsub.s32 %v5093, %v5095
    %v5097 = vrot.slane %v5081, %v5096
    %v5099 = vunpack.c.l.s4 1983009808
    %v5100 = vunpack.c.0.s8 %v5099
    %v5101 = vlaneseq
    %v5102 = vshrl.u32 %v5101, 7
    %v5103 = vsub.s32 %v5100, %v5102
    %v5104 = vrot.slane %v5082, %v5103
    %v5106 = vunpack.c.l.s4 1983009808
    %v5107 = vunpack.c.0.s8 %v5106
    %v5108 = vlaneseq
    %v5109 = vshrl.u32 %v5108, 7
    %v5110 = vsub.s32 %v5107, %v5109
    %v5111 = vrot.slane %v5083, %v5110
    %v5112 = vcombine.low %v5090, %v5104
    %v5113 = vcombine.high %v5090, %v5104
    %v5114 = vcombine.low %v5097, %v5111
    %v5115 = vcombine.high %v5097, %v5111
    %v5124 = vadd.f32 %v4988, %v5115
    %v5126 = vlaneseq
    %v5127 = vshrl.u32 %v5126, 7
    %v5128 = vsub.s32 0, %v5127
    %v5129 = vrot.slane %v4587, %v5128
    %v5130 = vlaneseq
    %v5131 = vshrl.u32 %v5130, 7
    %v5132 = vsub.s32 1, %v5131
    %v5133 = vrot.slane %v4587, %v5132
    %v5134 = vlaneseq
    %v5135 = vshrl.u32 %v5134, 7
    %v5136 = vsub.s32 2, %v5135
    %v5137 = vrot.slane %v4587, %v5136
    %v5138 = vlaneseq
    %v5139 = vshrl.u32 %v5138, 7
    %v5140 = vsub.s32 3, %v5139
    %v5141 = vrot.slane %v4587, %v5140
    %v5142 = vcombine.low %v5129, %v5133
    %v5143 = vcombine.low %v5137, %v5141
    %v5145 = vunpack.c.l.s4 1983009808
    %v5146 = vunpack.c.0.s8 %v5145
    %v5147 = vlaneseq
    %v5148 = vshrl.u32 %v5147, 7
    %v5149 = vsub.s32 %v5146, %v5148
    %v5150 = vrot.slane %v5142, %v5149
    %v5152 = vunpack.c.l.s4 1983009808
    %v5153 = vunpack.c.0.s8 %v5152
    %v5154 = vlaneseq
    %v5155 = vshrl.u32 %v5154, 7
    %v5156 = vsub.s32 %v5153, %v5155
    %v5157 = vrot.slane %v5143, %v5156
    %v5158 = vcombine.low %v5150, %v5157
    %v5160 = vadd.f32 %v5124, %v5158
    %5161 = vst [vmem:[#allocation2] sm:$0xff] %v5160
    %v5162 = vadd.f32 %v4989, %v5114
    %v5163 = vadd.f32 %v5162, %v5158
    %5164 = vst [vmem:[%s2698] sm:$0xff] %v5163
    %v5165 = vadd.f32 %v4990, %v5113
    %v5166 = vadd.f32 %v5165, %v5158
    %5167 = vst [vmem:[%s2730] sm:$0xff] %v5166
    %v5168 = vadd.f32 %v4991, %v5112
    %v5169 = vadd.f32 %v5168, %v5158
    %5170 = vst [vmem:[%s2762] sm:$0xff] %v5169
    %v5171 = vadd.f32 %v5024, %v5079
    %v5172 = vadd.f32 %v5171, %v5158
    %5173 = vst [vmem:[%s2794] sm:$0xff] %v5172
    %v5174 = vadd.f32 %v5025, %v5078
    %v5175 = vadd.f32 %v5174, %v5158
    %5176 = vst [vmem:[%s2826] sm:$0xff] %v5175
    %v5177 = vadd.f32 %v5026, %v5077
    %v5178 = vadd.f32 %v5177, %v5158
    %5179 = vst [vmem:[%s2858] sm:$0xff] %v5178
    %v5180 = vadd.f32 %v5027, %v5076
    %v5181 = vadd.f32 %v5180, %v5158
    %5182 = vst [vmem:[%s2890] sm:$0xff] %v5181
    %v5183 = vld [vmem:[#allocation2] sm:$0xff]
    %5184 = vmatprep.subr.mxu0 %v4524
    %5185 = vmatpush1.msra.mxu0 %v4523
    %5186 = vmatprep.subr.mxu0 %v4528
    %5187 = vmatpush1.msra.mxu0 %v4527
    %5188 = vmatprep.subr.mxu0 %v4532
    %5189 = vmatpush1.msra.mxu0 %v4531
    %5190 = vmatprep.subr.mxu0 %v4536
    %5191 = vmatpush1.msra.mxu0 %v4535
    %5192 = vmatprep.subr.mxu0 %v4540
    %5193 = vmatpush1.msra.mxu0 %v4539
    %5194 = vmatprep.subr.mxu0 %v4544
    %5195 = vmatpush1.msra.mxu0 %v4543
    %5196 = vmatprep.subr.mxu0 %v4548
    %5197 = vmatpush1.msra.mxu0 %v4547
    %5198 = vmatprep.subr.mxu0 %v4552
    %5199 = vmatpush1.msra.mxu0 %v4551
    %5200 = vmatprep.subr.mxu0 %v4556
    %5201 = vmatpush1.msra.mxu0 %v4555
    %5202 = vmatprep.subr.mxu0 %v4560
    %5203 = vmatpush1.msra.mxu0 %v4559
    %5204 = vmatprep.subr.mxu0 %v4564
    %5205 = vmatpush1.msra.mxu0 %v4563
    %5206 = vmatprep.subr.mxu0 %v4568
    %5207 = vmatpush1.msra.mxu0 %v4567
    %5208 = vmatprep.subr.mxu0 %v4572
    %5209 = vmatpush1.msra.mxu0 %v4571
    %5210 = vmatprep.subr.mxu0 %v4576
    %5211 = vmatpush1.msra.mxu0 %v4575
    %5212 = vmatprep.subr.mxu0 %v4580
    %5213 = vmatpush1.msra.mxu0 %v4579
    %5214 = vmatprep.subr.mxu0 %v4584
    %5215 = vmatpush1.msra.mxu0 %v4583
    %5216 = vmatprep.subr.mxu0 0.0
    %5217 = vmatpush1.msra.mxu0 0.0
    %5218 = vmatprep.subr.mxu0 0.0
    %5219 = vmatpush1.msra.mxu0 0.0
    %5220 = vmatprep.subr.mxu0 0.0
    %5221 = vmatpush1.msra.mxu0 0.0
    %5222 = vmatprep.subr.mxu0 0.0
    %5223 = vmatpush1.msra.mxu0 0.0
    %5224 = vmatprep.subr.mxu0 0.0
    %5225 = vmatpush1.msra.mxu0 0.0
    %5226 = vmatprep.subr.mxu0 0.0
    %5227 = vmatpush1.msra.mxu0 0.0
    %5228 = vmatprep.subr.mxu0 0.0
    %5229 = vmatpush1.msra.mxu0 0.0
    %5230 = vmatprep.subr.mxu0 0.0
    %5231 = vmatpush1.msra.mxu0 0.0
    %5232 = vmatprep.subr.mxu0 0.0
    %5233 = vmatpush1.msra.mxu0 0.0
    %5234 = vmatprep.subr.mxu0 0.0
    %5235 = vmatpush1.msra.mxu0 0.0
    %5236 = vmatprep.subr.mxu0 0.0
    %5237 = vmatpush1.msra.mxu0 0.0
    %5238 = vmatprep.subr.mxu0 0.0
    %5239 = vmatpush1.msra.mxu0 0.0
    %5240 = vmatprep.subr.mxu0 0.0
    %5241 = vmatpush1.msra.mxu0 0.0
    %5242 = vmatprep.subr.mxu0 0.0
    %5243 = vmatpush1.msra.mxu0 0.0
    %5244 = vmatprep.subr.mxu0 0.0
    %5245 = vmatpush1.msra.mxu0 0.0
    %5246 = vmatprep.subr.mxu0 0.0
    %5247 = vmatpush1.msra.mxu0 0.0
    %5248 = vmatprep.mubr.f32.mxu0 0.0
    %5249 = vmatmul.mubr.f32.gmra.mrb[0].mxu0 0.0
    %v5250 = vpop.f32.mrb[0].mxu0
    %v5251 = vadd.f32 0.0, %v5250
    %v5252 = vpop.f32.mrb[0].mxu0
    %v5253 = vadd.f32 0.0, %v5252
    %5254 = vdwg.mxu0
    %5255 = vmatprep.subr.mxu0 %v4526
    %5256 = vmatpush1.msra.mxu0 %v4525
    %5257 = vmatprep.subr.mxu0 %v4530
    %5258 = vmatpush1.msra.mxu0 %v4529
    %5259 = vmatprep.subr.mxu0 %v4534
    %5260 = vmatpush1.msra.mxu0 %v4533
    %5261 = vmatprep.subr.mxu0 %v4538
    %5262 = vmatpush1.msra.mxu0 %v4537
    %5263 = vmatprep.subr.mxu0 %v4542
    %5264 = vmatpush1.msra.mxu0 %v4541
    %5265 = vmatprep.subr.mxu0 %v4546
    %5266 = vmatpush1.msra.mxu0 %v4545
    %5267 = vmatprep.subr.mxu0 %v4550
    %5268 = vmatpush1.msra.mxu0 %v4549
    %5269 = vmatprep.subr.mxu0 %v4554
    %5270 = vmatpush1.msra.mxu0 %v4553
    %5271 = vmatprep.subr.mxu0 %v4558
    %5272 = vmatpush1.msra.mxu0 %v4557
    %5273 = vmatprep.subr.mxu0 %v4562
    %5274 = vmatpush1.msra.mxu0 %v4561
    %5275 = vmatprep.subr.mxu0 %v4566
    %5276 = vmatpush1.msra.mxu0 %v4565
    %5277 = vmatprep.subr.mxu0 %v4570
    %5278 = vmatpush1.msra.mxu0 %v4569
    %5279 = vmatprep.subr.mxu0 %v4574
    %5280 = vmatpush1.msra.mxu0 %v4573
    %5281 = vmatprep.subr.mxu0 %v4578
    %5282 = vmatpush1.msra.mxu0 %v4577
    %5283 = vmatprep.subr.mxu0 %v4582
    %5284 = vmatpush1.msra.mxu0 %v4581
    %5285 = vmatprep.subr.mxu0 %v4586
    %5286 = vmatpush1.msra.mxu0 %v4585
    %5287 = vmatprep.subr.mxu0 0.0
    %5288 = vmatpush1.msra.mxu0 0.0
    %5289 = vmatprep.subr.mxu0 0.0
    %5290 = vmatpush1.msra.mxu0 0.0
    %5291 = vmatprep.subr.mxu0 0.0
    %5292 = vmatpush1.msra.mxu0 0.0
    %5293 = vmatprep.subr.mxu0 0.0
    %5294 = vmatpush1.msra.mxu0 0.0
    %5295 = vmatprep.subr.mxu0 0.0
    %5296 = vmatpush1.msra.mxu0 0.0
    %5297 = vmatprep.subr.mxu0 0.0
    %5298 = vmatpush1.msra.mxu0 0.0
    %5299 = vmatprep.subr.mxu0 0.0
    %5300 = vmatpush1.msra.mxu0 0.0
    %5301 = vmatprep.subr.mxu0 0.0
    %5302 = vmatpush1.msra.mxu0 0.0
    %5303 = vmatprep.subr.mxu0 0.0
    %5304 = vmatpush1.msra.mxu0 0.0
    %5305 = vmatprep.subr.mxu0 0.0
    %5306 = vmatpush1.msra.mxu0 0.0
    %5307 = vmatprep.subr.mxu0 0.0
    %5308 = vmatpush1.msra.mxu0 0.0
    %5309 = vmatprep.subr.mxu0 0.0
    %5310 = vmatpush1.msra.mxu0 0.0
    %5311 = vmatprep.subr.mxu0 0.0
    %5312 = vmatpush1.msra.mxu0 0.0
    %5313 = vmatprep.subr.mxu0 0.0
    %5314 = vmatpush1.msra.mxu0 0.0
    %5315 = vmatprep.subr.mxu0 0.0
    %5316 = vmatpush1.msra.mxu0 0.0
    %5317 = vmatprep.subr.mxu0 0.0
    %5318 = vmatpush1.msra.mxu0 0.0
    %5319 = vmatprep.mubr.f32.mxu0 0.0
    %5320 = vmatmul.mubr.f32.gmra.mrb[0].mxu0 0.0
    %v5321 = vpop.f32.mrb[0].mxu0
    %v5322 = vadd.f32 0.0, %v5321
    %v5323 = vpop.f32.mrb[0].mxu0
    %v5324 = vadd.f32 0.0, %v5323
    %5325 = vdwg.mxu0
    %v5330 = vcombine.low %v5251, %v5253
    %v5331 = vcombine.low %v5322, %v5324
    %v5333 = vunpack.c.l.s4 1983009808
    %v5334 = vunpack.c.0.s8 %v5333
    %v5335 = vlaneseq
    %v5336 = vshrl.u32 %v5335, 7
    %v5337 = vsub.s32 %v5334, %v5336
    %v5338 = vrot.slane %v5330, %v5337
    %v5340 = vunpack.c.l.s4 1983009808
    %v5341 = vunpack.c.0.s8 %v5340
    %v5342 = vlaneseq
    %v5343 = vshrl.u32 %v5342, 7
    %v5344 = vsub.s32 %v5341, %v5343
    %v5345 = vrot.slane %v5331, %v5344
    %v5346 = vcombine.low %v5338, %v5345
    %v5348 = vadd.f32 %v5183, %v5346
    %v5349 = vxor.u32 %v5348, 2147483648
    %v5350 = vmul.f32 %v5349, 1.442695
    %v5351 = vpow.pop %v5350
    %v5352 = vadd.f32 %v5351, 1.0
    %v5353 = vrcp.pop %v5352
    %v5354 = vmul.f32 1.0, %v5353
    %v5356 = vrot.slane %v5348, 6
    %v5358 = vtanh.pop %v5356
    %v5360 = vrot.slane %v5354, 2
    %v5362 = vmul.f32 %v5360, 0.0
    %v5363 = vmul.f32 %v5354, %v5358
    %v5364 = vadd.f32 %v5362, %v5363
    %v5365 = vtanh.pop %v5364
    %v5366 = vrot.slane %v5354, 4
    %v5368 = vmul.f32 %v5366, %v5365
    %5369 = vst [vmem:[#allocation4] sm:$0x3] %v5368
    %v5370 = vld [vmem:[%s2698] sm:$0xff]
    %5371 = vmatprep.subr.mxu0 %v4524
    %5372 = vmatpush1.msra.mxu0 %v4523
    %5373 = vmatprep.subr.mxu0 %v4528
    %5374 = vmatpush1.msra.mxu0 %v4527
    %5375 = vmatprep.subr.mxu0 %v4532
    %5376 = vmatpush1.msra.mxu0 %v4531
    %5377 = vmatprep.subr.mxu0 %v4536
    %5378 = vmatpush1.msra.mxu0 %v4535
    %5379 = vmatprep.subr.mxu0 %v4540
    %5380 = vmatpush1.msra.mxu0 %v4539
    %5381 = vmatprep.subr.mxu0 %v4544
    %5382 = vmatpush1.msra.mxu0 %v4543
    %5383 = vmatprep.subr.mxu0 %v4548
    %5384 = vmatpush1.msra.mxu0 %v4547
    %5385 = vmatprep.subr.mxu0 %v4552
    %5386 = vmatpush1.msra.mxu0 %v4551
    %5387 = vmatprep.subr.mxu0 %v4556
    %5388 = vmatpush1.msra.mxu0 %v4555
    %5389 = vmatprep.subr.mxu0 %v4560
    %5390 = vmatpush1.msra.mxu0 %v4559
    %5391 = vmatprep.subr.mxu0 %v4564
    %5392 = vmatpush1.msra.mxu0 %v4563
    %5393 = vmatprep.subr.mxu0 %v4568
    %5394 = vmatpush1.msra.mxu0 %v4567
    %5395 = vmatprep.subr.mxu0 %v4572
    %5396 = vmatpush1.msra.mxu0 %v4571
    %5397 = vmatprep.subr.mxu0 %v4576
    %5398 = vmatpush1.msra.mxu0 %v4575
    %5399 = vmatprep.subr.mxu0 %v4580
    %5400 = vmatpush1.msra.mxu0 %v4579
    %5401 = vmatprep.subr.mxu0 %v4584
    %5402 = vmatpush1.msra.mxu0 %v4583
    %5403 = vmatprep.subr.mxu0 0.0
    %5404 = vmatpush1.msra.mxu0 0.0
    %5405 = vmatprep.subr.mxu0 0.0
    %5406 = vmatpush1.msra.mxu0 0.0
    %5407 = vmatprep.subr.mxu0 0.0
    %5408 = vmatpush1.msra.mxu0 0.0
    %5409 = vmatprep.subr.mxu0 0.0
    %5410 = vmatpush1.msra.mxu0 0.0
    %5411 = vmatprep.subr.mxu0 0.0
    %5412 = vmatpush1.msra.mxu0 0.0
    %5413 = vmatprep.subr.mxu0 0.0
    %5414 = vmatpush1.msra.mxu0 0.0
    %5415 = vmatprep.subr.mxu0 0.0
    %5416 = vmatpush1.msra.mxu0 0.0
    %5417 = vmatprep.subr.mxu0 0.0
    %5418 = vmatpush1.msra.mxu0 0.0
    %5419 = vmatprep.subr.mxu0 0.0
    %5420 = vmatpush1.msra.mxu0 0.0
    %5421 = vmatprep.subr.mxu0 0.0
    %5422 = vmatpush1.msra.mxu0 0.0
    %5423 = vmatprep.subr.mxu0 0.0
    %5424 = vmatpush1.msra.mxu0 0.0
    %5425 = vmatprep.subr.mxu0 0.0
    %5426 = vmatpush1.msra.mxu0 0.0
    %5427 = vmatprep.subr.mxu0 0.0
    %5428 = vmatpush1.msra.mxu0 0.0
    %5429 = vmatprep.subr.mxu0 0.0
    %5430 = vmatpush1.msra.mxu0 0.0
    %5431 = vmatprep.subr.mxu0 0.0
    %5432 = vmatpush1.msra.mxu0 0.0
    %5433 = vmatprep.subr.mxu0 0.0
    %5434 = vmatpush1.msra.mxu0 0.0
    %5435 = vmatprep.mubr.f32.mxu0 0.0
    %5436 = vmatmul.mubr.f32.gmra.mrb[0].mxu0 %v5368
    %v5437 = vpop.f32.mrb[0].mxu0
    %v5438 = vadd.f32 0.0, %v5437
    %v5439 = vpop.f32.mrb[0].mxu0
    %v5440 = vadd.f32 0.0, %v5439
    %5441 = vdwg.mxu0
    %5442 = vmatprep.subr.mxu0 %v4526
    %5443 = vmatpush1.msra.mxu0 %v4525
    %5444 = vmatprep.subr.mxu0 %v4530
    %5445 = vmatpush1.msra.mxu0 %v4529
    %5446 = vmatprep.subr.mxu0 %v4534
    %5447 = vmatpush1.msra.mxu0 %v4533
    %5448 = vmatprep.subr.mxu0 %v4538
    %5449 = vmatpush1.msra.mxu0 %v4537
    %5450 = vmatprep.subr.mxu0 %v4542
    %5451 = vmatpush1.msra.mxu0 %v4541
    %5452 = vmatprep.subr.mxu0 %v4546
    %5453 = vmatpush1.msra.mxu0 %v4545
    %5454 = vmatprep.subr.mxu0 %v4550
    %5455 = vmatpush1.msra.mxu0 %v4549
    %5456 = vmatprep.subr.mxu0 %v4554
    %5457 = vmatpush1.msra.mxu0 %v4553
    %5458 = vmatprep.subr.mxu0 %v4558
    %5459 = vmatpush1.msra.mxu0 %v4557
    %5460 = vmatprep.subr.mxu0 %v4562
    %5461 = vmatpush1.msra.mxu0 %v4561
    %5462 = vmatprep.subr.mxu0 %v4566
    %5463 = vmatpush1.msra.mxu0 %v4565
    %5464 = vmatprep.subr.mxu0 %v4570
    %5465 = vmatpush1.msra.mxu0 %v4569
    %5466 = vmatprep.subr.mxu0 %v4574
    %5467 = vmatpush1.msra.mxu0 %v4573
    %5468 = vmatprep.subr.mxu0 %v4578
    %5469 = vmatpush1.msra.mxu0 %v4577
    %5470 = vmatprep.subr.mxu0 %v4582
    %5471 = vmatpush1.msra.mxu0 %v4581
    %5472 = vmatprep.subr.mxu0 %v4586
    %5473 = vmatpush1.msra.mxu0 %v4585
    %5474 = vmatprep.subr.mxu0 0.0
    %5475 = vmatpush1.msra.mxu0 0.0
    %5476 = vmatprep.subr.mxu0 0.0
    %5477 = vmatpush1.msra.mxu0 0.0
    %5478 = vmatprep.subr.mxu0 0.0
    %5479 = vmatpush1.msra.mxu0 0.0
    %5480 = vmatprep.subr.mxu0 0.0
    %5481 = vmatpush1.msra.mxu0 0.0
    %5482 = vmatprep.subr.mxu0 0.0
    %5483 = vmatpush1.msra.mxu0 0.0
    %5484 = vmatprep.subr.mxu0 0.0
    %5485 = vmatpush1.msra.mxu0 0.0
    %5486 = vmatprep.subr.mxu0 0.0
    %5487 = vmatpush1.msra.mxu0 0.0
    %5488 = vmatprep.subr.mxu0 0.0
    %5489 = vmatpush1.msra.mxu0 0.0
    %5490 = vmatprep.subr.mxu0 0.0
    %5491 = vmatpush1.msra.mxu0 0.0
    %5492 = vmatprep.subr.mxu0 0.0
    %5493 = vmatpush1.msra.mxu0 0.0
    %5494 = vmatprep.subr.mxu0 0.0
    %5495 = vmatpush1.msra.mxu0 0.0
    %5496 = vmatprep.subr.mxu0 0.0
    %5497 = vmatpush1.msra.mxu0 0.0
    %5498 = vmatprep.subr.mxu0 0.0
    %5499 = vmatpush1.msra.mxu0 0.0
    %5500 = vmatprep.subr.mxu0 0.0
    %5501 = vmatpush1.msra.mxu0 0.0
    %5502 = vmatprep.subr.mxu0 0.0
    %5503 = vmatpush1.msra.mxu0 0.0
    %5504 = vmatprep.subr.mxu0 0.0
    %5505 = vmatpush1.msra.mxu0 0.0
    %5506 = vmatprep.mubr.f32.mxu0 0.0
    %5507 = vmatmul.mubr.f32.gmra.mrb[0].mxu0 %v5368
    %v5508 = vpop.f32.mrb[0].mxu0
    %v5509 = vadd.f32 0.0, %v5508
    %v5510 = vpop.f32.mrb[0].mxu0
    %v5511 = vadd.f32 0.0, %v5510
    %5512 = vdwg.mxu0
    %v5517 = vcombine.low %v5438, %v5440
    %v5518 = vcombine.low %v5509, %v5511
    %v5520 = vunpack.c.l.s4 1983009808
    %v5521 = vunpack.c.0.s8 %v5520
    %v5522 = vlaneseq
    %v5523 = vshrl.u32 %v5522, 7
    %v5524 = vsub.s32 %v5521, %v5523
    %v5525 = vrot.slane %v5517, %v5524
    %v5527 = vunpack.c.l.s4 1983009808
    %v5528 = vunpack.c.0.s8 %v5527
    %v5529 = vlaneseq
    %v5530 = vshrl.u32 %v5529, 7
    %v5531 = vsub.s32 %v5528, %v5530
    %v5532 = vrot.slane %v5518, %v5531
    %v5533 = vcombine.low %v5525, %v5532
    %v5535 = vadd.f32 %v5370, %v5533
    %v5536 = vxor.u32 %v5535, 2147483648
    %v5537 = vmul.f32 %v5536, 1.442695
    %v5538 = vpow.pop %v5537
    %v5539 = vadd.f32 %v5538, 1.0
    %v5540 = vrcp.pop %v5539
    %v5541 = vmul.f32 1.0, %v5540
    %v5543 = vrot.slane %v5535, 6
    %v5545 = vtanh.pop %v5543
    %v5547 = vrot.slane %v5541, 2
    %v5549 = vmul.f32 %v5547, %v5364
    %v5550 = vmul.f32 %v5541, %v5545
    %v5551 = vadd.f32 %v5549, %v5550
    %v5552 = vtanh.pop %v5551
    %v5553 = vrot.slane %v5541, 4
    %v5555 = vmul.f32 %v5553, %v5552
    %5556 = vst [vmem:[#allocation4 + $0x2] sm:$0x3] %v5555
    %v5557 = vld [vmem:[%s2730] sm:$0xff]
    %5558 = vmatprep.subr.mxu0 %v4524
    %5559 = vmatpush1.msra.mxu0 %v4523
    %5560 = vmatprep.subr.mxu0 %v4528
    %5561 = vmatpush1.msra.mxu0 %v4527
    %5562 = vmatprep.subr.mxu0 %v4532
    %5563 = vmatpush1.msra.mxu0 %v4531
    %5564 = vmatprep.subr.mxu0 %v4536
    %5565 = vmatpush1.msra.mxu0 %v4535
    %5566 = vmatprep.subr.mxu0 %v4540
    %5567 = vmatpush1.msra.mxu0 %v4539
    %5568 = vmatprep.subr.mxu0 %v4544
    %5569 = vmatpush1.msra.mxu0 %v4543
    %5570 = vmatprep.subr.mxu0 %v4548
    %5571 = vmatpush1.msra.mxu0 %v4547
    %5572 = vmatprep.subr.mxu0 %v4552
    %5573 = vmatpush1.msra.mxu0 %v4551
    %5574 = vmatprep.subr.mxu0 %v4556
    %5575 = vmatpush1.msra.mxu0 %v4555
    %5576 = vmatprep.subr.mxu0 %v4560
    %5577 = vmatpush1.msra.mxu0 %v4559
    %5578 = vmatprep.subr.mxu0 %v4564
    %5579 = vmatpush1.msra.mxu0 %v4563
    %5580 = vmatprep.subr.mxu0 %v4568
    %5581 = vmatpush1.msra.mxu0 %v4567
    %5582 = vmatprep.subr.mxu0 %v4572
    %5583 = vmatpush1.msra.mxu0 %v4571
    %5584 = vmatprep.subr.mxu0 %v4576
    %5585 = vmatpush1.msra.mxu0 %v4575
    %5586 = vmatprep.subr.mxu0 %v4580
    %5587 = vmatpush1.msra.mxu0 %v4579
    %5588 = vmatprep.subr.mxu0 %v4584
    %5589 = vmatpush1.msra.mxu0 %v4583
    %5590 = vmatprep.subr.mxu0 0.0
    %5591 = vmatpush1.msra.mxu0 0.0
    %5592 = vmatprep.subr.mxu0 0.0
    %5593 = vmatpush1.msra.mxu0 0.0
    %5594 = vmatprep.subr.mxu0 0.0
    %5595 = vmatpush1.msra.mxu0 0.0
    %5596 = vmatprep.subr.mxu0 0.0
    %5597 = vmatpush1.msra.mxu0 0.0
    %5598 = vmatprep.subr.mxu0 0.0
    %5599 = vmatpush1.msra.mxu0 0.0
    %5600 = vmatprep.subr.mxu0 0.0
    %5601 = vmatpush1.msra.mxu0 0.0
    %5602 = vmatprep.subr.mxu0 0.0
    %5603 = vmatpush1.msra.mxu0 0.0
    %5604 = vmatprep.subr.mxu0 0.0
    %5605 = vmatpush1.msra.mxu0 0.0
    %5606 = vmatprep.subr.mxu0 0.0
    %5607 = vmatpush1.msra.mxu0 0.0
    %5608 = vmatprep.subr.mxu0 0.0
    %5609 = vmatpush1.msra.mxu0 0.0
    %5610 = vmatprep.subr.mxu0 0.0
    %5611 = vmatpush1.msra.mxu0 0.0
    %5612 = vmatprep.subr.mxu0 0.0
    %5613 = vmatpush1.msra.mxu0 0.0
    %5614 = vmatprep.subr.mxu0 0.0
    %5615 = vmatpush1.msra.mxu0 0.0
    %5616 = vmatprep.subr.mxu0 0.0
    %5617 = vmatpush1.msra.mxu0 0.0
    %5618 = vmatprep.subr.mxu0 0.0
    %5619 = vmatpush1.msra.mxu0 0.0
    %5620 = vmatprep.subr.mxu0 0.0
    %5621 = vmatpush1.msra.mxu0 0.0
    %5622 = vmatprep.mubr.f32.mxu0 0.0
    %5623 = vmatmul.mubr.f32.gmra.mrb[0].mxu0 %v5555
    %v5624 = vpop.f32.mrb[0].mxu0
    %v5625 = vadd.f32 0.0, %v5624
    %v5626 = vpop.f32.mrb[0].mxu0
    %v5627 = vadd.f32 0.0, %v5626
    %5628 = vdwg.mxu0
    %5629 = vmatprep.subr.mxu0 %v4526
    %5630 = vmatpush1.msra.mxu0 %v4525
    %5631 = vmatprep.subr.mxu0 %v4530
    %5632 = vmatpush1.msra.mxu0 %v4529
    %5633 = vmatprep.subr.mxu0 %v4534
    %5634 = vmatpush1.msra.mxu0 %v4533
    %5635 = vmatprep.subr.mxu0 %v4538
    %5636 = vmatpush1.msra.mxu0 %v4537
    %5637 = vmatprep.subr.mxu0 %v4542
    %5638 = vmatpush1.msra.mxu0 %v4541
    %5639 = vmatprep.subr.mxu0 %v4546
    %5640 = vmatpush1.msra.mxu0 %v4545
    %5641 = vmatprep.subr.mxu0 %v4550
    %5642 = vmatpush1.msra.mxu0 %v4549
    %5643 = vmatprep.subr.mxu0 %v4554
    %5644 = vmatpush1.msra.mxu0 %v4553
    %5645 = vmatprep.subr.mxu0 %v4558
    %5646 = vmatpush1.msra.mxu0 %v4557
    %5647 = vmatprep.subr.mxu0 %v4562
    %5648 = vmatpush1.msra.mxu0 %v4561
    %5649 = vmatprep.subr.mxu0 %v4566
    %5650 = vmatpush1.msra.mxu0 %v4565
    %5651 = vmatprep.subr.mxu0 %v4570
    %5652 = vmatpush1.msra.mxu0 %v4569
    %5653 = vmatprep.subr.mxu0 %v4574
    %5654 = vmatpush1.msra.mxu0 %v4573
    %5655 = vmatprep.subr.mxu0 %v4578
    %5656 = vmatpush1.msra.mxu0 %v4577
    %5657 = vmatprep.subr.mxu0 %v4582
    %5658 = vmatpush1.msra.mxu0 %v4581
    %5659 = vmatprep.subr.mxu0 %v4586
    %5660 = vmatpush1.msra.mxu0 %v4585
    %5661 = vmatprep.subr.mxu0 0.0
    %5662 = vmatpush1.msra.mxu0 0.0
    %5663 = vmatprep.subr.mxu0 0.0
    %5664 = vmatpush1.msra.mxu0 0.0
    %5665 = vmatprep.subr.mxu0 0.0
    %5666 = vmatpush1.msra.mxu0 0.0
    %5667 = vmatprep.subr.mxu0 0.0
    %5668 = vmatpush1.msra.mxu0 0.0
    %5669 = vmatprep.subr.mxu0 0.0
    %5670 = vmatpush1.msra.mxu0 0.0
    %5671 = vmatprep.subr.mxu0 0.0
    %5672 = vmatpush1.msra.mxu0 0.0
    %5673 = vmatprep.subr.mxu0 0.0
    %5674 = vmatpush1.msra.mxu0 0.0
    %5675 = vmatprep.subr.mxu0 0.0
    %5676 = vmatpush1.msra.mxu0 0.0
    %5677 = vmatprep.subr.mxu0 0.0
    %5678 = vmatpush1.msra.mxu0 0.0
    %5679 = vmatprep.subr.mxu0 0.0
    %5680 = vmatpush1.msra.mxu0 0.0
    %5681 = vmatprep.subr.mxu0 0.0
    %5682 = vmatpush1.msra.mxu0 0.0
    %5683 = vmatprep.subr.mxu0 0.0
    %5684 = vmatpush1.msra.mxu0 0.0
    %5685 = vmatprep.subr.mxu0 0.0
    %5686 = vmatpush1.msra.mxu0 0.0
    %5687 = vmatprep.subr.mxu0 0.0
    %5688 = vmatpush1.msra.mxu0 0.0
    %5689 = vmatprep.subr.mxu0 0.0
    %5690 = vmatpush1.msra.mxu0 0.0
    %5691 = vmatprep.subr.mxu0 0.0
    %5692 = vmatpush1.msra.mxu0 0.0
    %5693 = vmatprep.mubr.f32.mxu0 0.0
    %5694 = vmatmul.mubr.f32.gmra.mrb[0].mxu0 %v5555
    %v5695 = vpop.f32.mrb[0].mxu0
    %v5696 = vadd.f32 0.0, %v5695
    %v5697 = vpop.f32.mrb[0].mxu0
    %v5698 = vadd.f32 0.0, %v5697
    %5699 = vdwg.mxu0
    %v5704 = vcombine.low %v5625, %v5627
    %v5705 = vcombine.low %v5696, %v5698
    %v5707 = vunpack.c.l.s4 1983009808
    %v5708 = vunpack.c.0.s8 %v5707
    %v5709 = vlaneseq
    %v5710 = vshrl.u32 %v5709, 7
    %v5711 = vsub.s32 %v5708, %v5710
    %v5712 = vrot.slane %v5704, %v5711
    %v5714 = vunpack.c.l.s4 1983009808
    %v5715 = vunpack.c.0.s8 %v5714
    %v5716 = vlaneseq
    %v5717 = vshrl.u32 %v5716, 7
    %v5718 = vsub.s32 %v5715, %v5717
    %v5719 = vrot.slane %v5705, %v5718
    %v5720 = vcombine.low %v5712, %v5719
    %v5722 = vadd.f32 %v5557, %v5720
    %v5723 = vxor.u32 %v5722, 2147483648
    %v5724 = vmul.f32 %v5723, 1.442695
    %v5725 = vpow.pop %v5724
    %v5726 = vadd.f32 %v5725, 1.0
    %v5727 = vrcp.pop %v5726
    %v5728 = vmul.f32 1.0, %v5727
    %v5730 = vrot.slane %v5722, 6
    %v5732 = vtanh.pop %v5730
    %v5734 = vrot.slane %v5728, 2
    %v5736 = vmul.f32 %v5734, %v5551
    %v5737 = vmul.f32 %v5728, %v5732
    %v5738 = vadd.f32 %v5736, %v5737
    %v5739 = vtanh.pop %v5738
    %v5740 = vrot.slane %v5728, 4
    %v5742 = vmul.f32 %v5740, %v5739
    %5743 = vst [vmem:[#allocation4 + $0x4] sm:$0x3] %v5742
    %v5744 = vld [vmem:[%s2762] sm:$0xff]
    %5745 = vmatprep.subr.mxu0 %v4524
    %5746 = vmatpush1.msra.mxu0 %v4523
    %5747 = vmatprep.subr.mxu0 %v4528
    %5748 = vmatpush1.msra.mxu0 %v4527
    %5749 = vmatprep.subr.mxu0 %v4532
    %5750 = vmatpush1.msra.mxu0 %v4531
    %5751 = vmatprep.subr.mxu0 %v4536
    %5752 = vmatpush1.msra.mxu0 %v4535
    %5753 = vmatprep.subr.mxu0 %v4540
    %5754 = vmatpush1.msra.mxu0 %v4539
    %5755 = vmatprep.subr.mxu0 %v4544
    %5756 = vmatpush1.msra.mxu0 %v4543
    %5757 = vmatprep.subr.mxu0 %v4548
    %5758 = vmatpush1.msra.mxu0 %v4547
    %5759 = vmatprep.subr.mxu0 %v4552
    %5760 = vmatpush1.msra.mxu0 %v4551
    %5761 = vmatprep.subr.mxu0 %v4556
    %5762 = vmatpush1.msra.mxu0 %v4555
    %5763 = vmatprep.subr.mxu0 %v4560
    %5764 = vmatpush1.msra.mxu0 %v4559
    %5765 = vmatprep.subr.mxu0 %v4564
    %5766 = vmatpush1.msra.mxu0 %v4563
    %5767 = vmatprep.subr.mxu0 %v4568
    %5768 = vmatpush1.msra.mxu0 %v4567
    %5769 = vmatprep.subr.mxu0 %v4572
    %5770 = vmatpush1.msra.mxu0 %v4571
    %5771 = vmatprep.subr.mxu0 %v4576
    %5772 = vmatpush1.msra.mxu0 %v4575
    %5773 = vmatprep.subr.mxu0 %v4580
    %5774 = vmatpush1.msra.mxu0 %v4579
    %5775 = vmatprep.subr.mxu0 %v4584
    %5776 = vmatpush1.msra.mxu0 %v4583
    %5777 = vmatprep.subr.mxu0 0.0
    %5778 = vmatpush1.msra.mxu0 0.0
    %5779 = vmatprep.subr.mxu0 0.0
    %5780 = vmatpush1.msra.mxu0 0.0
    %5781 = vmatprep.subr.mxu0 0.0
    %5782 = vmatpush1.msra.mxu0 0.0
    %5783 = vmatprep.subr.mxu0 0.0
    %5784 = vmatpush1.msra.mxu0 0.0
    %5785 = vmatprep.subr.mxu0 0.0
    %5786 = vmatpush1.msra.mxu0 0.0
    %5787 = vmatprep.subr.mxu0 0.0
    %5788 = vmatpush1.msra.mxu0 0.0
    %5789 = vmatprep.subr.mxu0 0.0
    %5790 = vmatpush1.msra.mxu0 0.0
    %5791 = vmatprep.subr.mxu0 0.0
    %5792 = vmatpush1.msra.mxu0 0.0
    %5793 = vmatprep.subr.mxu0 0.0
    %5794 = vmatpush1.msra.mxu0 0.0
    %5795 = vmatprep.subr.mxu0 0.0
    %5796 = vmatpush1.msra.mxu0 0.0
    %5797 = vmatprep.subr.mxu0 0.0
    %5798 = vmatpush1.msra.mxu0 0.0
    %5799 = vmatprep.subr.mxu0 0.0
    %5800 = vmatpush1.msra.mxu0 0.0
    %5801 = vmatprep.subr.mxu0 0.0
    %5802 = vmatpush1.msra.mxu0 0.0
    %5803 = vmatprep.subr.mxu0 0.0
    %5804 = vmatpush1.msra.mxu0 0.0
    %5805 = vmatprep.subr.mxu0 0.0
    %5806 = vmatpush1.msra.mxu0 0.0
    %5807 = vmatprep.subr.mxu0 0.0
    %5808 = vmatpush1.msra.mxu0 0.0
    %5809 = vmatprep.mubr.f32.mxu0 0.0
    %5810 = vmatmul.mubr.f32.gmra.mrb[0].mxu0 %v5742
    %v5811 = vpop.f32.mrb[0].mxu0
    %v5812 = vadd.f32 0.0, %v5811
    %v5813 = vpop.f32.mrb[0].mxu0
    %v5814 = vadd.f32 0.0, %v5813
    %5815 = vdwg.mxu0
    %5816 = vmatprep.subr.mxu0 %v4526
    %5817 = vmatpush1.msra.mxu0 %v4525
    %5818 = vmatprep.subr.mxu0 %v4530
    %5819 = vmatpush1.msra.mxu0 %v4529
    %5820 = vmatprep.subr.mxu0 %v4534
    %5821 = vmatpush1.msra.mxu0 %v4533
    %5822 = vmatprep.subr.mxu0 %v4538
    %5823 = vmatpush1.msra.mxu0 %v4537
    %5824 = vmatprep.subr.mxu0 %v4542
    %5825 = vmatpush1.msra.mxu0 %v4541
    %5826 = vmatprep.subr.mxu0 %v4546
    %5827 = vmatpush1.msra.mxu0 %v4545
    %5828 = vmatprep.subr.mxu0 %v4550
    %5829 = vmatpush1.msra.mxu0 %v4549
    %5830 = vmatprep.subr.mxu0 %v4554
    %5831 = vmatpush1.msra.mxu0 %v4553
    %5832 = vmatprep.subr.mxu0 %v4558
    %5833 = vmatpush1.msra.mxu0 %v4557
    %5834 = vmatprep.subr.mxu0 %v4562
    %5835 = vmatpush1.msra.mxu0 %v4561
    %5836 = vmatprep.subr.mxu0 %v4566
    %5837 = vmatpush1.msra.mxu0 %v4565
    %5838 = vmatprep.subr.mxu0 %v4570
    %5839 = vmatpush1.msra.mxu0 %v4569
    %5840 = vmatprep.subr.mxu0 %v4574
    %5841 = vmatpush1.msra.mxu0 %v4573
    %5842 = vmatprep.subr.mxu0 %v4578
    %5843 = vmatpush1.msra.mxu0 %v4577
    %5844 = vmatprep.subr.mxu0 %v4582
    %5845 = vmatpush1.msra.mxu0 %v4581
    %5846 = vmatprep.subr.mxu0 %v4586
    %5847 = vmatpush1.msra.mxu0 %v4585
    %5848 = vmatprep.subr.mxu0 0.0
    %5849 = vmatpush1.msra.mxu0 0.0
    %5850 = vmatprep.subr.mxu0 0.0
    %5851 = vmatpush1.msra.mxu0 0.0
    %5852 = vmatprep.subr.mxu0 0.0
    %5853 = vmatpush1.msra.mxu0 0.0
    %5854 = vmatprep.subr.mxu0 0.0
    %5855 = vmatpush1.msra.mxu0 0.0
    %5856 = vmatprep.subr.mxu0 0.0
    %5857 = vmatpush1.msra.mxu0 0.0
    %5858 = vmatprep.subr.mxu0 0.0
    %5859 = vmatpush1.msra.mxu0 0.0
    %5860 = vmatprep.subr.mxu0 0.0
    %5861 = vmatpush1.msra.mxu0 0.0
    %5862 = vmatprep.subr.mxu0 0.0
    %5863 = vmatpush1.msra.mxu0 0.0
    %5864 = vmatprep.subr.mxu0 0.0
    %5865 = vmatpush1.msra.mxu0 0.0
    %5866 = vmatprep.subr.mxu0 0.0
    %5867 = vmatpush1.msra.mxu0 0.0
    %5868 = vmatprep.subr.mxu0 0.0
    %5869 = vmatpush1.msra.mxu0 0.0
    %5870 = vmatprep.subr.mxu0 0.0
    %5871 = vmatpush1.msra.mxu0 0.0
    %5872 = vmatprep.subr.mxu0 0.0
    %5873 = vmatpush1.msra.mxu0 0.0
    %5874 = vmatprep.subr.mxu0 0.0
    %5875 = vmatpush1.msra.mxu0 0.0
    %5876 = vmatprep.subr.mxu0 0.0
    %5877 = vmatpush1.msra.mxu0 0.0
    %5878 = vmatprep.subr.mxu0 0.0
    %5879 = vmatpush1.msra.mxu0 0.0
    %5880 = vmatprep.mubr.f32.mxu0 0.0
    %5881 = vmatmul.mubr.f32.gmra.mrb[0].mxu0 %v5742
    %v5882 = vpop.f32.mrb[0].mxu0
    %v5883 = vadd.f32 0.0, %v5882
    %v5884 = vpop.f32.mrb[0].mxu0
    %v5885 = vadd.f32 0.0, %v5884
    %5886 = vdwg.mxu0
    %v5891 = vcombine.low %v5812, %v5814
    %v5892 = vcombine.low %v5883, %v5885
    %v5894 = vunpack.c.l.s4 1983009808
    %v5895 = vunpack.c.0.s8 %v5894
    %v5896 = vlaneseq
    %v5897 = vshrl.u32 %v5896, 7
    %v5898 = vsub.s32 %v5895, %v5897
    %v5899 = vrot.slane %v5891, %v5898
    %v5901 = vunpack.c.l.s4 1983009808
    %v5902 = vunpack.c.0.s8 %v5901
    %v5903 = vlaneseq
    %v5904 = vshrl.u32 %v5903, 7
    %v5905 = vsub.s32 %v5902, %v5904
    %v5906 = vrot.slane %v5892, %v5905
    %v5907 = vcombine.low %v5899, %v5906
    %v5909 = vadd.f32 %v5744, %v5907
    %v5910 = vxor.u32 %v5909, 2147483648
    %v5911 = vmul.f32 %v5910, 1.442695
    %v5912 = vpow.pop %v5911
    %v5913 = vadd.f32 %v5912, 1.0
    %v5914 = vrcp.pop %v5913
    %v5915 = vmul.f32 1.0, %v5914
    %v5917 = vrot.slane %v5909, 6
    %v5919 = vtanh.pop %v5917
    %v5921 = vrot.slane %v5915, 2
    %v5923 = vmul.f32 %v5921, %v5738
    %v5924 = vmul.f32 %v5915, %v5919
    %v5925 = vadd.f32 %v5923, %v5924
    %v5926 = vtanh.pop %v5925
    %v5927 = vrot.slane %v5915, 4
    %v5929 = vmul.f32 %v5927, %v5926
    %5930 = vst [vmem:[#allocation4 + $0x6] sm:$0x3] %v5929
    %v5931 = vld [vmem:[%s2794] sm:$0xff]
    %5932 = vmatprep.subr.mxu0 %v4524
    %5933 = vmatpush1.msra.mxu0 %v4523
    %5934 = vmatprep.subr.mxu0 %v4528
    %5935 = vmatpush1.msra.mxu0 %v4527
    %5936 = vmatprep.subr.mxu0 %v4532
    %5937 = vmatpush1.msra.mxu0 %v4531
    %5938 = vmatprep.subr.mxu0 %v4536
    %5939 = vmatpush1.msra.mxu0 %v4535
    %5940 = vmatprep.subr.mxu0 %v4540
    %5941 = vmatpush1.msra.mxu0 %v4539
    %5942 = vmatprep.subr.mxu0 %v4544
    %5943 = vmatpush1.msra.mxu0 %v4543
    %5944 = vmatprep.subr.mxu0 %v4548
    %5945 = vmatpush1.msra.mxu0 %v4547
    %5946 = vmatprep.subr.mxu0 %v4552
    %5947 = vmatpush1.msra.mxu0 %v4551
    %5948 = vmatprep.subr.mxu0 %v4556
    %5949 = vmatpush1.msra.mxu0 %v4555
    %5950 = vmatprep.subr.mxu0 %v4560
    %5951 = vmatpush1.msra.mxu0 %v4559
    %5952 = vmatprep.subr.mxu0 %v4564
    %5953 = vmatpush1.msra.mxu0 %v4563
    %5954 = vmatprep.subr.mxu0 %v4568
    %5955 = vmatpush1.msra.mxu0 %v4567
    %5956 = vmatprep.subr.mxu0 %v4572
    %5957 = vmatpush1.msra.mxu0 %v4571
    %5958 = vmatprep.subr.mxu0 %v4576
    %5959 = vmatpush1.msra.mxu0 %v4575
    %5960 = vmatprep.subr.mxu0 %v4580
    %5961 = vmatpush1.msra.mxu0 %v4579
    %5962 = vmatprep.subr.mxu0 %v4584
    %5963 = vmatpush1.msra.mxu0 %v4583
    %5964 = vmatprep.subr.mxu0 0.0
    %5965 = vmatpush1.msra.mxu0 0.0
    %5966 = vmatprep.subr.mxu0 0.0
    %5967 = vmatpush1.msra.mxu0 0.0
    %5968 = vmatprep.subr.mxu0 0.0
    %5969 = vmatpush1.msra.mxu0 0.0
    %5970 = vmatprep.subr.mxu0 0.0
    %5971 = vmatpush1.msra.mxu0 0.0
    %5972 = vmatprep.subr.mxu0 0.0
    %5973 = vmatpush1.msra.mxu0 0.0
    %5974 = vmatprep.subr.mxu0 0.0
    %5975 = vmatpush1.msra.mxu0 0.0
    %5976 = vmatprep.subr.mxu0 0.0
    %5977 = vmatpush1.msra.mxu0 0.0
    %5978 = vmatprep.subr.mxu0 0.0
    %5979 = vmatpush1.msra.mxu0 0.0
    %5980 = vmatprep.subr.mxu0 0.0
    %5981 = vmatpush1.msra.mxu0 0.0
    %5982 = vmatprep.subr.mxu0 0.0
    %5983 = vmatpush1.msra.mxu0 0.0
    %5984 = vmatprep.subr.mxu0 0.0
    %5985 = vmatpush1.msra.mxu0 0.0
    %5986 = vmatprep.subr.mxu0 0.0
    %5987 = vmatpush1.msra.mxu0 0.0
    %5988 = vmatprep.subr.mxu0 0.0
    %5989 = vmatpush1.msra.mxu0 0.0
    %5990 = vmatprep.subr.mxu0 0.0
    %5991 = vmatpush1.msra.mxu0 0.0
    %5992 = vmatprep.subr.mxu0 0.0
    %5993 = vmatpush1.msra.mxu0 0.0
    %5994 = vmatprep.subr.mxu0 0.0
    %5995 = vmatpush1.msra.mxu0 0.0
    %5996 = vmatprep.mubr.f32.mxu0 0.0
    %5997 = vmatmul.mubr.f32.gmra.mrb[0].mxu0 %v5929
    %v5998 = vpop.f32.mrb[0].mxu0
    %v5999 = vadd.f32 0.0, %v5998
    %v6000 = vpop.f32.mrb[0].mxu0
    %v6001 = vadd.f32 0.0, %v6000
    %6002 = vdwg.mxu0
    %6003 = vmatprep.subr.mxu0 %v4526
    %6004 = vmatpush1.msra.mxu0 %v4525
    %6005 = vmatprep.subr.mxu0 %v4530
    %6006 = vmatpush1.msra.mxu0 %v4529
    %6007 = vmatprep.subr.mxu0 %v4534
    %6008 = vmatpush1.msra.mxu0 %v4533
    %6009 = vmatprep.subr.mxu0 %v4538
    %6010 = vmatpush1.msra.mxu0 %v4537
    %6011 = vmatprep.subr.mxu0 %v4542
    %6012 = vmatpush1.msra.mxu0 %v4541
    %6013 = vmatprep.subr.mxu0 %v4546
    %6014 = vmatpush1.msra.mxu0 %v4545
    %6015 = vmatprep.subr.mxu0 %v4550
    %6016 = vmatpush1.msra.mxu0 %v4549
    %6017 = vmatprep.subr.mxu0 %v4554
    %6018 = vmatpush1.msra.mxu0 %v4553
    %6019 = vmatprep.subr.mxu0 %v4558
    %6020 = vmatpush1.msra.mxu0 %v4557
    %6021 = vmatprep.subr.mxu0 %v4562
    %6022 = vmatpush1.msra.mxu0 %v4561
    %6023 = vmatprep.subr.mxu0 %v4566
    %6024 = vmatpush1.msra.mxu0 %v4565
    %6025 = vmatprep.subr.mxu0 %v4570
    %6026 = vmatpush1.msra.mxu0 %v4569
    %6027 = vmatprep.subr.mxu0 %v4574
    %6028 = vmatpush1.msra.mxu0 %v4573
    %6029 = vmatprep.subr.mxu0 %v4578
    %6030 = vmatpush1.msra.mxu0 %v4577
    %6031 = vmatprep.subr.mxu0 %v4582
    %6032 = vmatpush1.msra.mxu0 %v4581
    %6033 = vmatprep.subr.mxu0 %v4586
    %6034 = vmatpush1.msra.mxu0 %v4585
    %6035 = vmatprep.subr.mxu0 0.0
    %6036 = vmatpush1.msra.mxu0 0.0
    %6037 = vmatprep.subr.mxu0 0.0
    %6038 = vmatpush1.msra.mxu0 0.0
    %6039 = vmatprep.subr.mxu0 0.0
    %6040 = vmatpush1.msra.mxu0 0.0
    %6041 = vmatprep.subr.mxu0 0.0
    %6042 = vmatpush1.msra.mxu0 0.0
    %6043 = vmatprep.subr.mxu0 0.0
    %6044 = vmatpush1.msra.mxu0 0.0
    %6045 = vmatprep.subr.mxu0 0.0
    %6046 = vmatpush1.msra.mxu0 0.0
    %6047 = vmatprep.subr.mxu0 0.0
    %6048 = vmatpush1.msra.mxu0 0.0
    %6049 = vmatprep.subr.mxu0 0.0
    %6050 = vmatpush1.msra.mxu0 0.0
    %6051 = vmatprep.subr.mxu0 0.0
    %6052 = vmatpush1.msra.mxu0 0.0
    %6053 = vmatprep.subr.mxu0 0.0
    %6054 = vmatpush1.msra.mxu0 0.0
    %6055 = vmatprep.subr.mxu0 0.0
    %6056 = vmatpush1.msra.mxu0 0.0
    %6057 = vmatprep.subr.mxu0 0.0
    %6058 = vmatpush1.msra.mxu0 0.0
    %6059 = vmatprep.subr.mxu0 0.0
    %6060 = vmatpush1.msra.mxu0 0.0
    %6061 = vmatprep.subr.mxu0 0.0
    %6062 = vmatpush1.msra.mxu0 0.0
    %6063 = vmatprep.subr.mxu0 0.0
    %6064 = vmatpush1.msra.mxu0 0.0
    %6065 = vmatprep.subr.mxu0 0.0
    %6066 = vmatpush1.msra.mxu0 0.0
    %6067 = vmatprep.mubr.f32.mxu0 0.0
    %6068 = vmatmul.mubr.f32.gmra.mrb[0].mxu0 %v5929
    %v6069 = vpop.f32.mrb[0].mxu0
    %v6070 = vadd.f32 0.0, %v6069
    %v6071 = vpop.f32.mrb[0].mxu0
    %v6072 = vadd.f32 0.0, %v6071
    %6073 = vdwg.mxu0
    %v6078 = vcombine.low %v5999, %v6001
    %v6079 = vcombine.low %v6070, %v6072
    %v6081 = vunpack.c.l.s4 1983009808
    %v6082 = vunpack.c.0.s8 %v6081
    %v6083 = vlaneseq
    %v6084 = vshrl.u32 %v6083, 7
    %v6085 = vsub.s32 %v6082, %v6084
    %v6086 = vrot.slane %v6078, %v6085
    %v6088 = vunpack.c.l.s4 1983009808
    %v6089 = vunpack.c.0.s8 %v6088
    %v6090 = vlaneseq
    %v6091 = vshrl.u32 %v6090, 7
    %v6092 = vsub.s32 %v6089, %v6091
    %v6093 = vrot.slane %v6079, %v6092
    %v6094 = vcombine.low %v6086, %v6093
    %v6096 = vadd.f32 %v5931, %v6094
    %v6097 = vxor.u32 %v6096, 2147483648
    %v6098 = vmul.f32 %v6097, 1.442695
    %v6099 = vpow.pop %v6098
    %v6100 = vadd.f32 %v6099, 1.0
    %v6101 = vrcp.pop %v6100
    %v6102 = vmul.f32 1.0, %v6101
    %v6104 = vrot.slane %v6096, 6
    %v6106 = vtanh.pop %v6104
    %v6108 = vrot.slane %v6102, 2
    %v6110 = vmul.f32 %v6108, %v5925
    %v6111 = vmul.f32 %v6102, %v6106
    %v6112 = vadd.f32 %v6110, %v6111
    %v6113 = vtanh.pop %v6112
    %v6114 = vrot.slane %v6102, 4
    %v6116 = vmul.f32 %v6114, %v6113
    %6117 = vst [vmem:[#allocation4 + $0x8] sm:$0x3] %v6116
    %v6118 = vld [vmem:[%s2826] sm:$0xff]
    %6119 = vmatprep.subr.mxu0 %v4524
    %6120 = vmatpush1.msra.mxu0 %v4523
    %6121 = vmatprep.subr.mxu0 %v4528
    %6122 = vmatpush1.msra.mxu0 %v4527
    %6123 = vmatprep.subr.mxu0 %v4532
    %6124 = vmatpush1.msra.mxu0 %v4531
    %6125 = vmatprep.subr.mxu0 %v4536
    %6126 = vmatpush1.msra.mxu0 %v4535
    %6127 = vmatprep.subr.mxu0 %v4540
    %6128 = vmatpush1.msra.mxu0 %v4539
    %6129 = vmatprep.subr.mxu0 %v4544
    %6130 = vmatpush1.msra.mxu0 %v4543
    %6131 = vmatprep.subr.mxu0 %v4548
    %6132 = vmatpush1.msra.mxu0 %v4547
    %6133 = vmatprep.subr.mxu0 %v4552
    %6134 = vmatpush1.msra.mxu0 %v4551
    %6135 = vmatprep.subr.mxu0 %v4556
    %6136 = vmatpush1.msra.mxu0 %v4555
    %6137 = vmatprep.subr.mxu0 %v4560
    %6138 = vmatpush1.msra.mxu0 %v4559
    %6139 = vmatprep.subr.mxu0 %v4564
    %6140 = vmatpush1.msra.mxu0 %v4563
    %6141 = vmatprep.subr.mxu0 %v4568
    %6142 = vmatpush1.msra.mxu0 %v4567
    %6143 = vmatprep.subr.mxu0 %v4572
    %6144 = vmatpush1.msra.mxu0 %v4571
    %6145 = vmatprep.subr.mxu0 %v4576
    %6146 = vmatpush1.msra.mxu0 %v4575
    %6147 = vmatprep.subr.mxu0 %v4580
    %6148 = vmatpush1.msra.mxu0 %v4579
    %6149 = vmatprep.subr.mxu0 %v4584
    %6150 = vmatpush1.msra.mxu0 %v4583
    %6151 = vmatprep.subr.mxu0 0.0
    %6152 = vmatpush1.msra.mxu0 0.0
    %6153 = vmatprep.subr.mxu0 0.0
    %6154 = vmatpush1.msra.mxu0 0.0
    %6155 = vmatprep.subr.mxu0 0.0
    %6156 = vmatpush1.msra.mxu0 0.0
    %6157 = vmatprep.subr.mxu0 0.0
    %6158 = vmatpush1.msra.mxu0 0.0
    %6159 = vmatprep.subr.mxu0 0.0
    %6160 = vmatpush1.msra.mxu0 0.0
    %6161 = vmatprep.subr.mxu0 0.0
    %6162 = vmatpush1.msra.mxu0 0.0
    %6163 = vmatprep.subr.mxu0 0.0
    %6164 = vmatpush1.msra.mxu0 0.0
    %6165 = vmatprep.subr.mxu0 0.0
    %6166 = vmatpush1.msra.mxu0 0.0
    %6167 = vmatprep.subr.mxu0 0.0
    %6168 = vmatpush1.msra.mxu0 0.0
    %6169 = vmatprep.subr.mxu0 0.0
    %6170 = vmatpush1.msra.mxu0 0.0
    %6171 = vmatprep.subr.mxu0 0.0
    %6172 = vmatpush1.msra.mxu0 0.0
    %6173 = vmatprep.subr.mxu0 0.0
    %6174 = vmatpush1.msra.mxu0 0.0
    %6175 = vmatprep.subr.mxu0 0.0
    %6176 = vmatpush1.msra.mxu0 0.0
    %6177 = vmatprep.subr.mxu0 0.0
    %6178 = vmatpush1.msra.mxu0 0.0
    %6179 = vmatprep.subr.mxu0 0.0
    %6180 = vmatpush1.msra.mxu0 0.0
    %6181 = vmatprep.subr.mxu0 0.0
    %6182 = vmatpush1.msra.mxu0 0.0
    %6183 = vmatprep.mubr.f32.mxu0 0.0
    %6184 = vmatmul.mubr.f32.gmra.mrb[0].mxu0 %v6116
    %v6185 = vpop.f32.mrb[0].mxu0
    %v6186 = vadd.f32 0.0, %v6185
    %v6187 = vpop.f32.mrb[0].mxu0
    %v6188 = vadd.f32 0.0, %v6187
    %6189 = vdwg.mxu0
    %6190 = vmatprep.subr.mxu0 %v4526
    %6191 = vmatpush1.msra.mxu0 %v4525
    %6192 = vmatprep.subr.mxu0 %v4530
    %6193 = vmatpush1.msra.mxu0 %v4529
    %6194 = vmatprep.subr.mxu0 %v4534
    %6195 = vmatpush1.msra.mxu0 %v4533
    %6196 = vmatprep.subr.mxu0 %v4538
    %6197 = vmatpush1.msra.mxu0 %v4537
    %6198 = vmatprep.subr.mxu0 %v4542
    %6199 = vmatpush1.msra.mxu0 %v4541
    %6200 = vmatprep.subr.mxu0 %v4546
    %6201 = vmatpush1.msra.mxu0 %v4545
    %6202 = vmatprep.subr.mxu0 %v4550
    %6203 = vmatpush1.msra.mxu0 %v4549
    %6204 = vmatprep.subr.mxu0 %v4554
    %6205 = vmatpush1.msra.mxu0 %v4553
    %6206 = vmatprep.subr.mxu0 %v4558
    %6207 = vmatpush1.msra.mxu0 %v4557
    %6208 = vmatprep.subr.mxu0 %v4562
    %6209 = vmatpush1.msra.mxu0 %v4561
    %6210 = vmatprep.subr.mxu0 %v4566
    %6211 = vmatpush1.msra.mxu0 %v4565
    %6212 = vmatprep.subr.mxu0 %v4570
    %6213 = vmatpush1.msra.mxu0 %v4569
    %6214 = vmatprep.subr.mxu0 %v4574
    %6215 = vmatpush1.msra.mxu0 %v4573
    %6216 = vmatprep.subr.mxu0 %v4578
    %6217 = vmatpush1.msra.mxu0 %v4577
    %6218 = vmatprep.subr.mxu0 %v4582
    %6219 = vmatpush1.msra.mxu0 %v4581
    %6220 = vmatprep.subr.mxu0 %v4586
    %6221 = vmatpush1.msra.mxu0 %v4585
    %6222 = vmatprep.subr.mxu0 0.0
    %6223 = vmatpush1.msra.mxu0 0.0
    %6224 = vmatprep.subr.mxu0 0.0
    %6225 = vmatpush1.msra.mxu0 0.0
    %6226 = vmatprep.subr.mxu0 0.0
    %6227 = vmatpush1.msra.mxu0 0.0
    %6228 = vmatprep.subr.mxu0 0.0
    %6229 = vmatpush1.msra.mxu0 0.0
    %6230 = vmatprep.subr.mxu0 0.0
    %6231 = vmatpush1.msra.mxu0 0.0
    %6232 = vmatprep.subr.mxu0 0.0
    %6233 = vmatpush1.msra.mxu0 0.0
    %6234 = vmatprep.subr.mxu0 0.0
    %6235 = vmatpush1.msra.mxu0 0.0
    %6236 = vmatprep.subr.mxu0 0.0
    %6237 = vmatpush1.msra.mxu0 0.0
    %6238 = vmatprep.subr.mxu0 0.0
    %6239 = vmatpush1.msra.mxu0 0.0
    %6240 = vmatprep.subr.mxu0 0.0
    %6241 = vmatpush1.msra.mxu0 0.0
    %6242 = vmatprep.subr.mxu0 0.0
    %6243 = vmatpush1.msra.mxu0 0.0
    %6244 = vmatprep.subr.mxu0 0.0
    %6245 = vmatpush1.msra.mxu0 0.0
    %6246 = vmatprep.subr.mxu0 0.0
    %6247 = vmatpush1.msra.mxu0 0.0
    %6248 = vmatprep.subr.mxu0 0.0
    %6249 = vmatpush1.msra.mxu0 0.0
    %6250 = vmatprep.subr.mxu0 0.0
    %6251 = vmatpush1.msra.mxu0 0.0
    %6252 = vmatprep.subr.mxu0 0.0
    %6253 = vmatpush1.msra.mxu0 0.0
    %6254 = vmatprep.mubr.f32.mxu0 0.0
    %6255 = vmatmul.mubr.f32.gmra.mrb[0].mxu0 %v6116
    %v6256 = vpop.f32.mrb[0].mxu0
    %v6257 = vadd.f32 0.0, %v6256
    %v6258 = vpop.f32.mrb[0].mxu0
    %v6259 = vadd.f32 0.0, %v6258
    %6260 = vdwg.mxu0
    %v6265 = vcombine.low %v6186, %v6188
    %v6266 = vcombine.low %v6257, %v6259
    %v6268 = vunpack.c.l.s4 1983009808
    %v6269 = vunpack.c.0.s8 %v6268
    %v6270 = vlaneseq
    %v6271 = vshrl.u32 %v6270, 7
    %v6272 = vsub.s32 %v6269, %v6271
    %v6273 = vrot.slane %v6265, %v6272
    %v6275 = vunpack.c.l.s4 1983009808
    %v6276 = vunpack.c.0.s8 %v6275
    %v6277 = vlaneseq
    %v6278 = vshrl.u32 %v6277, 7
    %v6279 = vsub.s32 %v6276, %v6278
    %v6280 = vrot.slane %v6266, %v6279
    %v6281 = vcombine.low %v6273, %v6280
    %v6283 = vadd.f32 %v6118, %v6281
    %v6284 = vxor.u32 %v6283, 2147483648
    %v6285 = vmul.f32 %v6284, 1.442695
    %v6286 = vpow.pop %v6285
    %v6287 = vadd.f32 %v6286, 1.0
    %v6288 = vrcp.pop %v6287
    %v6289 = vmul.f32 1.0, %v6288
    %v6291 = vrot.slane %v6283, 6
    %v6293 = vtanh.pop %v6291
    %v6295 = vrot.slane %v6289, 2
    %v6297 = vmul.f32 %v6295, %v6112
    %v6298 = vmul.f32 %v6289, %v6293
    %v6299 = vadd.f32 %v6297, %v6298
    %v6300 = vtanh.pop %v6299
    %v6301 = vrot.slane %v6289, 4
    %v6303 = vmul.f32 %v6301, %v6300
    %6304 = vst [vmem:[#allocation4 + $0xa] sm:$0x3] %v6303
    %v6305 = vld [vmem:[%s2858] sm:$0xff]
    %6306 = vmatprep.subr.mxu0 %v4524
    %6307 = vmatpush1.msra.mxu0 %v4523
    %6308 = vmatprep.subr.mxu0 %v4528
    %6309 = vmatpush1.msra.mxu0 %v4527
    %6310 = vmatprep.subr.mxu0 %v4532
    %6311 = vmatpush1.msra.mxu0 %v4531
    %6312 = vmatprep.subr.mxu0 %v4536
    %6313 = vmatpush1.msra.mxu0 %v4535
    %6314 = vmatprep.subr.mxu0 %v4540
    %6315 = vmatpush1.msra.mxu0 %v4539
    %6316 = vmatprep.subr.mxu0 %v4544
    %6317 = vmatpush1.msra.mxu0 %v4543
    %6318 = vmatprep.subr.mxu0 %v4548
    %6319 = vmatpush1.msra.mxu0 %v4547
    %6320 = vmatprep.subr.mxu0 %v4552
    %6321 = vmatpush1.msra.mxu0 %v4551
    %6322 = vmatprep.subr.mxu0 %v4556
    %6323 = vmatpush1.msra.mxu0 %v4555
    %6324 = vmatprep.subr.mxu0 %v4560
    %6325 = vmatpush1.msra.mxu0 %v4559
    %6326 = vmatprep.subr.mxu0 %v4564
    %6327 = vmatpush1.msra.mxu0 %v4563
    %6328 = vmatprep.subr.mxu0 %v4568
    %6329 = vmatpush1.msra.mxu0 %v4567
    %6330 = vmatprep.subr.mxu0 %v4572
    %6331 = vmatpush1.msra.mxu0 %v4571
    %6332 = vmatprep.subr.mxu0 %v4576
    %6333 = vmatpush1.msra.mxu0 %v4575
    %6334 = vmatprep.subr.mxu0 %v4580
    %6335 = vmatpush1.msra.mxu0 %v4579
    %6336 = vmatprep.subr.mxu0 %v4584
    %6337 = vmatpush1.msra.mxu0 %v4583
    %6338 = vmatprep.subr.mxu0 0.0
    %6339 = vmatpush1.msra.mxu0 0.0
    %6340 = vmatprep.subr.mxu0 0.0
    %6341 = vmatpush1.msra.mxu0 0.0
    %6342 = vmatprep.subr.mxu0 0.0
    %6343 = vmatpush1.msra.mxu0 0.0
    %6344 = vmatprep.subr.mxu0 0.0
    %6345 = vmatpush1.msra.mxu0 0.0
    %6346 = vmatprep.subr.mxu0 0.0
    %6347 = vmatpush1.msra.mxu0 0.0
    %6348 = vmatprep.subr.mxu0 0.0
    %6349 = vmatpush1.msra.mxu0 0.0
    %6350 = vmatprep.subr.mxu0 0.0
    %6351 = vmatpush1.msra.mxu0 0.0
    %6352 = vmatprep.subr.mxu0 0.0
    %6353 = vmatpush1.msra.mxu0 0.0
    %6354 = vmatprep.subr.mxu0 0.0
    %6355 = vmatpush1.msra.mxu0 0.0
    %6356 = vmatprep.subr.mxu0 0.0
    %6357 = vmatpush1.msra.mxu0 0.0
    %6358 = vmatprep.subr.mxu0 0.0
    %6359 = vmatpush1.msra.mxu0 0.0
    %6360 = vmatprep.subr.mxu0 0.0
    %6361 = vmatpush1.msra.mxu0 0.0
    %6362 = vmatprep.subr.mxu0 0.0
    %6363 = vmatpush1.msra.mxu0 0.0
    %6364 = vmatprep.subr.mxu0 0.0
    %6365 = vmatpush1.msra.mxu0 0.0
    %6366 = vmatprep.subr.mxu0 0.0
    %6367 = vmatpush1.msra.mxu0 0.0
    %6368 = vmatprep.subr.mxu0 0.0
    %6369 = vmatpush1.msra.mxu0 0.0
    %6370 = vmatprep.mubr.f32.mxu0 0.0
    %6371 = vmatmul.mubr.f32.gmra.mrb[0].mxu0 %v6303
    %v6372 = vpop.f32.mrb[0].mxu0
    %v6373 = vadd.f32 0.0, %v6372
    %v6374 = vpop.f32.mrb[0].mxu0
    %v6375 = vadd.f32 0.0, %v6374
    %6376 = vdwg.mxu0
    %6377 = vmatprep.subr.mxu0 %v4526
    %6378 = vmatpush1.msra.mxu0 %v4525
    %6379 = vmatprep.subr.mxu0 %v4530
    %6380 = vmatpush1.msra.mxu0 %v4529
    %6381 = vmatprep.subr.mxu0 %v4534
    %6382 = vmatpush1.msra.mxu0 %v4533
    %6383 = vmatprep.subr.mxu0 %v4538
    %6384 = vmatpush1.msra.mxu0 %v4537
    %6385 = vmatprep.subr.mxu0 %v4542
    %6386 = vmatpush1.msra.mxu0 %v4541
    %6387 = vmatprep.subr.mxu0 %v4546
    %6388 = vmatpush1.msra.mxu0 %v4545
    %6389 = vmatprep.subr.mxu0 %v4550
    %6390 = vmatpush1.msra.mxu0 %v4549
    %6391 = vmatprep.subr.mxu0 %v4554
    %6392 = vmatpush1.msra.mxu0 %v4553
    %6393 = vmatprep.subr.mxu0 %v4558
    %6394 = vmatpush1.msra.mxu0 %v4557
    %6395 = vmatprep.subr.mxu0 %v4562
    %6396 = vmatpush1.msra.mxu0 %v4561
    %6397 = vmatprep.subr.mxu0 %v4566
    %6398 = vmatpush1.msra.mxu0 %v4565
    %6399 = vmatprep.subr.mxu0 %v4570
    %6400 = vmatpush1.msra.mxu0 %v4569
    %6401 = vmatprep.subr.mxu0 %v4574
    %6402 = vmatpush1.msra.mxu0 %v4573
    %6403 = vmatprep.subr.mxu0 %v4578
    %6404 = vmatpush1.msra.mxu0 %v4577
    %6405 = vmatprep.subr.mxu0 %v4582
    %6406 = vmatpush1.msra.mxu0 %v4581
    %6407 = vmatprep.subr.mxu0 %v4586
    %6408 = vmatpush1.msra.mxu0 %v4585
    %6409 = vmatprep.subr.mxu0 0.0
    %6410 = vmatpush1.msra.mxu0 0.0
    %6411 = vmatprep.subr.mxu0 0.0
    %6412 = vmatpush1.msra.mxu0 0.0
    %6413 = vmatprep.subr.mxu0 0.0
    %6414 = vmatpush1.msra.mxu0 0.0
    %6415 = vmatprep.subr.mxu0 0.0
    %6416 = vmatpush1.msra.mxu0 0.0
    %6417 = vmatprep.subr.mxu0 0.0
    %6418 = vmatpush1.msra.mxu0 0.0
    %6419 = vmatprep.subr.mxu0 0.0
    %6420 = vmatpush1.msra.mxu0 0.0
    %6421 = vmatprep.subr.mxu0 0.0
    %6422 = vmatpush1.msra.mxu0 0.0
    %6423 = vmatprep.subr.mxu0 0.0
    %6424 = vmatpush1.msra.mxu0 0.0
    %6425 = vmatprep.subr.mxu0 0.0
    %6426 = vmatpush1.msra.mxu0 0.0
    %6427 = vmatprep.subr.mxu0 0.0
    %6428 = vmatpush1.msra.mxu0 0.0
    %6429 = vmatprep.subr.mxu0 0.0
    %6430 = vmatpush1.msra.mxu0 0.0
    %6431 = vmatprep.subr.mxu0 0.0
    %6432 = vmatpush1.msra.mxu0 0.0
    %6433 = vmatprep.subr.mxu0 0.0
    %6434 = vmatpush1.msra.mxu0 0.0
    %6435 = vmatprep.subr.mxu0 0.0
    %6436 = vmatpush1.msra.mxu0 0.0
    %6437 = vmatprep.subr.mxu0 0.0
    %6438 = vmatpush1.msra.mxu0 0.0
    %6439 = vmatprep.subr.mxu0 0.0
    %6440 = vmatpush1.msra.mxu0 0.0
    %6441 = vmatprep.mubr.f32.mxu0 0.0
    %6442 = vmatmul.mubr.f32.gmra.mrb[0].mxu0 %v6303
    %v6443 = vpop.f32.mrb[0].mxu0
    %v6444 = vadd.f32 0.0, %v6443
    %v6445 = vpop.f32.mrb[0].mxu0
    %v6446 = vadd.f32 0.0, %v6445
    %6447 = vdwg.mxu0
    %v6452 = vcombine.low %v6373, %v6375
    %v6453 = vcombine.low %v6444, %v6446
    %v6455 = vunpack.c.l.s4 1983009808
    %v6456 = vunpack.c.0.s8 %v6455
    %v6457 = vlaneseq
    %v6458 = vshrl.u32 %v6457, 7
    %v6459 = vsub.s32 %v6456, %v6458
    %v6460 = vrot.slane %v6452, %v6459
    %v6462 = vunpack.c.l.s4 1983009808
    %v6463 = vunpack.c.0.s8 %v6462
    %v6464 = vlaneseq
    %v6465 = vshrl.u32 %v6464, 7
    %v6466 = vsub.s32 %v6463, %v6465
    %v6467 = vrot.slane %v6453, %v6466
    %v6468 = vcombine.low %v6460, %v6467
    %v6470 = vadd.f32 %v6305, %v6468
    %v6471 = vxor.u32 %v6470, 2147483648
    %v6472 = vmul.f32 %v6471, 1.442695
    %v6473 = vpow.pop %v6472
    %v6474 = vadd.f32 %v6473, 1.0
    %v6475 = vrcp.pop %v6474
    %v6476 = vmul.f32 1.0, %v6475
    %v6478 = vrot.slane %v6470, 6
    %v6480 = vtanh.pop %v6478
    %v6482 = vrot.slane %v6476, 2
    %v6484 = vmul.f32 %v6482, %v6299
    %v6485 = vmul.f32 %v6476, %v6480
    %v6486 = vadd.f32 %v6484, %v6485
    %v6487 = vtanh.pop %v6486
    %v6488 = vrot.slane %v6476, 4
    %v6490 = vmul.f32 %v6488, %v6487
    %6491 = vst [vmem:[#allocation4 + $0xc] sm:$0x3] %v6490
    %v6492 = vld [vmem:[%s2890] sm:$0xff]
    %6493 = vmatprep.subr.mxu0 %v4524
    %6494 = vmatpush1.msra.mxu0 %v4523
    %6495 = vmatprep.subr.mxu0 %v4528
    %6496 = vmatpush1.msra.mxu0 %v4527
    %6497 = vmatprep.subr.mxu0 %v4532
    %6498 = vmatpush1.msra.mxu0 %v4531
    %6499 = vmatprep.subr.mxu0 %v4536
    %6500 = vmatpush1.msra.mxu0 %v4535
    %6501 = vmatprep.subr.mxu0 %v4540
    %6502 = vmatpush1.msra.mxu0 %v4539
    %6503 = vmatprep.subr.mxu0 %v4544
    %6504 = vmatpush1.msra.mxu0 %v4543
    %6505 = vmatprep.subr.mxu0 %v4548
    %6506 = vmatpush1.msra.mxu0 %v4547
    %6507 = vmatprep.subr.mxu0 %v4552
    %6508 = vmatpush1.msra.mxu0 %v4551
    %6509 = vmatprep.subr.mxu0 %v4556
    %6510 = vmatpush1.msra.mxu0 %v4555
    %6511 = vmatprep.subr.mxu0 %v4560
    %6512 = vmatpush1.msra.mxu0 %v4559
    %6513 = vmatprep.subr.mxu0 %v4564
    %6514 = vmatpush1.msra.mxu0 %v4563
    %6515 = vmatprep.subr.mxu0 %v4568
    %6516 = vmatpush1.msra.mxu0 %v4567
    %6517 = vmatprep.subr.mxu0 %v4572
    %6518 = vmatpush1.msra.mxu0 %v4571
    %6519 = vmatprep.subr.mxu0 %v4576
    %6520 = vmatpush1.msra.mxu0 %v4575
    %6521 = vmatprep.subr.mxu0 %v4580
    %6522 = vmatpush1.msra.mxu0 %v4579
    %6523 = vmatprep.subr.mxu0 %v4584
    %6524 = vmatpush1.msra.mxu0 %v4583
    %6525 = vmatprep.subr.mxu0 0.0
    %6526 = vmatpush1.msra.mxu0 0.0
    %6527 = vmatprep.subr.mxu0 0.0
    %6528 = vmatpush1.msra.mxu0 0.0
    %6529 = vmatprep.subr.mxu0 0.0
    %6530 = vmatpush1.msra.mxu0 0.0
    %6531 = vmatprep.subr.mxu0 0.0
    %6532 = vmatpush1.msra.mxu0 0.0
    %6533 = vmatprep.subr.mxu0 0.0
    %6534 = vmatpush1.msra.mxu0 0.0
    %6535 = vmatprep.subr.mxu0 0.0
    %6536 = vmatpush1.msra.mxu0 0.0
    %6537 = vmatprep.subr.mxu0 0.0
    %6538 = vmatpush1.msra.mxu0 0.0
    %6539 = vmatprep.subr.mxu0 0.0
    %6540 = vmatpush1.msra.mxu0 0.0
    %6541 = vmatprep.subr.mxu0 0.0
    %6542 = vmatpush1.msra.mxu0 0.0
    %6543 = vmatprep.subr.mxu0 0.0
    %6544 = vmatpush1.msra.mxu0 0.0
    %6545 = vmatprep.subr.mxu0 0.0
    %6546 = vmatpush1.msra.mxu0 0.0
    %6547 = vmatprep.subr.mxu0 0.0
    %6548 = vmatpush1.msra.mxu0 0.0
    %6549 = vmatprep.subr.mxu0 0.0
    %6550 = vmatpush1.msra.mxu0 0.0
    %6551 = vmatprep.subr.mxu0 0.0
    %6552 = vmatpush1.msra.mxu0 0.0
    %6553 = vmatprep.subr.mxu0 0.0
    %6554 = vmatpush1.msra.mxu0 0.0
    %6555 = vmatprep.subr.mxu0 0.0
    %6556 = vmatpush1.msra.mxu0 0.0
    %6557 = vmatprep.mubr.f32.mxu0 0.0
    %6558 = vmatmul.mubr.f32.gmra.mrb[0].mxu0 %v6490
    %v6559 = vpop.f32.mrb[0].mxu0
    %v6560 = vadd.f32 0.0, %v6559
    %v6561 = vpop.f32.mrb[0].mxu0
    %v6562 = vadd.f32 0.0, %v6561
    %6563 = vdwg.mxu0
    %6564 = vmatprep.subr.mxu0 %v4526
    %6565 = vmatpush1.msra.mxu0 %v4525
    %6566 = vmatprep.subr.mxu0 %v4530
    %6567 = vmatpush1.msra.mxu0 %v4529
    %6568 = vmatprep.subr.mxu0 %v4534
    %6569 = vmatpush1.msra.mxu0 %v4533
    %6570 = vmatprep.subr.mxu0 %v4538
    %6571 = vmatpush1.msra.mxu0 %v4537
    %6572 = vmatprep.subr.mxu0 %v4542
    %6573 = vmatpush1.msra.mxu0 %v4541
    %6574 = vmatprep.subr.mxu0 %v4546
    %6575 = vmatpush1.msra.mxu0 %v4545
    %6576 = vmatprep.subr.mxu0 %v4550
    %6577 = vmatpush1.msra.mxu0 %v4549
    %6578 = vmatprep.subr.mxu0 %v4554
    %6579 = vmatpush1.msra.mxu0 %v4553
    %6580 = vmatprep.subr.mxu0 %v4558
    %6581 = vmatpush1.msra.mxu0 %v4557
    %6582 = vmatprep.subr.mxu0 %v4562
    %6583 = vmatpush1.msra.mxu0 %v4561
    %6584 = vmatprep.subr.mxu0 %v4566
    %6585 = vmatpush1.msra.mxu0 %v4565
    %6586 = vmatprep.subr.mxu0 %v4570
    %6587 = vmatpush1.msra.mxu0 %v4569
    %6588 = vmatprep.subr.mxu0 %v4574
    %6589 = vmatpush1.msra.mxu0 %v4573
    %6590 = vmatprep.subr.mxu0 %v4578
    %6591 = vmatpush1.msra.mxu0 %v4577
    %6592 = vmatprep.subr.mxu0 %v4582
    %6593 = vmatpush1.msra.mxu0 %v4581
    %6594 = vmatprep.subr.mxu0 %v4586
    %6595 = vmatpush1.msra.mxu0 %v4585
    %6596 = vmatprep.subr.mxu0 0.0
    %6597 = vmatpush1.msra.mxu0 0.0
    %6598 = vmatprep.subr.mxu0 0.0
    %6599 = vmatpush1.msra.mxu0 0.0
    %6600 = vmatprep.subr.mxu0 0.0
    %6601 = vmatpush1.msra.mxu0 0.0
    %6602 = vmatprep.subr.mxu0 0.0
    %6603 = vmatpush1.msra.mxu0 0.0
    %6604 = vmatprep.subr.mxu0 0.0
    %6605 = vmatpush1.msra.mxu0 0.0
    %6606 = vmatprep.subr.mxu0 0.0
    %6607 = vmatpush1.msra.mxu0 0.0
    %6608 = vmatprep.subr.mxu0 0.0
    %6609 = vmatpush1.msra.mxu0 0.0
    %6610 = vmatprep.subr.mxu0 0.0
    %6611 = vmatpush1.msra.mxu0 0.0
    %6612 = vmatprep.subr.mxu0 0.0
    %6613 = vmatpush1.msra.mxu0 0.0
    %6614 = vmatprep.subr.mxu0 0.0
    %6615 = vmatpush1.msra.mxu0 0.0
    %6616 = vmatprep.subr.mxu0 0.0
    %6617 = vmatpush1.msra.mxu0 0.0
    %6618 = vmatprep.subr.mxu0 0.0
    %6619 = vmatpush1.msra.mxu0 0.0
    %6620 = vmatprep.subr.mxu0 0.0
    %6621 = vmatpush1.msra.mxu0 0.0
    %6622 = vmatprep.subr.mxu0 0.0
    %6623 = vmatpush1.msra.mxu0 0.0
    %6624 = vmatprep.subr.mxu0 0.0
    %6625 = vmatpush1.msra.mxu0 0.0
    %6626 = vmatprep.subr.mxu0 0.0
    %6627 = vmatpush1.msra.mxu0 0.0
    %6628 = vmatprep.mubr.f32.mxu0 0.0
    %6629 = vmatmul.mubr.f32.gmra.mrb[0].mxu0 %v6490
    %v6630 = vpop.f32.mrb[0].mxu0
    %v6631 = vadd.f32 0.0, %v6630
    %v6632 = vpop.f32.mrb[0].mxu0
    %v6633 = vadd.f32 0.0, %v6632
    %6634 = vdwg.mxu0
    %v6639 = vcombine.low %v6560, %v6562
    %v6640 = vcombine.low %v6631, %v6633
    %v6642 = vunpack.c.l.s4 1983009808
    %v6643 = vunpack.c.0.s8 %v6642
    %v6644 = vlaneseq
    %v6645 = vshrl.u32 %v6644, 7
    %v6646 = vsub.s32 %v6643, %v6645
    %v6647 = vrot.slane %v6639, %v6646
    %v6649 = vunpack.c.l.s4 1983009808
    %v6650 = vunpack.c.0.s8 %v6649
    %v6651 = vlaneseq
    %v6652 = vshrl.u32 %v6651, 7
    %v6653 = vsub.s32 %v6650, %v6652
    %v6654 = vrot.slane %v6640, %v6653
    %v6655 = vcombine.low %v6647, %v6654
    %v6657 = vadd.f32 %v6492, %v6655
    %v6658 = vxor.u32 %v6657, 2147483648
    %v6659 = vmul.f32 %v6658, 1.442695
    %v6660 = vpow.pop %v6659
    %v6661 = vadd.f32 %v6660, 1.0
    %v6662 = vrcp.pop %v6661
    %v6663 = vmul.f32 1.0, %v6662
    %v6665 = vrot.slane %v6657, 6
    %v6667 = vtanh.pop %v6665
    %v6669 = vrot.slane %v6663, 2
    %v6671 = vmul.f32 %v6669, %v6486
    %v6672 = vmul.f32 %v6663, %v6667
    %v6673 = vadd.f32 %v6671, %v6672
    %v6674 = vtanh.pop %v6673
    %v6675 = vrot.slane %v6663, 4
    %v6677 = vmul.f32 %v6675, %v6674
    %6678 = vst [vmem:[#allocation4 + $0xe] sm:$0x3] %v6677
    %v6679 = vld [vmem:[#allocation17] sm:$0xff]
    %v6680 = vld [vmem:[#allocation17 + $0x8] sm:$0xff]
    %v6681 = vld [vmem:[#allocation17 + $0x10] sm:$0xff]
    %v6682 = vld [vmem:[#allocation17 + $0x18] sm:$0xff]
    %v6683 = vld [vmem:[#allocation17 + $0x20] sm:$0xff]
    %v6684 = vld [vmem:[#allocation17 + $0x28] sm:$0xff]
    %v6685 = vld [vmem:[#allocation17 + $0x30] sm:$0xff]
    %v6686 = vld [vmem:[#allocation17 + $0x38] sm:$0xff]
    %v6687 = vld [vmem:[#allocation17 + $0x40] sm:$0xff]
    %v6688 = vld [vmem:[#allocation17 + $0x48] sm:$0xff]
    %v6689 = vld [vmem:[#allocation17 + $0x50] sm:$0xff]
    %v6690 = vld [vmem:[#allocation17 + $0x58] sm:$0xff]
    %v6691 = vld [vmem:[#allocation17 + $0x60] sm:$0xff]
    %v6692 = vld [vmem:[#allocation17 + $0x68] sm:$0xff]
    %v6693 = vld [vmem:[#allocation17 + $0x70] sm:$0xff]
    %v6694 = vld [vmem:[#allocation17 + $0x78] sm:$0xff]
    %v6695 = vld [vmem:[#allocation17 + $0x80] sm:$0xff]
    %v6696 = vld [vmem:[#allocation17 + $0x88] sm:$0xff]
    %v6697 = vld [vmem:[#allocation17 + $0x90] sm:$0xff]
    %v6698 = vld [vmem:[#allocation17 + $0x98] sm:$0xff]
    %v6699 = vld [vmem:[#allocation17 + $0xa0] sm:$0xff]
    %v6700 = vld [vmem:[#allocation17 + $0xa8] sm:$0xff]
    %v6701 = vld [vmem:[#allocation17 + $0xb0] sm:$0xff]
    %v6702 = vld [vmem:[#allocation17 + $0xb8] sm:$0xff]
    %v6703 = vld [vmem:[#allocation17 + $0xc0] sm:$0xff]
    %v6704 = vld [vmem:[#allocation17 + $0xc8] sm:$0xff]
    %v6705 = vld [vmem:[#allocation17 + $0xd0] sm:$0xff]
    %v6706 = vld [vmem:[#allocation17 + $0xd8] sm:$0xff]
    %v6707 = vld [vmem:[#allocation17 + $0xe0] sm:$0xff]
    %v6708 = vld [vmem:[#allocation17 + $0xe8] sm:$0xff]
    %v6709 = vld [vmem:[#allocation17 + $0xf0] sm:$0xff]
    %v6710 = vld [vmem:[#allocation17 + $0xf8] sm:$0xff]
    %v6711 = vld [vmem:[#allocation17 + $0x100] sm:$0xff]
    %v6712 = vld [vmem:[#allocation17 + $0x108] sm:$0xff]
    %v6713 = vld [vmem:[#allocation17 + $0x110] sm:$0xff]
    %v6714 = vld [vmem:[#allocation17 + $0x118] sm:$0xff]
    %v6715 = vld [vmem:[#allocation17 + $0x120] sm:$0xff]
    %v6716 = vld [vmem:[#allocation17 + $0x128] sm:$0xff]
    %v6717 = vld [vmem:[#allocation17 + $0x130] sm:$0xff]
    %v6718 = vld [vmem:[#allocation17 + $0x138] sm:$0xff]
    %v6719 = vld [vmem:[#allocation17 + $0x140] sm:$0xff]
    %v6720 = vld [vmem:[#allocation17 + $0x148] sm:$0xff]
    %v6721 = vld [vmem:[#allocation17 + $0x150] sm:$0xff]
    %v6722 = vld [vmem:[#allocation17 + $0x158] sm:$0xff]
    %v6723 = vld [vmem:[#allocation17 + $0x160] sm:$0xff]
    %v6724 = vld [vmem:[#allocation17 + $0x168] sm:$0xff]
    %v6725 = vld [vmem:[#allocation17 + $0x170] sm:$0xff]
    %v6726 = vld [vmem:[#allocation17 + $0x178] sm:$0xff]
    %v6727 = vld [vmem:[#allocation17 + $0x180] sm:$0xff]
    %v6728 = vld [vmem:[#allocation17 + $0x188] sm:$0xff]
    %v6729 = vld [vmem:[#allocation17 + $0x190] sm:$0xff]
    %v6730 = vld [vmem:[#allocation17 + $0x198] sm:$0xff]
    %v6731 = vld [vmem:[#allocation17 + $0x1a0] sm:$0xff]
    %v6732 = vld [vmem:[#allocation17 + $0x1a8] sm:$0xff]
    %v6733 = vld [vmem:[#allocation17 + $0x1b0] sm:$0xff]
    %v6734 = vld [vmem:[#allocation17 + $0x1b8] sm:$0xff]
    %v6735 = vld [vmem:[#allocation17 + $0x1c0] sm:$0xff]
    %v6736 = vld [vmem:[#allocation17 + $0x1c8] sm:$0xff]
    %v6737 = vld [vmem:[#allocation17 + $0x1d0] sm:$0xff]
    %v6738 = vld [vmem:[#allocation17 + $0x1d8] sm:$0xff]
    %v6739 = vld [vmem:[#allocation17 + $0x1e0] sm:$0xff]
    %v6740 = vld [vmem:[#allocation17 + $0x1e8] sm:$0xff]
    %v6741 = vld [vmem:[#allocation17 + $0x1f0] sm:$0xff]
    %v6742 = vld [vmem:[#allocation17 + $0x1f8] sm:$0xff]
    %v6743 = vld [vmem:[#allocation17 + $0x200] sm:$0xff]
    %v6744 = vld [vmem:[#allocation17 + $0x208] sm:$0xff]
    %v6745 = vld [vmem:[#allocation17 + $0x210] sm:$0xff]
    %v6746 = vld [vmem:[#allocation17 + $0x218] sm:$0xff]
    %v6747 = vld [vmem:[#allocation17 + $0x220] sm:$0xff]
    %v6748 = vld [vmem:[#allocation17 + $0x228] sm:$0xff]
    %v6749 = vld [vmem:[#allocation17 + $0x230] sm:$0xff]
    %v6750 = vld [vmem:[#allocation17 + $0x238] sm:$0xff]
    %v6751 = vld [vmem:[#allocation17 + $0x240] sm:$0xff]
    %v6752 = vld [vmem:[#allocation17 + $0x248] sm:$0xff]
    %v6753 = vld [vmem:[#allocation17 + $0x250] sm:$0xff]
    %v6754 = vld [vmem:[#allocation17 + $0x258] sm:$0xff]
    %v6755 = vld [vmem:[#allocation17 + $0x260] sm:$0xff]
    %v6756 = vld [vmem:[#allocation17 + $0x268] sm:$0xff]
    %v6757 = vld [vmem:[#allocation17 + $0x270] sm:$0xff]
    %v6758 = vld [vmem:[#allocation17 + $0x278] sm:$0xff]
    %v6759 = vld [vmem:[#allocation17 + $0x280] sm:$0xff]
    %v6760 = vld [vmem:[#allocation17 + $0x288] sm:$0xff]
    %v6761 = vld [vmem:[#allocation17 + $0x290] sm:$0xff]
    %v6762 = vld [vmem:[#allocation17 + $0x298] sm:$0xff]
    %v6763 = vld [vmem:[#allocation17 + $0x2a0] sm:$0xff]
    %v6764 = vld [vmem:[#allocation17 + $0x2a8] sm:$0xff]
    %v6765 = vld [vmem:[#allocation17 + $0x2b0] sm:$0xff]
    %v6766 = vld [vmem:[#allocation17 + $0x2b8] sm:$0xff]
    %v6767 = vld [vmem:[#allocation17 + $0x2c0] sm:$0xff]
    %v6768 = vld [vmem:[#allocation17 + $0x2c8] sm:$0xff]
    %v6769 = vld [vmem:[#allocation17 + $0x2d0] sm:$0xff]
    %v6770 = vld [vmem:[#allocation17 + $0x2d8] sm:$0xff]
    %v6771 = vld [vmem:[#allocation17 + $0x2e0] sm:$0xff]
    %v6772 = vld [vmem:[#allocation17 + $0x2e8] sm:$0xff]
    %v6773 = vld [vmem:[#allocation17 + $0x2f0] sm:$0xff]
    %v6774 = vld [vmem:[#allocation17 + $0x2f8] sm:$0xff]
    %v6775 = vld [vmem:[#allocation17 + $0x300] sm:$0xff]
    %v6776 = vld [vmem:[#allocation17 + $0x308] sm:$0xff]
    %v6777 = vld [vmem:[#allocation17 + $0x310] sm:$0xff]
    %v6778 = vld [vmem:[#allocation17 + $0x318] sm:$0xff]
    %v6779 = vld [vmem:[#allocation17 + $0x320] sm:$0xff]
    %v6780 = vld [vmem:[#allocation17 + $0x328] sm:$0xff]
    %v6781 = vld [vmem:[#allocation17 + $0x330] sm:$0xff]
    %v6782 = vld [vmem:[#allocation17 + $0x338] sm:$0xff]
    %v6783 = vld [vmem:[#allocation17 + $0x340] sm:$0xff]
    %v6784 = vld [vmem:[#allocation17 + $0x348] sm:$0xff]
    %v6785 = vld [vmem:[#allocation17 + $0x350] sm:$0xff]
    %v6786 = vld [vmem:[#allocation17 + $0x358] sm:$0xff]
    %v6787 = vld [vmem:[#allocation17 + $0x360] sm:$0xff]
    %v6788 = vld [vmem:[#allocation17 + $0x368] sm:$0xff]
    %v6789 = vld [vmem:[#allocation17 + $0x370] sm:$0xff]
    %v6790 = vld [vmem:[#allocation17 + $0x378] sm:$0xff]
    %v6791 = vld [vmem:[#allocation17 + $0x380] sm:$0xff]
    %v6792 = vld [vmem:[#allocation17 + $0x388] sm:$0xff]
    %v6793 = vld [vmem:[#allocation17 + $0x390] sm:$0xff]
    %v6794 = vld [vmem:[#allocation17 + $0x398] sm:$0xff]
    %v6795 = vld [vmem:[#allocation17 + $0x3a0] sm:$0xff]
    %v6796 = vld [vmem:[#allocation17 + $0x3a8] sm:$0xff]
    %v6797 = vld [vmem:[#allocation17 + $0x3b0] sm:$0xff]
    %v6798 = vld [vmem:[#allocation17 + $0x3b8] sm:$0xff]
    %v6799 = vld [vmem:[#allocation17 + $0x3c0] sm:$0xff]
    %v6800 = vld [vmem:[#allocation17 + $0x3c8] sm:$0xff]
    %v6801 = vld [vmem:[#allocation17 + $0x3d0] sm:$0xff]
    %v6802 = vld [vmem:[#allocation17 + $0x3d8] sm:$0xff]
    %v6803 = vld [vmem:[#allocation17 + $0x3e0] sm:$0xff]
    %v6804 = vld [vmem:[#allocation17 + $0x3e8] sm:$0xff]
    %v6805 = vld [vmem:[#allocation17 + $0x3f0] sm:$0xff]
    %v6806 = vld [vmem:[#allocation17 + $0x3f8] sm:$0xff]
    %v6807 = vld [vmem:[%s10] sm:$0x1]
    %v6808 = vld [vmem:[#allocation4] sm:$0xff]
    %v6809 = vld [vmem:[#allocation4 + $0x8] sm:$0xff]
    %v6811 = vlaneseq
    %v6812 = vshrl.u32 %v6811, 7
    %v6813 = vsub.s32 0, %v6812
    %v6814 = vrot.slane %v6807, %v6813
    %v6818 = vcombine.high %v6808, %v6808
    %v6820 = vunpack.c.l.s4 1983009808
    %v6821 = vunpack.c.0.s8 %v6820
    %v6822 = vlaneseq
    %v6823 = vshrl.u32 %v6822, 7
    %v6824 = vsub.s32 %v6821, %v6823
    %v6825 = vrot.slane %v6808, %v6824
    %v6827 = vunpack.c.l.s4 1983009808
    %v6828 = vunpack.c.0.s8 %v6827
    %v6829 = vlaneseq
    %v6830 = vshrl.u32 %v6829, 7
    %v6831 = vsub.s32 %v6828, %v6830
    %v6832 = vrot.slane %v6818, %v6831
    %v6833 = vcombine.high %v6825, %v6825
    %v6834 = vcombine.high %v6832, %v6832
    %v6835 = vcombine.high %v6809, %v6809
    %v6837 = vunpack.c.l.s4 1983009808
    %v6838 = vunpack.c.0.s8 %v6837
    %v6839 = vlaneseq
    %v6840 = vshrl.u32 %v6839, 7
    %v6841 = vsub.s32 %v6838, %v6840
    %v6842 = vrot.slane %v6809, %v6841
    %v6844 = vunpack.c.l.s4 1983009808
    %v6845 = vunpack.c.0.s8 %v6844
    %v6846 = vlaneseq
    %v6847 = vshrl.u32 %v6846, 7
    %v6848 = vsub.s32 %v6845, %v6847
    %v6849 = vrot.slane %v6835, %v6848
    %v6850 = vcombine.high %v6842, %v6842
    %v6851 = vcombine.high %v6849, %v6849
    %6860 = vmatprep.subr.mxu0 0.0
    %6861 = vmatpush1.msra.mxu0 %v6679
    %6862 = vmatprep.subr.mxu0 0.0
    %6863 = vmatpush1.msra.mxu0 %v6680
    %6864 = vmatprep.subr.mxu0 0.0
    %6865 = vmatpush1.msra.mxu0 %v6681
    %6866 = vmatprep.subr.mxu0 0.0
    %6867 = vmatpush1.msra.mxu0 %v6682
    %6868 = vmatprep.subr.mxu0 0.0
    %6869 = vmatpush1.msra.mxu0 %v6683
    %6870 = vmatprep.subr.mxu0 0.0
    %6871 = vmatpush1.msra.mxu0 %v6684
    %6872 = vmatprep.subr.mxu0 0.0
    %6873 = vmatpush1.msra.mxu0 %v6685
    %6874 = vmatprep.subr.mxu0 0.0
    %6875 = vmatpush1.msra.mxu0 %v6686
    %6876 = vmatprep.subr.mxu0 0.0
    %6877 = vmatpush1.msra.mxu0 %v6687
    %6878 = vmatprep.subr.mxu0 0.0
    %6879 = vmatpush1.msra.mxu0 %v6688
    %6880 = vmatprep.subr.mxu0 0.0
    %6881 = vmatpush1.msra.mxu0 %v6689
    %6882 = vmatprep.subr.mxu0 0.0
    %6883 = vmatpush1.msra.mxu0 %v6690
    %6884 = vmatprep.subr.mxu0 0.0
    %6885 = vmatpush1.msra.mxu0 %v6691
    %6886 = vmatprep.subr.mxu0 0.0
    %6887 = vmatpush1.msra.mxu0 %v6692
    %6888 = vmatprep.subr.mxu0 0.0
    %6889 = vmatpush1.msra.mxu0 %v6693
    %6890 = vmatprep.subr.mxu0 0.0
    %6891 = vmatpush1.msra.mxu0 %v6694
    %6892 = vmatprep.subr.mxu0 0.0
    %6893 = vmatpush1.msra.mxu0 %v6695
    %6894 = vmatprep.subr.mxu0 0.0
    %6895 = vmatpush1.msra.mxu0 %v6696
    %6896 = vmatprep.subr.mxu0 0.0
    %6897 = vmatpush1.msra.mxu0 %v6697
    %6898 = vmatprep.subr.mxu0 0.0
    %6899 = vmatpush1.msra.mxu0 %v6698
    %6900 = vmatprep.subr.mxu0 0.0
    %6901 = vmatpush1.msra.mxu0 %v6699
    %6902 = vmatprep.subr.mxu0 0.0
    %6903 = vmatpush1.msra.mxu0 %v6700
    %6904 = vmatprep.subr.mxu0 0.0
    %6905 = vmatpush1.msra.mxu0 %v6701
    %6906 = vmatprep.subr.mxu0 0.0
    %6907 = vmatpush1.msra.mxu0 %v6702
    %6908 = vmatprep.subr.mxu0 0.0
    %6909 = vmatpush1.msra.mxu0 %v6703
    %6910 = vmatprep.subr.mxu0 0.0
    %6911 = vmatpush1.msra.mxu0 %v6704
    %6912 = vmatprep.subr.mxu0 0.0
    %6913 = vmatpush1.msra.mxu0 %v6705
    %6914 = vmatprep.subr.mxu0 0.0
    %6915 = vmatpush1.msra.mxu0 %v6706
    %6916 = vmatprep.subr.mxu0 0.0
    %6917 = vmatpush1.msra.mxu0 %v6707
    %6918 = vmatprep.subr.mxu0 0.0
    %6919 = vmatpush1.msra.mxu0 %v6708
    %6920 = vmatprep.subr.mxu0 0.0
    %6921 = vmatpush1.msra.mxu0 %v6709
    %6922 = vmatprep.subr.mxu0 0.0
    %6923 = vmatpush1.msra.mxu0 %v6710
    %6924 = vmatprep.mubr.f32.mxu0 %v6833
    %6925 = vmatmul.mubr.f32.gmra.mrb[0].mxu0 %v6825
    %v6926 = vpop.f32.mrb[0].mxu0
    %v6927 = vadd.f32 %v6814, %v6926
    %v6928 = vpop.f32.mrb[0].mxu0
    %6929 = vdwg.mxu0
    %6930 = vmatprep.subr.mxu0 0.0
    %6931 = vmatpush1.msra.mxu0 %v6711
    %6932 = vmatprep.subr.mxu0 0.0
    %6933 = vmatpush1.msra.mxu0 %v6712
    %6934 = vmatprep.subr.mxu0 0.0
    %6935 = vmatpush1.msra.mxu0 %v6713
    %6936 = vmatprep.subr.mxu0 0.0
    %6937 = vmatpush1.msra.mxu0 %v6714
    %6938 = vmatprep.subr.mxu0 0.0
    %6939 = vmatpush1.msra.mxu0 %v6715
    %6940 = vmatprep.subr.mxu0 0.0
    %6941 = vmatpush1.msra.mxu0 %v6716
    %6942 = vmatprep.subr.mxu0 0.0
    %6943 = vmatpush1.msra.mxu0 %v6717
    %6944 = vmatprep.subr.mxu0 0.0
    %6945 = vmatpush1.msra.mxu0 %v6718
    %6946 = vmatprep.subr.mxu0 0.0
    %6947 = vmatpush1.msra.mxu0 %v6719
    %6948 = vmatprep.subr.mxu0 0.0
    %6949 = vmatpush1.msra.mxu0 %v6720
    %6950 = vmatprep.subr.mxu0 0.0
    %6951 = vmatpush1.msra.mxu0 %v6721
    %6952 = vmatprep.subr.mxu0 0.0
    %6953 = vmatpush1.msra.mxu0 %v6722
    %6954 = vmatprep.subr.mxu0 0.0
    %6955 = vmatpush1.msra.mxu0 %v6723
    %6956 = vmatprep.subr.mxu0 0.0
    %6957 = vmatpush1.msra.mxu0 %v6724
    %6958 = vmatprep.subr.mxu0 0.0
    %6959 = vmatpush1.msra.mxu0 %v6725
    %6960 = vmatprep.subr.mxu0 0.0
    %6961 = vmatpush1.msra.mxu0 %v6726
    %6962 = vmatprep.subr.mxu0 0.0
    %6963 = vmatpush1.msra.mxu0 %v6727
    %6964 = vmatprep.subr.mxu0 0.0
    %6965 = vmatpush1.msra.mxu0 %v6728
    %6966 = vmatprep.subr.mxu0 0.0
    %6967 = vmatpush1.msra.mxu0 %v6729
    %6968 = vmatprep.subr.mxu0 0.0
    %6969 = vmatpush1.msra.mxu0 %v6730
    %6970 = vmatprep.subr.mxu0 0.0
    %6971 = vmatpush1.msra.mxu0 %v6731
    %6972 = vmatprep.subr.mxu0 0.0
    %6973 = vmatpush1.msra.mxu0 %v6732
    %6974 = vmatprep.subr.mxu0 0.0
    %6975 = vmatpush1.msra.mxu0 %v6733
    %6976 = vmatprep.subr.mxu0 0.0
    %6977 = vmatpush1.msra.mxu0 %v6734
    %6978 = vmatprep.subr.mxu0 0.0
    %6979 = vmatpush1.msra.mxu0 %v6735
    %6980 = vmatprep.subr.mxu0 0.0
    %6981 = vmatpush1.msra.mxu0 %v6736
    %6982 = vmatprep.subr.mxu0 0.0
    %6983 = vmatpush1.msra.mxu0 %v6737
    %6984 = vmatprep.subr.mxu0 0.0
    %6985 = vmatpush1.msra.mxu0 %v6738
    %6986 = vmatprep.subr.mxu0 0.0
    %6987 = vmatpush1.msra.mxu0 %v6739
    %6988 = vmatprep.subr.mxu0 0.0
    %6989 = vmatpush1.msra.mxu0 %v6740
    %6990 = vmatprep.subr.mxu0 0.0
    %6991 = vmatpush1.msra.mxu0 %v6741
    %6992 = vmatprep.subr.mxu0 0.0
    %6993 = vmatpush1.msra.mxu0 %v6742
    %6994 = vmatprep.mubr.f32.mxu0 %v6834
    %6995 = vmatmul.mubr.f32.gmra.mrb[0].mxu0 %v6832
    %v6996 = vpop.f32.mrb[0].mxu0
    %v6997 = vadd.f32 %v6927, %v6996
    %v6998 = vpop.f32.mrb[0].mxu0
    %6999 = vdwg.mxu0
    %7000 = vmatprep.subr.mxu0 0.0
    %7001 = vmatpush1.msra.mxu0 %v6743
    %7002 = vmatprep.subr.mxu0 0.0
    %7003 = vmatpush1.msra.mxu0 %v6744
    %7004 = vmatprep.subr.mxu0 0.0
    %7005 = vmatpush1.msra.mxu0 %v6745
    %7006 = vmatprep.subr.mxu0 0.0
    %7007 = vmatpush1.msra.mxu0 %v6746
    %7008 = vmatprep.subr.mxu0 0.0
    %7009 = vmatpush1.msra.mxu0 %v6747
    %7010 = vmatprep.subr.mxu0 0.0
    %7011 = vmatpush1.msra.mxu0 %v6748
    %7012 = vmatprep.subr.mxu0 0.0
    %7013 = vmatpush1.msra.mxu0 %v6749
    %7014 = vmatprep.subr.mxu0 0.0
    %7015 = vmatpush1.msra.mxu0 %v6750
    %7016 = vmatprep.subr.mxu0 0.0
    %7017 = vmatpush1.msra.mxu0 %v6751
    %7018 = vmatprep.subr.mxu0 0.0
    %7019 = vmatpush1.msra.mxu0 %v6752
    %7020 = vmatprep.subr.mxu0 0.0
    %7021 = vmatpush1.msra.mxu0 %v6753
    %7022 = vmatprep.subr.mxu0 0.0
    %7023 = vmatpush1.msra.mxu0 %v6754
    %7024 = vmatprep.subr.mxu0 0.0
    %7025 = vmatpush1.msra.mxu0 %v6755
    %7026 = vmatprep.subr.mxu0 0.0
    %7027 = vmatpush1.msra.mxu0 %v6756
    %7028 = vmatprep.subr.mxu0 0.0
    %7029 = vmatpush1.msra.mxu0 %v6757
    %7030 = vmatprep.subr.mxu0 0.0
    %7031 = vmatpush1.msra.mxu0 %v6758
    %7032 = vmatprep.subr.mxu0 0.0
    %7033 = vmatpush1.msra.mxu0 %v6759
    %7034 = vmatprep.subr.mxu0 0.0
    %7035 = vmatpush1.msra.mxu0 %v6760
    %7036 = vmatprep.subr.mxu0 0.0
    %7037 = vmatpush1.msra.mxu0 %v6761
    %7038 = vmatprep.subr.mxu0 0.0
    %7039 = vmatpush1.msra.mxu0 %v6762
    %7040 = vmatprep.subr.mxu0 0.0
    %7041 = vmatpush1.msra.mxu0 %v6763
    %7042 = vmatprep.subr.mxu0 0.0
    %7043 = vmatpush1.msra.mxu0 %v6764
    %7044 = vmatprep.subr.mxu0 0.0
    %7045 = vmatpush1.msra.mxu0 %v6765
    %7046 = vmatprep.subr.mxu0 0.0
    %7047 = vmatpush1.msra.mxu0 %v6766
    %7048 = vmatprep.subr.mxu0 0.0
    %7049 = vmatpush1.msra.mxu0 %v6767
    %7050 = vmatprep.subr.mxu0 0.0
    %7051 = vmatpush1.msra.mxu0 %v6768
    %7052 = vmatprep.subr.mxu0 0.0
    %7053 = vmatpush1.msra.mxu0 %v6769
    %7054 = vmatprep.subr.mxu0 0.0
    %7055 = vmatpush1.msra.mxu0 %v6770
    %7056 = vmatprep.subr.mxu0 0.0
    %7057 = vmatpush1.msra.mxu0 %v6771
    %7058 = vmatprep.subr.mxu0 0.0
    %7059 = vmatpush1.msra.mxu0 %v6772
    %7060 = vmatprep.subr.mxu0 0.0
    %7061 = vmatpush1.msra.mxu0 %v6773
    %7062 = vmatprep.subr.mxu0 0.0
    %7063 = vmatpush1.msra.mxu0 %v6774
    %7064 = vmatprep.mubr.f32.mxu0 %v6850
    %7065 = vmatmul.mubr.f32.gmra.mrb[0].mxu0 %v6842
    %v7066 = vpop.f32.mrb[0].mxu0
    %v7067 = vadd.f32 %v6997, %v7066
    %v7068 = vpop.f32.mrb[0].mxu0
    %7069 = vdwg.mxu0
    %7070 = vmatprep.subr.mxu0 0.0
    %7071 = vmatpush1.msra.mxu0 %v6775
    %7072 = vmatprep.subr.mxu0 0.0
    %7073 = vmatpush1.msra.mxu0 %v6776
    %7074 = vmatprep.subr.mxu0 0.0
    %7075 = vmatpush1.msra.mxu0 %v6777
    %7076 = vmatprep.subr.mxu0 0.0
    %7077 = vmatpush1.msra.mxu0 %v6778
    %7078 = vmatprep.subr.mxu0 0.0
    %7079 = vmatpush1.msra.mxu0 %v6779
    %7080 = vmatprep.subr.mxu0 0.0
    %7081 = vmatpush1.msra.mxu0 %v6780
    %7082 = vmatprep.subr.mxu0 0.0
    %7083 = vmatpush1.msra.mxu0 %v6781
    %7084 = vmatprep.subr.mxu0 0.0
    %7085 = vmatpush1.msra.mxu0 %v6782
    %7086 = vmatprep.subr.mxu0 0.0
    %7087 = vmatpush1.msra.mxu0 %v6783
    %7088 = vmatprep.subr.mxu0 0.0
    %7089 = vmatpush1.msra.mxu0 %v6784
    %7090 = vmatprep.subr.mxu0 0.0
    %7091 = vmatpush1.msra.mxu0 %v6785
    %7092 = vmatprep.subr.mxu0 0.0
    %7093 = vmatpush1.msra.mxu0 %v6786
    %7094 = vmatprep.subr.mxu0 0.0
    %7095 = vmatpush1.msra.mxu0 %v6787
    %7096 = vmatprep.subr.mxu0 0.0
    %7097 = vmatpush1.msra.mxu0 %v6788
    %7098 = vmatprep.subr.mxu0 0.0
    %7099 = vmatpush1.msra.mxu0 %v6789
    %7100 = vmatprep.subr.mxu0 0.0
    %7101 = vmatpush1.msra.mxu0 %v6790
    %7102 = vmatprep.subr.mxu0 0.0
    %7103 = vmatpush1.msra.mxu0 %v6791
    %7104 = vmatprep.subr.mxu0 0.0
    %7105 = vmatpush1.msra.mxu0 %v6792
    %7106 = vmatprep.subr.mxu0 0.0
    %7107 = vmatpush1.msra.mxu0 %v6793
    %7108 = vmatprep.subr.mxu0 0.0
    %7109 = vmatpush1.msra.mxu0 %v6794
    %7110 = vmatprep.subr.mxu0 0.0
    %7111 = vmatpush1.msra.mxu0 %v6795
    %7112 = vmatprep.subr.mxu0 0.0
    %7113 = vmatpush1.msra.mxu0 %v6796
    %7114 = vmatprep.subr.mxu0 0.0
    %7115 = vmatpush1.msra.mxu0 %v6797
    %7116 = vmatprep.subr.mxu0 0.0
    %7117 = vmatpush1.msra.mxu0 %v6798
    %7118 = vmatprep.subr.mxu0 0.0
    %7119 = vmatpush1.msra.mxu0 %v6799
    %7120 = vmatprep.subr.mxu0 0.0
    %7121 = vmatpush1.msra.mxu0 %v6800
    %7122 = vmatprep.subr.mxu0 0.0
    %7123 = vmatpush1.msra.mxu0 %v6801
    %7124 = vmatprep.subr.mxu0 0.0
    %7125 = vmatpush1.msra.mxu0 %v6802
    %7126 = vmatprep.subr.mxu0 0.0
    %7127 = vmatpush1.msra.mxu0 %v6803
    %7128 = vmatprep.subr.mxu0 0.0
    %7129 = vmatpush1.msra.mxu0 %v6804
    %7130 = vmatprep.subr.mxu0 0.0
    %7131 = vmatpush1.msra.mxu0 %v6805
    %7132 = vmatprep.subr.mxu0 0.0
    %7133 = vmatpush1.msra.mxu0 %v6806
    %7134 = vmatprep.mubr.f32.mxu0 %v6851
    %7135 = vmatmul.mubr.f32.gmra.mrb[0].mxu0 %v6849
    %v7136 = vpop.f32.mrb[0].mxu0
    %v7137 = vadd.f32 %v7067, %v7136
    %v7138 = vpop.f32.mrb[0].mxu0
    %7139 = vdwg.mxu0
    %7140 = vst [vmem:[#allocation19] sm:$0x3] %v7137
    // Predicated region
    $region78: #{tpu_custom_call.1} parent=1 // pred_check
      _
    $region79: #{tpu_custom_call.1} parent=1 // pred_check_branch
      %7142 = sbr.rel (0) target = $region81
    $region80: #{tpu_custom_call.1} parent=1 // pred_region
      %s7144 = ssub.s32 32, 32
      %7145 = vsyncadd [#allocation7], %s7144
      %s7147 = sshll.u32 [#allocation19], 4
      %s7148 = int_to_ptr.vmem [resolvable:$true] %s7147
      %7150 = dma.vmem_to_hbm [thread:$0]  %s7148, 32, %s11, [#allocation7]
    $region81: #{tpu_custom_call.1} parent=1 // pred_fallthru
      _
    // Predicated region
    $region82: #{tpu_custom_call.1} parent=1 // pred_check
      _
    $region83: #{tpu_custom_call.1} parent=1 // pred_check_branch
      %7152 = sbr.rel (0) target = $region85
    $region84: #{tpu_custom_call.1} parent=1 // pred_region
      %7153 = dma.done [#allocation7], 32
    $region85: #{tpu_custom_call.1} parent=1 // pred_fallthru
      _
    %7154 = vsyncpa [#allocation6], 1
    %7155 = vsyncpa [#allocation9], 1
    %7156 = vsyncpa [#allocation12], 1
    %7157 = vsyncpa [#allocation15], 1
    %7158 = vsyncpa [#allocation18], 1
    %7159 = vsyncpa [#allocation7], 1

</llo_original>
